<compile_context>
chip_gen: v7x
topology: tpu7x:2x2x1
jax: 0.10.0
libtpu: 0.0.40
codegen_flags: <defaults>
</compile_context>

<pallas_src>
import jax
import jax.numpy as jnp
from jax.experimental import pallas as pl
from jax.experimental.pallas import tpu as pltpu

EPS = 1e-5
# Above the 16/32 MiB scoped defaults (v5e/v6e), comfortably under v7x's 64 MiB physical.
_VMEM_LIMIT_BYTES = 48 * 1024 * 1024


# ---------------------------------------------------------------------------
# Packed-layout helpers (plain-JAX layout plumbing, done once per forward)
# ---------------------------------------------------------------------------
def _pick_block_batch(N, C, H, W, max_b=8, vmem_budget=24 * 2**20):
    """Largest divisor of N (<= max_b) whose per-step buffers fit the VMEM budget."""
    seg = W + 2
    for b in range(min(N, max_b), 0, -1):
        if N % b != 0:
            continue
        # double-buffered in + out blocks, prologue scratch, mask  (all f32)
        per_step = 4 * (H + 2) * b * seg * (2 * C + 2 * C + C + 1)
        if per_step <= vmem_budget:
            return b
    return 1


def _pack_padded(x, B):
    """(N, C, H, W) -> (N//B, C, H+2, B*(W+2)): zero-padded, B images packed on lanes."""
    N, C, H, W = x.shape
    T = N // B
    xp = jnp.pad(x, ((0, 0), (0, 0), (1, 1), (1, 1)))
    xp = xp.reshape(T, B, C, H + 2, W + 2)
    xp = jnp.transpose(xp, (0, 2, 3, 1, 4))
    return xp.reshape(T, C, H + 2, B * (W + 2))


def _unpack_padded(yp, N, B, H, W):
    """Inverse of _pack_padded (drops the zero borders / guard lanes)."""
    T, C, Hp2, _ = yp.shape
    y = yp.reshape(T, C, Hp2, B, W + 2)
    y = jnp.transpose(y, (0, 3, 1, 2, 4)).reshape(N, C, Hp2, W + 2)
    return y[:, :, 1:H + 1, 1:W + 1]


def _valid_mask(H, W, B):
    """(H+2, B*(W+2)) f32 mask: 1 on real pixels, 0 on padded borders / guard lanes."""
    seg = W + 2
    lane = jnp.arange(B * seg) % seg
    col_ok = (lane >= 1) & (lane <= W)
    row = jnp.arange(H + 2)
    row_ok = (row >= 1) & (row <= H)
    return (row_ok[:, None] & col_ok[None, :]).astype(jnp.float32)


# ---------------------------------------------------------------------------
# Kernel 1/2: [optional fused BN+ReLU prologue] -> 3x3 'same' conv -> BN-stats epilogue
# (operates on the lane-dense padded-packed layout; one batch tile per grid step)
# ---------------------------------------------------------------------------
def _make_conv_bn_stats_kernel(c_in, c_out, H, W, B, fuse_input_bn_relu):
    SEG = W + 2
    LP = B * SEG
    LACC = LP - 2   # widest lane range whose 3 taps (dw in 0..2) stay in bounds

    def kernel(xp_ref, w_ref, scale_ref, bias_ref, mask_ref, y_ref, stats_ref, *scratch):
        # xp_ref    : (1, c_in, H+2, LP) VMEM  padded-packed input block (B images)
        # w_ref     : (c_out, c_in*9)    SMEM  folded conv weights (col = ci*9+dh*3+dw)
        # scale/bias: (c_in,)            SMEM  previous BN affine (used iff fused prologue)
        # mask_ref  : (H+2, LP)          VMEM  1 on real pixels, 0 on borders/guards
        # y_ref     : (1, c_out, H+2, LP) VMEM padded-packed conv output
        # stats_ref : (1, 2, c_out)      VMEM  per-tile [sum ; sum-of-squares]
        # scratch   : (c_in, H+2, LP)    VMEM  only when the BN+ReLU prologue is fused

        if fuse_input_bn_relu:
            # Fused BN(prev)+ReLU on the whole lane-dense block, re-masked so the
            # conv zero-padding (borders/guards) stays exactly zero.
            xbuf_ref, = scratch
            m_full = mask_ref[...]
            for ci in range(c_in):
                xbuf_ref[ci] = m_full * jnp.maximum(
                    xp_ref[0, ci] * scale_ref[ci] + bias_ref[ci], 0.0)

            def tap(ci, dh, dw):
                return xbuf_ref[ci, dh:dh + H, dw:dw + LACC]
        else:
            # No prologue math -> tap the (already zero-padded) input block directly.
            def tap(ci, dh, dw):
                return xp_ref[0, ci, dh:dh + H, dw:dw + LACC]

        # 3x3 'same' conv as 9*c_in lane-dense shifted multiply-adds (VPU; MXU would
        # use only c_out of 128/256 output columns here, so VPU is the right unit).
        accs = [jnp.zeros((H, LACC), jnp.float32) for _ in range(c_out)]
        for ci in range(c_in):
            for dh in range(3):
                for dw in range(3):
                    sl = tap(ci, dh, dw)
                    k = ci * 9 + dh * 3 + dw
                    for co in range(c_out):
                        accs[co] = accs[co] + w_ref[co, k] * sl

        # Epilogue: zero the thin borders of the output block (fresh VMEM each step),
        # store the masked result in the same padded-packed layout (so the next
        # kernel needs no repacking), and fuse the BN statistics into one tiny output.
        mask_acc = mask_ref[1:H + 1, 1:1 + LACC]
        y_ref[...] = jnp.zeros_like(y_ref)
        sums, sqs = [], []
        for co in range(c_out):
            a = accs[co] * mask_acc            # zero the guard lanes exactly
            y_ref[0, co, 1:H + 1, 1:1 + LACC] = a
            sums.append(jnp.sum(a))
            sqs.append(jnp.sum(a * a))
        stats = jnp.stack([jnp.stack(sums), jnp.stack(sqs)])     # (2, c_out)
        stats_ref[...] = stats.reshape(1, 2, c_out)

    return kernel


def conv3x3_bn_stats(xp, w_mat, scale, bias, mask, *, H, W, B, fuse_input_bn_relu):
    T, c_in, Hp2, LP = xp.shape
    c_out = w_mat.shape[0]
    kernel = _make_conv_bn_stats_kernel(c_in, c_out, H, W, B, fuse_input_bn_relu)
    out_shape = (
        jax.ShapeDtypeStruct((T, c_out, Hp2, LP), jnp.float32),   # padded-packed conv out
        jax.ShapeDtypeStruct((T, 2, c_out), jnp.float32),         # per-tile [sum; sumsq]
    )
    scratch = ((pltpu.VMEM((c_in, Hp2, LP), jnp.float32),)
               if fuse_input_bn_relu else ())
    return pl.pallas_call(
        kernel,
        out_shape=out_shape,
        grid=(T,),
        in_specs=[
            pl.BlockSpec((1, c_in, Hp2, LP), lambda t: (t, 0, 0, 0)),
            pl.BlockSpec(memory_space=pltpu.MemorySpace.SMEM),   # weights as scalars
            pl.BlockSpec(memory_space=pltpu.MemorySpace.SMEM),   # prev BN scale
            pl.BlockSpec(memory_space=pltpu.MemorySpace.SMEM),   # prev BN bias
            pl.BlockSpec((Hp2, LP), lambda t: (0, 0)),            # mask (stays resident)
        ],
        out_specs=(
            pl.BlockSpec((1, c_out, Hp2, LP), lambda t: (t, 0, 0, 0)),
            pl.BlockSpec((1, 2, c_out), lambda t: (t, 0, 0)),
        ),
        scratch_shapes=scratch,
        compiler_params=pltpu.CompilerParams(
            dimension_semantics=("parallel",),
            vmem_limit_bytes=_VMEM_LIMIT_BYTES),
    )(xp, w_mat, scale, bias, mask)


# ---------------------------------------------------------------------------
# Kernel 3: final BN + ReLU apply (lane-dense, batch-tiled, packed in / packed out).
# Only exists because the block is terminal; a downstream block would absorb it
# into its conv prologue via fuse_input_bn_relu=True.
# ---------------------------------------------------------------------------
def _make_bn_relu_kernel(C):
    def kernel(y_ref, scale_ref, bias_ref, o_ref):
        # Padded borders get max(bias, 0); they are dropped by the host-side unpack.
        for c in range(C):
            o_ref[0, c] = jnp.maximum(y_ref[0, c] * scale_ref[c] + bias_ref[c], 0.0)
    return kernel


def bn_relu_apply(yp, scale, bias):
    T, C, Hp2, LP = yp.shape
    return pl.pallas_call(
        _make_bn_relu_kernel(C),
        out_shape=jax.ShapeDtypeStruct((T, C, Hp2, LP), jnp.float32),
        grid=(T,),
        in_specs=[
            pl.BlockSpec((1, C, Hp2, LP), lambda t: (t, 0, 0, 0)),
            pl.BlockSpec(memory_space=pltpu.MemorySpace.SMEM),
            pl.BlockSpec(memory_space=pltpu.MemorySpace.SMEM),
        ],
        out_specs=pl.BlockSpec((1, C, Hp2, LP), lambda t: (t, 0, 0, 0)),
        compiler_params=pltpu.CompilerParams(
            dimension_semantics=("parallel",),
            vmem_limit_bytes=_VMEM_LIMIT_BYTES),
    )(yp, scale, bias)


# ---------------------------------------------------------------------------
# Tiny plain-JAX glue: (sum, sumsq) -> BatchNorm (training mode) scale/bias
# ---------------------------------------------------------------------------
def _bn_affine_from_stats(stats, gamma, beta, count):
    total = jnp.sum(stats[:, 0, :], axis=0)       # (C,)
    total_sq = jnp.sum(stats[:, 1, :], axis=0)    # (C,)
    mean = total / count
    var = jnp.maximum(total_sq / count - mean * mean, 0.0)   # biased var (torch BN fwd)
    inv = jax.lax.rsqrt(var + EPS)
    scale = gamma * inv
    bias = beta - mean * scale
    return scale, bias


# ---------------------------------------------------------------------------
# ScnnBlock1 forward (NCHW in, NCHW out)
# ---------------------------------------------------------------------------
def scnn_block1_forward(x, params):
    N, c_in, H, W = x.shape
    assert H == W, "symmetry-generating conv requires a square (user x item) grid"
    c_out = params["gamma1"].shape[0]
    B = _pick_block_batch(N, max(c_in, c_out), H, W)
    count = N * H * W

    mask = _valid_mask(H, W, B)
    xp = _pack_padded(x, B)                       # lane-dense padded-packed layout
    dummy = jnp.zeros((c_in,), jnp.float32)

    # conv1 (symmetric branch folded into the weights) + BN1 stats in the epilogue.
    y1p, st1 = conv3x3_bn_stats(xp, params["w1_mat"], dummy, dummy, mask,
                                H=H, W=W, B=B, fuse_input_bn_relu=False)
    scale1, bias1 = _bn_affine_from_stats(st1, params["gamma1"], params["beta1"], count)

    # BN1+ReLU fused into conv2's prologue; conv2 + BN2 stats in the epilogue.
    y2p, st2 = conv3x3_bn_stats(y1p, params["w2_mat"], scale1, bias1, mask,
                                H=H, W=W, B=B, fuse_input_bn_relu=True)
    scale2, bias2 = _bn_affine_from_stats(st2, params["gamma2"], params["beta2"], count)

    # Final BN2 + ReLU (terminal block -> no consumer kernel to defer it into).
    outp = bn_relu_apply(y2p, scale2, bias2)
    return _unpack_padded(outp, N, B, H, W)


# ---------------------------------------------------------------------------
# Parameter init / host-side weight preparation (done once, outside the hot loop)
# ---------------------------------------------------------------------------
def init_raw_params(key, c_in, c_out):
    k1, k2 = jax.random.split(key)
    s1 = 1.0 / jnp.sqrt(c_in * 9.0)
    s2 = 1.0 / jnp.sqrt(c_out * 9.0)
    return {
        "w1": jax.random.uniform(k1, (c_out, c_in, 3, 3), jnp.float32, -s1, s1),
        "w2": jax.random.uniform(k2, (c_out, c_out, 3, 3), jnp.float32, -s2, s2),
        "gamma1": jnp.ones((c_out,), jnp.float32),
        "beta1": jnp.zeros((c_out,), jnp.float32),
        "gamma2": jnp.ones((c_out,), jnp.float32),
        "beta2": jnp.zeros((c_out,), jnp.float32),
    }


def prepare_params(raw):
    # conv1: out = conv(x, W1) + T(conv(T(x), W1)) == conv(x, W1 + W1^T_spatial)
    w1_eff = raw["w1"] + jnp.transpose(raw["w1"], (0, 1, 3, 2))
    # conv2: symmetry-preserving conv uses the spatially symmetrized kernel
    w2_eff = 0.5 * (raw["w2"] + jnp.transpose(raw["w2"], (0, 1, 3, 2)))
    return {
        "w1_mat": w1_eff.reshape(w1_eff.shape[0], -1),   # col index = ci*9 + dh*3 + dw
        "w2_mat": w2_eff.reshape(w2_eff.shape[0], -1),
        "gamma1": raw["gamma1"], "beta1": raw["beta1"],
        "gamma2": raw["gamma2"], "beta2": raw["beta2"],
    }


# ---------------------------------------------------------------------------
# Plain-JAX reference (mirrors the PyTorch module) for a correctness check
# ---------------------------------------------------------------------------
def _reference_forward(x, raw):
    def conv(v, w):
        return jax.lax.conv_general_dilated(
            v, w, window_strides=(1, 1), padding=((1, 1), (1, 1)),
            dimension_numbers=("NCHW", "OIHW", "NCHW"))

    def bn_relu(y, gamma, beta):
        mean = jnp.mean(y, axis=(0, 2, 3), keepdims=True)
        var = jnp.mean((y - mean) ** 2, axis=(0, 2, 3), keepdims=True)
        yn = (y - mean) * jax.lax.rsqrt(var + EPS)
        yn = yn * gamma.reshape(1, -1, 1, 1) + beta.reshape(1, -1, 1, 1)
        return jnp.maximum(yn, 0.0)

    xT = jnp.transpose(x, (0, 1, 3, 2))
    y1 = conv(x, raw["w1"]) + jnp.transpose(conv(xT, raw["w1"]), (0, 1, 3, 2))
    h1 = bn_relu(y1, raw["gamma1"], raw["beta1"])
    w2s = 0.5 * (raw["w2"] + jnp.transpose(raw["w2"], (0, 1, 3, 2)))
    y2 = conv(h1, w2s)
    return bn_relu(y2, raw["gamma2"], raw["beta2"])


if __name__ == "__main__":
    key = jax.random.PRNGKey(0)
    kx, kp = jax.random.split(key)

    N, C_IN, C_OUT, H, W = 2, 4, 4, 16, 16
    x = jax.random.normal(kx, (N, C_IN, H, W), jnp.float32)
    raw = init_raw_params(kp, C_IN, C_OUT)
    params = prepare_params(raw)            # weight folding done once, outside jit

    fwd = jax.jit(scnn_block1_forward)
    out = jax.block_until_ready(fwd(x, params))

    assert out.shape == (N, C_OUT, H, W)
    assert bool(jnp.all(jnp.isfinite(out)))
    assert bool(jnp.all(out >= 0.0))        # post-ReLU

    ref = _reference_forward(x, raw)
    max_err = float(jnp.max(jnp.abs(out - ref)))
    assert max_err < 1e-3, f"mismatch vs reference: {max_err}"

    print("KERNEL_OK")
</pallas_src>

<mosaic_0001>
module attributes {stable_mosaic.version = 11 : i64} {
  func.func @kernel(%arg0: i32, %arg1: memref<1x4x18x36xf32, #tpu.memory_space<vmem>>, %arg2: memref<4x36xf32, #tpu.memory_space<smem>>, %arg3: memref<4xf32, #tpu.memory_space<smem>>, %arg4: memref<4xf32, #tpu.memory_space<smem>>, %arg5: memref<18x36xf32, #tpu.memory_space<vmem>>, %arg6: memref<1x4x18x36xf32, #tpu.memory_space<vmem>>, %arg7: memref<1x2x4xf32, #tpu.memory_space<vmem>>) attributes {dimension_semantics = [#tpu.dimension_semantics<parallel>], iteration_bounds = array<i64: 1>, scalar_prefetch = 0 : i64, scratch_operands = 0 : i64, tpu.core_type = #tpu.core_type<tc>, window_params = [{transform_indices = @transform_0, window_bounds = array<i64: 1, 4, 18, 36>}, {transform_indices = @transform_1, window_bounds = array<i64: 4, 36>}, {transform_indices = @transform_2, window_bounds = array<i64: 4>}, {transform_indices = @transform_3, window_bounds = array<i64: 4>}, {pipeline_mode = #tpu.pipeline_mode<synchronous>, transform_indices = @transform_4, window_bounds = array<i64: 18, 36>}, {transform_indices = @transform_5, window_bounds = array<i64: 1, 4, 18, 36>}, {transform_indices = @transform_6, window_bounds = array<i64: 1, 2, 4>}]} {
    %cst = arith.constant 0.000000e+00 : f32
    %0 = vector.broadcast %cst : f32 to vector<16x34xf32>
    %cst_0 = arith.constant 0.000000e+00 : f32
    %1 = vector.broadcast %cst_0 : f32 to vector<16x34xf32>
    %cst_1 = arith.constant 0.000000e+00 : f32
    %2 = vector.broadcast %cst_1 : f32 to vector<16x34xf32>
    %cst_2 = arith.constant 0.000000e+00 : f32
    %3 = vector.broadcast %cst_2 : f32 to vector<16x34xf32>
    %c0 = arith.constant 0 : index
    %c0_3 = arith.constant 0 : index
    %c0_4 = arith.constant 0 : index
    %c0_5 = arith.constant 0 : index
    %4 = vector.load %arg1[%c0, %c0_3, %c0_4, %c0_5] : memref<1x4x18x36xf32, #tpu.memory_space<vmem>>, vector<1x1x16x34xf32>
    %5 = vector.shape_cast %4 : vector<1x1x16x34xf32> to vector<16x34xf32>
    %c0_6 = arith.constant 0 : index
    %c0_7 = arith.constant 0 : index
    %6 = memref.load %arg2[%c0_6, %c0_7] : memref<4x36xf32, #tpu.memory_space<smem>>
    %7 = vector.broadcast %6 : f32 to vector<16x34xf32>
    %8 = arith.mulf %7, %5 : vector<16x34xf32>
    %9 = arith.addf %0, %8 : vector<16x34xf32>
    %c1 = arith.constant 1 : index
    %c0_8 = arith.constant 0 : index
    %10 = memref.load %arg2[%c1, %c0_8] : memref<4x36xf32, #tpu.memory_space<smem>>
    %11 = vector.broadcast %10 : f32 to vector<16x34xf32>
    %12 = arith.mulf %11, %5 : vector<16x34xf32>
    %13 = arith.addf %1, %12 : vector<16x34xf32>
    %c2 = arith.constant 2 : index
    %c0_9 = arith.constant 0 : index
    %14 = memref.load %arg2[%c2, %c0_9] : memref<4x36xf32, #tpu.memory_space<smem>>
    %15 = vector.broadcast %14 : f32 to vector<16x34xf32>
    %16 = arith.mulf %15, %5 : vector<16x34xf32>
    %17 = arith.addf %2, %16 : vector<16x34xf32>
    %c3 = arith.constant 3 : index
    %c0_10 = arith.constant 0 : index
    %18 = memref.load %arg2[%c3, %c0_10] : memref<4x36xf32, #tpu.memory_space<smem>>
    %19 = vector.broadcast %18 : f32 to vector<16x34xf32>
    %20 = arith.mulf %19, %5 : vector<16x34xf32>
    %21 = arith.addf %3, %20 : vector<16x34xf32>
    %c0_11 = arith.constant 0 : index
    %c0_12 = arith.constant 0 : index
    %c0_13 = arith.constant 0 : index
    %c1_14 = arith.constant 1 : index
    %22 = vector.load %arg1[%c0_11, %c0_12, %c0_13, %c1_14] : memref<1x4x18x36xf32, #tpu.memory_space<vmem>>, vector<1x1x16x34xf32>
    %23 = vector.shape_cast %22 : vector<1x1x16x34xf32> to vector<16x34xf32>
    %c0_15 = arith.constant 0 : index
    %c1_16 = arith.constant 1 : index
    %24 = memref.load %arg2[%c0_15, %c1_16] : memref<4x36xf32, #tpu.memory_space<smem>>
    %25 = vector.broadcast %24 : f32 to vector<16x34xf32>
    %26 = arith.mulf %25, %23 : vector<16x34xf32>
    %27 = arith.addf %9, %26 : vector<16x34xf32>
    %c1_17 = arith.constant 1 : index
    %c1_18 = arith.constant 1 : index
    %28 = memref.load %arg2[%c1_17, %c1_18] : memref<4x36xf32, #tpu.memory_space<smem>>
    %29 = vector.broadcast %28 : f32 to vector<16x34xf32>
    %30 = arith.mulf %29, %23 : vector<16x34xf32>
    %31 = arith.addf %13, %30 : vector<16x34xf32>
    %c2_19 = arith.constant 2 : index
    %c1_20 = arith.constant 1 : index
    %32 = memref.load %arg2[%c2_19, %c1_20] : memref<4x36xf32, #tpu.memory_space<smem>>
    %33 = vector.broadcast %32 : f32 to vector<16x34xf32>
    %34 = arith.mulf %33, %23 : vector<16x34xf32>
    %35 = arith.addf %17, %34 : vector<16x34xf32>
    %c3_21 = arith.constant 3 : index
    %c1_22 = arith.constant 1 : index
    %36 = memref.load %arg2[%c3_21, %c1_22] : memref<4x36xf32, #tpu.memory_space<smem>>
    %37 = vector.broadcast %36 : f32 to vector<16x34xf32>
    %38 = arith.mulf %37, %23 : vector<16x34xf32>
    %39 = arith.addf %21, %38 : vector<16x34xf32>
    %c0_23 = arith.constant 0 : index
    %c0_24 = arith.constant 0 : index
    %c0_25 = arith.constant 0 : index
    %c2_26 = arith.constant 2 : index
    %40 = vector.load %arg1[%c0_23, %c0_24, %c0_25, %c2_26] : memref<1x4x18x36xf32, #tpu.memory_space<vmem>>, vector<1x1x16x34xf32>
    %41 = vector.shape_cast %40 : vector<1x1x16x34xf32> to vector<16x34xf32>
    %c0_27 = arith.constant 0 : index
    %c2_28 = arith.constant 2 : index
    %42 = memref.load %arg2[%c0_27, %c2_28] : memref<4x36xf32, #tpu.memory_space<smem>>
    %43 = vector.broadcast %42 : f32 to vector<16x34xf32>
    %44 = arith.mulf %43, %41 : vector<16x34xf32>
    %45 = arith.addf %27, %44 : vector<16x34xf32>
    %c1_29 = arith.constant 1 : index
    %c2_30 = arith.constant 2 : index
    %46 = memref.load %arg2[%c1_29, %c2_30] : memref<4x36xf32, #tpu.memory_space<smem>>
    %47 = vector.broadcast %46 : f32 to vector<16x34xf32>
    %48 = arith.mulf %47, %41 : vector<16x34xf32>
    %49 = arith.addf %31, %48 : vector<16x34xf32>
    %c2_31 = arith.constant 2 : index
    %c2_32 = arith.constant 2 : index
    %50 = memref.load %arg2[%c2_31, %c2_32] : memref<4x36xf32, #tpu.memory_space<smem>>
    %51 = vector.broadcast %50 : f32 to vector<16x34xf32>
    %52 = arith.mulf %51, %41 : vector<16x34xf32>
    %53 = arith.addf %35, %52 : vector<16x34xf32>
    %c3_33 = arith.constant 3 : index
    %c2_34 = arith.constant 2 : index
    %54 = memref.load %arg2[%c3_33, %c2_34] : memref<4x36xf32, #tpu.memory_space<smem>>
    %55 = vector.broadcast %54 : f32 to vector<16x34xf32>
    %56 = arith.mulf %55, %41 : vector<16x34xf32>
    %57 = arith.addf %39, %56 : vector<16x34xf32>
    %c0_35 = arith.constant 0 : index
    %c0_36 = arith.constant 0 : index
    %c1_37 = arith.constant 1 : index
    %c0_38 = arith.constant 0 : index
    %58 = vector.load %arg1[%c0_35, %c0_36, %c1_37, %c0_38] : memref<1x4x18x36xf32, #tpu.memory_space<vmem>>, vector<1x1x16x34xf32>
    %59 = vector.shape_cast %58 : vector<1x1x16x34xf32> to vector<16x34xf32>
    %c0_39 = arith.constant 0 : index
    %c3_40 = arith.constant 3 : index
    %60 = memref.load %arg2[%c0_39, %c3_40] : memref<4x36xf32, #tpu.memory_space<smem>>
    %61 = vector.broadcast %60 : f32 to vector<16x34xf32>
    %62 = arith.mulf %61, %59 : vector<16x34xf32>
    %63 = arith.addf %45, %62 : vector<16x34xf32>
    %c1_41 = arith.constant 1 : index
    %c3_42 = arith.constant 3 : index
    %64 = memref.load %arg2[%c1_41, %c3_42] : memref<4x36xf32, #tpu.memory_space<smem>>
    %65 = vector.broadcast %64 : f32 to vector<16x34xf32>
    %66 = arith.mulf %65, %59 : vector<16x34xf32>
    %67 = arith.addf %49, %66 : vector<16x34xf32>
    %c2_43 = arith.constant 2 : index
    %c3_44 = arith.constant 3 : index
    %68 = memref.load %arg2[%c2_43, %c3_44] : memref<4x36xf32, #tpu.memory_space<smem>>
    %69 = vector.broadcast %68 : f32 to vector<16x34xf32>
    %70 = arith.mulf %69, %59 : vector<16x34xf32>
    %71 = arith.addf %53, %70 : vector<16x34xf32>
    %c3_45 = arith.constant 3 : index
    %c3_46 = arith.constant 3 : index
    %72 = memref.load %arg2[%c3_45, %c3_46] : memref<4x36xf32, #tpu.memory_space<smem>>
    %73 = vector.broadcast %72 : f32 to vector<16x34xf32>
    %74 = arith.mulf %73, %59 : vector<16x34xf32>
    %75 = arith.addf %57, %74 : vector<16x34xf32>
    %c0_47 = arith.constant 0 : index
    %c0_48 = arith.constant 0 : index
    %c1_49 = arith.constant 1 : index
    %c1_50 = arith.constant 1 : index
    %76 = vector.load %arg1[%c0_47, %c0_48, %c1_49, %c1_50] : memref<1x4x18x36xf32, #tpu.memory_space<vmem>>, vector<1x1x16x34xf32>
    %77 = vector.shape_cast %76 : vector<1x1x16x34xf32> to vector<16x34xf32>
    %c0_51 = arith.constant 0 : index
    %c4 = arith.constant 4 : index
    %78 = memref.load %arg2[%c0_51, %c4] : memref<4x36xf32, #tpu.memory_space<smem>>
    %79 = vector.broadcast %78 : f32 to vector<16x34xf32>
    %80 = arith.mulf %79, %77 : vector<16x34xf32>
    %81 = arith.addf %63, %80 : vector<16x34xf32>
    %c1_52 = arith.constant 1 : index
    %c4_53 = arith.constant 4 : index
    %82 = memref.load %arg2[%c1_52, %c4_53] : memref<4x36xf32, #tpu.memory_space<smem>>
    %83 = vector.broadcast %82 : f32 to vector<16x34xf32>
    %84 = arith.mulf %83, %77 : vector<16x34xf32>
    %85 = arith.addf %67, %84 : vector<16x34xf32>
    %c2_54 = arith.constant 2 : index
    %c4_55 = arith.constant 4 : index
    %86 = memref.load %arg2[%c2_54, %c4_55] : memref<4x36xf32, #tpu.memory_space<smem>>
    %87 = vector.broadcast %86 : f32 to vector<16x34xf32>
    %88 = arith.mulf %87, %77 : vector<16x34xf32>
    %89 = arith.addf %71, %88 : vector<16x34xf32>
    %c3_56 = arith.constant 3 : index
    %c4_57 = arith.constant 4 : index
    %90 = memref.load %arg2[%c3_56, %c4_57] : memref<4x36xf32, #tpu.memory_space<smem>>
    %91 = vector.broadcast %90 : f32 to vector<16x34xf32>
    %92 = arith.mulf %91, %77 : vector<16x34xf32>
    %93 = arith.addf %75, %92 : vector<16x34xf32>
    %c0_58 = arith.constant 0 : index
    %c0_59 = arith.constant 0 : index
    %c1_60 = arith.constant 1 : index
    %c2_61 = arith.constant 2 : index
    %94 = vector.load %arg1[%c0_58, %c0_59, %c1_60, %c2_61] : memref<1x4x18x36xf32, #tpu.memory_space<vmem>>, vector<1x1x16x34xf32>
    %95 = vector.shape_cast %94 : vector<1x1x16x34xf32> to vector<16x34xf32>
    %c0_62 = arith.constant 0 : index
    %c5 = arith.constant 5 : index
    %96 = memref.load %arg2[%c0_62, %c5] : memref<4x36xf32, #tpu.memory_space<smem>>
    %97 = vector.broadcast %96 : f32 to vector<16x34xf32>
    %98 = arith.mulf %97, %95 : vector<16x34xf32>
    %99 = arith.addf %81, %98 : vector<16x34xf32>
    %c1_63 = arith.constant 1 : index
    %c5_64 = arith.constant 5 : index
    %100 = memref.load %arg2[%c1_63, %c5_64] : memref<4x36xf32, #tpu.memory_space<smem>>
    %101 = vector.broadcast %100 : f32 to vector<16x34xf32>
    %102 = arith.mulf %101, %95 : vector<16x34xf32>
    %103 = arith.addf %85, %102 : vector<16x34xf32>
    %c2_65 = arith.constant 2 : index
    %c5_66 = arith.constant 5 : index
    %104 = memref.load %arg2[%c2_65, %c5_66] : memref<4x36xf32, #tpu.memory_space<smem>>
    %105 = vector.broadcast %104 : f32 to vector<16x34xf32>
    %106 = arith.mulf %105, %95 : vector<16x34xf32>
    %107 = arith.addf %89, %106 : vector<16x34xf32>
    %c3_67 = arith.constant 3 : index
    %c5_68 = arith.constant 5 : index
    %108 = memref.load %arg2[%c3_67, %c5_68] : memref<4x36xf32, #tpu.memory_space<smem>>
    %109 = vector.broadcast %108 : f32 to vector<16x34xf32>
    %110 = arith.mulf %109, %95 : vector<16x34xf32>
    %111 = arith.addf %93, %110 : vector<16x34xf32>
    %c0_69 = arith.constant 0 : index
    %c0_70 = arith.constant 0 : index
    %c2_71 = arith.constant 2 : index
    %c0_72 = arith.constant 0 : index
    %112 = vector.load %arg1[%c0_69, %c0_70, %c2_71, %c0_72] : memref<1x4x18x36xf32, #tpu.memory_space<vmem>>, vector<1x1x16x34xf32>
    %113 = vector.shape_cast %112 : vector<1x1x16x34xf32> to vector<16x34xf32>
    %c0_73 = arith.constant 0 : index
    %c6 = arith.constant 6 : index
    %114 = memref.load %arg2[%c0_73, %c6] : memref<4x36xf32, #tpu.memory_space<smem>>
    %115 = vector.broadcast %114 : f32 to vector<16x34xf32>
    %116 = arith.mulf %115, %113 : vector<16x34xf32>
    %117 = arith.addf %99, %116 : vector<16x34xf32>
    %c1_74 = arith.constant 1 : index
    %c6_75 = arith.constant 6 : index
    %118 = memref.load %arg2[%c1_74, %c6_75] : memref<4x36xf32, #tpu.memory_space<smem>>
    %119 = vector.broadcast %118 : f32 to vector<16x34xf32>
    %120 = arith.mulf %119, %113 : vector<16x34xf32>
    %121 = arith.addf %103, %120 : vector<16x34xf32>
    %c2_76 = arith.constant 2 : index
    %c6_77 = arith.constant 6 : index
    %122 = memref.load %arg2[%c2_76, %c6_77] : memref<4x36xf32, #tpu.memory_space<smem>>
    %123 = vector.broadcast %122 : f32 to vector<16x34xf32>
    %124 = arith.mulf %123, %113 : vector<16x34xf32>
    %125 = arith.addf %107, %124 : vector<16x34xf32>
    %c3_78 = arith.constant 3 : index
    %c6_79 = arith.constant 6 : index
    %126 = memref.load %arg2[%c3_78, %c6_79] : memref<4x36xf32, #tpu.memory_space<smem>>
    %127 = vector.broadcast %126 : f32 to vector<16x34xf32>
    %128 = arith.mulf %127, %113 : vector<16x34xf32>
    %129 = arith.addf %111, %128 : vector<16x34xf32>
    %c0_80 = arith.constant 0 : index
    %c0_81 = arith.constant 0 : index
    %c2_82 = arith.constant 2 : index
    %c1_83 = arith.constant 1 : index
    %130 = vector.load %arg1[%c0_80, %c0_81, %c2_82, %c1_83] : memref<1x4x18x36xf32, #tpu.memory_space<vmem>>, vector<1x1x16x34xf32>
    %131 = vector.shape_cast %130 : vector<1x1x16x34xf32> to vector<16x34xf32>
    %c0_84 = arith.constant 0 : index
    %c7 = arith.constant 7 : index
    %132 = memref.load %arg2[%c0_84, %c7] : memref<4x36xf32, #tpu.memory_space<smem>>
    %133 = vector.broadcast %132 : f32 to vector<16x34xf32>
    %134 = arith.mulf %133, %131 : vector<16x34xf32>
    %135 = arith.addf %117, %134 : vector<16x34xf32>
    %c1_85 = arith.constant 1 : index
    %c7_86 = arith.constant 7 : index
    %136 = memref.load %arg2[%c1_85, %c7_86] : memref<4x36xf32, #tpu.memory_space<smem>>
    %137 = vector.broadcast %136 : f32 to vector<16x34xf32>
    %138 = arith.mulf %137, %131 : vector<16x34xf32>
    %139 = arith.addf %121, %138 : vector<16x34xf32>
    %c2_87 = arith.constant 2 : index
    %c7_88 = arith.constant 7 : index
    %140 = memref.load %arg2[%c2_87, %c7_88] : memref<4x36xf32, #tpu.memory_space<smem>>
    %141 = vector.broadcast %140 : f32 to vector<16x34xf32>
    %142 = arith.mulf %141, %131 : vector<16x34xf32>
    %143 = arith.addf %125, %142 : vector<16x34xf32>
    %c3_89 = arith.constant 3 : index
    %c7_90 = arith.constant 7 : index
    %144 = memref.load %arg2[%c3_89, %c7_90] : memref<4x36xf32, #tpu.memory_space<smem>>
    %145 = vector.broadcast %144 : f32 to vector<16x34xf32>
    %146 = arith.mulf %145, %131 : vector<16x34xf32>
    %147 = arith.addf %129, %146 : vector<16x34xf32>
    %c0_91 = arith.constant 0 : index
    %c0_92 = arith.constant 0 : index
    %c2_93 = arith.constant 2 : index
    %c2_94 = arith.constant 2 : index
    %148 = vector.load %arg1[%c0_91, %c0_92, %c2_93, %c2_94] : memref<1x4x18x36xf32, #tpu.memory_space<vmem>>, vector<1x1x16x34xf32>
    %149 = vector.shape_cast %148 : vector<1x1x16x34xf32> to vector<16x34xf32>
    %c0_95 = arith.constant 0 : index
    %c8 = arith.constant 8 : index
    %150 = memref.load %arg2[%c0_95, %c8] : memref<4x36xf32, #tpu.memory_space<smem>>
    %151 = vector.broadcast %150 : f32 to vector<16x34xf32>
    %152 = arith.mulf %151, %149 : vector<16x34xf32>
    %153 = arith.addf %135, %152 : vector<16x34xf32>
    %c1_96 = arith.constant 1 : index
    %c8_97 = arith.constant 8 : index
    %154 = memref.load %arg2[%c1_96, %c8_97] : memref<4x36xf32, #tpu.memory_space<smem>>
    %155 = vector.broadcast %154 : f32 to vector<16x34xf32>
    %156 = arith.mulf %155, %149 : vector<16x34xf32>
    %157 = arith.addf %139, %156 : vector<16x34xf32>
    %c2_98 = arith.constant 2 : index
    %c8_99 = arith.constant 8 : index
    %158 = memref.load %arg2[%c2_98, %c8_99] : memref<4x36xf32, #tpu.memory_space<smem>>
    %159 = vector.broadcast %158 : f32 to vector<16x34xf32>
    %160 = arith.mulf %159, %149 : vector<16x34xf32>
    %161 = arith.addf %143, %160 : vector<16x34xf32>
    %c3_100 = arith.constant 3 : index
    %c8_101 = arith.constant 8 : index
    %162 = memref.load %arg2[%c3_100, %c8_101] : memref<4x36xf32, #tpu.memory_space<smem>>
    %163 = vector.broadcast %162 : f32 to vector<16x34xf32>
    %164 = arith.mulf %163, %149 : vector<16x34xf32>
    %165 = arith.addf %147, %164 : vector<16x34xf32>
    %c0_102 = arith.constant 0 : index
    %c1_103 = arith.constant 1 : index
    %c0_104 = arith.constant 0 : index
    %c0_105 = arith.constant 0 : index
    %166 = vector.load %arg1[%c0_102, %c1_103, %c0_104, %c0_105] : memref<1x4x18x36xf32, #tpu.memory_space<vmem>>, vector<1x1x16x34xf32>
    %167 = vector.shape_cast %166 : vector<1x1x16x34xf32> to vector<16x34xf32>
    %c0_106 = arith.constant 0 : index
    %c9 = arith.constant 9 : index
    %168 = memref.load %arg2[%c0_106, %c9] : memref<4x36xf32, #tpu.memory_space<smem>>
    %169 = vector.broadcast %168 : f32 to vector<16x34xf32>
    %170 = arith.mulf %169, %167 : vector<16x34xf32>
    %171 = arith.addf %153, %170 : vector<16x34xf32>
    %c1_107 = arith.constant 1 : index
    %c9_108 = arith.constant 9 : index
    %172 = memref.load %arg2[%c1_107, %c9_108] : memref<4x36xf32, #tpu.memory_space<smem>>
    %173 = vector.broadcast %172 : f32 to vector<16x34xf32>
    %174 = arith.mulf %173, %167 : vector<16x34xf32>
    %175 = arith.addf %157, %174 : vector<16x34xf32>
    %c2_109 = arith.constant 2 : index
    %c9_110 = arith.constant 9 : index
    %176 = memref.load %arg2[%c2_109, %c9_110] : memref<4x36xf32, #tpu.memory_space<smem>>
    %177 = vector.broadcast %176 : f32 to vector<16x34xf32>
    %178 = arith.mulf %177, %167 : vector<16x34xf32>
    %179 = arith.addf %161, %178 : vector<16x34xf32>
    %c3_111 = arith.constant 3 : index
    %c9_112 = arith.constant 9 : index
    %180 = memref.load %arg2[%c3_111, %c9_112] : memref<4x36xf32, #tpu.memory_space<smem>>
    %181 = vector.broadcast %180 : f32 to vector<16x34xf32>
    %182 = arith.mulf %181, %167 : vector<16x34xf32>
    %183 = arith.addf %165, %182 : vector<16x34xf32>
    %c0_113 = arith.constant 0 : index
    %c1_114 = arith.constant 1 : index
    %c0_115 = arith.constant 0 : index
    %c1_116 = arith.constant 1 : index
    %184 = vector.load %arg1[%c0_113, %c1_114, %c0_115, %c1_116] : memref<1x4x18x36xf32, #tpu.memory_space<vmem>>, vector<1x1x16x34xf32>
    %185 = vector.shape_cast %184 : vector<1x1x16x34xf32> to vector<16x34xf32>
    %c0_117 = arith.constant 0 : index
    %c10 = arith.constant 10 : index
    %186 = memref.load %arg2[%c0_117, %c10] : memref<4x36xf32, #tpu.memory_space<smem>>
    %187 = vector.broadcast %186 : f32 to vector<16x34xf32>
    %188 = arith.mulf %187, %185 : vector<16x34xf32>
    %189 = arith.addf %171, %188 : vector<16x34xf32>
    %c1_118 = arith.constant 1 : index
    %c10_119 = arith.constant 10 : index
    %190 = memref.load %arg2[%c1_118, %c10_119] : memref<4x36xf32, #tpu.memory_space<smem>>
    %191 = vector.broadcast %190 : f32 to vector<16x34xf32>
    %192 = arith.mulf %191, %185 : vector<16x34xf32>
    %193 = arith.addf %175, %192 : vector<16x34xf32>
    %c2_120 = arith.constant 2 : index
    %c10_121 = arith.constant 10 : index
    %194 = memref.load %arg2[%c2_120, %c10_121] : memref<4x36xf32, #tpu.memory_space<smem>>
    %195 = vector.broadcast %194 : f32 to vector<16x34xf32>
    %196 = arith.mulf %195, %185 : vector<16x34xf32>
    %197 = arith.addf %179, %196 : vector<16x34xf32>
    %c3_122 = arith.constant 3 : index
    %c10_123 = arith.constant 10 : index
    %198 = memref.load %arg2[%c3_122, %c10_123] : memref<4x36xf32, #tpu.memory_space<smem>>
    %199 = vector.broadcast %198 : f32 to vector<16x34xf32>
    %200 = arith.mulf %199, %185 : vector<16x34xf32>
    %201 = arith.addf %183, %200 : vector<16x34xf32>
    %c0_124 = arith.constant 0 : index
    %c1_125 = arith.constant 1 : index
    %c0_126 = arith.constant 0 : index
    %c2_127 = arith.constant 2 : index
    %202 = vector.load %arg1[%c0_124, %c1_125, %c0_126, %c2_127] : memref<1x4x18x36xf32, #tpu.memory_space<vmem>>, vector<1x1x16x34xf32>
    %203 = vector.shape_cast %202 : vector<1x1x16x34xf32> to vector<16x34xf32>
    %c0_128 = arith.constant 0 : index
    %c11 = arith.constant 11 : index
    %204 = memref.load %arg2[%c0_128, %c11] : memref<4x36xf32, #tpu.memory_space<smem>>
    %205 = vector.broadcast %204 : f32 to vector<16x34xf32>
    %206 = arith.mulf %205, %203 : vector<16x34xf32>
    %207 = arith.addf %189, %206 : vector<16x34xf32>
    %c1_129 = arith.constant 1 : index
    %c11_130 = arith.constant 11 : index
    %208 = memref.load %arg2[%c1_129, %c11_130] : memref<4x36xf32, #tpu.memory_space<smem>>
    %209 = vector.broadcast %208 : f32 to vector<16x34xf32>
    %210 = arith.mulf %209, %203 : vector<16x34xf32>
    %211 = arith.addf %193, %210 : vector<16x34xf32>
    %c2_131 = arith.constant 2 : index
    %c11_132 = arith.constant 11 : index
    %212 = memref.load %arg2[%c2_131, %c11_132] : memref<4x36xf32, #tpu.memory_space<smem>>
    %213 = vector.broadcast %212 : f32 to vector<16x34xf32>
    %214 = arith.mulf %213, %203 : vector<16x34xf32>
    %215 = arith.addf %197, %214 : vector<16x34xf32>
    %c3_133 = arith.constant 3 : index
    %c11_134 = arith.constant 11 : index
    %216 = memref.load %arg2[%c3_133, %c11_134] : memref<4x36xf32, #tpu.memory_space<smem>>
    %217 = vector.broadcast %216 : f32 to vector<16x34xf32>
    %218 = arith.mulf %217, %203 : vector<16x34xf32>
    %219 = arith.addf %201, %218 : vector<16x34xf32>
    %c0_135 = arith.constant 0 : index
    %c1_136 = arith.constant 1 : index
    %c1_137 = arith.constant 1 : index
    %c0_138 = arith.constant 0 : index
    %220 = vector.load %arg1[%c0_135, %c1_136, %c1_137, %c0_138] : memref<1x4x18x36xf32, #tpu.memory_space<vmem>>, vector<1x1x16x34xf32>
    %221 = vector.shape_cast %220 : vector<1x1x16x34xf32> to vector<16x34xf32>
    %c0_139 = arith.constant 0 : index
    %c12 = arith.constant 12 : index
    %222 = memref.load %arg2[%c0_139, %c12] : memref<4x36xf32, #tpu.memory_space<smem>>
    %223 = vector.broadcast %222 : f32 to vector<16x34xf32>
    %224 = arith.mulf %223, %221 : vector<16x34xf32>
    %225 = arith.addf %207, %224 : vector<16x34xf32>
    %c1_140 = arith.constant 1 : index
    %c12_141 = arith.constant 12 : index
    %226 = memref.load %arg2[%c1_140, %c12_141] : memref<4x36xf32, #tpu.memory_space<smem>>
    %227 = vector.broadcast %226 : f32 to vector<16x34xf32>
    %228 = arith.mulf %227, %221 : vector<16x34xf32>
    %229 = arith.addf %211, %228 : vector<16x34xf32>
    %c2_142 = arith.constant 2 : index
    %c12_143 = arith.constant 12 : index
    %230 = memref.load %arg2[%c2_142, %c12_143] : memref<4x36xf32, #tpu.memory_space<smem>>
    %231 = vector.broadcast %230 : f32 to vector<16x34xf32>
    %232 = arith.mulf %231, %221 : vector<16x34xf32>
    %233 = arith.addf %215, %232 : vector<16x34xf32>
    %c3_144 = arith.constant 3 : index
    %c12_145 = arith.constant 12 : index
    %234 = memref.load %arg2[%c3_144, %c12_145] : memref<4x36xf32, #tpu.memory_space<smem>>
    %235 = vector.broadcast %234 : f32 to vector<16x34xf32>
    %236 = arith.mulf %235, %221 : vector<16x34xf32>
    %237 = arith.addf %219, %236 : vector<16x34xf32>
    %c0_146 = arith.constant 0 : index
    %c1_147 = arith.constant 1 : index
    %c1_148 = arith.constant 1 : index
    %c1_149 = arith.constant 1 : index
    %238 = vector.load %arg1[%c0_146, %c1_147, %c1_148, %c1_149] : memref<1x4x18x36xf32, #tpu.memory_space<vmem>>, vector<1x1x16x34xf32>
    %239 = vector.shape_cast %238 : vector<1x1x16x34xf32> to vector<16x34xf32>
    %c0_150 = arith.constant 0 : index
    %c13 = arith.constant 13 : index
    %240 = memref.load %arg2[%c0_150, %c13] : memref<4x36xf32, #tpu.memory_space<smem>>
    %241 = vector.broadcast %240 : f32 to vector<16x34xf32>
    %242 = arith.mulf %241, %239 : vector<16x34xf32>
    %243 = arith.addf %225, %242 : vector<16x34xf32>
    %c1_151 = arith.constant 1 : index
    %c13_152 = arith.constant 13 : index
    %244 = memref.load %arg2[%c1_151, %c13_152] : memref<4x36xf32, #tpu.memory_space<smem>>
    %245 = vector.broadcast %244 : f32 to vector<16x34xf32>
    %246 = arith.mulf %245, %239 : vector<16x34xf32>
    %247 = arith.addf %229, %246 : vector<16x34xf32>
    %c2_153 = arith.constant 2 : index
    %c13_154 = arith.constant 13 : index
    %248 = memref.load %arg2[%c2_153, %c13_154] : memref<4x36xf32, #tpu.memory_space<smem>>
    %249 = vector.broadcast %248 : f32 to vector<16x34xf32>
    %250 = arith.mulf %249, %239 : vector<16x34xf32>
    %251 = arith.addf %233, %250 : vector<16x34xf32>
    %c3_155 = arith.constant 3 : index
    %c13_156 = arith.constant 13 : index
    %252 = memref.load %arg2[%c3_155, %c13_156] : memref<4x36xf32, #tpu.memory_space<smem>>
    %253 = vector.broadcast %252 : f32 to vector<16x34xf32>
    %254 = arith.mulf %253, %239 : vector<16x34xf32>
    %255 = arith.addf %237, %254 : vector<16x34xf32>
    %c0_157 = arith.constant 0 : index
    %c1_158 = arith.constant 1 : index
    %c1_159 = arith.constant 1 : index
    %c2_160 = arith.constant 2 : index
    %256 = vector.load %arg1[%c0_157, %c1_158, %c1_159, %c2_160] : memref<1x4x18x36xf32, #tpu.memory_space<vmem>>, vector<1x1x16x34xf32>
    %257 = vector.shape_cast %256 : vector<1x1x16x34xf32> to vector<16x34xf32>
    %c0_161 = arith.constant 0 : index
    %c14 = arith.constant 14 : index
    %258 = memref.load %arg2[%c0_161, %c14] : memref<4x36xf32, #tpu.memory_space<smem>>
    %259 = vector.broadcast %258 : f32 to vector<16x34xf32>
    %260 = arith.mulf %259, %257 : vector<16x34xf32>
    %261 = arith.addf %243, %260 : vector<16x34xf32>
    %c1_162 = arith.constant 1 : index
    %c14_163 = arith.constant 14 : index
    %262 = memref.load %arg2[%c1_162, %c14_163] : memref<4x36xf32, #tpu.memory_space<smem>>
    %263 = vector.broadcast %262 : f32 to vector<16x34xf32>
    %264 = arith.mulf %263, %257 : vector<16x34xf32>
    %265 = arith.addf %247, %264 : vector<16x34xf32>
    %c2_164 = arith.constant 2 : index
    %c14_165 = arith.constant 14 : index
    %266 = memref.load %arg2[%c2_164, %c14_165] : memref<4x36xf32, #tpu.memory_space<smem>>
    %267 = vector.broadcast %266 : f32 to vector<16x34xf32>
    %268 = arith.mulf %267, %257 : vector<16x34xf32>
    %269 = arith.addf %251, %268 : vector<16x34xf32>
    %c3_166 = arith.constant 3 : index
    %c14_167 = arith.constant 14 : index
    %270 = memref.load %arg2[%c3_166, %c14_167] : memref<4x36xf32, #tpu.memory_space<smem>>
    %271 = vector.broadcast %270 : f32 to vector<16x34xf32>
    %272 = arith.mulf %271, %257 : vector<16x34xf32>
    %273 = arith.addf %255, %272 : vector<16x34xf32>
    %c0_168 = arith.constant 0 : index
    %c1_169 = arith.constant 1 : index
    %c2_170 = arith.constant 2 : index
    %c0_171 = arith.constant 0 : index
    %274 = vector.load %arg1[%c0_168, %c1_169, %c2_170, %c0_171] : memref<1x4x18x36xf32, #tpu.memory_space<vmem>>, vector<1x1x16x34xf32>
    %275 = vector.shape_cast %274 : vector<1x1x16x34xf32> to vector<16x34xf32>
    %c0_172 = arith.constant 0 : index
    %c15 = arith.constant 15 : index
    %276 = memref.load %arg2[%c0_172, %c15] : memref<4x36xf32, #tpu.memory_space<smem>>
    %277 = vector.broadcast %276 : f32 to vector<16x34xf32>
    %278 = arith.mulf %277, %275 : vector<16x34xf32>
    %279 = arith.addf %261, %278 : vector<16x34xf32>
    %c1_173 = arith.constant 1 : index
    %c15_174 = arith.constant 15 : index
    %280 = memref.load %arg2[%c1_173, %c15_174] : memref<4x36xf32, #tpu.memory_space<smem>>
    %281 = vector.broadcast %280 : f32 to vector<16x34xf32>
    %282 = arith.mulf %281, %275 : vector<16x34xf32>
    %283 = arith.addf %265, %282 : vector<16x34xf32>
    %c2_175 = arith.constant 2 : index
    %c15_176 = arith.constant 15 : index
    %284 = memref.load %arg2[%c2_175, %c15_176] : memref<4x36xf32, #tpu.memory_space<smem>>
    %285 = vector.broadcast %284 : f32 to vector<16x34xf32>
    %286 = arith.mulf %285, %275 : vector<16x34xf32>
    %287 = arith.addf %269, %286 : vector<16x34xf32>
    %c3_177 = arith.constant 3 : index
    %c15_178 = arith.constant 15 : index
    %288 = memref.load %arg2[%c3_177, %c15_178] : memref<4x36xf32, #tpu.memory_space<smem>>
    %289 = vector.broadcast %288 : f32 to vector<16x34xf32>
    %290 = arith.mulf %289, %275 : vector<16x34xf32>
    %291 = arith.addf %273, %290 : vector<16x34xf32>
    %c0_179 = arith.constant 0 : index
    %c1_180 = arith.constant 1 : index
    %c2_181 = arith.constant 2 : index
    %c1_182 = arith.constant 1 : index
    %292 = vector.load %arg1[%c0_179, %c1_180, %c2_181, %c1_182] : memref<1x4x18x36xf32, #tpu.memory_space<vmem>>, vector<1x1x16x34xf32>
    %293 = vector.shape_cast %292 : vector<1x1x16x34xf32> to vector<16x34xf32>
    %c0_183 = arith.constant 0 : index
    %c16 = arith.constant 16 : index
    %294 = memref.load %arg2[%c0_183, %c16] : memref<4x36xf32, #tpu.memory_space<smem>>
    %295 = vector.broadcast %294 : f32 to vector<16x34xf32>
    %296 = arith.mulf %295, %293 : vector<16x34xf32>
    %297 = arith.addf %279, %296 : vector<16x34xf32>
    %c1_184 = arith.constant 1 : index
    %c16_185 = arith.constant 16 : index
    %298 = memref.load %arg2[%c1_184, %c16_185] : memref<4x36xf32, #tpu.memory_space<smem>>
    %299 = vector.broadcast %298 : f32 to vector<16x34xf32>
    %300 = arith.mulf %299, %293 : vector<16x34xf32>
    %301 = arith.addf %283, %300 : vector<16x34xf32>
    %c2_186 = arith.constant 2 : index
    %c16_187 = arith.constant 16 : index
    %302 = memref.load %arg2[%c2_186, %c16_187] : memref<4x36xf32, #tpu.memory_space<smem>>
    %303 = vector.broadcast %302 : f32 to vector<16x34xf32>
    %304 = arith.mulf %303, %293 : vector<16x34xf32>
    %305 = arith.addf %287, %304 : vector<16x34xf32>
    %c3_188 = arith.constant 3 : index
    %c16_189 = arith.constant 16 : index
    %306 = memref.load %arg2[%c3_188, %c16_189] : memref<4x36xf32, #tpu.memory_space<smem>>
    %307 = vector.broadcast %306 : f32 to vector<16x34xf32>
    %308 = arith.mulf %307, %293 : vector<16x34xf32>
    %309 = arith.addf %291, %308 : vector<16x34xf32>
    %c0_190 = arith.constant 0 : index
    %c1_191 = arith.constant 1 : index
    %c2_192 = arith.constant 2 : index
    %c2_193 = arith.constant 2 : index
    %310 = vector.load %arg1[%c0_190, %c1_191, %c2_192, %c2_193] : memref<1x4x18x36xf32, #tpu.memory_space<vmem>>, vector<1x1x16x34xf32>
    %311 = vector.shape_cast %310 : vector<1x1x16x34xf32> to vector<16x34xf32>
    %c0_194 = arith.constant 0 : index
    %c17 = arith.constant 17 : index
    %312 = memref.load %arg2[%c0_194, %c17] : memref<4x36xf32, #tpu.memory_space<smem>>
    %313 = vector.broadcast %312 : f32 to vector<16x34xf32>
    %314 = arith.mulf %313, %311 : vector<16x34xf32>
    %315 = arith.addf %297, %314 : vector<16x34xf32>
    %c1_195 = arith.constant 1 : index
    %c17_196 = arith.constant 17 : index
    %316 = memref.load %arg2[%c1_195, %c17_196] : memref<4x36xf32, #tpu.memory_space<smem>>
    %317 = vector.broadcast %316 : f32 to vector<16x34xf32>
    %318 = arith.mulf %317, %311 : vector<16x34xf32>
    %319 = arith.addf %301, %318 : vector<16x34xf32>
    %c2_197 = arith.constant 2 : index
    %c17_198 = arith.constant 17 : index
    %320 = memref.load %arg2[%c2_197, %c17_198] : memref<4x36xf32, #tpu.memory_space<smem>>
    %321 = vector.broadcast %320 : f32 to vector<16x34xf32>
    %322 = arith.mulf %321, %311 : vector<16x34xf32>
    %323 = arith.addf %305, %322 : vector<16x34xf32>
    %c3_199 = arith.constant 3 : index
    %c17_200 = arith.constant 17 : index
    %324 = memref.load %arg2[%c3_199, %c17_200] : memref<4x36xf32, #tpu.memory_space<smem>>
    %325 = vector.broadcast %324 : f32 to vector<16x34xf32>
    %326 = arith.mulf %325, %311 : vector<16x34xf32>
    %327 = arith.addf %309, %326 : vector<16x34xf32>
    %c0_201 = arith.constant 0 : index
    %c2_202 = arith.constant 2 : index
    %c0_203 = arith.constant 0 : index
    %c0_204 = arith.constant 0 : index
    %328 = vector.load %arg1[%c0_201, %c2_202, %c0_203, %c0_204] : memref<1x4x18x36xf32, #tpu.memory_space<vmem>>, vector<1x1x16x34xf32>
    %329 = vector.shape_cast %328 : vector<1x1x16x34xf32> to vector<16x34xf32>
    %c0_205 = arith.constant 0 : index
    %c18 = arith.constant 18 : index
    %330 = memref.load %arg2[%c0_205, %c18] : memref<4x36xf32, #tpu.memory_space<smem>>
    %331 = vector.broadcast %330 : f32 to vector<16x34xf32>
    %332 = arith.mulf %331, %329 : vector<16x34xf32>
    %333 = arith.addf %315, %332 : vector<16x34xf32>
    %c1_206 = arith.constant 1 : index
    %c18_207 = arith.constant 18 : index
    %334 = memref.load %arg2[%c1_206, %c18_207] : memref<4x36xf32, #tpu.memory_space<smem>>
    %335 = vector.broadcast %334 : f32 to vector<16x34xf32>
    %336 = arith.mulf %335, %329 : vector<16x34xf32>
    %337 = arith.addf %319, %336 : vector<16x34xf32>
    %c2_208 = arith.constant 2 : index
    %c18_209 = arith.constant 18 : index
    %338 = memref.load %arg2[%c2_208, %c18_209] : memref<4x36xf32, #tpu.memory_space<smem>>
    %339 = vector.broadcast %338 : f32 to vector<16x34xf32>
    %340 = arith.mulf %339, %329 : vector<16x34xf32>
    %341 = arith.addf %323, %340 : vector<16x34xf32>
    %c3_210 = arith.constant 3 : index
    %c18_211 = arith.constant 18 : index
    %342 = memref.load %arg2[%c3_210, %c18_211] : memref<4x36xf32, #tpu.memory_space<smem>>
    %343 = vector.broadcast %342 : f32 to vector<16x34xf32>
    %344 = arith.mulf %343, %329 : vector<16x34xf32>
    %345 = arith.addf %327, %344 : vector<16x34xf32>
    %c0_212 = arith.constant 0 : index
    %c2_213 = arith.constant 2 : index
    %c0_214 = arith.constant 0 : index
    %c1_215 = arith.constant 1 : index
    %346 = vector.load %arg1[%c0_212, %c2_213, %c0_214, %c1_215] : memref<1x4x18x36xf32, #tpu.memory_space<vmem>>, vector<1x1x16x34xf32>
    %347 = vector.shape_cast %346 : vector<1x1x16x34xf32> to vector<16x34xf32>
    %c0_216 = arith.constant 0 : index
    %c19 = arith.constant 19 : index
    %348 = memref.load %arg2[%c0_216, %c19] : memref<4x36xf32, #tpu.memory_space<smem>>
    %349 = vector.broadcast %348 : f32 to vector<16x34xf32>
    %350 = arith.mulf %349, %347 : vector<16x34xf32>
    %351 = arith.addf %333, %350 : vector<16x34xf32>
    %c1_217 = arith.constant 1 : index
    %c19_218 = arith.constant 19 : index
    %352 = memref.load %arg2[%c1_217, %c19_218] : memref<4x36xf32, #tpu.memory_space<smem>>
    %353 = vector.broadcast %352 : f32 to vector<16x34xf32>
    %354 = arith.mulf %353, %347 : vector<16x34xf32>
    %355 = arith.addf %337, %354 : vector<16x34xf32>
    %c2_219 = arith.constant 2 : index
    %c19_220 = arith.constant 19 : index
    %356 = memref.load %arg2[%c2_219, %c19_220] : memref<4x36xf32, #tpu.memory_space<smem>>
    %357 = vector.broadcast %356 : f32 to vector<16x34xf32>
    %358 = arith.mulf %357, %347 : vector<16x34xf32>
    %359 = arith.addf %341, %358 : vector<16x34xf32>
    %c3_221 = arith.constant 3 : index
    %c19_222 = arith.constant 19 : index
    %360 = memref.load %arg2[%c3_221, %c19_222] : memref<4x36xf32, #tpu.memory_space<smem>>
    %361 = vector.broadcast %360 : f32 to vector<16x34xf32>
    %362 = arith.mulf %361, %347 : vector<16x34xf32>
    %363 = arith.addf %345, %362 : vector<16x34xf32>
    %c0_223 = arith.constant 0 : index
    %c2_224 = arith.constant 2 : index
    %c0_225 = arith.constant 0 : index
    %c2_226 = arith.constant 2 : index
    %364 = vector.load %arg1[%c0_223, %c2_224, %c0_225, %c2_226] : memref<1x4x18x36xf32, #tpu.memory_space<vmem>>, vector<1x1x16x34xf32>
    %365 = vector.shape_cast %364 : vector<1x1x16x34xf32> to vector<16x34xf32>
    %c0_227 = arith.constant 0 : index
    %c20 = arith.constant 20 : index
    %366 = memref.load %arg2[%c0_227, %c20] : memref<4x36xf32, #tpu.memory_space<smem>>
    %367 = vector.broadcast %366 : f32 to vector<16x34xf32>
    %368 = arith.mulf %367, %365 : vector<16x34xf32>
    %369 = arith.addf %351, %368 : vector<16x34xf32>
    %c1_228 = arith.constant 1 : index
    %c20_229 = arith.constant 20 : index
    %370 = memref.load %arg2[%c1_228, %c20_229] : memref<4x36xf32, #tpu.memory_space<smem>>
    %371 = vector.broadcast %370 : f32 to vector<16x34xf32>
    %372 = arith.mulf %371, %365 : vector<16x34xf32>
    %373 = arith.addf %355, %372 : vector<16x34xf32>
    %c2_230 = arith.constant 2 : index
    %c20_231 = arith.constant 20 : index
    %374 = memref.load %arg2[%c2_230, %c20_231] : memref<4x36xf32, #tpu.memory_space<smem>>
    %375 = vector.broadcast %374 : f32 to vector<16x34xf32>
    %376 = arith.mulf %375, %365 : vector<16x34xf32>
    %377 = arith.addf %359, %376 : vector<16x34xf32>
    %c3_232 = arith.constant 3 : index
    %c20_233 = arith.constant 20 : index
    %378 = memref.load %arg2[%c3_232, %c20_233] : memref<4x36xf32, #tpu.memory_space<smem>>
    %379 = vector.broadcast %378 : f32 to vector<16x34xf32>
    %380 = arith.mulf %379, %365 : vector<16x34xf32>
    %381 = arith.addf %363, %380 : vector<16x34xf32>
    %c0_234 = arith.constant 0 : index
    %c2_235 = arith.constant 2 : index
    %c1_236 = arith.constant 1 : index
    %c0_237 = arith.constant 0 : index
    %382 = vector.load %arg1[%c0_234, %c2_235, %c1_236, %c0_237] : memref<1x4x18x36xf32, #tpu.memory_space<vmem>>, vector<1x1x16x34xf32>
    %383 = vector.shape_cast %382 : vector<1x1x16x34xf32> to vector<16x34xf32>
    %c0_238 = arith.constant 0 : index
    %c21 = arith.constant 21 : index
    %384 = memref.load %arg2[%c0_238, %c21] : memref<4x36xf32, #tpu.memory_space<smem>>
    %385 = vector.broadcast %384 : f32 to vector<16x34xf32>
    %386 = arith.mulf %385, %383 : vector<16x34xf32>
    %387 = arith.addf %369, %386 : vector<16x34xf32>
    %c1_239 = arith.constant 1 : index
    %c21_240 = arith.constant 21 : index
    %388 = memref.load %arg2[%c1_239, %c21_240] : memref<4x36xf32, #tpu.memory_space<smem>>
    %389 = vector.broadcast %388 : f32 to vector<16x34xf32>
    %390 = arith.mulf %389, %383 : vector<16x34xf32>
    %391 = arith.addf %373, %390 : vector<16x34xf32>
    %c2_241 = arith.constant 2 : index
    %c21_242 = arith.constant 21 : index
    %392 = memref.load %arg2[%c2_241, %c21_242] : memref<4x36xf32, #tpu.memory_space<smem>>
    %393 = vector.broadcast %392 : f32 to vector<16x34xf32>
    %394 = arith.mulf %393, %383 : vector<16x34xf32>
    %395 = arith.addf %377, %394 : vector<16x34xf32>
    %c3_243 = arith.constant 3 : index
    %c21_244 = arith.constant 21 : index
    %396 = memref.load %arg2[%c3_243, %c21_244] : memref<4x36xf32, #tpu.memory_space<smem>>
    %397 = vector.broadcast %396 : f32 to vector<16x34xf32>
    %398 = arith.mulf %397, %383 : vector<16x34xf32>
    %399 = arith.addf %381, %398 : vector<16x34xf32>
    %c0_245 = arith.constant 0 : index
    %c2_246 = arith.constant 2 : index
    %c1_247 = arith.constant 1 : index
    %c1_248 = arith.constant 1 : index
    %400 = vector.load %arg1[%c0_245, %c2_246, %c1_247, %c1_248] : memref<1x4x18x36xf32, #tpu.memory_space<vmem>>, vector<1x1x16x34xf32>
    %401 = vector.shape_cast %400 : vector<1x1x16x34xf32> to vector<16x34xf32>
    %c0_249 = arith.constant 0 : index
    %c22 = arith.constant 22 : index
    %402 = memref.load %arg2[%c0_249, %c22] : memref<4x36xf32, #tpu.memory_space<smem>>
    %403 = vector.broadcast %402 : f32 to vector<16x34xf32>
    %404 = arith.mulf %403, %401 : vector<16x34xf32>
    %405 = arith.addf %387, %404 : vector<16x34xf32>
    %c1_250 = arith.constant 1 : index
    %c22_251 = arith.constant 22 : index
    %406 = memref.load %arg2[%c1_250, %c22_251] : memref<4x36xf32, #tpu.memory_space<smem>>
    %407 = vector.broadcast %406 : f32 to vector<16x34xf32>
    %408 = arith.mulf %407, %401 : vector<16x34xf32>
    %409 = arith.addf %391, %408 : vector<16x34xf32>
    %c2_252 = arith.constant 2 : index
    %c22_253 = arith.constant 22 : index
    %410 = memref.load %arg2[%c2_252, %c22_253] : memref<4x36xf32, #tpu.memory_space<smem>>
    %411 = vector.broadcast %410 : f32 to vector<16x34xf32>
    %412 = arith.mulf %411, %401 : vector<16x34xf32>
    %413 = arith.addf %395, %412 : vector<16x34xf32>
    %c3_254 = arith.constant 3 : index
    %c22_255 = arith.constant 22 : index
    %414 = memref.load %arg2[%c3_254, %c22_255] : memref<4x36xf32, #tpu.memory_space<smem>>
    %415 = vector.broadcast %414 : f32 to vector<16x34xf32>
    %416 = arith.mulf %415, %401 : vector<16x34xf32>
    %417 = arith.addf %399, %416 : vector<16x34xf32>
    %c0_256 = arith.constant 0 : index
    %c2_257 = arith.constant 2 : index
    %c1_258 = arith.constant 1 : index
    %c2_259 = arith.constant 2 : index
    %418 = vector.load %arg1[%c0_256, %c2_257, %c1_258, %c2_259] : memref<1x4x18x36xf32, #tpu.memory_space<vmem>>, vector<1x1x16x34xf32>
    %419 = vector.shape_cast %418 : vector<1x1x16x34xf32> to vector<16x34xf32>
    %c0_260 = arith.constant 0 : index
    %c23 = arith.constant 23 : index
    %420 = memref.load %arg2[%c0_260, %c23] : memref<4x36xf32, #tpu.memory_space<smem>>
    %421 = vector.broadcast %420 : f32 to vector<16x34xf32>
    %422 = arith.mulf %421, %419 : vector<16x34xf32>
    %423 = arith.addf %405, %422 : vector<16x34xf32>
    %c1_261 = arith.constant 1 : index
    %c23_262 = arith.constant 23 : index
    %424 = memref.load %arg2[%c1_261, %c23_262] : memref<4x36xf32, #tpu.memory_space<smem>>
    %425 = vector.broadcast %424 : f32 to vector<16x34xf32>
    %426 = arith.mulf %425, %419 : vector<16x34xf32>
    %427 = arith.addf %409, %426 : vector<16x34xf32>
    %c2_263 = arith.constant 2 : index
    %c23_264 = arith.constant 23 : index
    %428 = memref.load %arg2[%c2_263, %c23_264] : memref<4x36xf32, #tpu.memory_space<smem>>
    %429 = vector.broadcast %428 : f32 to vector<16x34xf32>
    %430 = arith.mulf %429, %419 : vector<16x34xf32>
    %431 = arith.addf %413, %430 : vector<16x34xf32>
    %c3_265 = arith.constant 3 : index
    %c23_266 = arith.constant 23 : index
    %432 = memref.load %arg2[%c3_265, %c23_266] : memref<4x36xf32, #tpu.memory_space<smem>>
    %433 = vector.broadcast %432 : f32 to vector<16x34xf32>
    %434 = arith.mulf %433, %419 : vector<16x34xf32>
    %435 = arith.addf %417, %434 : vector<16x34xf32>
    %c0_267 = arith.constant 0 : index
    %c2_268 = arith.constant 2 : index
    %c2_269 = arith.constant 2 : index
    %c0_270 = arith.constant 0 : index
    %436 = vector.load %arg1[%c0_267, %c2_268, %c2_269, %c0_270] : memref<1x4x18x36xf32, #tpu.memory_space<vmem>>, vector<1x1x16x34xf32>
    %437 = vector.shape_cast %436 : vector<1x1x16x34xf32> to vector<16x34xf32>
    %c0_271 = arith.constant 0 : index
    %c24 = arith.constant 24 : index
    %438 = memref.load %arg2[%c0_271, %c24] : memref<4x36xf32, #tpu.memory_space<smem>>
    %439 = vector.broadcast %438 : f32 to vector<16x34xf32>
    %440 = arith.mulf %439, %437 : vector<16x34xf32>
    %441 = arith.addf %423, %440 : vector<16x34xf32>
    %c1_272 = arith.constant 1 : index
    %c24_273 = arith.constant 24 : index
    %442 = memref.load %arg2[%c1_272, %c24_273] : memref<4x36xf32, #tpu.memory_space<smem>>
    %443 = vector.broadcast %442 : f32 to vector<16x34xf32>
    %444 = arith.mulf %443, %437 : vector<16x34xf32>
    %445 = arith.addf %427, %444 : vector<16x34xf32>
    %c2_274 = arith.constant 2 : index
    %c24_275 = arith.constant 24 : index
    %446 = memref.load %arg2[%c2_274, %c24_275] : memref<4x36xf32, #tpu.memory_space<smem>>
    %447 = vector.broadcast %446 : f32 to vector<16x34xf32>
    %448 = arith.mulf %447, %437 : vector<16x34xf32>
    %449 = arith.addf %431, %448 : vector<16x34xf32>
    %c3_276 = arith.constant 3 : index
    %c24_277 = arith.constant 24 : index
    %450 = memref.load %arg2[%c3_276, %c24_277] : memref<4x36xf32, #tpu.memory_space<smem>>
    %451 = vector.broadcast %450 : f32 to vector<16x34xf32>
    %452 = arith.mulf %451, %437 : vector<16x34xf32>
    %453 = arith.addf %435, %452 : vector<16x34xf32>
    %c0_278 = arith.constant 0 : index
    %c2_279 = arith.constant 2 : index
    %c2_280 = arith.constant 2 : index
    %c1_281 = arith.constant 1 : index
    %454 = vector.load %arg1[%c0_278, %c2_279, %c2_280, %c1_281] : memref<1x4x18x36xf32, #tpu.memory_space<vmem>>, vector<1x1x16x34xf32>
    %455 = vector.shape_cast %454 : vector<1x1x16x34xf32> to vector<16x34xf32>
    %c0_282 = arith.constant 0 : index
    %c25 = arith.constant 25 : index
    %456 = memref.load %arg2[%c0_282, %c25] : memref<4x36xf32, #tpu.memory_space<smem>>
    %457 = vector.broadcast %456 : f32 to vector<16x34xf32>
    %458 = arith.mulf %457, %455 : vector<16x34xf32>
    %459 = arith.addf %441, %458 : vector<16x34xf32>
    %c1_283 = arith.constant 1 : index
    %c25_284 = arith.constant 25 : index
    %460 = memref.load %arg2[%c1_283, %c25_284] : memref<4x36xf32, #tpu.memory_space<smem>>
    %461 = vector.broadcast %460 : f32 to vector<16x34xf32>
    %462 = arith.mulf %461, %455 : vector<16x34xf32>
    %463 = arith.addf %445, %462 : vector<16x34xf32>
    %c2_285 = arith.constant 2 : index
    %c25_286 = arith.constant 25 : index
    %464 = memref.load %arg2[%c2_285, %c25_286] : memref<4x36xf32, #tpu.memory_space<smem>>
    %465 = vector.broadcast %464 : f32 to vector<16x34xf32>
    %466 = arith.mulf %465, %455 : vector<16x34xf32>
    %467 = arith.addf %449, %466 : vector<16x34xf32>
    %c3_287 = arith.constant 3 : index
    %c25_288 = arith.constant 25 : index
    %468 = memref.load %arg2[%c3_287, %c25_288] : memref<4x36xf32, #tpu.memory_space<smem>>
    %469 = vector.broadcast %468 : f32 to vector<16x34xf32>
    %470 = arith.mulf %469, %455 : vector<16x34xf32>
    %471 = arith.addf %453, %470 : vector<16x34xf32>
    %c0_289 = arith.constant 0 : index
    %c2_290 = arith.constant 2 : index
    %c2_291 = arith.constant 2 : index
    %c2_292 = arith.constant 2 : index
    %472 = vector.load %arg1[%c0_289, %c2_290, %c2_291, %c2_292] : memref<1x4x18x36xf32, #tpu.memory_space<vmem>>, vector<1x1x16x34xf32>
    %473 = vector.shape_cast %472 : vector<1x1x16x34xf32> to vector<16x34xf32>
    %c0_293 = arith.constant 0 : index
    %c26 = arith.constant 26 : index
    %474 = memref.load %arg2[%c0_293, %c26] : memref<4x36xf32, #tpu.memory_space<smem>>
    %475 = vector.broadcast %474 : f32 to vector<16x34xf32>
    %476 = arith.mulf %475, %473 : vector<16x34xf32>
    %477 = arith.addf %459, %476 : vector<16x34xf32>
    %c1_294 = arith.constant 1 : index
    %c26_295 = arith.constant 26 : index
    %478 = memref.load %arg2[%c1_294, %c26_295] : memref<4x36xf32, #tpu.memory_space<smem>>
    %479 = vector.broadcast %478 : f32 to vector<16x34xf32>
    %480 = arith.mulf %479, %473 : vector<16x34xf32>
    %481 = arith.addf %463, %480 : vector<16x34xf32>
    %c2_296 = arith.constant 2 : index
    %c26_297 = arith.constant 26 : index
    %482 = memref.load %arg2[%c2_296, %c26_297] : memref<4x36xf32, #tpu.memory_space<smem>>
    %483 = vector.broadcast %482 : f32 to vector<16x34xf32>
    %484 = arith.mulf %483, %473 : vector<16x34xf32>
    %485 = arith.addf %467, %484 : vector<16x34xf32>
    %c3_298 = arith.constant 3 : index
    %c26_299 = arith.constant 26 : index
    %486 = memref.load %arg2[%c3_298, %c26_299] : memref<4x36xf32, #tpu.memory_space<smem>>
    %487 = vector.broadcast %486 : f32 to vector<16x34xf32>
    %488 = arith.mulf %487, %473 : vector<16x34xf32>
    %489 = arith.addf %471, %488 : vector<16x34xf32>
    %c0_300 = arith.constant 0 : index
    %c3_301 = arith.constant 3 : index
    %c0_302 = arith.constant 0 : index
    %c0_303 = arith.constant 0 : index
    %490 = vector.load %arg1[%c0_300, %c3_301, %c0_302, %c0_303] : memref<1x4x18x36xf32, #tpu.memory_space<vmem>>, vector<1x1x16x34xf32>
    %491 = vector.shape_cast %490 : vector<1x1x16x34xf32> to vector<16x34xf32>
    %c0_304 = arith.constant 0 : index
    %c27 = arith.constant 27 : index
    %492 = memref.load %arg2[%c0_304, %c27] : memref<4x36xf32, #tpu.memory_space<smem>>
    %493 = vector.broadcast %492 : f32 to vector<16x34xf32>
    %494 = arith.mulf %493, %491 : vector<16x34xf32>
    %495 = arith.addf %477, %494 : vector<16x34xf32>
    %c1_305 = arith.constant 1 : index
    %c27_306 = arith.constant 27 : index
    %496 = memref.load %arg2[%c1_305, %c27_306] : memref<4x36xf32, #tpu.memory_space<smem>>
    %497 = vector.broadcast %496 : f32 to vector<16x34xf32>
    %498 = arith.mulf %497, %491 : vector<16x34xf32>
    %499 = arith.addf %481, %498 : vector<16x34xf32>
    %c2_307 = arith.constant 2 : index
    %c27_308 = arith.constant 27 : index
    %500 = memref.load %arg2[%c2_307, %c27_308] : memref<4x36xf32, #tpu.memory_space<smem>>
    %501 = vector.broadcast %500 : f32 to vector<16x34xf32>
    %502 = arith.mulf %501, %491 : vector<16x34xf32>
    %503 = arith.addf %485, %502 : vector<16x34xf32>
    %c3_309 = arith.constant 3 : index
    %c27_310 = arith.constant 27 : index
    %504 = memref.load %arg2[%c3_309, %c27_310] : memref<4x36xf32, #tpu.memory_space<smem>>
    %505 = vector.broadcast %504 : f32 to vector<16x34xf32>
    %506 = arith.mulf %505, %491 : vector<16x34xf32>
    %507 = arith.addf %489, %506 : vector<16x34xf32>
    %c0_311 = arith.constant 0 : index
    %c3_312 = arith.constant 3 : index
    %c0_313 = arith.constant 0 : index
    %c1_314 = arith.constant 1 : index
    %508 = vector.load %arg1[%c0_311, %c3_312, %c0_313, %c1_314] : memref<1x4x18x36xf32, #tpu.memory_space<vmem>>, vector<1x1x16x34xf32>
    %509 = vector.shape_cast %508 : vector<1x1x16x34xf32> to vector<16x34xf32>
    %c0_315 = arith.constant 0 : index
    %c28 = arith.constant 28 : index
    %510 = memref.load %arg2[%c0_315, %c28] : memref<4x36xf32, #tpu.memory_space<smem>>
    %511 = vector.broadcast %510 : f32 to vector<16x34xf32>
    %512 = arith.mulf %511, %509 : vector<16x34xf32>
    %513 = arith.addf %495, %512 : vector<16x34xf32>
    %c1_316 = arith.constant 1 : index
    %c28_317 = arith.constant 28 : index
    %514 = memref.load %arg2[%c1_316, %c28_317] : memref<4x36xf32, #tpu.memory_space<smem>>
    %515 = vector.broadcast %514 : f32 to vector<16x34xf32>
    %516 = arith.mulf %515, %509 : vector<16x34xf32>
    %517 = arith.addf %499, %516 : vector<16x34xf32>
    %c2_318 = arith.constant 2 : index
    %c28_319 = arith.constant 28 : index
    %518 = memref.load %arg2[%c2_318, %c28_319] : memref<4x36xf32, #tpu.memory_space<smem>>
    %519 = vector.broadcast %518 : f32 to vector<16x34xf32>
    %520 = arith.mulf %519, %509 : vector<16x34xf32>
    %521 = arith.addf %503, %520 : vector<16x34xf32>
    %c3_320 = arith.constant 3 : index
    %c28_321 = arith.constant 28 : index
    %522 = memref.load %arg2[%c3_320, %c28_321] : memref<4x36xf32, #tpu.memory_space<smem>>
    %523 = vector.broadcast %522 : f32 to vector<16x34xf32>
    %524 = arith.mulf %523, %509 : vector<16x34xf32>
    %525 = arith.addf %507, %524 : vector<16x34xf32>
    %c0_322 = arith.constant 0 : index
    %c3_323 = arith.constant 3 : index
    %c0_324 = arith.constant 0 : index
    %c2_325 = arith.constant 2 : index
    %526 = vector.load %arg1[%c0_322, %c3_323, %c0_324, %c2_325] : memref<1x4x18x36xf32, #tpu.memory_space<vmem>>, vector<1x1x16x34xf32>
    %527 = vector.shape_cast %526 : vector<1x1x16x34xf32> to vector<16x34xf32>
    %c0_326 = arith.constant 0 : index
    %c29 = arith.constant 29 : index
    %528 = memref.load %arg2[%c0_326, %c29] : memref<4x36xf32, #tpu.memory_space<smem>>
    %529 = vector.broadcast %528 : f32 to vector<16x34xf32>
    %530 = arith.mulf %529, %527 : vector<16x34xf32>
    %531 = arith.addf %513, %530 : vector<16x34xf32>
    %c1_327 = arith.constant 1 : index
    %c29_328 = arith.constant 29 : index
    %532 = memref.load %arg2[%c1_327, %c29_328] : memref<4x36xf32, #tpu.memory_space<smem>>
    %533 = vector.broadcast %532 : f32 to vector<16x34xf32>
    %534 = arith.mulf %533, %527 : vector<16x34xf32>
    %535 = arith.addf %517, %534 : vector<16x34xf32>
    %c2_329 = arith.constant 2 : index
    %c29_330 = arith.constant 29 : index
    %536 = memref.load %arg2[%c2_329, %c29_330] : memref<4x36xf32, #tpu.memory_space<smem>>
    %537 = vector.broadcast %536 : f32 to vector<16x34xf32>
    %538 = arith.mulf %537, %527 : vector<16x34xf32>
    %539 = arith.addf %521, %538 : vector<16x34xf32>
    %c3_331 = arith.constant 3 : index
    %c29_332 = arith.constant 29 : index
    %540 = memref.load %arg2[%c3_331, %c29_332] : memref<4x36xf32, #tpu.memory_space<smem>>
    %541 = vector.broadcast %540 : f32 to vector<16x34xf32>
    %542 = arith.mulf %541, %527 : vector<16x34xf32>
    %543 = arith.addf %525, %542 : vector<16x34xf32>
    %c0_333 = arith.constant 0 : index
    %c3_334 = arith.constant 3 : index
    %c1_335 = arith.constant 1 : index
    %c0_336 = arith.constant 0 : index
    %544 = vector.load %arg1[%c0_333, %c3_334, %c1_335, %c0_336] : memref<1x4x18x36xf32, #tpu.memory_space<vmem>>, vector<1x1x16x34xf32>
    %545 = vector.shape_cast %544 : vector<1x1x16x34xf32> to vector<16x34xf32>
    %c0_337 = arith.constant 0 : index
    %c30 = arith.constant 30 : index
    %546 = memref.load %arg2[%c0_337, %c30] : memref<4x36xf32, #tpu.memory_space<smem>>
    %547 = vector.broadcast %546 : f32 to vector<16x34xf32>
    %548 = arith.mulf %547, %545 : vector<16x34xf32>
    %549 = arith.addf %531, %548 : vector<16x34xf32>
    %c1_338 = arith.constant 1 : index
    %c30_339 = arith.constant 30 : index
    %550 = memref.load %arg2[%c1_338, %c30_339] : memref<4x36xf32, #tpu.memory_space<smem>>
    %551 = vector.broadcast %550 : f32 to vector<16x34xf32>
    %552 = arith.mulf %551, %545 : vector<16x34xf32>
    %553 = arith.addf %535, %552 : vector<16x34xf32>
    %c2_340 = arith.constant 2 : index
    %c30_341 = arith.constant 30 : index
    %554 = memref.load %arg2[%c2_340, %c30_341] : memref<4x36xf32, #tpu.memory_space<smem>>
    %555 = vector.broadcast %554 : f32 to vector<16x34xf32>
    %556 = arith.mulf %555, %545 : vector<16x34xf32>
    %557 = arith.addf %539, %556 : vector<16x34xf32>
    %c3_342 = arith.constant 3 : index
    %c30_343 = arith.constant 30 : index
    %558 = memref.load %arg2[%c3_342, %c30_343] : memref<4x36xf32, #tpu.memory_space<smem>>
    %559 = vector.broadcast %558 : f32 to vector<16x34xf32>
    %560 = arith.mulf %559, %545 : vector<16x34xf32>
    %561 = arith.addf %543, %560 : vector<16x34xf32>
    %c0_344 = arith.constant 0 : index
    %c3_345 = arith.constant 3 : index
    %c1_346 = arith.constant 1 : index
    %c1_347 = arith.constant 1 : index
    %562 = vector.load %arg1[%c0_344, %c3_345, %c1_346, %c1_347] : memref<1x4x18x36xf32, #tpu.memory_space<vmem>>, vector<1x1x16x34xf32>
    %563 = vector.shape_cast %562 : vector<1x1x16x34xf32> to vector<16x34xf32>
    %c0_348 = arith.constant 0 : index
    %c31 = arith.constant 31 : index
    %564 = memref.load %arg2[%c0_348, %c31] : memref<4x36xf32, #tpu.memory_space<smem>>
    %565 = vector.broadcast %564 : f32 to vector<16x34xf32>
    %566 = arith.mulf %565, %563 : vector<16x34xf32>
    %567 = arith.addf %549, %566 : vector<16x34xf32>
    %c1_349 = arith.constant 1 : index
    %c31_350 = arith.constant 31 : index
    %568 = memref.load %arg2[%c1_349, %c31_350] : memref<4x36xf32, #tpu.memory_space<smem>>
    %569 = vector.broadcast %568 : f32 to vector<16x34xf32>
    %570 = arith.mulf %569, %563 : vector<16x34xf32>
    %571 = arith.addf %553, %570 : vector<16x34xf32>
    %c2_351 = arith.constant 2 : index
    %c31_352 = arith.constant 31 : index
    %572 = memref.load %arg2[%c2_351, %c31_352] : memref<4x36xf32, #tpu.memory_space<smem>>
    %573 = vector.broadcast %572 : f32 to vector<16x34xf32>
    %574 = arith.mulf %573, %563 : vector<16x34xf32>
    %575 = arith.addf %557, %574 : vector<16x34xf32>
    %c3_353 = arith.constant 3 : index
    %c31_354 = arith.constant 31 : index
    %576 = memref.load %arg2[%c3_353, %c31_354] : memref<4x36xf32, #tpu.memory_space<smem>>
    %577 = vector.broadcast %576 : f32 to vector<16x34xf32>
    %578 = arith.mulf %577, %563 : vector<16x34xf32>
    %579 = arith.addf %561, %578 : vector<16x34xf32>
    %c0_355 = arith.constant 0 : index
    %c3_356 = arith.constant 3 : index
    %c1_357 = arith.constant 1 : index
    %c2_358 = arith.constant 2 : index
    %580 = vector.load %arg1[%c0_355, %c3_356, %c1_357, %c2_358] : memref<1x4x18x36xf32, #tpu.memory_space<vmem>>, vector<1x1x16x34xf32>
    %581 = vector.shape_cast %580 : vector<1x1x16x34xf32> to vector<16x34xf32>
    %c0_359 = arith.constant 0 : index
    %c32 = arith.constant 32 : index
    %582 = memref.load %arg2[%c0_359, %c32] : memref<4x36xf32, #tpu.memory_space<smem>>
    %583 = vector.broadcast %582 : f32 to vector<16x34xf32>
    %584 = arith.mulf %583, %581 : vector<16x34xf32>
    %585 = arith.addf %567, %584 : vector<16x34xf32>
    %c1_360 = arith.constant 1 : index
    %c32_361 = arith.constant 32 : index
    %586 = memref.load %arg2[%c1_360, %c32_361] : memref<4x36xf32, #tpu.memory_space<smem>>
    %587 = vector.broadcast %586 : f32 to vector<16x34xf32>
    %588 = arith.mulf %587, %581 : vector<16x34xf32>
    %589 = arith.addf %571, %588 : vector<16x34xf32>
    %c2_362 = arith.constant 2 : index
    %c32_363 = arith.constant 32 : index
    %590 = memref.load %arg2[%c2_362, %c32_363] : memref<4x36xf32, #tpu.memory_space<smem>>
    %591 = vector.broadcast %590 : f32 to vector<16x34xf32>
    %592 = arith.mulf %591, %581 : vector<16x34xf32>
    %593 = arith.addf %575, %592 : vector<16x34xf32>
    %c3_364 = arith.constant 3 : index
    %c32_365 = arith.constant 32 : index
    %594 = memref.load %arg2[%c3_364, %c32_365] : memref<4x36xf32, #tpu.memory_space<smem>>
    %595 = vector.broadcast %594 : f32 to vector<16x34xf32>
    %596 = arith.mulf %595, %581 : vector<16x34xf32>
    %597 = arith.addf %579, %596 : vector<16x34xf32>
    %c0_366 = arith.constant 0 : index
    %c3_367 = arith.constant 3 : index
    %c2_368 = arith.constant 2 : index
    %c0_369 = arith.constant 0 : index
    %598 = vector.load %arg1[%c0_366, %c3_367, %c2_368, %c0_369] : memref<1x4x18x36xf32, #tpu.memory_space<vmem>>, vector<1x1x16x34xf32>
    %599 = vector.shape_cast %598 : vector<1x1x16x34xf32> to vector<16x34xf32>
    %c0_370 = arith.constant 0 : index
    %c33 = arith.constant 33 : index
    %600 = memref.load %arg2[%c0_370, %c33] : memref<4x36xf32, #tpu.memory_space<smem>>
    %601 = vector.broadcast %600 : f32 to vector<16x34xf32>
    %602 = arith.mulf %601, %599 : vector<16x34xf32>
    %603 = arith.addf %585, %602 : vector<16x34xf32>
    %c1_371 = arith.constant 1 : index
    %c33_372 = arith.constant 33 : index
    %604 = memref.load %arg2[%c1_371, %c33_372] : memref<4x36xf32, #tpu.memory_space<smem>>
    %605 = vector.broadcast %604 : f32 to vector<16x34xf32>
    %606 = arith.mulf %605, %599 : vector<16x34xf32>
    %607 = arith.addf %589, %606 : vector<16x34xf32>
    %c2_373 = arith.constant 2 : index
    %c33_374 = arith.constant 33 : index
    %608 = memref.load %arg2[%c2_373, %c33_374] : memref<4x36xf32, #tpu.memory_space<smem>>
    %609 = vector.broadcast %608 : f32 to vector<16x34xf32>
    %610 = arith.mulf %609, %599 : vector<16x34xf32>
    %611 = arith.addf %593, %610 : vector<16x34xf32>
    %c3_375 = arith.constant 3 : index
    %c33_376 = arith.constant 33 : index
    %612 = memref.load %arg2[%c3_375, %c33_376] : memref<4x36xf32, #tpu.memory_space<smem>>
    %613 = vector.broadcast %612 : f32 to vector<16x34xf32>
    %614 = arith.mulf %613, %599 : vector<16x34xf32>
    %615 = arith.addf %597, %614 : vector<16x34xf32>
    %c0_377 = arith.constant 0 : index
    %c3_378 = arith.constant 3 : index
    %c2_379 = arith.constant 2 : index
    %c1_380 = arith.constant 1 : index
    %616 = vector.load %arg1[%c0_377, %c3_378, %c2_379, %c1_380] : memref<1x4x18x36xf32, #tpu.memory_space<vmem>>, vector<1x1x16x34xf32>
    %617 = vector.shape_cast %616 : vector<1x1x16x34xf32> to vector<16x34xf32>
    %c0_381 = arith.constant 0 : index
    %c34 = arith.constant 34 : index
    %618 = memref.load %arg2[%c0_381, %c34] : memref<4x36xf32, #tpu.memory_space<smem>>
    %619 = vector.broadcast %618 : f32 to vector<16x34xf32>
    %620 = arith.mulf %619, %617 : vector<16x34xf32>
    %621 = arith.addf %603, %620 : vector<16x34xf32>
    %c1_382 = arith.constant 1 : index
    %c34_383 = arith.constant 34 : index
    %622 = memref.load %arg2[%c1_382, %c34_383] : memref<4x36xf32, #tpu.memory_space<smem>>
    %623 = vector.broadcast %622 : f32 to vector<16x34xf32>
    %624 = arith.mulf %623, %617 : vector<16x34xf32>
    %625 = arith.addf %607, %624 : vector<16x34xf32>
    %c2_384 = arith.constant 2 : index
    %c34_385 = arith.constant 34 : index
    %626 = memref.load %arg2[%c2_384, %c34_385] : memref<4x36xf32, #tpu.memory_space<smem>>
    %627 = vector.broadcast %626 : f32 to vector<16x34xf32>
    %628 = arith.mulf %627, %617 : vector<16x34xf32>
    %629 = arith.addf %611, %628 : vector<16x34xf32>
    %c3_386 = arith.constant 3 : index
    %c34_387 = arith.constant 34 : index
    %630 = memref.load %arg2[%c3_386, %c34_387] : memref<4x36xf32, #tpu.memory_space<smem>>
    %631 = vector.broadcast %630 : f32 to vector<16x34xf32>
    %632 = arith.mulf %631, %617 : vector<16x34xf32>
    %633 = arith.addf %615, %632 : vector<16x34xf32>
    %c0_388 = arith.constant 0 : index
    %c3_389 = arith.constant 3 : index
    %c2_390 = arith.constant 2 : index
    %c2_391 = arith.constant 2 : index
    %634 = vector.load %arg1[%c0_388, %c3_389, %c2_390, %c2_391] : memref<1x4x18x36xf32, #tpu.memory_space<vmem>>, vector<1x1x16x34xf32>
    %635 = vector.shape_cast %634 : vector<1x1x16x34xf32> to vector<16x34xf32>
    %c0_392 = arith.constant 0 : index
    %c35 = arith.constant 35 : index
    %636 = memref.load %arg2[%c0_392, %c35] : memref<4x36xf32, #tpu.memory_space<smem>>
    %637 = vector.broadcast %636 : f32 to vector<16x34xf32>
    %638 = arith.mulf %637, %635 : vector<16x34xf32>
    %639 = arith.addf %621, %638 : vector<16x34xf32>
    %c1_393 = arith.constant 1 : index
    %c35_394 = arith.constant 35 : index
    %640 = memref.load %arg2[%c1_393, %c35_394] : memref<4x36xf32, #tpu.memory_space<smem>>
    %641 = vector.broadcast %640 : f32 to vector<16x34xf32>
    %642 = arith.mulf %641, %635 : vector<16x34xf32>
    %643 = arith.addf %625, %642 : vector<16x34xf32>
    %c2_395 = arith.constant 2 : index
    %c35_396 = arith.constant 35 : index
    %644 = memref.load %arg2[%c2_395, %c35_396] : memref<4x36xf32, #tpu.memory_space<smem>>
    %645 = vector.broadcast %644 : f32 to vector<16x34xf32>
    %646 = arith.mulf %645, %635 : vector<16x34xf32>
    %647 = arith.addf %629, %646 : vector<16x34xf32>
    %c3_397 = arith.constant 3 : index
    %c35_398 = arith.constant 35 : index
    %648 = memref.load %arg2[%c3_397, %c35_398] : memref<4x36xf32, #tpu.memory_space<smem>>
    %649 = vector.broadcast %648 : f32 to vector<16x34xf32>
    %650 = arith.mulf %649, %635 : vector<16x34xf32>
    %651 = arith.addf %633, %650 : vector<16x34xf32>
    %c1_399 = arith.constant 1 : index
    %c1_400 = arith.constant 1 : index
    %652 = vector.load %arg5[%c1_399, %c1_400] : memref<18x36xf32, #tpu.memory_space<vmem>>, vector<16x34xf32>
    %cst_401 = arith.constant 0.000000e+00 : f32
    %653 = vector.broadcast %cst_401 : f32 to vector<1x4x18x36xf32>
    %c0_402 = arith.constant 0 : index
    %c0_403 = arith.constant 0 : index
    %c0_404 = arith.constant 0 : index
    %c0_405 = arith.constant 0 : index
    %654 = vector.load %arg6[%c0_402, %c0_403, %c0_404, %c0_405] : memref<1x4x18x36xf32, #tpu.memory_space<vmem>>, vector<1x4x18x36xf32>
    tpu.vector_store %arg6[%c0_402, %c0_403, %c0_404, %c0_405], %653 {strides = array<i32>} : memref<1x4x18x36xf32, #tpu.memory_space<vmem>>, vector<1x4x18x36xf32>,
    %655 = arith.mulf %639, %652 : vector<16x34xf32>
    %c0_406 = arith.constant 0 : index
    %c0_407 = arith.constant 0 : index
    %c1_408 = arith.constant 1 : index
    %c1_409 = arith.constant 1 : index
    %656 = vector.load %arg6[%c0_406, %c0_407, %c1_408, %c1_409] : memref<1x4x18x36xf32, #tpu.memory_space<vmem>>, vector<1x1x16x34xf32>
    %657 = vector.shape_cast %656 : vector<1x1x16x34xf32> to vector<16x34xf32>
    %658 = vector.shape_cast %655 : vector<16x34xf32> to vector<1x1x16x34xf32>
    tpu.vector_store %arg6[%c0_406, %c0_407, %c1_408, %c1_409], %658 {strides = array<i32>} : memref<1x4x18x36xf32, #tpu.memory_space<vmem>>, vector<1x1x16x34xf32>,
    %659 = vector.shape_cast %655 : vector<16x34xf32> to vector<1x16x34xf32>
    %cst_410 = arith.constant dense<0.000000e+00> : vector<1xf32>
    %660 = vector.multi_reduction <add>, %659, %cst_410 [1, 2] : vector<1x16x34xf32> to vector<1xf32>
    %661 = vector.shape_cast %660 : vector<1xf32> to vector<1x1x1xf32>
    %662 = vector.extract %661[0, 0, 0] : f32 from vector<1x1x1xf32>
    %663 = arith.mulf %655, %655 : vector<16x34xf32>
    %664 = vector.shape_cast %663 : vector<16x34xf32> to vector<1x16x34xf32>
    %cst_411 = arith.constant dense<0.000000e+00> : vector<1xf32>
    %665 = vector.multi_reduction <add>, %664, %cst_411 [1, 2] : vector<1x16x34xf32> to vector<1xf32>
    %666 = vector.shape_cast %665 : vector<1xf32> to vector<1x1x1xf32>
    %667 = vector.extract %666[0, 0, 0] : f32 from vector<1x1x1xf32>
    %668 = arith.mulf %643, %652 : vector<16x34xf32>
    %c0_412 = arith.constant 0 : index
    %c1_413 = arith.constant 1 : index
    %c1_414 = arith.constant 1 : index
    %c1_415 = arith.constant 1 : index
    %669 = vector.load %arg6[%c0_412, %c1_413, %c1_414, %c1_415] : memref<1x4x18x36xf32, #tpu.memory_space<vmem>>, vector<1x1x16x34xf32>
    %670 = vector.shape_cast %669 : vector<1x1x16x34xf32> to vector<16x34xf32>
    %671 = vector.shape_cast %668 : vector<16x34xf32> to vector<1x1x16x34xf32>
    tpu.vector_store %arg6[%c0_412, %c1_413, %c1_414, %c1_415], %671 {strides = array<i32>} : memref<1x4x18x36xf32, #tpu.memory_space<vmem>>, vector<1x1x16x34xf32>,
    %672 = vector.shape_cast %668 : vector<16x34xf32> to vector<1x16x34xf32>
    %cst_416 = arith.constant dense<0.000000e+00> : vector<1xf32>
    %673 = vector.multi_reduction <add>, %672, %cst_416 [1, 2] : vector<1x16x34xf32> to vector<1xf32>
    %674 = vector.shape_cast %673 : vector<1xf32> to vector<1x1x1xf32>
    %675 = vector.extract %674[0, 0, 0] : f32 from vector<1x1x1xf32>
    %676 = arith.mulf %668, %668 : vector<16x34xf32>
    %677 = vector.shape_cast %676 : vector<16x34xf32> to vector<1x16x34xf32>
    %cst_417 = arith.constant dense<0.000000e+00> : vector<1xf32>
    %678 = vector.multi_reduction <add>, %677, %cst_417 [1, 2] : vector<1x16x34xf32> to vector<1xf32>
    %679 = vector.shape_cast %678 : vector<1xf32> to vector<1x1x1xf32>
    %680 = vector.extract %679[0, 0, 0] : f32 from vector<1x1x1xf32>
    %681 = arith.mulf %647, %652 : vector<16x34xf32>
    %c0_418 = arith.constant 0 : index
    %c2_419 = arith.constant 2 : index
    %c1_420 = arith.constant 1 : index
    %c1_421 = arith.constant 1 : index
    %682 = vector.load %arg6[%c0_418, %c2_419, %c1_420, %c1_421] : memref<1x4x18x36xf32, #tpu.memory_space<vmem>>, vector<1x1x16x34xf32>
    %683 = vector.shape_cast %682 : vector<1x1x16x34xf32> to vector<16x34xf32>
    %684 = vector.shape_cast %681 : vector<16x34xf32> to vector<1x1x16x34xf32>
    tpu.vector_store %arg6[%c0_418, %c2_419, %c1_420, %c1_421], %684 {strides = array<i32>} : memref<1x4x18x36xf32, #tpu.memory_space<vmem>>, vector<1x1x16x34xf32>,
    %685 = vector.shape_cast %681 : vector<16x34xf32> to vector<1x16x34xf32>
    %cst_422 = arith.constant dense<0.000000e+00> : vector<1xf32>
    %686 = vector.multi_reduction <add>, %685, %cst_422 [1, 2] : vector<1x16x34xf32> to vector<1xf32>
    %687 = vector.shape_cast %686 : vector<1xf32> to vector<1x1x1xf32>
    %688 = vector.extract %687[0, 0, 0] : f32 from vector<1x1x1xf32>
    %689 = arith.mulf %681, %681 : vector<16x34xf32>
    %690 = vector.shape_cast %689 : vector<16x34xf32> to vector<1x16x34xf32>
    %cst_423 = arith.constant dense<0.000000e+00> : vector<1xf32>
    %691 = vector.multi_reduction <add>, %690, %cst_423 [1, 2] : vector<1x16x34xf32> to vector<1xf32>
    %692 = vector.shape_cast %691 : vector<1xf32> to vector<1x1x1xf32>
    %693 = vector.extract %692[0, 0, 0] : f32 from vector<1x1x1xf32>
    %694 = arith.mulf %651, %652 : vector<16x34xf32>
    %c0_424 = arith.constant 0 : index
    %c3_425 = arith.constant 3 : index
    %c1_426 = arith.constant 1 : index
    %c1_427 = arith.constant 1 : index
    %695 = vector.load %arg6[%c0_424, %c3_425, %c1_426, %c1_427] : memref<1x4x18x36xf32, #tpu.memory_space<vmem>>, vector<1x1x16x34xf32>
    %696 = vector.shape_cast %695 : vector<1x1x16x34xf32> to vector<16x34xf32>
    %697 = vector.shape_cast %694 : vector<16x34xf32> to vector<1x1x16x34xf32>
    tpu.vector_store %arg6[%c0_424, %c3_425, %c1_426, %c1_427], %697 {strides = array<i32>} : memref<1x4x18x36xf32, #tpu.memory_space<vmem>>, vector<1x1x16x34xf32>,
    %698 = vector.shape_cast %694 : vector<16x34xf32> to vector<1x16x34xf32>
    %cst_428 = arith.constant dense<0.000000e+00> : vector<1xf32>
    %699 = vector.multi_reduction <add>, %698, %cst_428 [1, 2] : vector<1x16x34xf32> to vector<1xf32>
    %700 = vector.shape_cast %699 : vector<1xf32> to vector<1x1x1xf32>
    %701 = vector.extract %700[0, 0, 0] : f32 from vector<1x1x1xf32>
    %702 = arith.mulf %694, %694 : vector<16x34xf32>
    %703 = vector.shape_cast %702 : vector<16x34xf32> to vector<1x16x34xf32>
    %cst_429 = arith.constant dense<0.000000e+00> : vector<1xf32>
    %704 = vector.multi_reduction <add>, %703, %cst_429 [1, 2] : vector<1x16x34xf32> to vector<1xf32>
    %705 = vector.shape_cast %704 : vector<1xf32> to vector<1x1x1xf32>
    %706 = vector.extract %705[0, 0, 0] : f32 from vector<1x1x1xf32>
    %707 = vector.broadcast %662 : f32 to vector<1xf32>
    %708 = vector.broadcast %675 : f32 to vector<1xf32>
    %709 = vector.broadcast %688 : f32 to vector<1xf32>
    %710 = vector.broadcast %701 : f32 to vector<1xf32>
    %711 = tpu.concatenate %707, %708, %709, %710 in 0 : vector<1xf32>, vector<1xf32>, vector<1xf32>, vector<1xf32> -> vector<4xf32>
    %712 = vector.broadcast %667 : f32 to vector<1xf32>
    %713 = vector.broadcast %680 : f32 to vector<1xf32>
    %714 = vector.broadcast %693 : f32 to vector<1xf32>
    %715 = vector.broadcast %706 : f32 to vector<1xf32>
    %716 = tpu.concatenate %712, %713, %714, %715 in 0 : vector<1xf32>, vector<1xf32>, vector<1xf32>, vector<1xf32> -> vector<4xf32>
    %717 = vector.shape_cast %711 : vector<4xf32> to vector<1x4xf32>
    %718 = vector.shape_cast %716 : vector<4xf32> to vector<1x4xf32>
    %719 = tpu.concatenate %717, %718 in 0 : vector<1x4xf32>, vector<1x4xf32> -> vector<2x4xf32>
    %720 = vector.shape_cast %719 : vector<2x4xf32> to vector<1x2x4xf32>
    %c0_430 = arith.constant 0 : index
    %c0_431 = arith.constant 0 : index
    %c0_432 = arith.constant 0 : index
    %721 = vector.load %arg7[%c0_430, %c0_431, %c0_432] : memref<1x2x4xf32, #tpu.memory_space<vmem>>, vector<1x2x4xf32>
    tpu.vector_store %arg7[%c0_430, %c0_431, %c0_432], %720 {strides = array<i32>} : memref<1x2x4xf32, #tpu.memory_space<vmem>>, vector<1x2x4xf32>,
    return
  }
  func.func @transform_0(%arg0: i32) -> (i32, i32, i32, i32) {
    %c0_i32 = arith.constant 0 : i32
    %c0_i32_0 = arith.constant 0 : i32
    %c0_i32_1 = arith.constant 0 : i32
    %c0_i32_2 = arith.constant 0 : i32
    return %arg0, %c0_i32, %c0_i32_0, %c0_i32_1 : i32, i32, i32, i32
  }
  func.func @transform_1(%arg0: i32) -> (i32, i32) {
    %c0_i32 = arith.constant 0 : i32
    %c0_i32_0 = arith.constant 0 : i32
    %c0_i32_1 = arith.constant 0 : i32
    return %c0_i32, %c0_i32_0 : i32, i32
  }
  func.func @transform_2(%arg0: i32) -> i32 {
    %c0_i32 = arith.constant 0 : i32
    %c0_i32_0 = arith.constant 0 : i32
    return %c0_i32 : i32
  }
  func.func @transform_3(%arg0: i32) -> i32 {
    %c0_i32 = arith.constant 0 : i32
    %c0_i32_0 = arith.constant 0 : i32
    return %c0_i32 : i32
  }
  func.func @transform_4(%arg0: i32) -> (i32, i32) {
    %c0_i32 = arith.constant 0 : i32
    %c0_i32_0 = arith.constant 0 : i32
    %c0_i32_1 = arith.constant 0 : i32
    return %c0_i32, %c0_i32_0 : i32, i32
  }
  func.func @transform_5(%arg0: i32) -> (i32, i32, i32, i32) {
    %c0_i32 = arith.constant 0 : i32
    %c0_i32_0 = arith.constant 0 : i32
    %c0_i32_1 = arith.constant 0 : i32
    %c0_i32_2 = arith.constant 0 : i32
    return %arg0, %c0_i32, %c0_i32_0, %c0_i32_1 : i32, i32, i32, i32
  }
  func.func @transform_6(%arg0: i32) -> (i32, i32, i32) {
    %c0_i32 = arith.constant 0 : i32
    %c0_i32_0 = arith.constant 0 : i32
    %c0_i32_1 = arith.constant 0 : i32
    return %arg0, %c0_i32, %c0_i32_0 : i32, i32, i32
  }
}

module attributes {stable_mosaic.version = 11 : i64} {
  func.func @kernel(%arg0: i32, %arg1: memref<1x4x18x36xf32, #tpu.memory_space<vmem>>, %arg2: memref<4xf32, #tpu.memory_space<smem>>, %arg3: memref<4xf32, #tpu.memory_space<smem>>, %arg4: memref<1x4x18x36xf32, #tpu.memory_space<vmem>>) attributes {dimension_semantics = [#tpu.dimension_semantics<parallel>], iteration_bounds = array<i64: 1>, scalar_prefetch = 0 : i64, scratch_operands = 0 : i64, tpu.core_type = #tpu.core_type<tc>, window_params = [{transform_indices = @transform_0, window_bounds = array<i64: 1, 4, 18, 36>}, {transform_indices = @transform_1, window_bounds = array<i64: 4>}, {transform_indices = @transform_2, window_bounds = array<i64: 4>}, {transform_indices = @transform_3, window_bounds = array<i64: 1, 4, 18, 36>}]} {
    %c0 = arith.constant 0 : index
    %c0_0 = arith.constant 0 : index
    %c0_1 = arith.constant 0 : index
    %c0_2 = arith.constant 0 : index
    %0 = vector.load %arg1[%c0, %c0_0, %c0_1, %c0_2] : memref<1x4x18x36xf32, #tpu.memory_space<vmem>>, vector<1x1x18x36xf32>
    %1 = vector.shape_cast %0 : vector<1x1x18x36xf32> to vector<18x36xf32>
    %c0_3 = arith.constant 0 : index
    %2 = memref.load %arg2[%c0_3] : memref<4xf32, #tpu.memory_space<smem>>
    %3 = vector.broadcast %2 : f32 to vector<18x36xf32>
    %4 = arith.mulf %1, %3 : vector<18x36xf32>
    %c0_4 = arith.constant 0 : index
    %5 = memref.load %arg3[%c0_4] : memref<4xf32, #tpu.memory_space<smem>>
    %6 = vector.broadcast %5 : f32 to vector<18x36xf32>
    %7 = arith.addf %4, %6 : vector<18x36xf32>
    %cst = arith.constant 0.000000e+00 : f32
    %8 = vector.broadcast %cst : f32 to vector<18x36xf32>
    %9 = arith.maximumf %7, %8 : vector<18x36xf32>
    %c0_5 = arith.constant 0 : index
    %c0_6 = arith.constant 0 : index
    %c0_7 = arith.constant 0 : index
    %c0_8 = arith.constant 0 : index
    %10 = vector.load %arg4[%c0_5, %c0_6, %c0_7, %c0_8] : memref<1x4x18x36xf32, #tpu.memory_space<vmem>>, vector<1x1x18x36xf32>
    %11 = vector.shape_cast %10 : vector<1x1x18x36xf32> to vector<18x36xf32>
    %12 = vector.shape_cast %9 : vector<18x36xf32> to vector<1x1x18x36xf32>
    tpu.vector_store %arg4[%c0_5, %c0_6, %c0_7, %c0_8], %12 {strides = array<i32>} : memref<1x4x18x36xf32, #tpu.memory_space<vmem>>, vector<1x1x18x36xf32>,
    %c0_9 = arith.constant 0 : index
    %c1 = arith.constant 1 : index
    %c0_10 = arith.constant 0 : index
    %c0_11 = arith.constant 0 : index
    %13 = vector.load %arg1[%c0_9, %c1, %c0_10, %c0_11] : memref<1x4x18x36xf32, #tpu.memory_space<vmem>>, vector<1x1x18x36xf32>
    %14 = vector.shape_cast %13 : vector<1x1x18x36xf32> to vector<18x36xf32>
    %c1_12 = arith.constant 1 : index
    %15 = memref.load %arg2[%c1_12] : memref<4xf32, #tpu.memory_space<smem>>
    %16 = vector.broadcast %15 : f32 to vector<18x36xf32>
    %17 = arith.mulf %14, %16 : vector<18x36xf32>
    %c1_13 = arith.constant 1 : index
    %18 = memref.load %arg3[%c1_13] : memref<4xf32, #tpu.memory_space<smem>>
    %19 = vector.broadcast %18 : f32 to vector<18x36xf32>
    %20 = arith.addf %17, %19 : vector<18x36xf32>
    %cst_14 = arith.constant 0.000000e+00 : f32
    %21 = vector.broadcast %cst_14 : f32 to vector<18x36xf32>
    %22 = arith.maximumf %20, %21 : vector<18x36xf32>
    %c0_15 = arith.constant 0 : index
    %c1_16 = arith.constant 1 : index
    %c0_17 = arith.constant 0 : index
    %c0_18 = arith.constant 0 : index
    %23 = vector.load %arg4[%c0_15, %c1_16, %c0_17, %c0_18] : memref<1x4x18x36xf32, #tpu.memory_space<vmem>>, vector<1x1x18x36xf32>
    %24 = vector.shape_cast %23 : vector<1x1x18x36xf32> to vector<18x36xf32>
    %25 = vector.shape_cast %22 : vector<18x36xf32> to vector<1x1x18x36xf32>
    tpu.vector_store %arg4[%c0_15, %c1_16, %c0_17, %c0_18], %25 {strides = array<i32>} : memref<1x4x18x36xf32, #tpu.memory_space<vmem>>, vector<1x1x18x36xf32>,
    %c0_19 = arith.constant 0 : index
    %c2 = arith.constant 2 : index
    %c0_20 = arith.constant 0 : index
    %c0_21 = arith.constant 0 : index
    %26 = vector.load %arg1[%c0_19, %c2, %c0_20, %c0_21] : memref<1x4x18x36xf32, #tpu.memory_space<vmem>>, vector<1x1x18x36xf32>
    %27 = vector.shape_cast %26 : vector<1x1x18x36xf32> to vector<18x36xf32>
    %c2_22 = arith.constant 2 : index
    %28 = memref.load %arg2[%c2_22] : memref<4xf32, #tpu.memory_space<smem>>
    %29 = vector.broadcast %28 : f32 to vector<18x36xf32>
    %30 = arith.mulf %27, %29 : vector<18x36xf32>
    %c2_23 = arith.constant 2 : index
    %31 = memref.load %arg3[%c2_23] : memref<4xf32, #tpu.memory_space<smem>>
    %32 = vector.broadcast %31 : f32 to vector<18x36xf32>
    %33 = arith.addf %30, %32 : vector<18x36xf32>
    %cst_24 = arith.constant 0.000000e+00 : f32
    %34 = vector.broadcast %cst_24 : f32 to vector<18x36xf32>
    %35 = arith.maximumf %33, %34 : vector<18x36xf32>
    %c0_25 = arith.constant 0 : index
    %c2_26 = arith.constant 2 : index
    %c0_27 = arith.constant 0 : index
    %c0_28 = arith.constant 0 : index
    %36 = vector.load %arg4[%c0_25, %c2_26, %c0_27, %c0_28] : memref<1x4x18x36xf32, #tpu.memory_space<vmem>>, vector<1x1x18x36xf32>
    %37 = vector.shape_cast %36 : vector<1x1x18x36xf32> to vector<18x36xf32>
    %38 = vector.shape_cast %35 : vector<18x36xf32> to vector<1x1x18x36xf32>
    tpu.vector_store %arg4[%c0_25, %c2_26, %c0_27, %c0_28], %38 {strides = array<i32>} : memref<1x4x18x36xf32, #tpu.memory_space<vmem>>, vector<1x1x18x36xf32>,
    %c0_29 = arith.constant 0 : index
    %c3 = arith.constant 3 : index
    %c0_30 = arith.constant 0 : index
    %c0_31 = arith.constant 0 : index
    %39 = vector.load %arg1[%c0_29, %c3, %c0_30, %c0_31] : memref<1x4x18x36xf32, #tpu.memory_space<vmem>>, vector<1x1x18x36xf32>
    %40 = vector.shape_cast %39 : vector<1x1x18x36xf32> to vector<18x36xf32>
    %c3_32 = arith.constant 3 : index
    %41 = memref.load %arg2[%c3_32] : memref<4xf32, #tpu.memory_space<smem>>
    %42 = vector.broadcast %41 : f32 to vector<18x36xf32>
    %43 = arith.mulf %40, %42 : vector<18x36xf32>
    %c3_33 = arith.constant 3 : index
    %44 = memref.load %arg3[%c3_33] : memref<4xf32, #tpu.memory_space<smem>>
    %45 = vector.broadcast %44 : f32 to vector<18x36xf32>
    %46 = arith.addf %43, %45 : vector<18x36xf32>
    %cst_34 = arith.constant 0.000000e+00 : f32
    %47 = vector.broadcast %cst_34 : f32 to vector<18x36xf32>
    %48 = arith.maximumf %46, %47 : vector<18x36xf32>
    %c0_35 = arith.constant 0 : index
    %c3_36 = arith.constant 3 : index
    %c0_37 = arith.constant 0 : index
    %c0_38 = arith.constant 0 : index
    %49 = vector.load %arg4[%c0_35, %c3_36, %c0_37, %c0_38] : memref<1x4x18x36xf32, #tpu.memory_space<vmem>>, vector<1x1x18x36xf32>
    %50 = vector.shape_cast %49 : vector<1x1x18x36xf32> to vector<18x36xf32>
    %51 = vector.shape_cast %48 : vector<18x36xf32> to vector<1x1x18x36xf32>
    tpu.vector_store %arg4[%c0_35, %c3_36, %c0_37, %c0_38], %51 {strides = array<i32>} : memref<1x4x18x36xf32, #tpu.memory_space<vmem>>, vector<1x1x18x36xf32>,
    return
  }
  func.func @transform_0(%arg0: i32) -> (i32, i32, i32, i32) {
    %c0_i32 = arith.constant 0 : i32
    %c0_i32_0 = arith.constant 0 : i32
    %c0_i32_1 = arith.constant 0 : i32
    %c0_i32_2 = arith.constant 0 : i32
    return %arg0, %c0_i32, %c0_i32_0, %c0_i32_1 : i32, i32, i32, i32
  }
  func.func @transform_1(%arg0: i32) -> i32 {
    %c0_i32 = arith.constant 0 : i32
    %c0_i32_0 = arith.constant 0 : i32
    return %c0_i32 : i32
  }
  func.func @transform_2(%arg0: i32) -> i32 {
    %c0_i32 = arith.constant 0 : i32
    %c0_i32_0 = arith.constant 0 : i32
    return %c0_i32 : i32
  }
  func.func @transform_3(%arg0: i32) -> (i32, i32, i32, i32) {
    %c0_i32 = arith.constant 0 : i32
    %c0_i32_0 = arith.constant 0 : i32
    %c0_i32_1 = arith.constant 0 : i32
    %c0_i32_2 = arith.constant 0 : i32
    return %arg0, %c0_i32, %c0_i32_0, %c0_i32_1 : i32, i32, i32, i32
  }
}

module attributes {stable_mosaic.version = 11 : i64} {
  func.func @kernel(%arg0: i32, %arg1: memref<1x4x18x36xf32, #tpu.memory_space<vmem>>, %arg2: memref<4x36xf32, #tpu.memory_space<smem>>, %arg3: memref<4xf32, #tpu.memory_space<smem>>, %arg4: memref<4xf32, #tpu.memory_space<smem>>, %arg5: memref<18x36xf32, #tpu.memory_space<vmem>>, %arg6: memref<1x4x18x36xf32, #tpu.memory_space<vmem>>, %arg7: memref<1x2x4xf32, #tpu.memory_space<vmem>>, %arg8: memref<4x18x36xf32, #tpu.memory_space<vmem>>) attributes {dimension_semantics = [#tpu.dimension_semantics<parallel>], iteration_bounds = array<i64: 1>, scalar_prefetch = 0 : i64, scratch_operands = 1 : i64, tpu.core_type = #tpu.core_type<tc>, window_params = [{transform_indices = @transform_0, window_bounds = array<i64: 1, 4, 18, 36>}, {transform_indices = @transform_1, window_bounds = array<i64: 4, 36>}, {transform_indices = @transform_2, window_bounds = array<i64: 4>}, {transform_indices = @transform_3, window_bounds = array<i64: 4>}, {pipeline_mode = #tpu.pipeline_mode<synchronous>, transform_indices = @transform_4, window_bounds = array<i64: 18, 36>}, {transform_indices = @transform_5, window_bounds = array<i64: 1, 4, 18, 36>}, {transform_indices = @transform_6, window_bounds = array<i64: 1, 2, 4>}]} {
    %c0 = arith.constant 0 : index
    %c0_0 = arith.constant 0 : index
    %0 = vector.load %arg5[%c0, %c0_0] : memref<18x36xf32, #tpu.memory_space<vmem>>, vector<18x36xf32>
    %c0_1 = arith.constant 0 : index
    %c0_2 = arith.constant 0 : index
    %c0_3 = arith.constant 0 : index
    %c0_4 = arith.constant 0 : index
    %1 = vector.load %arg1[%c0_1, %c0_2, %c0_3, %c0_4] : memref<1x4x18x36xf32, #tpu.memory_space<vmem>>, vector<1x1x18x36xf32>
    %2 = vector.shape_cast %1 : vector<1x1x18x36xf32> to vector<18x36xf32>
    %c0_5 = arith.constant 0 : index
    %3 = memref.load %arg3[%c0_5] : memref<4xf32, #tpu.memory_space<smem>>
    %4 = vector.broadcast %3 : f32 to vector<18x36xf32>
    %5 = arith.mulf %2, %4 : vector<18x36xf32>
    %c0_6 = arith.constant 0 : index
    %6 = memref.load %arg4[%c0_6] : memref<4xf32, #tpu.memory_space<smem>>
    %7 = vector.broadcast %6 : f32 to vector<18x36xf32>
    %8 = arith.addf %5, %7 : vector<18x36xf32>
    %cst = arith.constant 0.000000e+00 : f32
    %9 = vector.broadcast %cst : f32 to vector<18x36xf32>
    %10 = arith.maximumf %8, %9 : vector<18x36xf32>
    %11 = arith.mulf %0, %10 : vector<18x36xf32>
    %c0_7 = arith.constant 0 : index
    %c0_8 = arith.constant 0 : index
    %c0_9 = arith.constant 0 : index
    %12 = vector.load %arg8[%c0_7, %c0_8, %c0_9] : memref<4x18x36xf32, #tpu.memory_space<vmem>>, vector<1x18x36xf32>
    %13 = vector.shape_cast %12 : vector<1x18x36xf32> to vector<18x36xf32>
    %14 = vector.shape_cast %11 : vector<18x36xf32> to vector<1x18x36xf32>
    tpu.vector_store %arg8[%c0_7, %c0_8, %c0_9], %14 {strides = array<i32>} : memref<4x18x36xf32, #tpu.memory_space<vmem>>, vector<1x18x36xf32>,
    %c0_10 = arith.constant 0 : index
    %c1 = arith.constant 1 : index
    %c0_11 = arith.constant 0 : index
    %c0_12 = arith.constant 0 : index
    %15 = vector.load %arg1[%c0_10, %c1, %c0_11, %c0_12] : memref<1x4x18x36xf32, #tpu.memory_space<vmem>>, vector<1x1x18x36xf32>
    %16 = vector.shape_cast %15 : vector<1x1x18x36xf32> to vector<18x36xf32>
    %c1_13 = arith.constant 1 : index
    %17 = memref.load %arg3[%c1_13] : memref<4xf32, #tpu.memory_space<smem>>
    %18 = vector.broadcast %17 : f32 to vector<18x36xf32>
    %19 = arith.mulf %16, %18 : vector<18x36xf32>
    %c1_14 = arith.constant 1 : index
    %20 = memref.load %arg4[%c1_14] : memref<4xf32, #tpu.memory_space<smem>>
    %21 = vector.broadcast %20 : f32 to vector<18x36xf32>
    %22 = arith.addf %19, %21 : vector<18x36xf32>
    %cst_15 = arith.constant 0.000000e+00 : f32
    %23 = vector.broadcast %cst_15 : f32 to vector<18x36xf32>
    %24 = arith.maximumf %22, %23 : vector<18x36xf32>
    %25 = arith.mulf %0, %24 : vector<18x36xf32>
    %c1_16 = arith.constant 1 : index
    %c0_17 = arith.constant 0 : index
    %c0_18 = arith.constant 0 : index
    %26 = vector.load %arg8[%c1_16, %c0_17, %c0_18] : memref<4x18x36xf32, #tpu.memory_space<vmem>>, vector<1x18x36xf32>
    %27 = vector.shape_cast %26 : vector<1x18x36xf32> to vector<18x36xf32>
    %28 = vector.shape_cast %25 : vector<18x36xf32> to vector<1x18x36xf32>
    tpu.vector_store %arg8[%c1_16, %c0_17, %c0_18], %28 {strides = array<i32>} : memref<4x18x36xf32, #tpu.memory_space<vmem>>, vector<1x18x36xf32>,
    %c0_19 = arith.constant 0 : index
    %c2 = arith.constant 2 : index
    %c0_20 = arith.constant 0 : index
    %c0_21 = arith.constant 0 : index
    %29 = vector.load %arg1[%c0_19, %c2, %c0_20, %c0_21] : memref<1x4x18x36xf32, #tpu.memory_space<vmem>>, vector<1x1x18x36xf32>
    %30 = vector.shape_cast %29 : vector<1x1x18x36xf32> to vector<18x36xf32>
    %c2_22 = arith.constant 2 : index
    %31 = memref.load %arg3[%c2_22] : memref<4xf32, #tpu.memory_space<smem>>
    %32 = vector.broadcast %31 : f32 to vector<18x36xf32>
    %33 = arith.mulf %30, %32 : vector<18x36xf32>
    %c2_23 = arith.constant 2 : index
    %34 = memref.load %arg4[%c2_23] : memref<4xf32, #tpu.memory_space<smem>>
    %35 = vector.broadcast %34 : f32 to vector<18x36xf32>
    %36 = arith.addf %33, %35 : vector<18x36xf32>
    %cst_24 = arith.constant 0.000000e+00 : f32
    %37 = vector.broadcast %cst_24 : f32 to vector<18x36xf32>
    %38 = arith.maximumf %36, %37 : vector<18x36xf32>
    %39 = arith.mulf %0, %38 : vector<18x36xf32>
    %c2_25 = arith.constant 2 : index
    %c0_26 = arith.constant 0 : index
    %c0_27 = arith.constant 0 : index
    %40 = vector.load %arg8[%c2_25, %c0_26, %c0_27] : memref<4x18x36xf32, #tpu.memory_space<vmem>>, vector<1x18x36xf32>
    %41 = vector.shape_cast %40 : vector<1x18x36xf32> to vector<18x36xf32>
    %42 = vector.shape_cast %39 : vector<18x36xf32> to vector<1x18x36xf32>
    tpu.vector_store %arg8[%c2_25, %c0_26, %c0_27], %42 {strides = array<i32>} : memref<4x18x36xf32, #tpu.memory_space<vmem>>, vector<1x18x36xf32>,
    %c0_28 = arith.constant 0 : index
    %c3 = arith.constant 3 : index
    %c0_29 = arith.constant 0 : index
    %c0_30 = arith.constant 0 : index
    %43 = vector.load %arg1[%c0_28, %c3, %c0_29, %c0_30] : memref<1x4x18x36xf32, #tpu.memory_space<vmem>>, vector<1x1x18x36xf32>
    %44 = vector.shape_cast %43 : vector<1x1x18x36xf32> to vector<18x36xf32>
    %c3_31 = arith.constant 3 : index
    %45 = memref.load %arg3[%c3_31] : memref<4xf32, #tpu.memory_space<smem>>
    %46 = vector.broadcast %45 : f32 to vector<18x36xf32>
    %47 = arith.mulf %44, %46 : vector<18x36xf32>
    %c3_32 = arith.constant 3 : index
    %48 = memref.load %arg4[%c3_32] : memref<4xf32, #tpu.memory_space<smem>>
    %49 = vector.broadcast %48 : f32 to vector<18x36xf32>
    %50 = arith.addf %47, %49 : vector<18x36xf32>
    %cst_33 = arith.constant 0.000000e+00 : f32
    %51 = vector.broadcast %cst_33 : f32 to vector<18x36xf32>
    %52 = arith.maximumf %50, %51 : vector<18x36xf32>
    %53 = arith.mulf %0, %52 : vector<18x36xf32>
    %c3_34 = arith.constant 3 : index
    %c0_35 = arith.constant 0 : index
    %c0_36 = arith.constant 0 : index
    %54 = vector.load %arg8[%c3_34, %c0_35, %c0_36] : memref<4x18x36xf32, #tpu.memory_space<vmem>>, vector<1x18x36xf32>
    %55 = vector.shape_cast %54 : vector<1x18x36xf32> to vector<18x36xf32>
    %56 = vector.shape_cast %53 : vector<18x36xf32> to vector<1x18x36xf32>
    tpu.vector_store %arg8[%c3_34, %c0_35, %c0_36], %56 {strides = array<i32>} : memref<4x18x36xf32, #tpu.memory_space<vmem>>, vector<1x18x36xf32>,
    %cst_37 = arith.constant 0.000000e+00 : f32
    %57 = vector.broadcast %cst_37 : f32 to vector<16x34xf32>
    %cst_38 = arith.constant 0.000000e+00 : f32
    %58 = vector.broadcast %cst_38 : f32 to vector<16x34xf32>
    %cst_39 = arith.constant 0.000000e+00 : f32
    %59 = vector.broadcast %cst_39 : f32 to vector<16x34xf32>
    %cst_40 = arith.constant 0.000000e+00 : f32
    %60 = vector.broadcast %cst_40 : f32 to vector<16x34xf32>
    %c0_41 = arith.constant 0 : index
    %c0_42 = arith.constant 0 : index
    %c0_43 = arith.constant 0 : index
    %61 = vector.load %arg8[%c0_41, %c0_42, %c0_43] : memref<4x18x36xf32, #tpu.memory_space<vmem>>, vector<1x16x34xf32>
    %62 = vector.shape_cast %61 : vector<1x16x34xf32> to vector<16x34xf32>
    %c0_44 = arith.constant 0 : index
    %c0_45 = arith.constant 0 : index
    %63 = memref.load %arg2[%c0_44, %c0_45] : memref<4x36xf32, #tpu.memory_space<smem>>
    %64 = vector.broadcast %63 : f32 to vector<16x34xf32>
    %65 = arith.mulf %64, %62 : vector<16x34xf32>
    %66 = arith.addf %57, %65 : vector<16x34xf32>
    %c1_46 = arith.constant 1 : index
    %c0_47 = arith.constant 0 : index
    %67 = memref.load %arg2[%c1_46, %c0_47] : memref<4x36xf32, #tpu.memory_space<smem>>
    %68 = vector.broadcast %67 : f32 to vector<16x34xf32>
    %69 = arith.mulf %68, %62 : vector<16x34xf32>
    %70 = arith.addf %58, %69 : vector<16x34xf32>
    %c2_48 = arith.constant 2 : index
    %c0_49 = arith.constant 0 : index
    %71 = memref.load %arg2[%c2_48, %c0_49] : memref<4x36xf32, #tpu.memory_space<smem>>
    %72 = vector.broadcast %71 : f32 to vector<16x34xf32>
    %73 = arith.mulf %72, %62 : vector<16x34xf32>
    %74 = arith.addf %59, %73 : vector<16x34xf32>
    %c3_50 = arith.constant 3 : index
    %c0_51 = arith.constant 0 : index
    %75 = memref.load %arg2[%c3_50, %c0_51] : memref<4x36xf32, #tpu.memory_space<smem>>
    %76 = vector.broadcast %75 : f32 to vector<16x34xf32>
    %77 = arith.mulf %76, %62 : vector<16x34xf32>
    %78 = arith.addf %60, %77 : vector<16x34xf32>
    %c0_52 = arith.constant 0 : index
    %c0_53 = arith.constant 0 : index
    %c1_54 = arith.constant 1 : index
    %79 = vector.load %arg8[%c0_52, %c0_53, %c1_54] : memref<4x18x36xf32, #tpu.memory_space<vmem>>, vector<1x16x34xf32>
    %80 = vector.shape_cast %79 : vector<1x16x34xf32> to vector<16x34xf32>
    %c0_55 = arith.constant 0 : index
    %c1_56 = arith.constant 1 : index
    %81 = memref.load %arg2[%c0_55, %c1_56] : memref<4x36xf32, #tpu.memory_space<smem>>
    %82 = vector.broadcast %81 : f32 to vector<16x34xf32>
    %83 = arith.mulf %82, %80 : vector<16x34xf32>
    %84 = arith.addf %66, %83 : vector<16x34xf32>
    %c1_57 = arith.constant 1 : index
    %c1_58 = arith.constant 1 : index
    %85 = memref.load %arg2[%c1_57, %c1_58] : memref<4x36xf32, #tpu.memory_space<smem>>
    %86 = vector.broadcast %85 : f32 to vector<16x34xf32>
    %87 = arith.mulf %86, %80 : vector<16x34xf32>
    %88 = arith.addf %70, %87 : vector<16x34xf32>
    %c2_59 = arith.constant 2 : index
    %c1_60 = arith.constant 1 : index
    %89 = memref.load %arg2[%c2_59, %c1_60] : memref<4x36xf32, #tpu.memory_space<smem>>
    %90 = vector.broadcast %89 : f32 to vector<16x34xf32>
    %91 = arith.mulf %90, %80 : vector<16x34xf32>
    %92 = arith.addf %74, %91 : vector<16x34xf32>
    %c3_61 = arith.constant 3 : index
    %c1_62 = arith.constant 1 : index
    %93 = memref.load %arg2[%c3_61, %c1_62] : memref<4x36xf32, #tpu.memory_space<smem>>
    %94 = vector.broadcast %93 : f32 to vector<16x34xf32>
    %95 = arith.mulf %94, %80 : vector<16x34xf32>
    %96 = arith.addf %78, %95 : vector<16x34xf32>
    %c0_63 = arith.constant 0 : index
    %c0_64 = arith.constant 0 : index
    %c2_65 = arith.constant 2 : index
    %97 = vector.load %arg8[%c0_63, %c0_64, %c2_65] : memref<4x18x36xf32, #tpu.memory_space<vmem>>, vector<1x16x34xf32>
    %98 = vector.shape_cast %97 : vector<1x16x34xf32> to vector<16x34xf32>
    %c0_66 = arith.constant 0 : index
    %c2_67 = arith.constant 2 : index
    %99 = memref.load %arg2[%c0_66, %c2_67] : memref<4x36xf32, #tpu.memory_space<smem>>
    %100 = vector.broadcast %99 : f32 to vector<16x34xf32>
    %101 = arith.mulf %100, %98 : vector<16x34xf32>
    %102 = arith.addf %84, %101 : vector<16x34xf32>
    %c1_68 = arith.constant 1 : index
    %c2_69 = arith.constant 2 : index
    %103 = memref.load %arg2[%c1_68, %c2_69] : memref<4x36xf32, #tpu.memory_space<smem>>
    %104 = vector.broadcast %103 : f32 to vector<16x34xf32>
    %105 = arith.mulf %104, %98 : vector<16x34xf32>
    %106 = arith.addf %88, %105 : vector<16x34xf32>
    %c2_70 = arith.constant 2 : index
    %c2_71 = arith.constant 2 : index
    %107 = memref.load %arg2[%c2_70, %c2_71] : memref<4x36xf32, #tpu.memory_space<smem>>
    %108 = vector.broadcast %107 : f32 to vector<16x34xf32>
    %109 = arith.mulf %108, %98 : vector<16x34xf32>
    %110 = arith.addf %92, %109 : vector<16x34xf32>
    %c3_72 = arith.constant 3 : index
    %c2_73 = arith.constant 2 : index
    %111 = memref.load %arg2[%c3_72, %c2_73] : memref<4x36xf32, #tpu.memory_space<smem>>
    %112 = vector.broadcast %111 : f32 to vector<16x34xf32>
    %113 = arith.mulf %112, %98 : vector<16x34xf32>
    %114 = arith.addf %96, %113 : vector<16x34xf32>
    %c0_74 = arith.constant 0 : index
    %c1_75 = arith.constant 1 : index
    %c0_76 = arith.constant 0 : index
    %115 = vector.load %arg8[%c0_74, %c1_75, %c0_76] : memref<4x18x36xf32, #tpu.memory_space<vmem>>, vector<1x16x34xf32>
    %116 = vector.shape_cast %115 : vector<1x16x34xf32> to vector<16x34xf32>
    %c0_77 = arith.constant 0 : index
    %c3_78 = arith.constant 3 : index
    %117 = memref.load %arg2[%c0_77, %c3_78] : memref<4x36xf32, #tpu.memory_space<smem>>
    %118 = vector.broadcast %117 : f32 to vector<16x34xf32>
    %119 = arith.mulf %118, %116 : vector<16x34xf32>
    %120 = arith.addf %102, %119 : vector<16x34xf32>
    %c1_79 = arith.constant 1 : index
    %c3_80 = arith.constant 3 : index
    %121 = memref.load %arg2[%c1_79, %c3_80] : memref<4x36xf32, #tpu.memory_space<smem>>
    %122 = vector.broadcast %121 : f32 to vector<16x34xf32>
    %123 = arith.mulf %122, %116 : vector<16x34xf32>
    %124 = arith.addf %106, %123 : vector<16x34xf32>
    %c2_81 = arith.constant 2 : index
    %c3_82 = arith.constant 3 : index
    %125 = memref.load %arg2[%c2_81, %c3_82] : memref<4x36xf32, #tpu.memory_space<smem>>
    %126 = vector.broadcast %125 : f32 to vector<16x34xf32>
    %127 = arith.mulf %126, %116 : vector<16x34xf32>
    %128 = arith.addf %110, %127 : vector<16x34xf32>
    %c3_83 = arith.constant 3 : index
    %c3_84 = arith.constant 3 : index
    %129 = memref.load %arg2[%c3_83, %c3_84] : memref<4x36xf32, #tpu.memory_space<smem>>
    %130 = vector.broadcast %129 : f32 to vector<16x34xf32>
    %131 = arith.mulf %130, %116 : vector<16x34xf32>
    %132 = arith.addf %114, %131 : vector<16x34xf32>
    %c0_85 = arith.constant 0 : index
    %c1_86 = arith.constant 1 : index
    %c1_87 = arith.constant 1 : index
    %133 = vector.load %arg8[%c0_85, %c1_86, %c1_87] : memref<4x18x36xf32, #tpu.memory_space<vmem>>, vector<1x16x34xf32>
    %134 = vector.shape_cast %133 : vector<1x16x34xf32> to vector<16x34xf32>
    %c0_88 = arith.constant 0 : index
    %c4 = arith.constant 4 : index
    %135 = memref.load %arg2[%c0_88, %c4] : memref<4x36xf32, #tpu.memory_space<smem>>
    %136 = vector.broadcast %135 : f32 to vector<16x34xf32>
    %137 = arith.mulf %136, %134 : vector<16x34xf32>
    %138 = arith.addf %120, %137 : vector<16x34xf32>
    %c1_89 = arith.constant 1 : index
    %c4_90 = arith.constant 4 : index
    %139 = memref.load %arg2[%c1_89, %c4_90] : memref<4x36xf32, #tpu.memory_space<smem>>
    %140 = vector.broadcast %139 : f32 to vector<16x34xf32>
    %141 = arith.mulf %140, %134 : vector<16x34xf32>
    %142 = arith.addf %124, %141 : vector<16x34xf32>
    %c2_91 = arith.constant 2 : index
    %c4_92 = arith.constant 4 : index
    %143 = memref.load %arg2[%c2_91, %c4_92] : memref<4x36xf32, #tpu.memory_space<smem>>
    %144 = vector.broadcast %143 : f32 to vector<16x34xf32>
    %145 = arith.mulf %144, %134 : vector<16x34xf32>
    %146 = arith.addf %128, %145 : vector<16x34xf32>
    %c3_93 = arith.constant 3 : index
    %c4_94 = arith.constant 4 : index
    %147 = memref.load %arg2[%c3_93, %c4_94] : memref<4x36xf32, #tpu.memory_space<smem>>
    %148 = vector.broadcast %147 : f32 to vector<16x34xf32>
    %149 = arith.mulf %148, %134 : vector<16x34xf32>
    %150 = arith.addf %132, %149 : vector<16x34xf32>
    %c0_95 = arith.constant 0 : index
    %c1_96 = arith.constant 1 : index
    %c2_97 = arith.constant 2 : index
    %151 = vector.load %arg8[%c0_95, %c1_96, %c2_97] : memref<4x18x36xf32, #tpu.memory_space<vmem>>, vector<1x16x34xf32>
    %152 = vector.shape_cast %151 : vector<1x16x34xf32> to vector<16x34xf32>
    %c0_98 = arith.constant 0 : index
    %c5 = arith.constant 5 : index
    %153 = memref.load %arg2[%c0_98, %c5] : memref<4x36xf32, #tpu.memory_space<smem>>
    %154 = vector.broadcast %153 : f32 to vector<16x34xf32>
    %155 = arith.mulf %154, %152 : vector<16x34xf32>
    %156 = arith.addf %138, %155 : vector<16x34xf32>
    %c1_99 = arith.constant 1 : index
    %c5_100 = arith.constant 5 : index
    %157 = memref.load %arg2[%c1_99, %c5_100] : memref<4x36xf32, #tpu.memory_space<smem>>
    %158 = vector.broadcast %157 : f32 to vector<16x34xf32>
    %159 = arith.mulf %158, %152 : vector<16x34xf32>
    %160 = arith.addf %142, %159 : vector<16x34xf32>
    %c2_101 = arith.constant 2 : index
    %c5_102 = arith.constant 5 : index
    %161 = memref.load %arg2[%c2_101, %c5_102] : memref<4x36xf32, #tpu.memory_space<smem>>
    %162 = vector.broadcast %161 : f32 to vector<16x34xf32>
    %163 = arith.mulf %162, %152 : vector<16x34xf32>
    %164 = arith.addf %146, %163 : vector<16x34xf32>
    %c3_103 = arith.constant 3 : index
    %c5_104 = arith.constant 5 : index
    %165 = memref.load %arg2[%c3_103, %c5_104] : memref<4x36xf32, #tpu.memory_space<smem>>
    %166 = vector.broadcast %165 : f32 to vector<16x34xf32>
    %167 = arith.mulf %166, %152 : vector<16x34xf32>
    %168 = arith.addf %150, %167 : vector<16x34xf32>
    %c0_105 = arith.constant 0 : index
    %c2_106 = arith.constant 2 : index
    %c0_107 = arith.constant 0 : index
    %169 = vector.load %arg8[%c0_105, %c2_106, %c0_107] : memref<4x18x36xf32, #tpu.memory_space<vmem>>, vector<1x16x34xf32>
    %170 = vector.shape_cast %169 : vector<1x16x34xf32> to vector<16x34xf32>
    %c0_108 = arith.constant 0 : index
    %c6 = arith.constant 6 : index
    %171 = memref.load %arg2[%c0_108, %c6] : memref<4x36xf32, #tpu.memory_space<smem>>
    %172 = vector.broadcast %171 : f32 to vector<16x34xf32>
    %173 = arith.mulf %172, %170 : vector<16x34xf32>
    %174 = arith.addf %156, %173 : vector<16x34xf32>
    %c1_109 = arith.constant 1 : index
    %c6_110 = arith.constant 6 : index
    %175 = memref.load %arg2[%c1_109, %c6_110] : memref<4x36xf32, #tpu.memory_space<smem>>
    %176 = vector.broadcast %175 : f32 to vector<16x34xf32>
    %177 = arith.mulf %176, %170 : vector<16x34xf32>
    %178 = arith.addf %160, %177 : vector<16x34xf32>
    %c2_111 = arith.constant 2 : index
    %c6_112 = arith.constant 6 : index
    %179 = memref.load %arg2[%c2_111, %c6_112] : memref<4x36xf32, #tpu.memory_space<smem>>
    %180 = vector.broadcast %179 : f32 to vector<16x34xf32>
    %181 = arith.mulf %180, %170 : vector<16x34xf32>
    %182 = arith.addf %164, %181 : vector<16x34xf32>
    %c3_113 = arith.constant 3 : index
    %c6_114 = arith.constant 6 : index
    %183 = memref.load %arg2[%c3_113, %c6_114] : memref<4x36xf32, #tpu.memory_space<smem>>
    %184 = vector.broadcast %183 : f32 to vector<16x34xf32>
    %185 = arith.mulf %184, %170 : vector<16x34xf32>
    %186 = arith.addf %168, %185 : vector<16x34xf32>
    %c0_115 = arith.constant 0 : index
    %c2_116 = arith.constant 2 : index
    %c1_117 = arith.constant 1 : index
    %187 = vector.load %arg8[%c0_115, %c2_116, %c1_117] : memref<4x18x36xf32, #tpu.memory_space<vmem>>, vector<1x16x34xf32>
    %188 = vector.shape_cast %187 : vector<1x16x34xf32> to vector<16x34xf32>
    %c0_118 = arith.constant 0 : index
    %c7 = arith.constant 7 : index
    %189 = memref.load %arg2[%c0_118, %c7] : memref<4x36xf32, #tpu.memory_space<smem>>
    %190 = vector.broadcast %189 : f32 to vector<16x34xf32>
    %191 = arith.mulf %190, %188 : vector<16x34xf32>
    %192 = arith.addf %174, %191 : vector<16x34xf32>
    %c1_119 = arith.constant 1 : index
    %c7_120 = arith.constant 7 : index
    %193 = memref.load %arg2[%c1_119, %c7_120] : memref<4x36xf32, #tpu.memory_space<smem>>
    %194 = vector.broadcast %193 : f32 to vector<16x34xf32>
    %195 = arith.mulf %194, %188 : vector<16x34xf32>
    %196 = arith.addf %178, %195 : vector<16x34xf32>
    %c2_121 = arith.constant 2 : index
    %c7_122 = arith.constant 7 : index
    %197 = memref.load %arg2[%c2_121, %c7_122] : memref<4x36xf32, #tpu.memory_space<smem>>
    %198 = vector.broadcast %197 : f32 to vector<16x34xf32>
    %199 = arith.mulf %198, %188 : vector<16x34xf32>
    %200 = arith.addf %182, %199 : vector<16x34xf32>
    %c3_123 = arith.constant 3 : index
    %c7_124 = arith.constant 7 : index
    %201 = memref.load %arg2[%c3_123, %c7_124] : memref<4x36xf32, #tpu.memory_space<smem>>
    %202 = vector.broadcast %201 : f32 to vector<16x34xf32>
    %203 = arith.mulf %202, %188 : vector<16x34xf32>
    %204 = arith.addf %186, %203 : vector<16x34xf32>
    %c0_125 = arith.constant 0 : index
    %c2_126 = arith.constant 2 : index
    %c2_127 = arith.constant 2 : index
    %205 = vector.load %arg8[%c0_125, %c2_126, %c2_127] : memref<4x18x36xf32, #tpu.memory_space<vmem>>, vector<1x16x34xf32>
    %206 = vector.shape_cast %205 : vector<1x16x34xf32> to vector<16x34xf32>
    %c0_128 = arith.constant 0 : index
    %c8 = arith.constant 8 : index
    %207 = memref.load %arg2[%c0_128, %c8] : memref<4x36xf32, #tpu.memory_space<smem>>
    %208 = vector.broadcast %207 : f32 to vector<16x34xf32>
    %209 = arith.mulf %208, %206 : vector<16x34xf32>
    %210 = arith.addf %192, %209 : vector<16x34xf32>
    %c1_129 = arith.constant 1 : index
    %c8_130 = arith.constant 8 : index
    %211 = memref.load %arg2[%c1_129, %c8_130] : memref<4x36xf32, #tpu.memory_space<smem>>
    %212 = vector.broadcast %211 : f32 to vector<16x34xf32>
    %213 = arith.mulf %212, %206 : vector<16x34xf32>
    %214 = arith.addf %196, %213 : vector<16x34xf32>
    %c2_131 = arith.constant 2 : index
    %c8_132 = arith.constant 8 : index
    %215 = memref.load %arg2[%c2_131, %c8_132] : memref<4x36xf32, #tpu.memory_space<smem>>
    %216 = vector.broadcast %215 : f32 to vector<16x34xf32>
    %217 = arith.mulf %216, %206 : vector<16x34xf32>
    %218 = arith.addf %200, %217 : vector<16x34xf32>
    %c3_133 = arith.constant 3 : index
    %c8_134 = arith.constant 8 : index
    %219 = memref.load %arg2[%c3_133, %c8_134] : memref<4x36xf32, #tpu.memory_space<smem>>
    %220 = vector.broadcast %219 : f32 to vector<16x34xf32>
    %221 = arith.mulf %220, %206 : vector<16x34xf32>
    %222 = arith.addf %204, %221 : vector<16x34xf32>
    %c1_135 = arith.constant 1 : index
    %c0_136 = arith.constant 0 : index
    %c0_137 = arith.constant 0 : index
    %223 = vector.load %arg8[%c1_135, %c0_136, %c0_137] : memref<4x18x36xf32, #tpu.memory_space<vmem>>, vector<1x16x34xf32>
    %224 = vector.shape_cast %223 : vector<1x16x34xf32> to vector<16x34xf32>
    %c0_138 = arith.constant 0 : index
    %c9 = arith.constant 9 : index
    %225 = memref.load %arg2[%c0_138, %c9] : memref<4x36xf32, #tpu.memory_space<smem>>
    %226 = vector.broadcast %225 : f32 to vector<16x34xf32>
    %227 = arith.mulf %226, %224 : vector<16x34xf32>
    %228 = arith.addf %210, %227 : vector<16x34xf32>
    %c1_139 = arith.constant 1 : index
    %c9_140 = arith.constant 9 : index
    %229 = memref.load %arg2[%c1_139, %c9_140] : memref<4x36xf32, #tpu.memory_space<smem>>
    %230 = vector.broadcast %229 : f32 to vector<16x34xf32>
    %231 = arith.mulf %230, %224 : vector<16x34xf32>
    %232 = arith.addf %214, %231 : vector<16x34xf32>
    %c2_141 = arith.constant 2 : index
    %c9_142 = arith.constant 9 : index
    %233 = memref.load %arg2[%c2_141, %c9_142] : memref<4x36xf32, #tpu.memory_space<smem>>
    %234 = vector.broadcast %233 : f32 to vector<16x34xf32>
    %235 = arith.mulf %234, %224 : vector<16x34xf32>
    %236 = arith.addf %218, %235 : vector<16x34xf32>
    %c3_143 = arith.constant 3 : index
    %c9_144 = arith.constant 9 : index
    %237 = memref.load %arg2[%c3_143, %c9_144] : memref<4x36xf32, #tpu.memory_space<smem>>
    %238 = vector.broadcast %237 : f32 to vector<16x34xf32>
    %239 = arith.mulf %238, %224 : vector<16x34xf32>
    %240 = arith.addf %222, %239 : vector<16x34xf32>
    %c1_145 = arith.constant 1 : index
    %c0_146 = arith.constant 0 : index
    %c1_147 = arith.constant 1 : index
    %241 = vector.load %arg8[%c1_145, %c0_146, %c1_147] : memref<4x18x36xf32, #tpu.memory_space<vmem>>, vector<1x16x34xf32>
    %242 = vector.shape_cast %241 : vector<1x16x34xf32> to vector<16x34xf32>
    %c0_148 = arith.constant 0 : index
    %c10 = arith.constant 10 : index
    %243 = memref.load %arg2[%c0_148, %c10] : memref<4x36xf32, #tpu.memory_space<smem>>
    %244 = vector.broadcast %243 : f32 to vector<16x34xf32>
    %245 = arith.mulf %244, %242 : vector<16x34xf32>
    %246 = arith.addf %228, %245 : vector<16x34xf32>
    %c1_149 = arith.constant 1 : index
    %c10_150 = arith.constant 10 : index
    %247 = memref.load %arg2[%c1_149, %c10_150] : memref<4x36xf32, #tpu.memory_space<smem>>
    %248 = vector.broadcast %247 : f32 to vector<16x34xf32>
    %249 = arith.mulf %248, %242 : vector<16x34xf32>
    %250 = arith.addf %232, %249 : vector<16x34xf32>
    %c2_151 = arith.constant 2 : index
    %c10_152 = arith.constant 10 : index
    %251 = memref.load %arg2[%c2_151, %c10_152] : memref<4x36xf32, #tpu.memory_space<smem>>
    %252 = vector.broadcast %251 : f32 to vector<16x34xf32>
    %253 = arith.mulf %252, %242 : vector<16x34xf32>
    %254 = arith.addf %236, %253 : vector<16x34xf32>
    %c3_153 = arith.constant 3 : index
    %c10_154 = arith.constant 10 : index
    %255 = memref.load %arg2[%c3_153, %c10_154] : memref<4x36xf32, #tpu.memory_space<smem>>
    %256 = vector.broadcast %255 : f32 to vector<16x34xf32>
    %257 = arith.mulf %256, %242 : vector<16x34xf32>
    %258 = arith.addf %240, %257 : vector<16x34xf32>
    %c1_155 = arith.constant 1 : index
    %c0_156 = arith.constant 0 : index
    %c2_157 = arith.constant 2 : index
    %259 = vector.load %arg8[%c1_155, %c0_156, %c2_157] : memref<4x18x36xf32, #tpu.memory_space<vmem>>, vector<1x16x34xf32>
    %260 = vector.shape_cast %259 : vector<1x16x34xf32> to vector<16x34xf32>
    %c0_158 = arith.constant 0 : index
    %c11 = arith.constant 11 : index
    %261 = memref.load %arg2[%c0_158, %c11] : memref<4x36xf32, #tpu.memory_space<smem>>
    %262 = vector.broadcast %261 : f32 to vector<16x34xf32>
    %263 = arith.mulf %262, %260 : vector<16x34xf32>
    %264 = arith.addf %246, %263 : vector<16x34xf32>
    %c1_159 = arith.constant 1 : index
    %c11_160 = arith.constant 11 : index
    %265 = memref.load %arg2[%c1_159, %c11_160] : memref<4x36xf32, #tpu.memory_space<smem>>
    %266 = vector.broadcast %265 : f32 to vector<16x34xf32>
    %267 = arith.mulf %266, %260 : vector<16x34xf32>
    %268 = arith.addf %250, %267 : vector<16x34xf32>
    %c2_161 = arith.constant 2 : index
    %c11_162 = arith.constant 11 : index
    %269 = memref.load %arg2[%c2_161, %c11_162] : memref<4x36xf32, #tpu.memory_space<smem>>
    %270 = vector.broadcast %269 : f32 to vector<16x34xf32>
    %271 = arith.mulf %270, %260 : vector<16x34xf32>
    %272 = arith.addf %254, %271 : vector<16x34xf32>
    %c3_163 = arith.constant 3 : index
    %c11_164 = arith.constant 11 : index
    %273 = memref.load %arg2[%c3_163, %c11_164] : memref<4x36xf32, #tpu.memory_space<smem>>
    %274 = vector.broadcast %273 : f32 to vector<16x34xf32>
    %275 = arith.mulf %274, %260 : vector<16x34xf32>
    %276 = arith.addf %258, %275 : vector<16x34xf32>
    %c1_165 = arith.constant 1 : index
    %c1_166 = arith.constant 1 : index
    %c0_167 = arith.constant 0 : index
    %277 = vector.load %arg8[%c1_165, %c1_166, %c0_167] : memref<4x18x36xf32, #tpu.memory_space<vmem>>, vector<1x16x34xf32>
    %278 = vector.shape_cast %277 : vector<1x16x34xf32> to vector<16x34xf32>
    %c0_168 = arith.constant 0 : index
    %c12 = arith.constant 12 : index
    %279 = memref.load %arg2[%c0_168, %c12] : memref<4x36xf32, #tpu.memory_space<smem>>
    %280 = vector.broadcast %279 : f32 to vector<16x34xf32>
    %281 = arith.mulf %280, %278 : vector<16x34xf32>
    %282 = arith.addf %264, %281 : vector<16x34xf32>
    %c1_169 = arith.constant 1 : index
    %c12_170 = arith.constant 12 : index
    %283 = memref.load %arg2[%c1_169, %c12_170] : memref<4x36xf32, #tpu.memory_space<smem>>
    %284 = vector.broadcast %283 : f32 to vector<16x34xf32>
    %285 = arith.mulf %284, %278 : vector<16x34xf32>
    %286 = arith.addf %268, %285 : vector<16x34xf32>
    %c2_171 = arith.constant 2 : index
    %c12_172 = arith.constant 12 : index
    %287 = memref.load %arg2[%c2_171, %c12_172] : memref<4x36xf32, #tpu.memory_space<smem>>
    %288 = vector.broadcast %287 : f32 to vector<16x34xf32>
    %289 = arith.mulf %288, %278 : vector<16x34xf32>
    %290 = arith.addf %272, %289 : vector<16x34xf32>
    %c3_173 = arith.constant 3 : index
    %c12_174 = arith.constant 12 : index
    %291 = memref.load %arg2[%c3_173, %c12_174] : memref<4x36xf32, #tpu.memory_space<smem>>
    %292 = vector.broadcast %291 : f32 to vector<16x34xf32>
    %293 = arith.mulf %292, %278 : vector<16x34xf32>
    %294 = arith.addf %276, %293 : vector<16x34xf32>
    %c1_175 = arith.constant 1 : index
    %c1_176 = arith.constant 1 : index
    %c1_177 = arith.constant 1 : index
    %295 = vector.load %arg8[%c1_175, %c1_176, %c1_177] : memref<4x18x36xf32, #tpu.memory_space<vmem>>, vector<1x16x34xf32>
    %296 = vector.shape_cast %295 : vector<1x16x34xf32> to vector<16x34xf32>
    %c0_178 = arith.constant 0 : index
    %c13 = arith.constant 13 : index
    %297 = memref.load %arg2[%c0_178, %c13] : memref<4x36xf32, #tpu.memory_space<smem>>
    %298 = vector.broadcast %297 : f32 to vector<16x34xf32>
    %299 = arith.mulf %298, %296 : vector<16x34xf32>
    %300 = arith.addf %282, %299 : vector<16x34xf32>
    %c1_179 = arith.constant 1 : index
    %c13_180 = arith.constant 13 : index
    %301 = memref.load %arg2[%c1_179, %c13_180] : memref<4x36xf32, #tpu.memory_space<smem>>
    %302 = vector.broadcast %301 : f32 to vector<16x34xf32>
    %303 = arith.mulf %302, %296 : vector<16x34xf32>
    %304 = arith.addf %286, %303 : vector<16x34xf32>
    %c2_181 = arith.constant 2 : index
    %c13_182 = arith.constant 13 : index
    %305 = memref.load %arg2[%c2_181, %c13_182] : memref<4x36xf32, #tpu.memory_space<smem>>
    %306 = vector.broadcast %305 : f32 to vector<16x34xf32>
    %307 = arith.mulf %306, %296 : vector<16x34xf32>
    %308 = arith.addf %290, %307 : vector<16x34xf32>
    %c3_183 = arith.constant 3 : index
    %c13_184 = arith.constant 13 : index
    %309 = memref.load %arg2[%c3_183, %c13_184] : memref<4x36xf32, #tpu.memory_space<smem>>
    %310 = vector.broadcast %309 : f32 to vector<16x34xf32>
    %311 = arith.mulf %310, %296 : vector<16x34xf32>
    %312 = arith.addf %294, %311 : vector<16x34xf32>
    %c1_185 = arith.constant 1 : index
    %c1_186 = arith.constant 1 : index
    %c2_187 = arith.constant 2 : index
    %313 = vector.load %arg8[%c1_185, %c1_186, %c2_187] : memref<4x18x36xf32, #tpu.memory_space<vmem>>, vector<1x16x34xf32>
    %314 = vector.shape_cast %313 : vector<1x16x34xf32> to vector<16x34xf32>
    %c0_188 = arith.constant 0 : index
    %c14 = arith.constant 14 : index
    %315 = memref.load %arg2[%c0_188, %c14] : memref<4x36xf32, #tpu.memory_space<smem>>
    %316 = vector.broadcast %315 : f32 to vector<16x34xf32>
    %317 = arith.mulf %316, %314 : vector<16x34xf32>
    %318 = arith.addf %300, %317 : vector<16x34xf32>
    %c1_189 = arith.constant 1 : index
    %c14_190 = arith.constant 14 : index
    %319 = memref.load %arg2[%c1_189, %c14_190] : memref<4x36xf32, #tpu.memory_space<smem>>
    %320 = vector.broadcast %319 : f32 to vector<16x34xf32>
    %321 = arith.mulf %320, %314 : vector<16x34xf32>
    %322 = arith.addf %304, %321 : vector<16x34xf32>
    %c2_191 = arith.constant 2 : index
    %c14_192 = arith.constant 14 : index
    %323 = memref.load %arg2[%c2_191, %c14_192] : memref<4x36xf32, #tpu.memory_space<smem>>
    %324 = vector.broadcast %323 : f32 to vector<16x34xf32>
    %325 = arith.mulf %324, %314 : vector<16x34xf32>
    %326 = arith.addf %308, %325 : vector<16x34xf32>
    %c3_193 = arith.constant 3 : index
    %c14_194 = arith.constant 14 : index
    %327 = memref.load %arg2[%c3_193, %c14_194] : memref<4x36xf32, #tpu.memory_space<smem>>
    %328 = vector.broadcast %327 : f32 to vector<16x34xf32>
    %329 = arith.mulf %328, %314 : vector<16x34xf32>
    %330 = arith.addf %312, %329 : vector<16x34xf32>
    %c1_195 = arith.constant 1 : index
    %c2_196 = arith.constant 2 : index
    %c0_197 = arith.constant 0 : index
    %331 = vector.load %arg8[%c1_195, %c2_196, %c0_197] : memref<4x18x36xf32, #tpu.memory_space<vmem>>, vector<1x16x34xf32>
    %332 = vector.shape_cast %331 : vector<1x16x34xf32> to vector<16x34xf32>
    %c0_198 = arith.constant 0 : index
    %c15 = arith.constant 15 : index
    %333 = memref.load %arg2[%c0_198, %c15] : memref<4x36xf32, #tpu.memory_space<smem>>
    %334 = vector.broadcast %333 : f32 to vector<16x34xf32>
    %335 = arith.mulf %334, %332 : vector<16x34xf32>
    %336 = arith.addf %318, %335 : vector<16x34xf32>
    %c1_199 = arith.constant 1 : index
    %c15_200 = arith.constant 15 : index
    %337 = memref.load %arg2[%c1_199, %c15_200] : memref<4x36xf32, #tpu.memory_space<smem>>
    %338 = vector.broadcast %337 : f32 to vector<16x34xf32>
    %339 = arith.mulf %338, %332 : vector<16x34xf32>
    %340 = arith.addf %322, %339 : vector<16x34xf32>
    %c2_201 = arith.constant 2 : index
    %c15_202 = arith.constant 15 : index
    %341 = memref.load %arg2[%c2_201, %c15_202] : memref<4x36xf32, #tpu.memory_space<smem>>
    %342 = vector.broadcast %341 : f32 to vector<16x34xf32>
    %343 = arith.mulf %342, %332 : vector<16x34xf32>
    %344 = arith.addf %326, %343 : vector<16x34xf32>
    %c3_203 = arith.constant 3 : index
    %c15_204 = arith.constant 15 : index
    %345 = memref.load %arg2[%c3_203, %c15_204] : memref<4x36xf32, #tpu.memory_space<smem>>
    %346 = vector.broadcast %345 : f32 to vector<16x34xf32>
    %347 = arith.mulf %346, %332 : vector<16x34xf32>
    %348 = arith.addf %330, %347 : vector<16x34xf32>
    %c1_205 = arith.constant 1 : index
    %c2_206 = arith.constant 2 : index
    %c1_207 = arith.constant 1 : index
    %349 = vector.load %arg8[%c1_205, %c2_206, %c1_207] : memref<4x18x36xf32, #tpu.memory_space<vmem>>, vector<1x16x34xf32>
    %350 = vector.shape_cast %349 : vector<1x16x34xf32> to vector<16x34xf32>
    %c0_208 = arith.constant 0 : index
    %c16 = arith.constant 16 : index
    %351 = memref.load %arg2[%c0_208, %c16] : memref<4x36xf32, #tpu.memory_space<smem>>
    %352 = vector.broadcast %351 : f32 to vector<16x34xf32>
    %353 = arith.mulf %352, %350 : vector<16x34xf32>
    %354 = arith.addf %336, %353 : vector<16x34xf32>
    %c1_209 = arith.constant 1 : index
    %c16_210 = arith.constant 16 : index
    %355 = memref.load %arg2[%c1_209, %c16_210] : memref<4x36xf32, #tpu.memory_space<smem>>
    %356 = vector.broadcast %355 : f32 to vector<16x34xf32>
    %357 = arith.mulf %356, %350 : vector<16x34xf32>
    %358 = arith.addf %340, %357 : vector<16x34xf32>
    %c2_211 = arith.constant 2 : index
    %c16_212 = arith.constant 16 : index
    %359 = memref.load %arg2[%c2_211, %c16_212] : memref<4x36xf32, #tpu.memory_space<smem>>
    %360 = vector.broadcast %359 : f32 to vector<16x34xf32>
    %361 = arith.mulf %360, %350 : vector<16x34xf32>
    %362 = arith.addf %344, %361 : vector<16x34xf32>
    %c3_213 = arith.constant 3 : index
    %c16_214 = arith.constant 16 : index
    %363 = memref.load %arg2[%c3_213, %c16_214] : memref<4x36xf32, #tpu.memory_space<smem>>
    %364 = vector.broadcast %363 : f32 to vector<16x34xf32>
    %365 = arith.mulf %364, %350 : vector<16x34xf32>
    %366 = arith.addf %348, %365 : vector<16x34xf32>
    %c1_215 = arith.constant 1 : index
    %c2_216 = arith.constant 2 : index
    %c2_217 = arith.constant 2 : index
    %367 = vector.load %arg8[%c1_215, %c2_216, %c2_217] : memref<4x18x36xf32, #tpu.memory_space<vmem>>, vector<1x16x34xf32>
    %368 = vector.shape_cast %367 : vector<1x16x34xf32> to vector<16x34xf32>
    %c0_218 = arith.constant 0 : index
    %c17 = arith.constant 17 : index
    %369 = memref.load %arg2[%c0_218, %c17] : memref<4x36xf32, #tpu.memory_space<smem>>
    %370 = vector.broadcast %369 : f32 to vector<16x34xf32>
    %371 = arith.mulf %370, %368 : vector<16x34xf32>
    %372 = arith.addf %354, %371 : vector<16x34xf32>
    %c1_219 = arith.constant 1 : index
    %c17_220 = arith.constant 17 : index
    %373 = memref.load %arg2[%c1_219, %c17_220] : memref<4x36xf32, #tpu.memory_space<smem>>
    %374 = vector.broadcast %373 : f32 to vector<16x34xf32>
    %375 = arith.mulf %374, %368 : vector<16x34xf32>
    %376 = arith.addf %358, %375 : vector<16x34xf32>
    %c2_221 = arith.constant 2 : index
    %c17_222 = arith.constant 17 : index
    %377 = memref.load %arg2[%c2_221, %c17_222] : memref<4x36xf32, #tpu.memory_space<smem>>
    %378 = vector.broadcast %377 : f32 to vector<16x34xf32>
    %379 = arith.mulf %378, %368 : vector<16x34xf32>
    %380 = arith.addf %362, %379 : vector<16x34xf32>
    %c3_223 = arith.constant 3 : index
    %c17_224 = arith.constant 17 : index
    %381 = memref.load %arg2[%c3_223, %c17_224] : memref<4x36xf32, #tpu.memory_space<smem>>
    %382 = vector.broadcast %381 : f32 to vector<16x34xf32>
    %383 = arith.mulf %382, %368 : vector<16x34xf32>
    %384 = arith.addf %366, %383 : vector<16x34xf32>
    %c2_225 = arith.constant 2 : index
    %c0_226 = arith.constant 0 : index
    %c0_227 = arith.constant 0 : index
    %385 = vector.load %arg8[%c2_225, %c0_226, %c0_227] : memref<4x18x36xf32, #tpu.memory_space<vmem>>, vector<1x16x34xf32>
    %386 = vector.shape_cast %385 : vector<1x16x34xf32> to vector<16x34xf32>
    %c0_228 = arith.constant 0 : index
    %c18 = arith.constant 18 : index
    %387 = memref.load %arg2[%c0_228, %c18] : memref<4x36xf32, #tpu.memory_space<smem>>
    %388 = vector.broadcast %387 : f32 to vector<16x34xf32>
    %389 = arith.mulf %388, %386 : vector<16x34xf32>
    %390 = arith.addf %372, %389 : vector<16x34xf32>
    %c1_229 = arith.constant 1 : index
    %c18_230 = arith.constant 18 : index
    %391 = memref.load %arg2[%c1_229, %c18_230] : memref<4x36xf32, #tpu.memory_space<smem>>
    %392 = vector.broadcast %391 : f32 to vector<16x34xf32>
    %393 = arith.mulf %392, %386 : vector<16x34xf32>
    %394 = arith.addf %376, %393 : vector<16x34xf32>
    %c2_231 = arith.constant 2 : index
    %c18_232 = arith.constant 18 : index
    %395 = memref.load %arg2[%c2_231, %c18_232] : memref<4x36xf32, #tpu.memory_space<smem>>
    %396 = vector.broadcast %395 : f32 to vector<16x34xf32>
    %397 = arith.mulf %396, %386 : vector<16x34xf32>
    %398 = arith.addf %380, %397 : vector<16x34xf32>
    %c3_233 = arith.constant 3 : index
    %c18_234 = arith.constant 18 : index
    %399 = memref.load %arg2[%c3_233, %c18_234] : memref<4x36xf32, #tpu.memory_space<smem>>
    %400 = vector.broadcast %399 : f32 to vector<16x34xf32>
    %401 = arith.mulf %400, %386 : vector<16x34xf32>
    %402 = arith.addf %384, %401 : vector<16x34xf32>
    %c2_235 = arith.constant 2 : index
    %c0_236 = arith.constant 0 : index
    %c1_237 = arith.constant 1 : index
    %403 = vector.load %arg8[%c2_235, %c0_236, %c1_237] : memref<4x18x36xf32, #tpu.memory_space<vmem>>, vector<1x16x34xf32>
    %404 = vector.shape_cast %403 : vector<1x16x34xf32> to vector<16x34xf32>
    %c0_238 = arith.constant 0 : index
    %c19 = arith.constant 19 : index
    %405 = memref.load %arg2[%c0_238, %c19] : memref<4x36xf32, #tpu.memory_space<smem>>
    %406 = vector.broadcast %405 : f32 to vector<16x34xf32>
    %407 = arith.mulf %406, %404 : vector<16x34xf32>
    %408 = arith.addf %390, %407 : vector<16x34xf32>
    %c1_239 = arith.constant 1 : index
    %c19_240 = arith.constant 19 : index
    %409 = memref.load %arg2[%c1_239, %c19_240] : memref<4x36xf32, #tpu.memory_space<smem>>
    %410 = vector.broadcast %409 : f32 to vector<16x34xf32>
    %411 = arith.mulf %410, %404 : vector<16x34xf32>
    %412 = arith.addf %394, %411 : vector<16x34xf32>
    %c2_241 = arith.constant 2 : index
    %c19_242 = arith.constant 19 : index
    %413 = memref.load %arg2[%c2_241, %c19_242] : memref<4x36xf32, #tpu.memory_space<smem>>
    %414 = vector.broadcast %413 : f32 to vector<16x34xf32>
    %415 = arith.mulf %414, %404 : vector<16x34xf32>
    %416 = arith.addf %398, %415 : vector<16x34xf32>
    %c3_243 = arith.constant 3 : index
    %c19_244 = arith.constant 19 : index
    %417 = memref.load %arg2[%c3_243, %c19_244] : memref<4x36xf32, #tpu.memory_space<smem>>
    %418 = vector.broadcast %417 : f32 to vector<16x34xf32>
    %419 = arith.mulf %418, %404 : vector<16x34xf32>
    %420 = arith.addf %402, %419 : vector<16x34xf32>
    %c2_245 = arith.constant 2 : index
    %c0_246 = arith.constant 0 : index
    %c2_247 = arith.constant 2 : index
    %421 = vector.load %arg8[%c2_245, %c0_246, %c2_247] : memref<4x18x36xf32, #tpu.memory_space<vmem>>, vector<1x16x34xf32>
    %422 = vector.shape_cast %421 : vector<1x16x34xf32> to vector<16x34xf32>
    %c0_248 = arith.constant 0 : index
    %c20 = arith.constant 20 : index
    %423 = memref.load %arg2[%c0_248, %c20] : memref<4x36xf32, #tpu.memory_space<smem>>
    %424 = vector.broadcast %423 : f32 to vector<16x34xf32>
    %425 = arith.mulf %424, %422 : vector<16x34xf32>
    %426 = arith.addf %408, %425 : vector<16x34xf32>
    %c1_249 = arith.constant 1 : index
    %c20_250 = arith.constant 20 : index
    %427 = memref.load %arg2[%c1_249, %c20_250] : memref<4x36xf32, #tpu.memory_space<smem>>
    %428 = vector.broadcast %427 : f32 to vector<16x34xf32>
    %429 = arith.mulf %428, %422 : vector<16x34xf32>
    %430 = arith.addf %412, %429 : vector<16x34xf32>
    %c2_251 = arith.constant 2 : index
    %c20_252 = arith.constant 20 : index
    %431 = memref.load %arg2[%c2_251, %c20_252] : memref<4x36xf32, #tpu.memory_space<smem>>
    %432 = vector.broadcast %431 : f32 to vector<16x34xf32>
    %433 = arith.mulf %432, %422 : vector<16x34xf32>
    %434 = arith.addf %416, %433 : vector<16x34xf32>
    %c3_253 = arith.constant 3 : index
    %c20_254 = arith.constant 20 : index
    %435 = memref.load %arg2[%c3_253, %c20_254] : memref<4x36xf32, #tpu.memory_space<smem>>
    %436 = vector.broadcast %435 : f32 to vector<16x34xf32>
    %437 = arith.mulf %436, %422 : vector<16x34xf32>
    %438 = arith.addf %420, %437 : vector<16x34xf32>
    %c2_255 = arith.constant 2 : index
    %c1_256 = arith.constant 1 : index
    %c0_257 = arith.constant 0 : index
    %439 = vector.load %arg8[%c2_255, %c1_256, %c0_257] : memref<4x18x36xf32, #tpu.memory_space<vmem>>, vector<1x16x34xf32>
    %440 = vector.shape_cast %439 : vector<1x16x34xf32> to vector<16x34xf32>
    %c0_258 = arith.constant 0 : index
    %c21 = arith.constant 21 : index
    %441 = memref.load %arg2[%c0_258, %c21] : memref<4x36xf32, #tpu.memory_space<smem>>
    %442 = vector.broadcast %441 : f32 to vector<16x34xf32>
    %443 = arith.mulf %442, %440 : vector<16x34xf32>
    %444 = arith.addf %426, %443 : vector<16x34xf32>
    %c1_259 = arith.constant 1 : index
    %c21_260 = arith.constant 21 : index
    %445 = memref.load %arg2[%c1_259, %c21_260] : memref<4x36xf32, #tpu.memory_space<smem>>
    %446 = vector.broadcast %445 : f32 to vector<16x34xf32>
    %447 = arith.mulf %446, %440 : vector<16x34xf32>
    %448 = arith.addf %430, %447 : vector<16x34xf32>
    %c2_261 = arith.constant 2 : index
    %c21_262 = arith.constant 21 : index
    %449 = memref.load %arg2[%c2_261, %c21_262] : memref<4x36xf32, #tpu.memory_space<smem>>
    %450 = vector.broadcast %449 : f32 to vector<16x34xf32>
    %451 = arith.mulf %450, %440 : vector<16x34xf32>
    %452 = arith.addf %434, %451 : vector<16x34xf32>
    %c3_263 = arith.constant 3 : index
    %c21_264 = arith.constant 21 : index
    %453 = memref.load %arg2[%c3_263, %c21_264] : memref<4x36xf32, #tpu.memory_space<smem>>
    %454 = vector.broadcast %453 : f32 to vector<16x34xf32>
    %455 = arith.mulf %454, %440 : vector<16x34xf32>
    %456 = arith.addf %438, %455 : vector<16x34xf32>
    %c2_265 = arith.constant 2 : index
    %c1_266 = arith.constant 1 : index
    %c1_267 = arith.constant 1 : index
    %457 = vector.load %arg8[%c2_265, %c1_266, %c1_267] : memref<4x18x36xf32, #tpu.memory_space<vmem>>, vector<1x16x34xf32>
    %458 = vector.shape_cast %457 : vector<1x16x34xf32> to vector<16x34xf32>
    %c0_268 = arith.constant 0 : index
    %c22 = arith.constant 22 : index
    %459 = memref.load %arg2[%c0_268, %c22] : memref<4x36xf32, #tpu.memory_space<smem>>
    %460 = vector.broadcast %459 : f32 to vector<16x34xf32>
    %461 = arith.mulf %460, %458 : vector<16x34xf32>
    %462 = arith.addf %444, %461 : vector<16x34xf32>
    %c1_269 = arith.constant 1 : index
    %c22_270 = arith.constant 22 : index
    %463 = memref.load %arg2[%c1_269, %c22_270] : memref<4x36xf32, #tpu.memory_space<smem>>
    %464 = vector.broadcast %463 : f32 to vector<16x34xf32>
    %465 = arith.mulf %464, %458 : vector<16x34xf32>
    %466 = arith.addf %448, %465 : vector<16x34xf32>
    %c2_271 = arith.constant 2 : index
    %c22_272 = arith.constant 22 : index
    %467 = memref.load %arg2[%c2_271, %c22_272] : memref<4x36xf32, #tpu.memory_space<smem>>
    %468 = vector.broadcast %467 : f32 to vector<16x34xf32>
    %469 = arith.mulf %468, %458 : vector<16x34xf32>
    %470 = arith.addf %452, %469 : vector<16x34xf32>
    %c3_273 = arith.constant 3 : index
    %c22_274 = arith.constant 22 : index
    %471 = memref.load %arg2[%c3_273, %c22_274] : memref<4x36xf32, #tpu.memory_space<smem>>
    %472 = vector.broadcast %471 : f32 to vector<16x34xf32>
    %473 = arith.mulf %472, %458 : vector<16x34xf32>
    %474 = arith.addf %456, %473 : vector<16x34xf32>
    %c2_275 = arith.constant 2 : index
    %c1_276 = arith.constant 1 : index
    %c2_277 = arith.constant 2 : index
    %475 = vector.load %arg8[%c2_275, %c1_276, %c2_277] : memref<4x18x36xf32, #tpu.memory_space<vmem>>, vector<1x16x34xf32>
    %476 = vector.shape_cast %475 : vector<1x16x34xf32> to vector<16x34xf32>
    %c0_278 = arith.constant 0 : index
    %c23 = arith.constant 23 : index
    %477 = memref.load %arg2[%c0_278, %c23] : memref<4x36xf32, #tpu.memory_space<smem>>
    %478 = vector.broadcast %477 : f32 to vector<16x34xf32>
    %479 = arith.mulf %478, %476 : vector<16x34xf32>
    %480 = arith.addf %462, %479 : vector<16x34xf32>
    %c1_279 = arith.constant 1 : index
    %c23_280 = arith.constant 23 : index
    %481 = memref.load %arg2[%c1_279, %c23_280] : memref<4x36xf32, #tpu.memory_space<smem>>
    %482 = vector.broadcast %481 : f32 to vector<16x34xf32>
    %483 = arith.mulf %482, %476 : vector<16x34xf32>
    %484 = arith.addf %466, %483 : vector<16x34xf32>
    %c2_281 = arith.constant 2 : index
    %c23_282 = arith.constant 23 : index
    %485 = memref.load %arg2[%c2_281, %c23_282] : memref<4x36xf32, #tpu.memory_space<smem>>
    %486 = vector.broadcast %485 : f32 to vector<16x34xf32>
    %487 = arith.mulf %486, %476 : vector<16x34xf32>
    %488 = arith.addf %470, %487 : vector<16x34xf32>
    %c3_283 = arith.constant 3 : index
    %c23_284 = arith.constant 23 : index
    %489 = memref.load %arg2[%c3_283, %c23_284] : memref<4x36xf32, #tpu.memory_space<smem>>
    %490 = vector.broadcast %489 : f32 to vector<16x34xf32>
    %491 = arith.mulf %490, %476 : vector<16x34xf32>
    %492 = arith.addf %474, %491 : vector<16x34xf32>
    %c2_285 = arith.constant 2 : index
    %c2_286 = arith.constant 2 : index
    %c0_287 = arith.constant 0 : index
    %493 = vector.load %arg8[%c2_285, %c2_286, %c0_287] : memref<4x18x36xf32, #tpu.memory_space<vmem>>, vector<1x16x34xf32>
    %494 = vector.shape_cast %493 : vector<1x16x34xf32> to vector<16x34xf32>
    %c0_288 = arith.constant 0 : index
    %c24 = arith.constant 24 : index
    %495 = memref.load %arg2[%c0_288, %c24] : memref<4x36xf32, #tpu.memory_space<smem>>
    %496 = vector.broadcast %495 : f32 to vector<16x34xf32>
    %497 = arith.mulf %496, %494 : vector<16x34xf32>
    %498 = arith.addf %480, %497 : vector<16x34xf32>
    %c1_289 = arith.constant 1 : index
    %c24_290 = arith.constant 24 : index
    %499 = memref.load %arg2[%c1_289, %c24_290] : memref<4x36xf32, #tpu.memory_space<smem>>
    %500 = vector.broadcast %499 : f32 to vector<16x34xf32>
    %501 = arith.mulf %500, %494 : vector<16x34xf32>
    %502 = arith.addf %484, %501 : vector<16x34xf32>
    %c2_291 = arith.constant 2 : index
    %c24_292 = arith.constant 24 : index
    %503 = memref.load %arg2[%c2_291, %c24_292] : memref<4x36xf32, #tpu.memory_space<smem>>
    %504 = vector.broadcast %503 : f32 to vector<16x34xf32>
    %505 = arith.mulf %504, %494 : vector<16x34xf32>
    %506 = arith.addf %488, %505 : vector<16x34xf32>
    %c3_293 = arith.constant 3 : index
    %c24_294 = arith.constant 24 : index
    %507 = memref.load %arg2[%c3_293, %c24_294] : memref<4x36xf32, #tpu.memory_space<smem>>
    %508 = vector.broadcast %507 : f32 to vector<16x34xf32>
    %509 = arith.mulf %508, %494 : vector<16x34xf32>
    %510 = arith.addf %492, %509 : vector<16x34xf32>
    %c2_295 = arith.constant 2 : index
    %c2_296 = arith.constant 2 : index
    %c1_297 = arith.constant 1 : index
    %511 = vector.load %arg8[%c2_295, %c2_296, %c1_297] : memref<4x18x36xf32, #tpu.memory_space<vmem>>, vector<1x16x34xf32>
    %512 = vector.shape_cast %511 : vector<1x16x34xf32> to vector<16x34xf32>
    %c0_298 = arith.constant 0 : index
    %c25 = arith.constant 25 : index
    %513 = memref.load %arg2[%c0_298, %c25] : memref<4x36xf32, #tpu.memory_space<smem>>
    %514 = vector.broadcast %513 : f32 to vector<16x34xf32>
    %515 = arith.mulf %514, %512 : vector<16x34xf32>
    %516 = arith.addf %498, %515 : vector<16x34xf32>
    %c1_299 = arith.constant 1 : index
    %c25_300 = arith.constant 25 : index
    %517 = memref.load %arg2[%c1_299, %c25_300] : memref<4x36xf32, #tpu.memory_space<smem>>
    %518 = vector.broadcast %517 : f32 to vector<16x34xf32>
    %519 = arith.mulf %518, %512 : vector<16x34xf32>
    %520 = arith.addf %502, %519 : vector<16x34xf32>
    %c2_301 = arith.constant 2 : index
    %c25_302 = arith.constant 25 : index
    %521 = memref.load %arg2[%c2_301, %c25_302] : memref<4x36xf32, #tpu.memory_space<smem>>
    %522 = vector.broadcast %521 : f32 to vector<16x34xf32>
    %523 = arith.mulf %522, %512 : vector<16x34xf32>
    %524 = arith.addf %506, %523 : vector<16x34xf32>
    %c3_303 = arith.constant 3 : index
    %c25_304 = arith.constant 25 : index
    %525 = memref.load %arg2[%c3_303, %c25_304] : memref<4x36xf32, #tpu.memory_space<smem>>
    %526 = vector.broadcast %525 : f32 to vector<16x34xf32>
    %527 = arith.mulf %526, %512 : vector<16x34xf32>
    %528 = arith.addf %510, %527 : vector<16x34xf32>
    %c2_305 = arith.constant 2 : index
    %c2_306 = arith.constant 2 : index
    %c2_307 = arith.constant 2 : index
    %529 = vector.load %arg8[%c2_305, %c2_306, %c2_307] : memref<4x18x36xf32, #tpu.memory_space<vmem>>, vector<1x16x34xf32>
    %530 = vector.shape_cast %529 : vector<1x16x34xf32> to vector<16x34xf32>
    %c0_308 = arith.constant 0 : index
    %c26 = arith.constant 26 : index
    %531 = memref.load %arg2[%c0_308, %c26] : memref<4x36xf32, #tpu.memory_space<smem>>
    %532 = vector.broadcast %531 : f32 to vector<16x34xf32>
    %533 = arith.mulf %532, %530 : vector<16x34xf32>
    %534 = arith.addf %516, %533 : vector<16x34xf32>
    %c1_309 = arith.constant 1 : index
    %c26_310 = arith.constant 26 : index
    %535 = memref.load %arg2[%c1_309, %c26_310] : memref<4x36xf32, #tpu.memory_space<smem>>
    %536 = vector.broadcast %535 : f32 to vector<16x34xf32>
    %537 = arith.mulf %536, %530 : vector<16x34xf32>
    %538 = arith.addf %520, %537 : vector<16x34xf32>
    %c2_311 = arith.constant 2 : index
    %c26_312 = arith.constant 26 : index
    %539 = memref.load %arg2[%c2_311, %c26_312] : memref<4x36xf32, #tpu.memory_space<smem>>
    %540 = vector.broadcast %539 : f32 to vector<16x34xf32>
    %541 = arith.mulf %540, %530 : vector<16x34xf32>
    %542 = arith.addf %524, %541 : vector<16x34xf32>
    %c3_313 = arith.constant 3 : index
    %c26_314 = arith.constant 26 : index
    %543 = memref.load %arg2[%c3_313, %c26_314] : memref<4x36xf32, #tpu.memory_space<smem>>
    %544 = vector.broadcast %543 : f32 to vector<16x34xf32>
    %545 = arith.mulf %544, %530 : vector<16x34xf32>
    %546 = arith.addf %528, %545 : vector<16x34xf32>
    %c3_315 = arith.constant 3 : index
    %c0_316 = arith.constant 0 : index
    %c0_317 = arith.constant 0 : index
    %547 = vector.load %arg8[%c3_315, %c0_316, %c0_317] : memref<4x18x36xf32, #tpu.memory_space<vmem>>, vector<1x16x34xf32>
    %548 = vector.shape_cast %547 : vector<1x16x34xf32> to vector<16x34xf32>
    %c0_318 = arith.constant 0 : index
    %c27 = arith.constant 27 : index
    %549 = memref.load %arg2[%c0_318, %c27] : memref<4x36xf32, #tpu.memory_space<smem>>
    %550 = vector.broadcast %549 : f32 to vector<16x34xf32>
    %551 = arith.mulf %550, %548 : vector<16x34xf32>
    %552 = arith.addf %534, %551 : vector<16x34xf32>
    %c1_319 = arith.constant 1 : index
    %c27_320 = arith.constant 27 : index
    %553 = memref.load %arg2[%c1_319, %c27_320] : memref<4x36xf32, #tpu.memory_space<smem>>
    %554 = vector.broadcast %553 : f32 to vector<16x34xf32>
    %555 = arith.mulf %554, %548 : vector<16x34xf32>
    %556 = arith.addf %538, %555 : vector<16x34xf32>
    %c2_321 = arith.constant 2 : index
    %c27_322 = arith.constant 27 : index
    %557 = memref.load %arg2[%c2_321, %c27_322] : memref<4x36xf32, #tpu.memory_space<smem>>
    %558 = vector.broadcast %557 : f32 to vector<16x34xf32>
    %559 = arith.mulf %558, %548 : vector<16x34xf32>
    %560 = arith.addf %542, %559 : vector<16x34xf32>
    %c3_323 = arith.constant 3 : index
    %c27_324 = arith.constant 27 : index
    %561 = memref.load %arg2[%c3_323, %c27_324] : memref<4x36xf32, #tpu.memory_space<smem>>
    %562 = vector.broadcast %561 : f32 to vector<16x34xf32>
    %563 = arith.mulf %562, %548 : vector<16x34xf32>
    %564 = arith.addf %546, %563 : vector<16x34xf32>
    %c3_325 = arith.constant 3 : index
    %c0_326 = arith.constant 0 : index
    %c1_327 = arith.constant 1 : index
    %565 = vector.load %arg8[%c3_325, %c0_326, %c1_327] : memref<4x18x36xf32, #tpu.memory_space<vmem>>, vector<1x16x34xf32>
    %566 = vector.shape_cast %565 : vector<1x16x34xf32> to vector<16x34xf32>
    %c0_328 = arith.constant 0 : index
    %c28 = arith.constant 28 : index
    %567 = memref.load %arg2[%c0_328, %c28] : memref<4x36xf32, #tpu.memory_space<smem>>
    %568 = vector.broadcast %567 : f32 to vector<16x34xf32>
    %569 = arith.mulf %568, %566 : vector<16x34xf32>
    %570 = arith.addf %552, %569 : vector<16x34xf32>
    %c1_329 = arith.constant 1 : index
    %c28_330 = arith.constant 28 : index
    %571 = memref.load %arg2[%c1_329, %c28_330] : memref<4x36xf32, #tpu.memory_space<smem>>
    %572 = vector.broadcast %571 : f32 to vector<16x34xf32>
    %573 = arith.mulf %572, %566 : vector<16x34xf32>
    %574 = arith.addf %556, %573 : vector<16x34xf32>
    %c2_331 = arith.constant 2 : index
    %c28_332 = arith.constant 28 : index
    %575 = memref.load %arg2[%c2_331, %c28_332] : memref<4x36xf32, #tpu.memory_space<smem>>
    %576 = vector.broadcast %575 : f32 to vector<16x34xf32>
    %577 = arith.mulf %576, %566 : vector<16x34xf32>
    %578 = arith.addf %560, %577 : vector<16x34xf32>
    %c3_333 = arith.constant 3 : index
    %c28_334 = arith.constant 28 : index
    %579 = memref.load %arg2[%c3_333, %c28_334] : memref<4x36xf32, #tpu.memory_space<smem>>
    %580 = vector.broadcast %579 : f32 to vector<16x34xf32>
    %581 = arith.mulf %580, %566 : vector<16x34xf32>
    %582 = arith.addf %564, %581 : vector<16x34xf32>
    %c3_335 = arith.constant 3 : index
    %c0_336 = arith.constant 0 : index
    %c2_337 = arith.constant 2 : index
    %583 = vector.load %arg8[%c3_335, %c0_336, %c2_337] : memref<4x18x36xf32, #tpu.memory_space<vmem>>, vector<1x16x34xf32>
    %584 = vector.shape_cast %583 : vector<1x16x34xf32> to vector<16x34xf32>
    %c0_338 = arith.constant 0 : index
    %c29 = arith.constant 29 : index
    %585 = memref.load %arg2[%c0_338, %c29] : memref<4x36xf32, #tpu.memory_space<smem>>
    %586 = vector.broadcast %585 : f32 to vector<16x34xf32>
    %587 = arith.mulf %586, %584 : vector<16x34xf32>
    %588 = arith.addf %570, %587 : vector<16x34xf32>
    %c1_339 = arith.constant 1 : index
    %c29_340 = arith.constant 29 : index
    %589 = memref.load %arg2[%c1_339, %c29_340] : memref<4x36xf32, #tpu.memory_space<smem>>
    %590 = vector.broadcast %589 : f32 to vector<16x34xf32>
    %591 = arith.mulf %590, %584 : vector<16x34xf32>
    %592 = arith.addf %574, %591 : vector<16x34xf32>
    %c2_341 = arith.constant 2 : index
    %c29_342 = arith.constant 29 : index
    %593 = memref.load %arg2[%c2_341, %c29_342] : memref<4x36xf32, #tpu.memory_space<smem>>
    %594 = vector.broadcast %593 : f32 to vector<16x34xf32>
    %595 = arith.mulf %594, %584 : vector<16x34xf32>
    %596 = arith.addf %578, %595 : vector<16x34xf32>
    %c3_343 = arith.constant 3 : index
    %c29_344 = arith.constant 29 : index
    %597 = memref.load %arg2[%c3_343, %c29_344] : memref<4x36xf32, #tpu.memory_space<smem>>
    %598 = vector.broadcast %597 : f32 to vector<16x34xf32>
    %599 = arith.mulf %598, %584 : vector<16x34xf32>
    %600 = arith.addf %582, %599 : vector<16x34xf32>
    %c3_345 = arith.constant 3 : index
    %c1_346 = arith.constant 1 : index
    %c0_347 = arith.constant 0 : index
    %601 = vector.load %arg8[%c3_345, %c1_346, %c0_347] : memref<4x18x36xf32, #tpu.memory_space<vmem>>, vector<1x16x34xf32>
    %602 = vector.shape_cast %601 : vector<1x16x34xf32> to vector<16x34xf32>
    %c0_348 = arith.constant 0 : index
    %c30 = arith.constant 30 : index
    %603 = memref.load %arg2[%c0_348, %c30] : memref<4x36xf32, #tpu.memory_space<smem>>
    %604 = vector.broadcast %603 : f32 to vector<16x34xf32>
    %605 = arith.mulf %604, %602 : vector<16x34xf32>
    %606 = arith.addf %588, %605 : vector<16x34xf32>
    %c1_349 = arith.constant 1 : index
    %c30_350 = arith.constant 30 : index
    %607 = memref.load %arg2[%c1_349, %c30_350] : memref<4x36xf32, #tpu.memory_space<smem>>
    %608 = vector.broadcast %607 : f32 to vector<16x34xf32>
    %609 = arith.mulf %608, %602 : vector<16x34xf32>
    %610 = arith.addf %592, %609 : vector<16x34xf32>
    %c2_351 = arith.constant 2 : index
    %c30_352 = arith.constant 30 : index
    %611 = memref.load %arg2[%c2_351, %c30_352] : memref<4x36xf32, #tpu.memory_space<smem>>
    %612 = vector.broadcast %611 : f32 to vector<16x34xf32>
    %613 = arith.mulf %612, %602 : vector<16x34xf32>
    %614 = arith.addf %596, %613 : vector<16x34xf32>
    %c3_353 = arith.constant 3 : index
    %c30_354 = arith.constant 30 : index
    %615 = memref.load %arg2[%c3_353, %c30_354] : memref<4x36xf32, #tpu.memory_space<smem>>
    %616 = vector.broadcast %615 : f32 to vector<16x34xf32>
    %617 = arith.mulf %616, %602 : vector<16x34xf32>
    %618 = arith.addf %600, %617 : vector<16x34xf32>
    %c3_355 = arith.constant 3 : index
    %c1_356 = arith.constant 1 : index
    %c1_357 = arith.constant 1 : index
    %619 = vector.load %arg8[%c3_355, %c1_356, %c1_357] : memref<4x18x36xf32, #tpu.memory_space<vmem>>, vector<1x16x34xf32>
    %620 = vector.shape_cast %619 : vector<1x16x34xf32> to vector<16x34xf32>
    %c0_358 = arith.constant 0 : index
    %c31 = arith.constant 31 : index
    %621 = memref.load %arg2[%c0_358, %c31] : memref<4x36xf32, #tpu.memory_space<smem>>
    %622 = vector.broadcast %621 : f32 to vector<16x34xf32>
    %623 = arith.mulf %622, %620 : vector<16x34xf32>
    %624 = arith.addf %606, %623 : vector<16x34xf32>
    %c1_359 = arith.constant 1 : index
    %c31_360 = arith.constant 31 : index
    %625 = memref.load %arg2[%c1_359, %c31_360] : memref<4x36xf32, #tpu.memory_space<smem>>
    %626 = vector.broadcast %625 : f32 to vector<16x34xf32>
    %627 = arith.mulf %626, %620 : vector<16x34xf32>
    %628 = arith.addf %610, %627 : vector<16x34xf32>
    %c2_361 = arith.constant 2 : index
    %c31_362 = arith.constant 31 : index
    %629 = memref.load %arg2[%c2_361, %c31_362] : memref<4x36xf32, #tpu.memory_space<smem>>
    %630 = vector.broadcast %629 : f32 to vector<16x34xf32>
    %631 = arith.mulf %630, %620 : vector<16x34xf32>
    %632 = arith.addf %614, %631 : vector<16x34xf32>
    %c3_363 = arith.constant 3 : index
    %c31_364 = arith.constant 31 : index
    %633 = memref.load %arg2[%c3_363, %c31_364] : memref<4x36xf32, #tpu.memory_space<smem>>
    %634 = vector.broadcast %633 : f32 to vector<16x34xf32>
    %635 = arith.mulf %634, %620 : vector<16x34xf32>
    %636 = arith.addf %618, %635 : vector<16x34xf32>
    %c3_365 = arith.constant 3 : index
    %c1_366 = arith.constant 1 : index
    %c2_367 = arith.constant 2 : index
    %637 = vector.load %arg8[%c3_365, %c1_366, %c2_367] : memref<4x18x36xf32, #tpu.memory_space<vmem>>, vector<1x16x34xf32>
    %638 = vector.shape_cast %637 : vector<1x16x34xf32> to vector<16x34xf32>
    %c0_368 = arith.constant 0 : index
    %c32 = arith.constant 32 : index
    %639 = memref.load %arg2[%c0_368, %c32] : memref<4x36xf32, #tpu.memory_space<smem>>
    %640 = vector.broadcast %639 : f32 to vector<16x34xf32>
    %641 = arith.mulf %640, %638 : vector<16x34xf32>
    %642 = arith.addf %624, %641 : vector<16x34xf32>
    %c1_369 = arith.constant 1 : index
    %c32_370 = arith.constant 32 : index
    %643 = memref.load %arg2[%c1_369, %c32_370] : memref<4x36xf32, #tpu.memory_space<smem>>
    %644 = vector.broadcast %643 : f32 to vector<16x34xf32>
    %645 = arith.mulf %644, %638 : vector<16x34xf32>
    %646 = arith.addf %628, %645 : vector<16x34xf32>
    %c2_371 = arith.constant 2 : index
    %c32_372 = arith.constant 32 : index
    %647 = memref.load %arg2[%c2_371, %c32_372] : memref<4x36xf32, #tpu.memory_space<smem>>
    %648 = vector.broadcast %647 : f32 to vector<16x34xf32>
    %649 = arith.mulf %648, %638 : vector<16x34xf32>
    %650 = arith.addf %632, %649 : vector<16x34xf32>
    %c3_373 = arith.constant 3 : index
    %c32_374 = arith.constant 32 : index
    %651 = memref.load %arg2[%c3_373, %c32_374] : memref<4x36xf32, #tpu.memory_space<smem>>
    %652 = vector.broadcast %651 : f32 to vector<16x34xf32>
    %653 = arith.mulf %652, %638 : vector<16x34xf32>
    %654 = arith.addf %636, %653 : vector<16x34xf32>
    %c3_375 = arith.constant 3 : index
    %c2_376 = arith.constant 2 : index
    %c0_377 = arith.constant 0 : index
    %655 = vector.load %arg8[%c3_375, %c2_376, %c0_377] : memref<4x18x36xf32, #tpu.memory_space<vmem>>, vector<1x16x34xf32>
    %656 = vector.shape_cast %655 : vector<1x16x34xf32> to vector<16x34xf32>
    %c0_378 = arith.constant 0 : index
    %c33 = arith.constant 33 : index
    %657 = memref.load %arg2[%c0_378, %c33] : memref<4x36xf32, #tpu.memory_space<smem>>
    %658 = vector.broadcast %657 : f32 to vector<16x34xf32>
    %659 = arith.mulf %658, %656 : vector<16x34xf32>
    %660 = arith.addf %642, %659 : vector<16x34xf32>
    %c1_379 = arith.constant 1 : index
    %c33_380 = arith.constant 33 : index
    %661 = memref.load %arg2[%c1_379, %c33_380] : memref<4x36xf32, #tpu.memory_space<smem>>
    %662 = vector.broadcast %661 : f32 to vector<16x34xf32>
    %663 = arith.mulf %662, %656 : vector<16x34xf32>
    %664 = arith.addf %646, %663 : vector<16x34xf32>
    %c2_381 = arith.constant 2 : index
    %c33_382 = arith.constant 33 : index
    %665 = memref.load %arg2[%c2_381, %c33_382] : memref<4x36xf32, #tpu.memory_space<smem>>
    %666 = vector.broadcast %665 : f32 to vector<16x34xf32>
    %667 = arith.mulf %666, %656 : vector<16x34xf32>
    %668 = arith.addf %650, %667 : vector<16x34xf32>
    %c3_383 = arith.constant 3 : index
    %c33_384 = arith.constant 33 : index
    %669 = memref.load %arg2[%c3_383, %c33_384] : memref<4x36xf32, #tpu.memory_space<smem>>
    %670 = vector.broadcast %669 : f32 to vector<16x34xf32>
    %671 = arith.mulf %670, %656 : vector<16x34xf32>
    %672 = arith.addf %654, %671 : vector<16x34xf32>
    %c3_385 = arith.constant 3 : index
    %c2_386 = arith.constant 2 : index
    %c1_387 = arith.constant 1 : index
    %673 = vector.load %arg8[%c3_385, %c2_386, %c1_387] : memref<4x18x36xf32, #tpu.memory_space<vmem>>, vector<1x16x34xf32>
    %674 = vector.shape_cast %673 : vector<1x16x34xf32> to vector<16x34xf32>
    %c0_388 = arith.constant 0 : index
    %c34 = arith.constant 34 : index
    %675 = memref.load %arg2[%c0_388, %c34] : memref<4x36xf32, #tpu.memory_space<smem>>
    %676 = vector.broadcast %675 : f32 to vector<16x34xf32>
    %677 = arith.mulf %676, %674 : vector<16x34xf32>
    %678 = arith.addf %660, %677 : vector<16x34xf32>
    %c1_389 = arith.constant 1 : index
    %c34_390 = arith.constant 34 : index
    %679 = memref.load %arg2[%c1_389, %c34_390] : memref<4x36xf32, #tpu.memory_space<smem>>
    %680 = vector.broadcast %679 : f32 to vector<16x34xf32>
    %681 = arith.mulf %680, %674 : vector<16x34xf32>
    %682 = arith.addf %664, %681 : vector<16x34xf32>
    %c2_391 = arith.constant 2 : index
    %c34_392 = arith.constant 34 : index
    %683 = memref.load %arg2[%c2_391, %c34_392] : memref<4x36xf32, #tpu.memory_space<smem>>
    %684 = vector.broadcast %683 : f32 to vector<16x34xf32>
    %685 = arith.mulf %684, %674 : vector<16x34xf32>
    %686 = arith.addf %668, %685 : vector<16x34xf32>
    %c3_393 = arith.constant 3 : index
    %c34_394 = arith.constant 34 : index
    %687 = memref.load %arg2[%c3_393, %c34_394] : memref<4x36xf32, #tpu.memory_space<smem>>
    %688 = vector.broadcast %687 : f32 to vector<16x34xf32>
    %689 = arith.mulf %688, %674 : vector<16x34xf32>
    %690 = arith.addf %672, %689 : vector<16x34xf32>
    %c3_395 = arith.constant 3 : index
    %c2_396 = arith.constant 2 : index
    %c2_397 = arith.constant 2 : index
    %691 = vector.load %arg8[%c3_395, %c2_396, %c2_397] : memref<4x18x36xf32, #tpu.memory_space<vmem>>, vector<1x16x34xf32>
    %692 = vector.shape_cast %691 : vector<1x16x34xf32> to vector<16x34xf32>
    %c0_398 = arith.constant 0 : index
    %c35 = arith.constant 35 : index
    %693 = memref.load %arg2[%c0_398, %c35] : memref<4x36xf32, #tpu.memory_space<smem>>
    %694 = vector.broadcast %693 : f32 to vector<16x34xf32>
    %695 = arith.mulf %694, %692 : vector<16x34xf32>
    %696 = arith.addf %678, %695 : vector<16x34xf32>
    %c1_399 = arith.constant 1 : index
    %c35_400 = arith.constant 35 : index
    %697 = memref.load %arg2[%c1_399, %c35_400] : memref<4x36xf32, #tpu.memory_space<smem>>
    %698 = vector.broadcast %697 : f32 to vector<16x34xf32>
    %699 = arith.mulf %698, %692 : vector<16x34xf32>
    %700 = arith.addf %682, %699 : vector<16x34xf32>
    %c2_401 = arith.constant 2 : index
    %c35_402 = arith.constant 35 : index
    %701 = memref.load %arg2[%c2_401, %c35_402] : memref<4x36xf32, #tpu.memory_space<smem>>
    %702 = vector.broadcast %701 : f32 to vector<16x34xf32>
    %703 = arith.mulf %702, %692 : vector<16x34xf32>
    %704 = arith.addf %686, %703 : vector<16x34xf32>
    %c3_403 = arith.constant 3 : index
    %c35_404 = arith.constant 35 : index
    %705 = memref.load %arg2[%c3_403, %c35_404] : memref<4x36xf32, #tpu.memory_space<smem>>
    %706 = vector.broadcast %705 : f32 to vector<16x34xf32>
    %707 = arith.mulf %706, %692 : vector<16x34xf32>
    %708 = arith.addf %690, %707 : vector<16x34xf32>
    %c1_405 = arith.constant 1 : index
    %c1_406 = arith.constant 1 : index
    %709 = vector.load %arg5[%c1_405, %c1_406] : memref<18x36xf32, #tpu.memory_space<vmem>>, vector<16x34xf32>
    %cst_407 = arith.constant 0.000000e+00 : f32
    %710 = vector.broadcast %cst_407 : f32 to vector<1x4x18x36xf32>
    %c0_408 = arith.constant 0 : index
    %c0_409 = arith.constant 0 : index
    %c0_410 = arith.constant 0 : index
    %c0_411 = arith.constant 0 : index
    %711 = vector.load %arg6[%c0_408, %c0_409, %c0_410, %c0_411] : memref<1x4x18x36xf32, #tpu.memory_space<vmem>>, vector<1x4x18x36xf32>
    tpu.vector_store %arg6[%c0_408, %c0_409, %c0_410, %c0_411], %710 {strides = array<i32>} : memref<1x4x18x36xf32, #tpu.memory_space<vmem>>, vector<1x4x18x36xf32>,
    %712 = arith.mulf %696, %709 : vector<16x34xf32>
    %c0_412 = arith.constant 0 : index
    %c0_413 = arith.constant 0 : index
    %c1_414 = arith.constant 1 : index
    %c1_415 = arith.constant 1 : index
    %713 = vector.load %arg6[%c0_412, %c0_413, %c1_414, %c1_415] : memref<1x4x18x36xf32, #tpu.memory_space<vmem>>, vector<1x1x16x34xf32>
    %714 = vector.shape_cast %713 : vector<1x1x16x34xf32> to vector<16x34xf32>
    %715 = vector.shape_cast %712 : vector<16x34xf32> to vector<1x1x16x34xf32>
    tpu.vector_store %arg6[%c0_412, %c0_413, %c1_414, %c1_415], %715 {strides = array<i32>} : memref<1x4x18x36xf32, #tpu.memory_space<vmem>>, vector<1x1x16x34xf32>,
    %716 = vector.shape_cast %712 : vector<16x34xf32> to vector<1x16x34xf32>
    %cst_416 = arith.constant dense<0.000000e+00> : vector<1xf32>
    %717 = vector.multi_reduction <add>, %716, %cst_416 [1, 2] : vector<1x16x34xf32> to vector<1xf32>
    %718 = vector.shape_cast %717 : vector<1xf32> to vector<1x1x1xf32>
    %719 = vector.extract %718[0, 0, 0] : f32 from vector<1x1x1xf32>
    %720 = arith.mulf %712, %712 : vector<16x34xf32>
    %721 = vector.shape_cast %720 : vector<16x34xf32> to vector<1x16x34xf32>
    %cst_417 = arith.constant dense<0.000000e+00> : vector<1xf32>
    %722 = vector.multi_reduction <add>, %721, %cst_417 [1, 2] : vector<1x16x34xf32> to vector<1xf32>
    %723 = vector.shape_cast %722 : vector<1xf32> to vector<1x1x1xf32>
    %724 = vector.extract %723[0, 0, 0] : f32 from vector<1x1x1xf32>
    %725 = arith.mulf %700, %709 : vector<16x34xf32>
    %c0_418 = arith.constant 0 : index
    %c1_419 = arith.constant 1 : index
    %c1_420 = arith.constant 1 : index
    %c1_421 = arith.constant 1 : index
    %726 = vector.load %arg6[%c0_418, %c1_419, %c1_420, %c1_421] : memref<1x4x18x36xf32, #tpu.memory_space<vmem>>, vector<1x1x16x34xf32>
    %727 = vector.shape_cast %726 : vector<1x1x16x34xf32> to vector<16x34xf32>
    %728 = vector.shape_cast %725 : vector<16x34xf32> to vector<1x1x16x34xf32>
    tpu.vector_store %arg6[%c0_418, %c1_419, %c1_420, %c1_421], %728 {strides = array<i32>} : memref<1x4x18x36xf32, #tpu.memory_space<vmem>>, vector<1x1x16x34xf32>,
    %729 = vector.shape_cast %725 : vector<16x34xf32> to vector<1x16x34xf32>
    %cst_422 = arith.constant dense<0.000000e+00> : vector<1xf32>
    %730 = vector.multi_reduction <add>, %729, %cst_422 [1, 2] : vector<1x16x34xf32> to vector<1xf32>
    %731 = vector.shape_cast %730 : vector<1xf32> to vector<1x1x1xf32>
    %732 = vector.extract %731[0, 0, 0] : f32 from vector<1x1x1xf32>
    %733 = arith.mulf %725, %725 : vector<16x34xf32>
    %734 = vector.shape_cast %733 : vector<16x34xf32> to vector<1x16x34xf32>
    %cst_423 = arith.constant dense<0.000000e+00> : vector<1xf32>
    %735 = vector.multi_reduction <add>, %734, %cst_423 [1, 2] : vector<1x16x34xf32> to vector<1xf32>
    %736 = vector.shape_cast %735 : vector<1xf32> to vector<1x1x1xf32>
    %737 = vector.extract %736[0, 0, 0] : f32 from vector<1x1x1xf32>
    %738 = arith.mulf %704, %709 : vector<16x34xf32>
    %c0_424 = arith.constant 0 : index
    %c2_425 = arith.constant 2 : index
    %c1_426 = arith.constant 1 : index
    %c1_427 = arith.constant 1 : index
    %739 = vector.load %arg6[%c0_424, %c2_425, %c1_426, %c1_427] : memref<1x4x18x36xf32, #tpu.memory_space<vmem>>, vector<1x1x16x34xf32>
    %740 = vector.shape_cast %739 : vector<1x1x16x34xf32> to vector<16x34xf32>
    %741 = vector.shape_cast %738 : vector<16x34xf32> to vector<1x1x16x34xf32>
    tpu.vector_store %arg6[%c0_424, %c2_425, %c1_426, %c1_427], %741 {strides = array<i32>} : memref<1x4x18x36xf32, #tpu.memory_space<vmem>>, vector<1x1x16x34xf32>,
    %742 = vector.shape_cast %738 : vector<16x34xf32> to vector<1x16x34xf32>
    %cst_428 = arith.constant dense<0.000000e+00> : vector<1xf32>
    %743 = vector.multi_reduction <add>, %742, %cst_428 [1, 2] : vector<1x16x34xf32> to vector<1xf32>
    %744 = vector.shape_cast %743 : vector<1xf32> to vector<1x1x1xf32>
    %745 = vector.extract %744[0, 0, 0] : f32 from vector<1x1x1xf32>
    %746 = arith.mulf %738, %738 : vector<16x34xf32>
    %747 = vector.shape_cast %746 : vector<16x34xf32> to vector<1x16x34xf32>
    %cst_429 = arith.constant dense<0.000000e+00> : vector<1xf32>
    %748 = vector.multi_reduction <add>, %747, %cst_429 [1, 2] : vector<1x16x34xf32> to vector<1xf32>
    %749 = vector.shape_cast %748 : vector<1xf32> to vector<1x1x1xf32>
    %750 = vector.extract %749[0, 0, 0] : f32 from vector<1x1x1xf32>
    %751 = arith.mulf %708, %709 : vector<16x34xf32>
    %c0_430 = arith.constant 0 : index
    %c3_431 = arith.constant 3 : index
    %c1_432 = arith.constant 1 : index
    %c1_433 = arith.constant 1 : index
    %752 = vector.load %arg6[%c0_430, %c3_431, %c1_432, %c1_433] : memref<1x4x18x36xf32, #tpu.memory_space<vmem>>, vector<1x1x16x34xf32>
    %753 = vector.shape_cast %752 : vector<1x1x16x34xf32> to vector<16x34xf32>
    %754 = vector.shape_cast %751 : vector<16x34xf32> to vector<1x1x16x34xf32>
    tpu.vector_store %arg6[%c0_430, %c3_431, %c1_432, %c1_433], %754 {strides = array<i32>} : memref<1x4x18x36xf32, #tpu.memory_space<vmem>>, vector<1x1x16x34xf32>,
    %755 = vector.shape_cast %751 : vector<16x34xf32> to vector<1x16x34xf32>
    %cst_434 = arith.constant dense<0.000000e+00> : vector<1xf32>
    %756 = vector.multi_reduction <add>, %755, %cst_434 [1, 2] : vector<1x16x34xf32> to vector<1xf32>
    %757 = vector.shape_cast %756 : vector<1xf32> to vector<1x1x1xf32>
    %758 = vector.extract %757[0, 0, 0] : f32 from vector<1x1x1xf32>
    %759 = arith.mulf %751, %751 : vector<16x34xf32>
    %760 = vector.shape_cast %759 : vector<16x34xf32> to vector<1x16x34xf32>
    %cst_435 = arith.constant dense<0.000000e+00> : vector<1xf32>
    %761 = vector.multi_reduction <add>, %760, %cst_435 [1, 2] : vector<1x16x34xf32> to vector<1xf32>
    %762 = vector.shape_cast %761 : vector<1xf32> to vector<1x1x1xf32>
    %763 = vector.extract %762[0, 0, 0] : f32 from vector<1x1x1xf32>
    %764 = vector.broadcast %719 : f32 to vector<1xf32>
    %765 = vector.broadcast %732 : f32 to vector<1xf32>
    %766 = vector.broadcast %745 : f32 to vector<1xf32>
    %767 = vector.broadcast %758 : f32 to vector<1xf32>
    %768 = tpu.concatenate %764, %765, %766, %767 in 0 : vector<1xf32>, vector<1xf32>, vector<1xf32>, vector<1xf32> -> vector<4xf32>
    %769 = vector.broadcast %724 : f32 to vector<1xf32>
    %770 = vector.broadcast %737 : f32 to vector<1xf32>
    %771 = vector.broadcast %750 : f32 to vector<1xf32>
    %772 = vector.broadcast %763 : f32 to vector<1xf32>
    %773 = tpu.concatenate %769, %770, %771, %772 in 0 : vector<1xf32>, vector<1xf32>, vector<1xf32>, vector<1xf32> -> vector<4xf32>
    %774 = vector.shape_cast %768 : vector<4xf32> to vector<1x4xf32>
    %775 = vector.shape_cast %773 : vector<4xf32> to vector<1x4xf32>
    %776 = tpu.concatenate %774, %775 in 0 : vector<1x4xf32>, vector<1x4xf32> -> vector<2x4xf32>
    %777 = vector.shape_cast %776 : vector<2x4xf32> to vector<1x2x4xf32>
    %c0_436 = arith.constant 0 : index
    %c0_437 = arith.constant 0 : index
    %c0_438 = arith.constant 0 : index
    %778 = vector.load %arg7[%c0_436, %c0_437, %c0_438] : memref<1x2x4xf32, #tpu.memory_space<vmem>>, vector<1x2x4xf32>
    tpu.vector_store %arg7[%c0_436, %c0_437, %c0_438], %777 {strides = array<i32>} : memref<1x2x4xf32, #tpu.memory_space<vmem>>, vector<1x2x4xf32>,
    return
  }
  func.func @transform_0(%arg0: i32) -> (i32, i32, i32, i32) {
    %c0_i32 = arith.constant 0 : i32
    %c0_i32_0 = arith.constant 0 : i32
    %c0_i32_1 = arith.constant 0 : i32
    %c0_i32_2 = arith.constant 0 : i32
    return %arg0, %c0_i32, %c0_i32_0, %c0_i32_1 : i32, i32, i32, i32
  }
  func.func @transform_1(%arg0: i32) -> (i32, i32) {
    %c0_i32 = arith.constant 0 : i32
    %c0_i32_0 = arith.constant 0 : i32
    %c0_i32_1 = arith.constant 0 : i32
    return %c0_i32, %c0_i32_0 : i32, i32
  }
  func.func @transform_2(%arg0: i32) -> i32 {
    %c0_i32 = arith.constant 0 : i32
    %c0_i32_0 = arith.constant 0 : i32
    return %c0_i32 : i32
  }
  func.func @transform_3(%arg0: i32) -> i32 {
    %c0_i32 = arith.constant 0 : i32
    %c0_i32_0 = arith.constant 0 : i32
    return %c0_i32 : i32
  }
  func.func @transform_4(%arg0: i32) -> (i32, i32) {
    %c0_i32 = arith.constant 0 : i32
    %c0_i32_0 = arith.constant 0 : i32
    %c0_i32_1 = arith.constant 0 : i32
    return %c0_i32, %c0_i32_0 : i32, i32
  }
  func.func @transform_5(%arg0: i32) -> (i32, i32, i32, i32) {
    %c0_i32 = arith.constant 0 : i32
    %c0_i32_0 = arith.constant 0 : i32
    %c0_i32_1 = arith.constant 0 : i32
    %c0_i32_2 = arith.constant 0 : i32
    return %arg0, %c0_i32, %c0_i32_0, %c0_i32_1 : i32, i32, i32, i32
  }
  func.func @transform_6(%arg0: i32) -> (i32, i32, i32) {
    %c0_i32 = arith.constant 0 : i32
    %c0_i32_0 = arith.constant 0 : i32
    %c0_i32_1 = arith.constant 0 : i32
    return %arg0, %c0_i32, %c0_i32_0 : i32, i32, i32
  }
}

</mosaic_0001>

<llo_original>
// kernel: scnn_block1_forward.5
$region0: #{scnn_block1_forward.5}
  #allocation0 [shape = 'u32[]', space=smem, size = 0x4, offset = 0x4, fixed_abs, tag = 'smem constant byte address 0x4 - core index']
  #allocation1 [shape = 'u32[144,128]{1,0:T(1,128)}', space=vmem, size = 0x12000, scoped, tag = 'internal scratch']
  %s0 = inlined_call_operand.vmem [shape: f32[1,4,18,36], index: 0, kind: input, shape index: {}]
  %s1 = inlined_call_operand.vmem [shape: f32[4], index: 1, kind: input, shape index: {}]
  %s2 = inlined_call_operand.vmem [shape: f32[4], index: 2, kind: input, shape index: {}]
  %s3 = inlined_call_operand.vmem [shape: f32[1,4,18,36], index: 3, kind: output, shape index: {}]
  %s4 = sld [smem:[#allocation0]]
  $region30: #{scnn_block1_forward.5} parent=0
    _
  %s6 = ssub.s32 1, %s4
  %s7 = scalar_select 0, %s6, %s4
  $region1: #{scnn_block1_forward.5} parent=0
    #allocation2 [shape = 'u8[512]{0}', space=smem, size = 0x200, scoped, tag = 'input window, operand 1, single buffered']
    #allocation3 [shape = 's32[1]{0}', space=sflag, size = 0x4, scoped, tag = 'scoped memory for scnn_block1_forward.5']
    #allocation4 [shape = 'u8[512]{0}', space=smem, size = 0x200, scoped, tag = 'input window, operand 2, single buffered']
    #allocation5 [shape = 's32[1]{0}', space=sflag, size = 0x4, scoped, tag = 'scoped memory for scnn_block1_forward.5']
    %8 = vsyncpa [#allocation3], 0
    %9 = vsyncpa [#allocation5], 0
    // Predicated region
    $region2: #{scnn_block1_forward.5} parent=1 // pred_check
      _
    $region3: #{scnn_block1_forward.5} parent=1 // pred_check_branch
      %11 = sbr.rel (0) target = $region5
    $region4: #{scnn_block1_forward.5} parent=1 // pred_region
      _
    $region5: #{scnn_block1_forward.5} parent=1 // pred_fallthru
      _
    // Predicated region
    $region6: #{scnn_block1_forward.5} parent=1 // pred_check
      _
    $region7: #{scnn_block1_forward.5} parent=1 // pred_check_branch
      %13 = sbr.rel (0) target = $region9
    $region8: #{scnn_block1_forward.5} parent=1 // pred_region
      %s15 = ssub.s32 16, 16
      %16 = vsyncadd [#allocation3], %s15
      %s18 = sshll.u32 %s1, 4
      %s19 = int_to_ptr.vmem [resolvable:$true] %s18
      %21 = dma.vmem_to_smem %s19, 16, [#allocation2], [#allocation3]
    $region9: #{scnn_block1_forward.5} parent=1 // pred_fallthru
      _
    // Predicated region
    $region10: #{scnn_block1_forward.5} parent=1 // pred_check
      _
    $region11: #{scnn_block1_forward.5} parent=1 // pred_check_branch
      %23 = sbr.rel (0) target = $region13
    $region12: #{scnn_block1_forward.5} parent=1 // pred_region
      %s25 = ssub.s32 16, 16
      %26 = vsyncadd [#allocation5], %s25
      %s28 = sshll.u32 %s2, 4
      %s29 = int_to_ptr.vmem [resolvable:$true] %s28
      %31 = dma.vmem_to_smem %s29, 16, [#allocation4], [#allocation5]
    $region13: #{scnn_block1_forward.5} parent=1 // pred_fallthru
      _
    // Predicated region
    $region14: #{scnn_block1_forward.5} parent=1 // pred_check
      _
    $region15: #{scnn_block1_forward.5} parent=1 // pred_check_branch
      %33 = sbr.rel (0) target = $region17
    $region16: #{scnn_block1_forward.5} parent=1 // pred_region
      %34 = dma.done [#allocation3], 16
    $region17: #{scnn_block1_forward.5} parent=1 // pred_fallthru
      _
    // Predicated region
    $region18: #{scnn_block1_forward.5} parent=1 // pred_check
      _
    $region19: #{scnn_block1_forward.5} parent=1 // pred_check_branch
      %36 = sbr.rel (0) target = $region21
    $region20: #{scnn_block1_forward.5} parent=1 // pred_region
      %37 = dma.done [#allocation5], 16
    $region21: #{scnn_block1_forward.5} parent=1 // pred_fallthru
      _
    %38 = sfence
    %v39 = vld [vmem:[%s0] sm:$0xff]
    %v40 = vld [vmem:[%s0 + $0x8] sm:$0xff]
    %v41 = vld [vmem:[%s0 + $0x10] sm:$0x3]
    %s42 = sld [smem:[#allocation2]]
    %v43 = vstv %s42
    %v44 = vmul.f32 %v39, %v43
    %v45 = vmul.f32 %v40, %v43
    %v46 = vmul.f32 %v41, %v43
    %s47 = sld [smem:[#allocation4]]
    %v48 = vstv %s47
    %v49 = vadd.f32 %v44, %v48
    %v50 = vadd.f32 %v45, %v48
    %v51 = vadd.f32 %v46, %v48
    %v52 = vmax.f32 %v49, 0.0
    %v53 = vmax.f32 %v50, 0.0
    %v54 = vmax.f32 %v51, 0.0
    %vm55 = vcmask 293888
    %56 = vst.msk [vmem:[%s3] sm:$0xff] %vm55, %v52
    %57 = vst.msk [vmem:[%s3 + $0x8] sm:$0xff] %vm55, %v53
    %vm58 = vcmask 287744
    %59 = vst.msk [vmem:[%s3 + $0x10] sm:$0x3] %vm58, %v54
    %s60 = scalar_lea.vmem %s0, 24
    %v61 = vld [vmem:[%s60] sm:$0xff]
    %v62 = vld [vmem:[%s60 + $0x8] sm:$0xff]
    %v63 = vld [vmem:[%s60 + $0x10] sm:$0x3]
    %s64 = sld [smem:[#allocation2 + $0x1]]
    %v65 = vstv %s64
    %v66 = vmul.f32 %v61, %v65
    %v67 = vmul.f32 %v62, %v65
    %v68 = vmul.f32 %v63, %v65
    %s69 = sld [smem:[#allocation4 + $0x1]]
    %v70 = vstv %s69
    %v71 = vadd.f32 %v66, %v70
    %v72 = vadd.f32 %v67, %v70
    %v73 = vadd.f32 %v68, %v70
    %v74 = vmax.f32 %v71, 0.0
    %v75 = vmax.f32 %v72, 0.0
    %v76 = vmax.f32 %v73, 0.0
    %s77 = scalar_lea.vmem %s3, 24
    %78 = vst.msk [vmem:[%s77] sm:$0xff] %vm55, %v74
    %79 = vst.msk [vmem:[%s77 + $0x8] sm:$0xff] %vm55, %v75
    %80 = vst.msk [vmem:[%s77 + $0x10] sm:$0x3] %vm58, %v76
    %s81 = scalar_lea.vmem %s0, 48
    %v82 = vld [vmem:[%s81] sm:$0xff]
    %v83 = vld [vmem:[%s81 + $0x8] sm:$0xff]
    %v84 = vld [vmem:[%s81 + $0x10] sm:$0x3]
    %s85 = sld [smem:[#allocation2 + $0x2]]
    %v86 = vstv %s85
    %v87 = vmul.f32 %v82, %v86
    %v88 = vmul.f32 %v83, %v86
    %v89 = vmul.f32 %v84, %v86
    %s90 = sld [smem:[#allocation4 + $0x2]]
    %v91 = vstv %s90
    %v92 = vadd.f32 %v87, %v91
    %v93 = vadd.f32 %v88, %v91
    %v94 = vadd.f32 %v89, %v91
    %v95 = vmax.f32 %v92, 0.0
    %v96 = vmax.f32 %v93, 0.0
    %v97 = vmax.f32 %v94, 0.0
    %s98 = scalar_lea.vmem %s3, 48
    %99 = vst.msk [vmem:[%s98] sm:$0xff] %vm55, %v95
    %100 = vst.msk [vmem:[%s98 + $0x8] sm:$0xff] %vm55, %v96
    %101 = vst.msk [vmem:[%s98 + $0x10] sm:$0x3] %vm58, %v97
    %s102 = scalar_lea.vmem %s0, 72
    %v103 = vld [vmem:[%s102] sm:$0xff]
    %v104 = vld [vmem:[%s102 + $0x8] sm:$0xff]
    %v105 = vld [vmem:[%s102 + $0x10] sm:$0x3]
    %s106 = sld [smem:[#allocation2 + $0x3]]
    %v107 = vstv %s106
    %v108 = vmul.f32 %v103, %v107
    %v109 = vmul.f32 %v104, %v107
    %v110 = vmul.f32 %v105, %v107
    %s111 = sld [smem:[#allocation4 + $0x3]]
    %v112 = vstv %s111
    %v113 = vadd.f32 %v108, %v112
    %v114 = vadd.f32 %v109, %v112
    %v115 = vadd.f32 %v110, %v112
    %v116 = vmax.f32 %v113, 0.0
    %v117 = vmax.f32 %v114, 0.0
    %v118 = vmax.f32 %v115, 0.0
    %s119 = scalar_lea.vmem %s3, 72
    %120 = vst.msk [vmem:[%s119] sm:$0xff] %vm55, %v116
    %121 = vst.msk [vmem:[%s119 + $0x8] sm:$0xff] %vm55, %v117
    %122 = vst.msk [vmem:[%s119 + $0x10] sm:$0x3] %vm58, %v118
    // Predicated region
    $region22: #{scnn_block1_forward.5} parent=1 // pred_check
      _
    $region23: #{scnn_block1_forward.5} parent=1 // pred_check_branch
      %124 = sbr.rel (0) target = $region25
    $region24: #{scnn_block1_forward.5} parent=1 // pred_region
      _
    $region25: #{scnn_block1_forward.5} parent=1 // pred_fallthru
      _
    // Predicated region
    $region26: #{scnn_block1_forward.5} parent=1 // pred_check
      _
    $region27: #{scnn_block1_forward.5} parent=1 // pred_check_branch
      %126 = sbr.rel (0) target = $region29
    $region28: #{scnn_block1_forward.5} parent=1 // pred_region
      _
    $region29: #{scnn_block1_forward.5} parent=1 // pred_fallthru
      _
    %127 = vsyncpa [#allocation3], 1
    %128 = vsyncpa [#allocation5], 1

// kernel: scnn_block1_forward.3
$region0: #{scnn_block1_forward.3}
  #allocation0 [shape = 'u32[]', space=smem, size = 0x4, offset = 0x4, fixed_abs, tag = 'smem constant byte address 0x4 - core index']
  #allocation1 [shape = 'u32[144,128]{1,0:T(1,128)}', space=vmem, size = 0x12000, scoped, tag = 'internal scratch']
  %s0 = inlined_call_operand.vmem [shape: f32[1,4,18,36], index: 0, kind: input, shape index: {}]
  %s1 = inlined_call_operand.vmem [shape: f32[4,36], index: 1, kind: input, shape index: {}]
  %s2 = inlined_call_operand.vmem [shape: f32[4], index: 2, kind: input, shape index: {}, may-alias: {2,3}]
  %s3 = inlined_call_operand.vmem [shape: f32[4], index: 3, kind: input, shape index: {}, may-alias: {2,3}]
  %s4 = inlined_call_operand.vmem [shape: f32[18,36], index: 4, kind: input, shape index: {}]
  %s5 = inlined_call_operand.vmem [shape: f32[1,4,18,36], index: 5, kind: output, shape index: {0}]
  %s6 = inlined_call_operand.vmem [shape: f32[1,2,4], index: 6, kind: output, shape index: {1}]
  %7 = xla_tuple %s5, %s6
  %s8 = sld [smem:[#allocation0]]
  $region50: #{scnn_block1_forward.3} parent=0
    _
  %s10 = ssub.s32 1, %s8
  %s11 = scalar_select 0, %s10, %s8
  $region1: #{scnn_block1_forward.3} parent=0
    #allocation2 [shape = 'u8[2048]{0}', space=smem, size = 0x800, scoped, tag = 'input window, operand 1, single buffered']
    #allocation3 [shape = 's32[1]{0}', space=sflag, size = 0x4, scoped, tag = 'scoped memory for scnn_block1_forward.3']
    #allocation4 [shape = 'u8[512]{0}', space=smem, size = 0x200, scoped, tag = 'input window, operand 2, single buffered']
    #allocation5 [shape = 's32[1]{0}', space=sflag, size = 0x4, scoped, tag = 'scoped memory for scnn_block1_forward.3']
    #allocation6 [shape = 'u8[512]{0}', space=smem, size = 0x200, scoped, tag = 'input window, operand 3, single buffered']
    %12 = vsyncpa [#allocation3], 0
    %13 = vsyncpa [#allocation5], 0
    // Predicated region
    $region2: #{scnn_block1_forward.3} parent=1 // pred_check
      _
    $region3: #{scnn_block1_forward.3} parent=1 // pred_check_branch
      %15 = sbr.rel (0) target = $region5
    $region4: #{scnn_block1_forward.3} parent=1 // pred_region
      _
    $region5: #{scnn_block1_forward.3} parent=1 // pred_fallthru
      _
    // Predicated region
    $region6: #{scnn_block1_forward.3} parent=1 // pred_check
      _
    $region7: #{scnn_block1_forward.3} parent=1 // pred_check_branch
      %17 = sbr.rel (0) target = $region9
    $region8: #{scnn_block1_forward.3} parent=1 // pred_region
      %s19 = ssub.s32 64, 64
      %20 = vsyncadd [#allocation3], %s19
      %s22 = sshll.u32 %s1, 4
      %s23 = int_to_ptr.vmem [resolvable:$true] %s22
      %25 = dma.vmem_to_smem %s23, 64, [#allocation2], [#allocation3]
    $region9: #{scnn_block1_forward.3} parent=1 // pred_fallthru
      _
    // Predicated region
    $region10: #{scnn_block1_forward.3} parent=1 // pred_check
      _
    $region11: #{scnn_block1_forward.3} parent=1 // pred_check_branch
      %27 = sbr.rel (0) target = $region13
    $region12: #{scnn_block1_forward.3} parent=1 // pred_region
      %s29 = ssub.s32 16, 16
      %30 = vsyncadd [#allocation5], %s29
      %s32 = sshll.u32 %s2, 4
      %s33 = int_to_ptr.vmem [resolvable:$true] %s32
      %35 = dma.vmem_to_smem %s33, 16, [#allocation4], [#allocation5]
    $region13: #{scnn_block1_forward.3} parent=1 // pred_fallthru
      _
    // Predicated region
    $region14: #{scnn_block1_forward.3} parent=1 // pred_check
      _
    $region15: #{scnn_block1_forward.3} parent=1 // pred_check_branch
      %37 = sbr.rel (0) target = $region17
    $region16: #{scnn_block1_forward.3} parent=1 // pred_region
      %s39 = ssub.s32 16, 16
      %40 = vsyncadd [#allocation5], %s39
      %s42 = sshll.u32 %s3, 4
      %s43 = int_to_ptr.vmem [resolvable:$true] %s42
      %45 = dma.vmem_to_smem %s43, 16, [#allocation6], [#allocation5]
    $region17: #{scnn_block1_forward.3} parent=1 // pred_fallthru
      _
    // Predicated region
    $region18: #{scnn_block1_forward.3} parent=1 // pred_check
      _
    $region19: #{scnn_block1_forward.3} parent=1 // pred_check_branch
      %47 = sbr.rel (0) target = $region21
    $region20: #{scnn_block1_forward.3} parent=1 // pred_region
      _
    $region21: #{scnn_block1_forward.3} parent=1 // pred_fallthru
      _
    // Predicated region
    $region22: #{scnn_block1_forward.3} parent=1 // pred_check
      _
    $region23: #{scnn_block1_forward.3} parent=1 // pred_check_branch
      %49 = sbr.rel (0) target = $region25
    $region24: #{scnn_block1_forward.3} parent=1 // pred_region
      %50 = dma.done [#allocation3], 64
    $region25: #{scnn_block1_forward.3} parent=1 // pred_fallthru
      _
    // Predicated region
    $region26: #{scnn_block1_forward.3} parent=1 // pred_check
      _
    $region27: #{scnn_block1_forward.3} parent=1 // pred_check_branch
      %52 = sbr.rel (0) target = $region29
    $region28: #{scnn_block1_forward.3} parent=1 // pred_region
      %53 = dma.done [#allocation5], 16
    $region29: #{scnn_block1_forward.3} parent=1 // pred_fallthru
      _
    // Predicated region
    $region30: #{scnn_block1_forward.3} parent=1 // pred_check
      _
    $region31: #{scnn_block1_forward.3} parent=1 // pred_check_branch
      %55 = sbr.rel (0) target = $region33
    $region32: #{scnn_block1_forward.3} parent=1 // pred_region
      %56 = dma.done [#allocation5], 16
    $region33: #{scnn_block1_forward.3} parent=1 // pred_fallthru
      _
    %57 = sfence
    %v58 = vld [vmem:[%s0] sm:$0xff]
    %v59 = vld [vmem:[%s0 + $0x8] sm:$0xff]
    %s60 = sld [smem:[#allocation2]]
    %v61 = vstv %s60
    %v62 = vmul.f32 %v61, %v58
    %v63 = vmul.f32 %v61, %v59
    %v64 = vadd.f32 %v62, 0.0
    %v65 = vadd.f32 %v63, 0.0
    %s66 = sld [smem:[#allocation2 + $0x80]]
    %v67 = vstv %s66
    %v68 = vmul.f32 %v67, %v58
    %v69 = vmul.f32 %v67, %v59
    %v70 = vadd.f32 %v68, 0.0
    %v71 = vadd.f32 %v69, 0.0
    %s72 = sld [smem:[#allocation2 + $0x100]]
    %v73 = vstv %s72
    %v74 = vmul.f32 %v73, %v58
    %v75 = vmul.f32 %v73, %v59
    %v76 = vadd.f32 %v74, 0.0
    %v77 = vadd.f32 %v75, 0.0
    %s78 = sld [smem:[#allocation2 + $0x180]]
    %v79 = vstv %s78
    %v80 = vmul.f32 %v79, %v58
    %v81 = vmul.f32 %v79, %v59
    %v82 = vadd.f32 %v80, 0.0
    %v83 = vadd.f32 %v81, 0.0
    %s84 = sld [smem:[#allocation2 + $0x1]]
    %v85 = vstv %s84
    %v86 = vmul.f32 %v85, %v58
    %v87 = vmul.f32 %v85, %v59
    %90 = vrot.lane.b32.xlu0 %v86, 127
    %v91 = vpop.permute.xlu0 %90
    %92 = vrot.lane.b32.xlu0 %v87, 127
    %v93 = vpop.permute.xlu0 %92
    %v96 = vadd.f32 %v64, %v91
    %v97 = vadd.f32 %v65, %v93
    %s98 = sld [smem:[#allocation2 + $0x81]]
    %v99 = vstv %s98
    %v100 = vmul.f32 %v99, %v58
    %v101 = vmul.f32 %v99, %v59
    %104 = vrot.lane.b32.xlu0 %v100, 127
    %v105 = vpop.permute.xlu0 %104
    %106 = vrot.lane.b32.xlu0 %v101, 127
    %v107 = vpop.permute.xlu0 %106
    %v110 = vadd.f32 %v70, %v105
    %v111 = vadd.f32 %v71, %v107
    %s112 = sld [smem:[#allocation2 + $0x101]]
    %v113 = vstv %s112
    %v114 = vmul.f32 %v113, %v58
    %v115 = vmul.f32 %v113, %v59
    %118 = vrot.lane.b32.xlu0 %v114, 127
    %v119 = vpop.permute.xlu0 %118
    %120 = vrot.lane.b32.xlu0 %v115, 127
    %v121 = vpop.permute.xlu0 %120
    %v124 = vadd.f32 %v76, %v119
    %v125 = vadd.f32 %v77, %v121
    %s126 = sld [smem:[#allocation2 + $0x181]]
    %v127 = vstv %s126
    %v128 = vmul.f32 %v127, %v58
    %v129 = vmul.f32 %v127, %v59
    %132 = vrot.lane.b32.xlu0 %v128, 127
    %v133 = vpop.permute.xlu0 %132
    %134 = vrot.lane.b32.xlu0 %v129, 127
    %v135 = vpop.permute.xlu0 %134
    %v138 = vadd.f32 %v82, %v133
    %v139 = vadd.f32 %v83, %v135
    %s140 = sld [smem:[#allocation2 + $0x2]]
    %v141 = vstv %s140
    %v142 = vmul.f32 %v141, %v58
    %v143 = vmul.f32 %v141, %v59
    %146 = vrot.lane.b32.xlu0 %v142, 126
    %v147 = vpop.permute.xlu0 %146
    %148 = vrot.lane.b32.xlu0 %v143, 126
    %v149 = vpop.permute.xlu0 %148
    %v152 = vadd.f32 %v96, %v147
    %v153 = vadd.f32 %v97, %v149
    %s154 = sld [smem:[#allocation2 + $0x82]]
    %v155 = vstv %s154
    %v156 = vmul.f32 %v155, %v58
    %v157 = vmul.f32 %v155, %v59
    %160 = vrot.lane.b32.xlu0 %v156, 126
    %v161 = vpop.permute.xlu0 %160
    %162 = vrot.lane.b32.xlu0 %v157, 126
    %v163 = vpop.permute.xlu0 %162
    %v166 = vadd.f32 %v110, %v161
    %v167 = vadd.f32 %v111, %v163
    %s168 = sld [smem:[#allocation2 + $0x102]]
    %v169 = vstv %s168
    %v170 = vmul.f32 %v169, %v58
    %v171 = vmul.f32 %v169, %v59
    %174 = vrot.lane.b32.xlu0 %v170, 126
    %v175 = vpop.permute.xlu0 %174
    %176 = vrot.lane.b32.xlu0 %v171, 126
    %v177 = vpop.permute.xlu0 %176
    %v180 = vadd.f32 %v124, %v175
    %v181 = vadd.f32 %v125, %v177
    %s182 = sld [smem:[#allocation2 + $0x182]]
    %v183 = vstv %s182
    %v184 = vmul.f32 %v183, %v58
    %v185 = vmul.f32 %v183, %v59
    %188 = vrot.lane.b32.xlu0 %v184, 126
    %v189 = vpop.permute.xlu0 %188
    %190 = vrot.lane.b32.xlu0 %v185, 126
    %v191 = vpop.permute.xlu0 %190
    %v194 = vadd.f32 %v138, %v189
    %v195 = vadd.f32 %v139, %v191
    %v196 = vld [vmem:[%s0 + $0x1] sm:$0xff]
    %v197 = vld [vmem:[%s0 + $0x9] sm:$0xff]
    %s198 = sld [smem:[#allocation2 + $0x3]]
    %v199 = vstv %s198
    %v200 = vmul.f32 %v199, %v196
    %v201 = vmul.f32 %v199, %v197
    %v202 = vadd.f32 %v152, %v200
    %v203 = vadd.f32 %v153, %v201
    %s204 = sld [smem:[#allocation2 + $0x83]]
    %v205 = vstv %s204
    %v206 = vmul.f32 %v205, %v196
    %v207 = vmul.f32 %v205, %v197
    %v208 = vadd.f32 %v166, %v206
    %v209 = vadd.f32 %v167, %v207
    %s210 = sld [smem:[#allocation2 + $0x103]]
    %v211 = vstv %s210
    %v212 = vmul.f32 %v211, %v196
    %v213 = vmul.f32 %v211, %v197
    %v214 = vadd.f32 %v180, %v212
    %v215 = vadd.f32 %v181, %v213
    %s216 = sld [smem:[#allocation2 + $0x183]]
    %v217 = vstv %s216
    %v218 = vmul.f32 %v217, %v196
    %v219 = vmul.f32 %v217, %v197
    %v220 = vadd.f32 %v194, %v218
    %v221 = vadd.f32 %v195, %v219
    %s222 = sld [smem:[#allocation2 + $0x4]]
    %v223 = vstv %s222
    %v224 = vmul.f32 %v223, %v196
    %v225 = vmul.f32 %v223, %v197
    %228 = vrot.lane.b32.xlu0 %v224, 127
    %v229 = vpop.permute.xlu0 %228
    %230 = vrot.lane.b32.xlu0 %v225, 127
    %v231 = vpop.permute.xlu0 %230
    %v234 = vadd.f32 %v202, %v229
    %v235 = vadd.f32 %v203, %v231
    %s236 = sld [smem:[#allocation2 + $0x84]]
    %v237 = vstv %s236
    %v238 = vmul.f32 %v237, %v196
    %v239 = vmul.f32 %v237, %v197
    %242 = vrot.lane.b32.xlu0 %v238, 127
    %v243 = vpop.permute.xlu0 %242
    %244 = vrot.lane.b32.xlu0 %v239, 127
    %v245 = vpop.permute.xlu0 %244
    %v248 = vadd.f32 %v208, %v243
    %v249 = vadd.f32 %v209, %v245
    %s250 = sld [smem:[#allocation2 + $0x104]]
    %v251 = vstv %s250
    %v252 = vmul.f32 %v251, %v196
    %v253 = vmul.f32 %v251, %v197
    %256 = vrot.lane.b32.xlu0 %v252, 127
    %v257 = vpop.permute.xlu0 %256
    %258 = vrot.lane.b32.xlu0 %v253, 127
    %v259 = vpop.permute.xlu0 %258
    %v262 = vadd.f32 %v214, %v257
    %v263 = vadd.f32 %v215, %v259
    %s264 = sld [smem:[#allocation2 + $0x184]]
    %v265 = vstv %s264
    %v266 = vmul.f32 %v265, %v196
    %v267 = vmul.f32 %v265, %v197
    %270 = vrot.lane.b32.xlu0 %v266, 127
    %v271 = vpop.permute.xlu0 %270
    %272 = vrot.lane.b32.xlu0 %v267, 127
    %v273 = vpop.permute.xlu0 %272
    %v276 = vadd.f32 %v220, %v271
    %v277 = vadd.f32 %v221, %v273
    %s278 = sld [smem:[#allocation2 + $0x5]]
    %v279 = vstv %s278
    %v280 = vmul.f32 %v279, %v196
    %v281 = vmul.f32 %v279, %v197
    %284 = vrot.lane.b32.xlu0 %v280, 126
    %v285 = vpop.permute.xlu0 %284
    %286 = vrot.lane.b32.xlu0 %v281, 126
    %v287 = vpop.permute.xlu0 %286
    %v290 = vadd.f32 %v234, %v285
    %v291 = vadd.f32 %v235, %v287
    %s292 = sld [smem:[#allocation2 + $0x85]]
    %v293 = vstv %s292
    %v294 = vmul.f32 %v293, %v196
    %v295 = vmul.f32 %v293, %v197
    %298 = vrot.lane.b32.xlu0 %v294, 126
    %v299 = vpop.permute.xlu0 %298
    %300 = vrot.lane.b32.xlu0 %v295, 126
    %v301 = vpop.permute.xlu0 %300
    %v304 = vadd.f32 %v248, %v299
    %v305 = vadd.f32 %v249, %v301
    %s306 = sld [smem:[#allocation2 + $0x105]]
    %v307 = vstv %s306
    %v308 = vmul.f32 %v307, %v196
    %v309 = vmul.f32 %v307, %v197
    %312 = vrot.lane.b32.xlu0 %v308, 126
    %v313 = vpop.permute.xlu0 %312
    %314 = vrot.lane.b32.xlu0 %v309, 126
    %v315 = vpop.permute.xlu0 %314
    %v318 = vadd.f32 %v262, %v313
    %v319 = vadd.f32 %v263, %v315
    %s320 = sld [smem:[#allocation2 + $0x185]]
    %v321 = vstv %s320
    %v322 = vmul.f32 %v321, %v196
    %v323 = vmul.f32 %v321, %v197
    %326 = vrot.lane.b32.xlu0 %v322, 126
    %v327 = vpop.permute.xlu0 %326
    %328 = vrot.lane.b32.xlu0 %v323, 126
    %v329 = vpop.permute.xlu0 %328
    %v332 = vadd.f32 %v276, %v327
    %v333 = vadd.f32 %v277, %v329
    %v334 = vld [vmem:[%s0 + $0x2] sm:$0xff]
    %v335 = vld [vmem:[%s0 + $0xa] sm:$0xff]
    %s336 = sld [smem:[#allocation2 + $0x6]]
    %v337 = vstv %s336
    %v338 = vmul.f32 %v337, %v334
    %v339 = vmul.f32 %v337, %v335
    %v340 = vadd.f32 %v290, %v338
    %v341 = vadd.f32 %v291, %v339
    %s342 = sld [smem:[#allocation2 + $0x86]]
    %v343 = vstv %s342
    %v344 = vmul.f32 %v343, %v334
    %v345 = vmul.f32 %v343, %v335
    %v346 = vadd.f32 %v304, %v344
    %v347 = vadd.f32 %v305, %v345
    %s348 = sld [smem:[#allocation2 + $0x106]]
    %v349 = vstv %s348
    %v350 = vmul.f32 %v349, %v334
    %v351 = vmul.f32 %v349, %v335
    %v352 = vadd.f32 %v318, %v350
    %v353 = vadd.f32 %v319, %v351
    %s354 = sld [smem:[#allocation2 + $0x186]]
    %v355 = vstv %s354
    %v356 = vmul.f32 %v355, %v334
    %v357 = vmul.f32 %v355, %v335
    %v358 = vadd.f32 %v332, %v356
    %v359 = vadd.f32 %v333, %v357
    %s360 = sld [smem:[#allocation2 + $0x7]]
    %v361 = vstv %s360
    %v362 = vmul.f32 %v361, %v334
    %v363 = vmul.f32 %v361, %v335
    %366 = vrot.lane.b32.xlu0 %v362, 127
    %v367 = vpop.permute.xlu0 %366
    %368 = vrot.lane.b32.xlu0 %v363, 127
    %v369 = vpop.permute.xlu0 %368
    %v372 = vadd.f32 %v340, %v367
    %v373 = vadd.f32 %v341, %v369
    %s374 = sld [smem:[#allocation2 + $0x87]]
    %v375 = vstv %s374
    %v376 = vmul.f32 %v375, %v334
    %v377 = vmul.f32 %v375, %v335
    %380 = vrot.lane.b32.xlu0 %v376, 127
    %v381 = vpop.permute.xlu0 %380
    %382 = vrot.lane.b32.xlu0 %v377, 127
    %v383 = vpop.permute.xlu0 %382
    %v386 = vadd.f32 %v346, %v381
    %v387 = vadd.f32 %v347, %v383
    %s388 = sld [smem:[#allocation2 + $0x107]]
    %v389 = vstv %s388
    %v390 = vmul.f32 %v389, %v334
    %v391 = vmul.f32 %v389, %v335
    %394 = vrot.lane.b32.xlu0 %v390, 127
    %v395 = vpop.permute.xlu0 %394
    %396 = vrot.lane.b32.xlu0 %v391, 127
    %v397 = vpop.permute.xlu0 %396
    %v400 = vadd.f32 %v352, %v395
    %v401 = vadd.f32 %v353, %v397
    %s402 = sld [smem:[#allocation2 + $0x187]]
    %v403 = vstv %s402
    %v404 = vmul.f32 %v403, %v334
    %v405 = vmul.f32 %v403, %v335
    %408 = vrot.lane.b32.xlu0 %v404, 127
    %v409 = vpop.permute.xlu0 %408
    %410 = vrot.lane.b32.xlu0 %v405, 127
    %v411 = vpop.permute.xlu0 %410
    %v414 = vadd.f32 %v358, %v409
    %v415 = vadd.f32 %v359, %v411
    %s416 = sld [smem:[#allocation2 + $0x8]]
    %v417 = vstv %s416
    %v418 = vmul.f32 %v417, %v334
    %v419 = vmul.f32 %v417, %v335
    %422 = vrot.lane.b32.xlu0 %v418, 126
    %v423 = vpop.permute.xlu0 %422
    %424 = vrot.lane.b32.xlu0 %v419, 126
    %v425 = vpop.permute.xlu0 %424
    %v428 = vadd.f32 %v372, %v423
    %v429 = vadd.f32 %v373, %v425
    %s430 = sld [smem:[#allocation2 + $0x88]]
    %v431 = vstv %s430
    %v432 = vmul.f32 %v431, %v334
    %v433 = vmul.f32 %v431, %v335
    %436 = vrot.lane.b32.xlu0 %v432, 126
    %v437 = vpop.permute.xlu0 %436
    %438 = vrot.lane.b32.xlu0 %v433, 126
    %v439 = vpop.permute.xlu0 %438
    %v442 = vadd.f32 %v386, %v437
    %v443 = vadd.f32 %v387, %v439
    %s444 = sld [smem:[#allocation2 + $0x108]]
    %v445 = vstv %s444
    %v446 = vmul.f32 %v445, %v334
    %v447 = vmul.f32 %v445, %v335
    %450 = vrot.lane.b32.xlu0 %v446, 126
    %v451 = vpop.permute.xlu0 %450
    %452 = vrot.lane.b32.xlu0 %v447, 126
    %v453 = vpop.permute.xlu0 %452
    %v456 = vadd.f32 %v400, %v451
    %v457 = vadd.f32 %v401, %v453
    %s458 = sld [smem:[#allocation2 + $0x188]]
    %v459 = vstv %s458
    %v460 = vmul.f32 %v459, %v334
    %v461 = vmul.f32 %v459, %v335
    %464 = vrot.lane.b32.xlu0 %v460, 126
    %v465 = vpop.permute.xlu0 %464
    %466 = vrot.lane.b32.xlu0 %v461, 126
    %v467 = vpop.permute.xlu0 %466
    %v470 = vadd.f32 %v414, %v465
    %v471 = vadd.f32 %v415, %v467
    %s472 = scalar_lea.vmem %s0, 24
    %v473 = vld [vmem:[%s472] sm:$0xff]
    %v474 = vld [vmem:[%s472 + $0x8] sm:$0xff]
    %s475 = sld [smem:[#allocation2 + $0x9]]
    %v476 = vstv %s475
    %v477 = vmul.f32 %v476, %v473
    %v478 = vmul.f32 %v476, %v474
    %v479 = vadd.f32 %v428, %v477
    %v480 = vadd.f32 %v429, %v478
    %s481 = sld [smem:[#allocation2 + $0x89]]
    %v482 = vstv %s481
    %v483 = vmul.f32 %v482, %v473
    %v484 = vmul.f32 %v482, %v474
    %v485 = vadd.f32 %v442, %v483
    %v486 = vadd.f32 %v443, %v484
    %s487 = sld [smem:[#allocation2 + $0x109]]
    %v488 = vstv %s487
    %v489 = vmul.f32 %v488, %v473
    %v490 = vmul.f32 %v488, %v474
    %v491 = vadd.f32 %v456, %v489
    %v492 = vadd.f32 %v457, %v490
    %s493 = sld [smem:[#allocation2 + $0x189]]
    %v494 = vstv %s493
    %v495 = vmul.f32 %v494, %v473
    %v496 = vmul.f32 %v494, %v474
    %v497 = vadd.f32 %v470, %v495
    %v498 = vadd.f32 %v471, %v496
    %s499 = sld [smem:[#allocation2 + $0xa]]
    %v500 = vstv %s499
    %v501 = vmul.f32 %v500, %v473
    %v502 = vmul.f32 %v500, %v474
    %505 = vrot.lane.b32.xlu0 %v501, 127
    %v506 = vpop.permute.xlu0 %505
    %507 = vrot.lane.b32.xlu0 %v502, 127
    %v508 = vpop.permute.xlu0 %507
    %v511 = vadd.f32 %v479, %v506
    %v512 = vadd.f32 %v480, %v508
    %s513 = sld [smem:[#allocation2 + $0x8a]]
    %v514 = vstv %s513
    %v515 = vmul.f32 %v514, %v473
    %v516 = vmul.f32 %v514, %v474
    %519 = vrot.lane.b32.xlu0 %v515, 127
    %v520 = vpop.permute.xlu0 %519
    %521 = vrot.lane.b32.xlu0 %v516, 127
    %v522 = vpop.permute.xlu0 %521
    %v525 = vadd.f32 %v485, %v520
    %v526 = vadd.f32 %v486, %v522
    %s527 = sld [smem:[#allocation2 + $0x10a]]
    %v528 = vstv %s527
    %v529 = vmul.f32 %v528, %v473
    %v530 = vmul.f32 %v528, %v474
    %533 = vrot.lane.b32.xlu0 %v529, 127
    %v534 = vpop.permute.xlu0 %533
    %535 = vrot.lane.b32.xlu0 %v530, 127
    %v536 = vpop.permute.xlu0 %535
    %v539 = vadd.f32 %v491, %v534
    %v540 = vadd.f32 %v492, %v536
    %s541 = sld [smem:[#allocation2 + $0x18a]]
    %v542 = vstv %s541
    %v543 = vmul.f32 %v542, %v473
    %v544 = vmul.f32 %v542, %v474
    %547 = vrot.lane.b32.xlu0 %v543, 127
    %v548 = vpop.permute.xlu0 %547
    %549 = vrot.lane.b32.xlu0 %v544, 127
    %v550 = vpop.permute.xlu0 %549
    %v553 = vadd.f32 %v497, %v548
    %v554 = vadd.f32 %v498, %v550
    %s555 = sld [smem:[#allocation2 + $0xb]]
    %v556 = vstv %s555
    %v557 = vmul.f32 %v556, %v473
    %v558 = vmul.f32 %v556, %v474
    %561 = vrot.lane.b32.xlu0 %v557, 126
    %v562 = vpop.permute.xlu0 %561
    %563 = vrot.lane.b32.xlu0 %v558, 126
    %v564 = vpop.permute.xlu0 %563
    %v567 = vadd.f32 %v511, %v562
    %v568 = vadd.f32 %v512, %v564
    %s569 = sld [smem:[#allocation2 + $0x8b]]
    %v570 = vstv %s569
    %v571 = vmul.f32 %v570, %v473
    %v572 = vmul.f32 %v570, %v474
    %575 = vrot.lane.b32.xlu0 %v571, 126
    %v576 = vpop.permute.xlu0 %575
    %577 = vrot.lane.b32.xlu0 %v572, 126
    %v578 = vpop.permute.xlu0 %577
    %v581 = vadd.f32 %v525, %v576
    %v582 = vadd.f32 %v526, %v578
    %s583 = sld [smem:[#allocation2 + $0x10b]]
    %v584 = vstv %s583
    %v585 = vmul.f32 %v584, %v473
    %v586 = vmul.f32 %v584, %v474
    %589 = vrot.lane.b32.xlu0 %v585, 126
    %v590 = vpop.permute.xlu0 %589
    %591 = vrot.lane.b32.xlu0 %v586, 126
    %v592 = vpop.permute.xlu0 %591
    %v595 = vadd.f32 %v539, %v590
    %v596 = vadd.f32 %v540, %v592
    %s597 = sld [smem:[#allocation2 + $0x18b]]
    %v598 = vstv %s597
    %v599 = vmul.f32 %v598, %v473
    %v600 = vmul.f32 %v598, %v474
    %603 = vrot.lane.b32.xlu0 %v599, 126
    %v604 = vpop.permute.xlu0 %603
    %605 = vrot.lane.b32.xlu0 %v600, 126
    %v606 = vpop.permute.xlu0 %605
    %v609 = vadd.f32 %v553, %v604
    %v610 = vadd.f32 %v554, %v606
    %v611 = vld [vmem:[%s472 + $0x1] sm:$0xff]
    %v612 = vld [vmem:[%s472 + $0x9] sm:$0xff]
    %s613 = sld [smem:[#allocation2 + $0xc]]
    %v614 = vstv %s613
    %v615 = vmul.f32 %v614, %v611
    %v616 = vmul.f32 %v614, %v612
    %v617 = vadd.f32 %v567, %v615
    %v618 = vadd.f32 %v568, %v616
    %s619 = sld [smem:[#allocation2 + $0x8c]]
    %v620 = vstv %s619
    %v621 = vmul.f32 %v620, %v611
    %v622 = vmul.f32 %v620, %v612
    %v623 = vadd.f32 %v581, %v621
    %v624 = vadd.f32 %v582, %v622
    %s625 = sld [smem:[#allocation2 + $0x10c]]
    %v626 = vstv %s625
    %v627 = vmul.f32 %v626, %v611
    %v628 = vmul.f32 %v626, %v612
    %v629 = vadd.f32 %v595, %v627
    %v630 = vadd.f32 %v596, %v628
    %s631 = sld [smem:[#allocation2 + $0x18c]]
    %v632 = vstv %s631
    %v633 = vmul.f32 %v632, %v611
    %v634 = vmul.f32 %v632, %v612
    %v635 = vadd.f32 %v609, %v633
    %v636 = vadd.f32 %v610, %v634
    %s637 = sld [smem:[#allocation2 + $0xd]]
    %v638 = vstv %s637
    %v639 = vmul.f32 %v638, %v611
    %v640 = vmul.f32 %v638, %v612
    %643 = vrot.lane.b32.xlu0 %v639, 127
    %v644 = vpop.permute.xlu0 %643
    %645 = vrot.lane.b32.xlu0 %v640, 127
    %v646 = vpop.permute.xlu0 %645
    %v649 = vadd.f32 %v617, %v644
    %v650 = vadd.f32 %v618, %v646
    %s651 = sld [smem:[#allocation2 + $0x8d]]
    %v652 = vstv %s651
    %v653 = vmul.f32 %v652, %v611
    %v654 = vmul.f32 %v652, %v612
    %657 = vrot.lane.b32.xlu0 %v653, 127
    %v658 = vpop.permute.xlu0 %657
    %659 = vrot.lane.b32.xlu0 %v654, 127
    %v660 = vpop.permute.xlu0 %659
    %v663 = vadd.f32 %v623, %v658
    %v664 = vadd.f32 %v624, %v660
    %s665 = sld [smem:[#allocation2 + $0x10d]]
    %v666 = vstv %s665
    %v667 = vmul.f32 %v666, %v611
    %v668 = vmul.f32 %v666, %v612
    %671 = vrot.lane.b32.xlu0 %v667, 127
    %v672 = vpop.permute.xlu0 %671
    %673 = vrot.lane.b32.xlu0 %v668, 127
    %v674 = vpop.permute.xlu0 %673
    %v677 = vadd.f32 %v629, %v672
    %v678 = vadd.f32 %v630, %v674
    %s679 = sld [smem:[#allocation2 + $0x18d]]
    %v680 = vstv %s679
    %v681 = vmul.f32 %v680, %v611
    %v682 = vmul.f32 %v680, %v612
    %685 = vrot.lane.b32.xlu0 %v681, 127
    %v686 = vpop.permute.xlu0 %685
    %687 = vrot.lane.b32.xlu0 %v682, 127
    %v688 = vpop.permute.xlu0 %687
    %v691 = vadd.f32 %v635, %v686
    %v692 = vadd.f32 %v636, %v688
    %s693 = sld [smem:[#allocation2 + $0xe]]
    %v694 = vstv %s693
    %v695 = vmul.f32 %v694, %v611
    %v696 = vmul.f32 %v694, %v612
    %699 = vrot.lane.b32.xlu0 %v695, 126
    %v700 = vpop.permute.xlu0 %699
    %701 = vrot.lane.b32.xlu0 %v696, 126
    %v702 = vpop.permute.xlu0 %701
    %v705 = vadd.f32 %v649, %v700
    %v706 = vadd.f32 %v650, %v702
    %s707 = sld [smem:[#allocation2 + $0x8e]]
    %v708 = vstv %s707
    %v709 = vmul.f32 %v708, %v611
    %v710 = vmul.f32 %v708, %v612
    %713 = vrot.lane.b32.xlu0 %v709, 126
    %v714 = vpop.permute.xlu0 %713
    %715 = vrot.lane.b32.xlu0 %v710, 126
    %v716 = vpop.permute.xlu0 %715
    %v719 = vadd.f32 %v663, %v714
    %v720 = vadd.f32 %v664, %v716
    %s721 = sld [smem:[#allocation2 + $0x10e]]
    %v722 = vstv %s721
    %v723 = vmul.f32 %v722, %v611
    %v724 = vmul.f32 %v722, %v612
    %727 = vrot.lane.b32.xlu0 %v723, 126
    %v728 = vpop.permute.xlu0 %727
    %729 = vrot.lane.b32.xlu0 %v724, 126
    %v730 = vpop.permute.xlu0 %729
    %v733 = vadd.f32 %v677, %v728
    %v734 = vadd.f32 %v678, %v730
    %s735 = sld [smem:[#allocation2 + $0x18e]]
    %v736 = vstv %s735
    %v737 = vmul.f32 %v736, %v611
    %v738 = vmul.f32 %v736, %v612
    %741 = vrot.lane.b32.xlu0 %v737, 126
    %v742 = vpop.permute.xlu0 %741
    %743 = vrot.lane.b32.xlu0 %v738, 126
    %v744 = vpop.permute.xlu0 %743
    %v747 = vadd.f32 %v691, %v742
    %v748 = vadd.f32 %v692, %v744
    %v749 = vld [vmem:[%s472 + $0x2] sm:$0xff]
    %v750 = vld [vmem:[%s472 + $0xa] sm:$0xff]
    %s751 = sld [smem:[#allocation2 + $0xf]]
    %v752 = vstv %s751
    %v753 = vmul.f32 %v752, %v749
    %v754 = vmul.f32 %v752, %v750
    %v755 = vadd.f32 %v705, %v753
    %v756 = vadd.f32 %v706, %v754
    %s757 = sld [smem:[#allocation2 + $0x8f]]
    %v758 = vstv %s757
    %v759 = vmul.f32 %v758, %v749
    %v760 = vmul.f32 %v758, %v750
    %v761 = vadd.f32 %v719, %v759
    %v762 = vadd.f32 %v720, %v760
    %s763 = sld [smem:[#allocation2 + $0x10f]]
    %v764 = vstv %s763
    %v765 = vmul.f32 %v764, %v749
    %v766 = vmul.f32 %v764, %v750
    %v767 = vadd.f32 %v733, %v765
    %v768 = vadd.f32 %v734, %v766
    %s769 = sld [smem:[#allocation2 + $0x18f]]
    %v770 = vstv %s769
    %v771 = vmul.f32 %v770, %v749
    %v772 = vmul.f32 %v770, %v750
    %v773 = vadd.f32 %v747, %v771
    %v774 = vadd.f32 %v748, %v772
    %s775 = sld [smem:[#allocation2 + $0x10]]
    %v776 = vstv %s775
    %v777 = vmul.f32 %v776, %v749
    %v778 = vmul.f32 %v776, %v750
    %781 = vrot.lane.b32.xlu0 %v777, 127
    %v782 = vpop.permute.xlu0 %781
    %783 = vrot.lane.b32.xlu0 %v778, 127
    %v784 = vpop.permute.xlu0 %783
    %v787 = vadd.f32 %v755, %v782
    %v788 = vadd.f32 %v756, %v784
    %s789 = sld [smem:[#allocation2 + $0x90]]
    %v790 = vstv %s789
    %v791 = vmul.f32 %v790, %v749
    %v792 = vmul.f32 %v790, %v750
    %795 = vrot.lane.b32.xlu0 %v791, 127
    %v796 = vpop.permute.xlu0 %795
    %797 = vrot.lane.b32.xlu0 %v792, 127
    %v798 = vpop.permute.xlu0 %797
    %v801 = vadd.f32 %v761, %v796
    %v802 = vadd.f32 %v762, %v798
    %s803 = sld [smem:[#allocation2 + $0x110]]
    %v804 = vstv %s803
    %v805 = vmul.f32 %v804, %v749
    %v806 = vmul.f32 %v804, %v750
    %809 = vrot.lane.b32.xlu0 %v805, 127
    %v810 = vpop.permute.xlu0 %809
    %811 = vrot.lane.b32.xlu0 %v806, 127
    %v812 = vpop.permute.xlu0 %811
    %v815 = vadd.f32 %v767, %v810
    %v816 = vadd.f32 %v768, %v812
    %s817 = sld [smem:[#allocation2 + $0x190]]
    %v818 = vstv %s817
    %v819 = vmul.f32 %v818, %v749
    %v820 = vmul.f32 %v818, %v750
    %823 = vrot.lane.b32.xlu0 %v819, 127
    %v824 = vpop.permute.xlu0 %823
    %825 = vrot.lane.b32.xlu0 %v820, 127
    %v826 = vpop.permute.xlu0 %825
    %v829 = vadd.f32 %v773, %v824
    %v830 = vadd.f32 %v774, %v826
    %s831 = sld [smem:[#allocation2 + $0x11]]
    %v832 = vstv %s831
    %v833 = vmul.f32 %v832, %v749
    %v834 = vmul.f32 %v832, %v750
    %837 = vrot.lane.b32.xlu0 %v833, 126
    %v838 = vpop.permute.xlu0 %837
    %839 = vrot.lane.b32.xlu0 %v834, 126
    %v840 = vpop.permute.xlu0 %839
    %v843 = vadd.f32 %v787, %v838
    %v844 = vadd.f32 %v788, %v840
    %s845 = sld [smem:[#allocation2 + $0x91]]
    %v846 = vstv %s845
    %v847 = vmul.f32 %v846, %v749
    %v848 = vmul.f32 %v846, %v750
    %851 = vrot.lane.b32.xlu0 %v847, 126
    %v852 = vpop.permute.xlu0 %851
    %853 = vrot.lane.b32.xlu0 %v848, 126
    %v854 = vpop.permute.xlu0 %853
    %v857 = vadd.f32 %v801, %v852
    %v858 = vadd.f32 %v802, %v854
    %s859 = sld [smem:[#allocation2 + $0x111]]
    %v860 = vstv %s859
    %v861 = vmul.f32 %v860, %v749
    %v862 = vmul.f32 %v860, %v750
    %865 = vrot.lane.b32.xlu0 %v861, 126
    %v866 = vpop.permute.xlu0 %865
    %867 = vrot.lane.b32.xlu0 %v862, 126
    %v868 = vpop.permute.xlu0 %867
    %v871 = vadd.f32 %v815, %v866
    %v872 = vadd.f32 %v816, %v868
    %s873 = sld [smem:[#allocation2 + $0x191]]
    %v874 = vstv %s873
    %v875 = vmul.f32 %v874, %v749
    %v876 = vmul.f32 %v874, %v750
    %879 = vrot.lane.b32.xlu0 %v875, 126
    %v880 = vpop.permute.xlu0 %879
    %881 = vrot.lane.b32.xlu0 %v876, 126
    %v882 = vpop.permute.xlu0 %881
    %v885 = vadd.f32 %v829, %v880
    %v886 = vadd.f32 %v830, %v882
    %s887 = scalar_lea.vmem %s0, 48
    %v888 = vld [vmem:[%s887] sm:$0xff]
    %v889 = vld [vmem:[%s887 + $0x8] sm:$0xff]
    %s890 = sld [smem:[#allocation2 + $0x12]]
    %v891 = vstv %s890
    %v892 = vmul.f32 %v891, %v888
    %v893 = vmul.f32 %v891, %v889
    %v894 = vadd.f32 %v843, %v892
    %v895 = vadd.f32 %v844, %v893
    %s896 = sld [smem:[#allocation2 + $0x92]]
    %v897 = vstv %s896
    %v898 = vmul.f32 %v897, %v888
    %v899 = vmul.f32 %v897, %v889
    %v900 = vadd.f32 %v857, %v898
    %v901 = vadd.f32 %v858, %v899
    %s902 = sld [smem:[#allocation2 + $0x112]]
    %v903 = vstv %s902
    %v904 = vmul.f32 %v903, %v888
    %v905 = vmul.f32 %v903, %v889
    %v906 = vadd.f32 %v871, %v904
    %v907 = vadd.f32 %v872, %v905
    %s908 = sld [smem:[#allocation2 + $0x192]]
    %v909 = vstv %s908
    %v910 = vmul.f32 %v909, %v888
    %v911 = vmul.f32 %v909, %v889
    %v912 = vadd.f32 %v885, %v910
    %v913 = vadd.f32 %v886, %v911
    %s914 = sld [smem:[#allocation2 + $0x13]]
    %v915 = vstv %s914
    %v916 = vmul.f32 %v915, %v888
    %v917 = vmul.f32 %v915, %v889
    %920 = vrot.lane.b32.xlu0 %v916, 127
    %v921 = vpop.permute.xlu0 %920
    %922 = vrot.lane.b32.xlu0 %v917, 127
    %v923 = vpop.permute.xlu0 %922
    %v926 = vadd.f32 %v894, %v921
    %v927 = vadd.f32 %v895, %v923
    %s928 = sld [smem:[#allocation2 + $0x93]]
    %v929 = vstv %s928
    %v930 = vmul.f32 %v929, %v888
    %v931 = vmul.f32 %v929, %v889
    %934 = vrot.lane.b32.xlu0 %v930, 127
    %v935 = vpop.permute.xlu0 %934
    %936 = vrot.lane.b32.xlu0 %v931, 127
    %v937 = vpop.permute.xlu0 %936
    %v940 = vadd.f32 %v900, %v935
    %v941 = vadd.f32 %v901, %v937
    %s942 = sld [smem:[#allocation2 + $0x113]]
    %v943 = vstv %s942
    %v944 = vmul.f32 %v943, %v888
    %v945 = vmul.f32 %v943, %v889
    %948 = vrot.lane.b32.xlu0 %v944, 127
    %v949 = vpop.permute.xlu0 %948
    %950 = vrot.lane.b32.xlu0 %v945, 127
    %v951 = vpop.permute.xlu0 %950
    %v954 = vadd.f32 %v906, %v949
    %v955 = vadd.f32 %v907, %v951
    %s956 = sld [smem:[#allocation2 + $0x193]]
    %v957 = vstv %s956
    %v958 = vmul.f32 %v957, %v888
    %v959 = vmul.f32 %v957, %v889
    %962 = vrot.lane.b32.xlu0 %v958, 127
    %v963 = vpop.permute.xlu0 %962
    %964 = vrot.lane.b32.xlu0 %v959, 127
    %v965 = vpop.permute.xlu0 %964
    %v968 = vadd.f32 %v912, %v963
    %v969 = vadd.f32 %v913, %v965
    %s970 = sld [smem:[#allocation2 + $0x14]]
    %v971 = vstv %s970
    %v972 = vmul.f32 %v971, %v888
    %v973 = vmul.f32 %v971, %v889
    %976 = vrot.lane.b32.xlu0 %v972, 126
    %v977 = vpop.permute.xlu0 %976
    %978 = vrot.lane.b32.xlu0 %v973, 126
    %v979 = vpop.permute.xlu0 %978
    %v982 = vadd.f32 %v926, %v977
    %v983 = vadd.f32 %v927, %v979
    %s984 = sld [smem:[#allocation2 + $0x94]]
    %v985 = vstv %s984
    %v986 = vmul.f32 %v985, %v888
    %v987 = vmul.f32 %v985, %v889
    %990 = vrot.lane.b32.xlu0 %v986, 126
    %v991 = vpop.permute.xlu0 %990
    %992 = vrot.lane.b32.xlu0 %v987, 126
    %v993 = vpop.permute.xlu0 %992
    %v996 = vadd.f32 %v940, %v991
    %v997 = vadd.f32 %v941, %v993
    %s998 = sld [smem:[#allocation2 + $0x114]]
    %v999 = vstv %s998
    %v1000 = vmul.f32 %v999, %v888
    %v1001 = vmul.f32 %v999, %v889
    %1004 = vrot.lane.b32.xlu0 %v1000, 126
    %v1005 = vpop.permute.xlu0 %1004
    %1006 = vrot.lane.b32.xlu0 %v1001, 126
    %v1007 = vpop.permute.xlu0 %1006
    %v1010 = vadd.f32 %v954, %v1005
    %v1011 = vadd.f32 %v955, %v1007
    %s1012 = sld [smem:[#allocation2 + $0x194]]
    %v1013 = vstv %s1012
    %v1014 = vmul.f32 %v1013, %v888
    %v1015 = vmul.f32 %v1013, %v889
    %1018 = vrot.lane.b32.xlu0 %v1014, 126
    %v1019 = vpop.permute.xlu0 %1018
    %1020 = vrot.lane.b32.xlu0 %v1015, 126
    %v1021 = vpop.permute.xlu0 %1020
    %v1024 = vadd.f32 %v968, %v1019
    %v1025 = vadd.f32 %v969, %v1021
    %v1026 = vld [vmem:[%s887 + $0x1] sm:$0xff]
    %v1027 = vld [vmem:[%s887 + $0x9] sm:$0xff]
    %s1028 = sld [smem:[#allocation2 + $0x15]]
    %v1029 = vstv %s1028
    %v1030 = vmul.f32 %v1029, %v1026
    %v1031 = vmul.f32 %v1029, %v1027
    %v1032 = vadd.f32 %v982, %v1030
    %v1033 = vadd.f32 %v983, %v1031
    %s1034 = sld [smem:[#allocation2 + $0x95]]
    %v1035 = vstv %s1034
    %v1036 = vmul.f32 %v1035, %v1026
    %v1037 = vmul.f32 %v1035, %v1027
    %v1038 = vadd.f32 %v996, %v1036
    %v1039 = vadd.f32 %v997, %v1037
    %s1040 = sld [smem:[#allocation2 + $0x115]]
    %v1041 = vstv %s1040
    %v1042 = vmul.f32 %v1041, %v1026
    %v1043 = vmul.f32 %v1041, %v1027
    %v1044 = vadd.f32 %v1010, %v1042
    %v1045 = vadd.f32 %v1011, %v1043
    %s1046 = sld [smem:[#allocation2 + $0x195]]
    %v1047 = vstv %s1046
    %v1048 = vmul.f32 %v1047, %v1026
    %v1049 = vmul.f32 %v1047, %v1027
    %v1050 = vadd.f32 %v1024, %v1048
    %v1051 = vadd.f32 %v1025, %v1049
    %s1052 = sld [smem:[#allocation2 + $0x16]]
    %v1053 = vstv %s1052
    %v1054 = vmul.f32 %v1053, %v1026
    %v1055 = vmul.f32 %v1053, %v1027
    %1058 = vrot.lane.b32.xlu0 %v1054, 127
    %v1059 = vpop.permute.xlu0 %1058
    %1060 = vrot.lane.b32.xlu0 %v1055, 127
    %v1061 = vpop.permute.xlu0 %1060
    %v1064 = vadd.f32 %v1032, %v1059
    %v1065 = vadd.f32 %v1033, %v1061
    %s1066 = sld [smem:[#allocation2 + $0x96]]
    %v1067 = vstv %s1066
    %v1068 = vmul.f32 %v1067, %v1026
    %v1069 = vmul.f32 %v1067, %v1027
    %1072 = vrot.lane.b32.xlu0 %v1068, 127
    %v1073 = vpop.permute.xlu0 %1072
    %1074 = vrot.lane.b32.xlu0 %v1069, 127
    %v1075 = vpop.permute.xlu0 %1074
    %v1078 = vadd.f32 %v1038, %v1073
    %v1079 = vadd.f32 %v1039, %v1075
    %s1080 = sld [smem:[#allocation2 + $0x116]]
    %v1081 = vstv %s1080
    %v1082 = vmul.f32 %v1081, %v1026
    %v1083 = vmul.f32 %v1081, %v1027
    %1086 = vrot.lane.b32.xlu0 %v1082, 127
    %v1087 = vpop.permute.xlu0 %1086
    %1088 = vrot.lane.b32.xlu0 %v1083, 127
    %v1089 = vpop.permute.xlu0 %1088
    %v1092 = vadd.f32 %v1044, %v1087
    %v1093 = vadd.f32 %v1045, %v1089
    %s1094 = sld [smem:[#allocation2 + $0x196]]
    %v1095 = vstv %s1094
    %v1096 = vmul.f32 %v1095, %v1026
    %v1097 = vmul.f32 %v1095, %v1027
    %1100 = vrot.lane.b32.xlu0 %v1096, 127
    %v1101 = vpop.permute.xlu0 %1100
    %1102 = vrot.lane.b32.xlu0 %v1097, 127
    %v1103 = vpop.permute.xlu0 %1102
    %v1106 = vadd.f32 %v1050, %v1101
    %v1107 = vadd.f32 %v1051, %v1103
    %s1108 = sld [smem:[#allocation2 + $0x17]]
    %v1109 = vstv %s1108
    %v1110 = vmul.f32 %v1109, %v1026
    %v1111 = vmul.f32 %v1109, %v1027
    %1114 = vrot.lane.b32.xlu0 %v1110, 126
    %v1115 = vpop.permute.xlu0 %1114
    %1116 = vrot.lane.b32.xlu0 %v1111, 126
    %v1117 = vpop.permute.xlu0 %1116
    %v1120 = vadd.f32 %v1064, %v1115
    %v1121 = vadd.f32 %v1065, %v1117
    %s1122 = sld [smem:[#allocation2 + $0x97]]
    %v1123 = vstv %s1122
    %v1124 = vmul.f32 %v1123, %v1026
    %v1125 = vmul.f32 %v1123, %v1027
    %1128 = vrot.lane.b32.xlu0 %v1124, 126
    %v1129 = vpop.permute.xlu0 %1128
    %1130 = vrot.lane.b32.xlu0 %v1125, 126
    %v1131 = vpop.permute.xlu0 %1130
    %v1134 = vadd.f32 %v1078, %v1129
    %v1135 = vadd.f32 %v1079, %v1131
    %s1136 = sld [smem:[#allocation2 + $0x117]]
    %v1137 = vstv %s1136
    %v1138 = vmul.f32 %v1137, %v1026
    %v1139 = vmul.f32 %v1137, %v1027
    %1142 = vrot.lane.b32.xlu0 %v1138, 126
    %v1143 = vpop.permute.xlu0 %1142
    %1144 = vrot.lane.b32.xlu0 %v1139, 126
    %v1145 = vpop.permute.xlu0 %1144
    %v1148 = vadd.f32 %v1092, %v1143
    %v1149 = vadd.f32 %v1093, %v1145
    %s1150 = sld [smem:[#allocation2 + $0x197]]
    %v1151 = vstv %s1150
    %v1152 = vmul.f32 %v1151, %v1026
    %v1153 = vmul.f32 %v1151, %v1027
    %1156 = vrot.lane.b32.xlu0 %v1152, 126
    %v1157 = vpop.permute.xlu0 %1156
    %1158 = vrot.lane.b32.xlu0 %v1153, 126
    %v1159 = vpop.permute.xlu0 %1158
    %v1162 = vadd.f32 %v1106, %v1157
    %v1163 = vadd.f32 %v1107, %v1159
    %v1164 = vld [vmem:[%s887 + $0x2] sm:$0xff]
    %v1165 = vld [vmem:[%s887 + $0xa] sm:$0xff]
    %s1166 = sld [smem:[#allocation2 + $0x18]]
    %v1167 = vstv %s1166
    %v1168 = vmul.f32 %v1167, %v1164
    %v1169 = vmul.f32 %v1167, %v1165
    %v1170 = vadd.f32 %v1120, %v1168
    %v1171 = vadd.f32 %v1121, %v1169
    %s1172 = sld [smem:[#allocation2 + $0x98]]
    %v1173 = vstv %s1172
    %v1174 = vmul.f32 %v1173, %v1164
    %v1175 = vmul.f32 %v1173, %v1165
    %v1176 = vadd.f32 %v1134, %v1174
    %v1177 = vadd.f32 %v1135, %v1175
    %s1178 = sld [smem:[#allocation2 + $0x118]]
    %v1179 = vstv %s1178
    %v1180 = vmul.f32 %v1179, %v1164
    %v1181 = vmul.f32 %v1179, %v1165
    %v1182 = vadd.f32 %v1148, %v1180
    %v1183 = vadd.f32 %v1149, %v1181
    %s1184 = sld [smem:[#allocation2 + $0x198]]
    %v1185 = vstv %s1184
    %v1186 = vmul.f32 %v1185, %v1164
    %v1187 = vmul.f32 %v1185, %v1165
    %v1188 = vadd.f32 %v1162, %v1186
    %v1189 = vadd.f32 %v1163, %v1187
    %s1190 = sld [smem:[#allocation2 + $0x19]]
    %v1191 = vstv %s1190
    %v1192 = vmul.f32 %v1191, %v1164
    %v1193 = vmul.f32 %v1191, %v1165
    %1196 = vrot.lane.b32.xlu0 %v1192, 127
    %v1197 = vpop.permute.xlu0 %1196
    %1198 = vrot.lane.b32.xlu0 %v1193, 127
    %v1199 = vpop.permute.xlu0 %1198
    %v1202 = vadd.f32 %v1170, %v1197
    %v1203 = vadd.f32 %v1171, %v1199
    %s1204 = sld [smem:[#allocation2 + $0x99]]
    %v1205 = vstv %s1204
    %v1206 = vmul.f32 %v1205, %v1164
    %v1207 = vmul.f32 %v1205, %v1165
    %1210 = vrot.lane.b32.xlu0 %v1206, 127
    %v1211 = vpop.permute.xlu0 %1210
    %1212 = vrot.lane.b32.xlu0 %v1207, 127
    %v1213 = vpop.permute.xlu0 %1212
    %v1216 = vadd.f32 %v1176, %v1211
    %v1217 = vadd.f32 %v1177, %v1213
    %s1218 = sld [smem:[#allocation2 + $0x119]]
    %v1219 = vstv %s1218
    %v1220 = vmul.f32 %v1219, %v1164
    %v1221 = vmul.f32 %v1219, %v1165
    %1224 = vrot.lane.b32.xlu0 %v1220, 127
    %v1225 = vpop.permute.xlu0 %1224
    %1226 = vrot.lane.b32.xlu0 %v1221, 127
    %v1227 = vpop.permute.xlu0 %1226
    %v1230 = vadd.f32 %v1182, %v1225
    %v1231 = vadd.f32 %v1183, %v1227
    %s1232 = sld [smem:[#allocation2 + $0x199]]
    %v1233 = vstv %s1232
    %v1234 = vmul.f32 %v1233, %v1164
    %v1235 = vmul.f32 %v1233, %v1165
    %1238 = vrot.lane.b32.xlu0 %v1234, 127
    %v1239 = vpop.permute.xlu0 %1238
    %1240 = vrot.lane.b32.xlu0 %v1235, 127
    %v1241 = vpop.permute.xlu0 %1240
    %v1244 = vadd.f32 %v1188, %v1239
    %v1245 = vadd.f32 %v1189, %v1241
    %s1246 = sld [smem:[#allocation2 + $0x1a]]
    %v1247 = vstv %s1246
    %v1248 = vmul.f32 %v1247, %v1164
    %v1249 = vmul.f32 %v1247, %v1165
    %1252 = vrot.lane.b32.xlu0 %v1248, 126
    %v1253 = vpop.permute.xlu0 %1252
    %1254 = vrot.lane.b32.xlu0 %v1249, 126
    %v1255 = vpop.permute.xlu0 %1254
    %v1258 = vadd.f32 %v1202, %v1253
    %v1259 = vadd.f32 %v1203, %v1255
    %s1260 = sld [smem:[#allocation2 + $0x9a]]
    %v1261 = vstv %s1260
    %v1262 = vmul.f32 %v1261, %v1164
    %v1263 = vmul.f32 %v1261, %v1165
    %1266 = vrot.lane.b32.xlu0 %v1262, 126
    %v1267 = vpop.permute.xlu0 %1266
    %1268 = vrot.lane.b32.xlu0 %v1263, 126
    %v1269 = vpop.permute.xlu0 %1268
    %v1272 = vadd.f32 %v1216, %v1267
    %v1273 = vadd.f32 %v1217, %v1269
    %s1274 = sld [smem:[#allocation2 + $0x11a]]
    %v1275 = vstv %s1274
    %v1276 = vmul.f32 %v1275, %v1164
    %v1277 = vmul.f32 %v1275, %v1165
    %1280 = vrot.lane.b32.xlu0 %v1276, 126
    %v1281 = vpop.permute.xlu0 %1280
    %1282 = vrot.lane.b32.xlu0 %v1277, 126
    %v1283 = vpop.permute.xlu0 %1282
    %v1286 = vadd.f32 %v1230, %v1281
    %v1287 = vadd.f32 %v1231, %v1283
    %s1288 = sld [smem:[#allocation2 + $0x19a]]
    %v1289 = vstv %s1288
    %v1290 = vmul.f32 %v1289, %v1164
    %v1291 = vmul.f32 %v1289, %v1165
    %1294 = vrot.lane.b32.xlu0 %v1290, 126
    %v1295 = vpop.permute.xlu0 %1294
    %1296 = vrot.lane.b32.xlu0 %v1291, 126
    %v1297 = vpop.permute.xlu0 %1296
    %v1300 = vadd.f32 %v1244, %v1295
    %v1301 = vadd.f32 %v1245, %v1297
    %s1302 = scalar_lea.vmem %s0, 72
    %v1303 = vld [vmem:[%s1302] sm:$0xff]
    %v1304 = vld [vmem:[%s1302 + $0x8] sm:$0xff]
    %s1305 = sld [smem:[#allocation2 + $0x1b]]
    %v1306 = vstv %s1305
    %v1307 = vmul.f32 %v1306, %v1303
    %v1308 = vmul.f32 %v1306, %v1304
    %v1309 = vadd.f32 %v1258, %v1307
    %v1310 = vadd.f32 %v1259, %v1308
    %s1311 = sld [smem:[#allocation2 + $0x9b]]
    %v1312 = vstv %s1311
    %v1313 = vmul.f32 %v1312, %v1303
    %v1314 = vmul.f32 %v1312, %v1304
    %v1315 = vadd.f32 %v1272, %v1313
    %v1316 = vadd.f32 %v1273, %v1314
    %s1317 = sld [smem:[#allocation2 + $0x11b]]
    %v1318 = vstv %s1317
    %v1319 = vmul.f32 %v1318, %v1303
    %v1320 = vmul.f32 %v1318, %v1304
    %v1321 = vadd.f32 %v1286, %v1319
    %v1322 = vadd.f32 %v1287, %v1320
    %s1323 = sld [smem:[#allocation2 + $0x19b]]
    %v1324 = vstv %s1323
    %v1325 = vmul.f32 %v1324, %v1303
    %v1326 = vmul.f32 %v1324, %v1304
    %v1327 = vadd.f32 %v1300, %v1325
    %v1328 = vadd.f32 %v1301, %v1326
    %s1329 = sld [smem:[#allocation2 + $0x1c]]
    %v1330 = vstv %s1329
    %v1331 = vmul.f32 %v1330, %v1303
    %v1332 = vmul.f32 %v1330, %v1304
    %1335 = vrot.lane.b32.xlu0 %v1331, 127
    %v1336 = vpop.permute.xlu0 %1335
    %1337 = vrot.lane.b32.xlu0 %v1332, 127
    %v1338 = vpop.permute.xlu0 %1337
    %v1341 = vadd.f32 %v1309, %v1336
    %v1342 = vadd.f32 %v1310, %v1338
    %s1343 = sld [smem:[#allocation2 + $0x9c]]
    %v1344 = vstv %s1343
    %v1345 = vmul.f32 %v1344, %v1303
    %v1346 = vmul.f32 %v1344, %v1304
    %1349 = vrot.lane.b32.xlu0 %v1345, 127
    %v1350 = vpop.permute.xlu0 %1349
    %1351 = vrot.lane.b32.xlu0 %v1346, 127
    %v1352 = vpop.permute.xlu0 %1351
    %v1355 = vadd.f32 %v1315, %v1350
    %v1356 = vadd.f32 %v1316, %v1352
    %s1357 = sld [smem:[#allocation2 + $0x11c]]
    %v1358 = vstv %s1357
    %v1359 = vmul.f32 %v1358, %v1303
    %v1360 = vmul.f32 %v1358, %v1304
    %1363 = vrot.lane.b32.xlu0 %v1359, 127
    %v1364 = vpop.permute.xlu0 %1363
    %1365 = vrot.lane.b32.xlu0 %v1360, 127
    %v1366 = vpop.permute.xlu0 %1365
    %v1369 = vadd.f32 %v1321, %v1364
    %v1370 = vadd.f32 %v1322, %v1366
    %s1371 = sld [smem:[#allocation2 + $0x19c]]
    %v1372 = vstv %s1371
    %v1373 = vmul.f32 %v1372, %v1303
    %v1374 = vmul.f32 %v1372, %v1304
    %1377 = vrot.lane.b32.xlu0 %v1373, 127
    %v1378 = vpop.permute.xlu0 %1377
    %1379 = vrot.lane.b32.xlu0 %v1374, 127
    %v1380 = vpop.permute.xlu0 %1379
    %v1383 = vadd.f32 %v1327, %v1378
    %v1384 = vadd.f32 %v1328, %v1380
    %s1385 = sld [smem:[#allocation2 + $0x1d]]
    %v1386 = vstv %s1385
    %v1387 = vmul.f32 %v1386, %v1303
    %v1388 = vmul.f32 %v1386, %v1304
    %1391 = vrot.lane.b32.xlu0 %v1387, 126
    %v1392 = vpop.permute.xlu0 %1391
    %1393 = vrot.lane.b32.xlu0 %v1388, 126
    %v1394 = vpop.permute.xlu0 %1393
    %v1397 = vadd.f32 %v1341, %v1392
    %v1398 = vadd.f32 %v1342, %v1394
    %s1399 = sld [smem:[#allocation2 + $0x9d]]
    %v1400 = vstv %s1399
    %v1401 = vmul.f32 %v1400, %v1303
    %v1402 = vmul.f32 %v1400, %v1304
    %1405 = vrot.lane.b32.xlu0 %v1401, 126
    %v1406 = vpop.permute.xlu0 %1405
    %1407 = vrot.lane.b32.xlu0 %v1402, 126
    %v1408 = vpop.permute.xlu0 %1407
    %v1411 = vadd.f32 %v1355, %v1406
    %v1412 = vadd.f32 %v1356, %v1408
    %s1413 = sld [smem:[#allocation2 + $0x11d]]
    %v1414 = vstv %s1413
    %v1415 = vmul.f32 %v1414, %v1303
    %v1416 = vmul.f32 %v1414, %v1304
    %1419 = vrot.lane.b32.xlu0 %v1415, 126
    %v1420 = vpop.permute.xlu0 %1419
    %1421 = vrot.lane.b32.xlu0 %v1416, 126
    %v1422 = vpop.permute.xlu0 %1421
    %v1425 = vadd.f32 %v1369, %v1420
    %v1426 = vadd.f32 %v1370, %v1422
    %s1427 = sld [smem:[#allocation2 + $0x19d]]
    %v1428 = vstv %s1427
    %v1429 = vmul.f32 %v1428, %v1303
    %v1430 = vmul.f32 %v1428, %v1304
    %1433 = vrot.lane.b32.xlu0 %v1429, 126
    %v1434 = vpop.permute.xlu0 %1433
    %1435 = vrot.lane.b32.xlu0 %v1430, 126
    %v1436 = vpop.permute.xlu0 %1435
    %v1439 = vadd.f32 %v1383, %v1434
    %v1440 = vadd.f32 %v1384, %v1436
    %v1441 = vld [vmem:[%s1302 + $0x1] sm:$0xff]
    %v1442 = vld [vmem:[%s1302 + $0x9] sm:$0xff]
    %s1443 = sld [smem:[#allocation2 + $0x1e]]
    %v1444 = vstv %s1443
    %v1445 = vmul.f32 %v1444, %v1441
    %v1446 = vmul.f32 %v1444, %v1442
    %v1447 = vadd.f32 %v1397, %v1445
    %v1448 = vadd.f32 %v1398, %v1446
    %s1449 = sld [smem:[#allocation2 + $0x9e]]
    %v1450 = vstv %s1449
    %v1451 = vmul.f32 %v1450, %v1441
    %v1452 = vmul.f32 %v1450, %v1442
    %v1453 = vadd.f32 %v1411, %v1451
    %v1454 = vadd.f32 %v1412, %v1452
    %s1455 = sld [smem:[#allocation2 + $0x11e]]
    %v1456 = vstv %s1455
    %v1457 = vmul.f32 %v1456, %v1441
    %v1458 = vmul.f32 %v1456, %v1442
    %v1459 = vadd.f32 %v1425, %v1457
    %v1460 = vadd.f32 %v1426, %v1458
    %s1461 = sld [smem:[#allocation2 + $0x19e]]
    %v1462 = vstv %s1461
    %v1463 = vmul.f32 %v1462, %v1441
    %v1464 = vmul.f32 %v1462, %v1442
    %v1465 = vadd.f32 %v1439, %v1463
    %v1466 = vadd.f32 %v1440, %v1464
    %s1467 = sld [smem:[#allocation2 + $0x1f]]
    %v1468 = vstv %s1467
    %v1469 = vmul.f32 %v1468, %v1441
    %v1470 = vmul.f32 %v1468, %v1442
    %1473 = vrot.lane.b32.xlu0 %v1469, 127
    %v1474 = vpop.permute.xlu0 %1473
    %1475 = vrot.lane.b32.xlu0 %v1470, 127
    %v1476 = vpop.permute.xlu0 %1475
    %v1479 = vadd.f32 %v1447, %v1474
    %v1480 = vadd.f32 %v1448, %v1476
    %s1481 = sld [smem:[#allocation2 + $0x9f]]
    %v1482 = vstv %s1481
    %v1483 = vmul.f32 %v1482, %v1441
    %v1484 = vmul.f32 %v1482, %v1442
    %1487 = vrot.lane.b32.xlu0 %v1483, 127
    %v1488 = vpop.permute.xlu0 %1487
    %1489 = vrot.lane.b32.xlu0 %v1484, 127
    %v1490 = vpop.permute.xlu0 %1489
    %v1493 = vadd.f32 %v1453, %v1488
    %v1494 = vadd.f32 %v1454, %v1490
    %s1495 = sld [smem:[#allocation2 + $0x11f]]
    %v1496 = vstv %s1495
    %v1497 = vmul.f32 %v1496, %v1441
    %v1498 = vmul.f32 %v1496, %v1442
    %1501 = vrot.lane.b32.xlu0 %v1497, 127
    %v1502 = vpop.permute.xlu0 %1501
    %1503 = vrot.lane.b32.xlu0 %v1498, 127
    %v1504 = vpop.permute.xlu0 %1503
    %v1507 = vadd.f32 %v1459, %v1502
    %v1508 = vadd.f32 %v1460, %v1504
    %s1509 = sld [smem:[#allocation2 + $0x19f]]
    %v1510 = vstv %s1509
    %v1511 = vmul.f32 %v1510, %v1441
    %v1512 = vmul.f32 %v1510, %v1442
    %1515 = vrot.lane.b32.xlu0 %v1511, 127
    %v1516 = vpop.permute.xlu0 %1515
    %1517 = vrot.lane.b32.xlu0 %v1512, 127
    %v1518 = vpop.permute.xlu0 %1517
    %v1521 = vadd.f32 %v1465, %v1516
    %v1522 = vadd.f32 %v1466, %v1518
    %s1523 = sld [smem:[#allocation2 + $0x20]]
    %v1524 = vstv %s1523
    %v1525 = vmul.f32 %v1524, %v1441
    %v1526 = vmul.f32 %v1524, %v1442
    %1529 = vrot.lane.b32.xlu0 %v1525, 126
    %v1530 = vpop.permute.xlu0 %1529
    %1531 = vrot.lane.b32.xlu0 %v1526, 126
    %v1532 = vpop.permute.xlu0 %1531
    %v1535 = vadd.f32 %v1479, %v1530
    %v1536 = vadd.f32 %v1480, %v1532
    %s1537 = sld [smem:[#allocation2 + $0xa0]]
    %v1538 = vstv %s1537
    %v1539 = vmul.f32 %v1538, %v1441
    %v1540 = vmul.f32 %v1538, %v1442
    %1543 = vrot.lane.b32.xlu0 %v1539, 126
    %v1544 = vpop.permute.xlu0 %1543
    %1545 = vrot.lane.b32.xlu0 %v1540, 126
    %v1546 = vpop.permute.xlu0 %1545
    %v1549 = vadd.f32 %v1493, %v1544
    %v1550 = vadd.f32 %v1494, %v1546
    %s1551 = sld [smem:[#allocation2 + $0x120]]
    %v1552 = vstv %s1551
    %v1553 = vmul.f32 %v1552, %v1441
    %v1554 = vmul.f32 %v1552, %v1442
    %1557 = vrot.lane.b32.xlu0 %v1553, 126
    %v1558 = vpop.permute.xlu0 %1557
    %1559 = vrot.lane.b32.xlu0 %v1554, 126
    %v1560 = vpop.permute.xlu0 %1559
    %v1563 = vadd.f32 %v1507, %v1558
    %v1564 = vadd.f32 %v1508, %v1560
    %s1565 = sld [smem:[#allocation2 + $0x1a0]]
    %v1566 = vstv %s1565
    %v1567 = vmul.f32 %v1566, %v1441
    %v1568 = vmul.f32 %v1566, %v1442
    %1571 = vrot.lane.b32.xlu0 %v1567, 126
    %v1572 = vpop.permute.xlu0 %1571
    %1573 = vrot.lane.b32.xlu0 %v1568, 126
    %v1574 = vpop.permute.xlu0 %1573
    %v1577 = vadd.f32 %v1521, %v1572
    %v1578 = vadd.f32 %v1522, %v1574
    %v1579 = vld [vmem:[%s1302 + $0x2] sm:$0xff]
    %v1580 = vld [vmem:[%s1302 + $0xa] sm:$0xff]
    %s1581 = sld [smem:[#allocation2 + $0x21]]
    %v1582 = vstv %s1581
    %v1583 = vmul.f32 %v1582, %v1579
    %v1584 = vmul.f32 %v1582, %v1580
    %v1585 = vadd.f32 %v1535, %v1583
    %v1586 = vadd.f32 %v1536, %v1584
    %s1587 = sld [smem:[#allocation2 + $0xa1]]
    %v1588 = vstv %s1587
    %v1589 = vmul.f32 %v1588, %v1579
    %v1590 = vmul.f32 %v1588, %v1580
    %v1591 = vadd.f32 %v1549, %v1589
    %v1592 = vadd.f32 %v1550, %v1590
    %s1593 = sld [smem:[#allocation2 + $0x121]]
    %v1594 = vstv %s1593
    %v1595 = vmul.f32 %v1594, %v1579
    %v1596 = vmul.f32 %v1594, %v1580
    %v1597 = vadd.f32 %v1563, %v1595
    %v1598 = vadd.f32 %v1564, %v1596
    %s1599 = sld [smem:[#allocation2 + $0x1a1]]
    %v1600 = vstv %s1599
    %v1601 = vmul.f32 %v1600, %v1579
    %v1602 = vmul.f32 %v1600, %v1580
    %v1603 = vadd.f32 %v1577, %v1601
    %v1604 = vadd.f32 %v1578, %v1602
    %s1605 = sld [smem:[#allocation2 + $0x22]]
    %v1606 = vstv %s1605
    %v1607 = vmul.f32 %v1606, %v1579
    %v1608 = vmul.f32 %v1606, %v1580
    %1611 = vrot.lane.b32.xlu0 %v1607, 127
    %v1612 = vpop.permute.xlu0 %1611
    %1613 = vrot.lane.b32.xlu0 %v1608, 127
    %v1614 = vpop.permute.xlu0 %1613
    %v1617 = vadd.f32 %v1585, %v1612
    %v1618 = vadd.f32 %v1586, %v1614
    %s1619 = sld [smem:[#allocation2 + $0xa2]]
    %v1620 = vstv %s1619
    %v1621 = vmul.f32 %v1620, %v1579
    %v1622 = vmul.f32 %v1620, %v1580
    %1625 = vrot.lane.b32.xlu0 %v1621, 127
    %v1626 = vpop.permute.xlu0 %1625
    %1627 = vrot.lane.b32.xlu0 %v1622, 127
    %v1628 = vpop.permute.xlu0 %1627
    %v1631 = vadd.f32 %v1591, %v1626
    %v1632 = vadd.f32 %v1592, %v1628
    %s1633 = sld [smem:[#allocation2 + $0x122]]
    %v1634 = vstv %s1633
    %v1635 = vmul.f32 %v1634, %v1579
    %v1636 = vmul.f32 %v1634, %v1580
    %1639 = vrot.lane.b32.xlu0 %v1635, 127
    %v1640 = vpop.permute.xlu0 %1639
    %1641 = vrot.lane.b32.xlu0 %v1636, 127
    %v1642 = vpop.permute.xlu0 %1641
    %v1645 = vadd.f32 %v1597, %v1640
    %v1646 = vadd.f32 %v1598, %v1642
    %s1647 = sld [smem:[#allocation2 + $0x1a2]]
    %v1648 = vstv %s1647
    %v1649 = vmul.f32 %v1648, %v1579
    %v1650 = vmul.f32 %v1648, %v1580
    %1653 = vrot.lane.b32.xlu0 %v1649, 127
    %v1654 = vpop.permute.xlu0 %1653
    %1655 = vrot.lane.b32.xlu0 %v1650, 127
    %v1656 = vpop.permute.xlu0 %1655
    %v1659 = vadd.f32 %v1603, %v1654
    %v1660 = vadd.f32 %v1604, %v1656
    %s1661 = sld [smem:[#allocation2 + $0x23]]
    %v1662 = vstv %s1661
    %v1663 = vmul.f32 %v1662, %v1579
    %v1664 = vmul.f32 %v1662, %v1580
    %1667 = vrot.lane.b32.xlu0 %v1663, 126
    %v1668 = vpop.permute.xlu0 %1667
    %1669 = vrot.lane.b32.xlu0 %v1664, 126
    %v1670 = vpop.permute.xlu0 %1669
    %v1673 = vadd.f32 %v1617, %v1668
    %v1674 = vadd.f32 %v1618, %v1670
    %s1675 = sld [smem:[#allocation2 + $0xa3]]
    %v1676 = vstv %s1675
    %v1677 = vmul.f32 %v1676, %v1579
    %v1678 = vmul.f32 %v1676, %v1580
    %1681 = vrot.lane.b32.xlu0 %v1677, 126
    %v1682 = vpop.permute.xlu0 %1681
    %1683 = vrot.lane.b32.xlu0 %v1678, 126
    %v1684 = vpop.permute.xlu0 %1683
    %v1687 = vadd.f32 %v1631, %v1682
    %v1688 = vadd.f32 %v1632, %v1684
    %s1689 = sld [smem:[#allocation2 + $0x123]]
    %v1690 = vstv %s1689
    %v1691 = vmul.f32 %v1690, %v1579
    %v1692 = vmul.f32 %v1690, %v1580
    %1695 = vrot.lane.b32.xlu0 %v1691, 126
    %v1696 = vpop.permute.xlu0 %1695
    %1697 = vrot.lane.b32.xlu0 %v1692, 126
    %v1698 = vpop.permute.xlu0 %1697
    %v1701 = vadd.f32 %v1645, %v1696
    %v1702 = vadd.f32 %v1646, %v1698
    %s1703 = sld [smem:[#allocation2 + $0x1a3]]
    %v1704 = vstv %s1703
    %v1705 = vmul.f32 %v1704, %v1579
    %v1706 = vmul.f32 %v1704, %v1580
    %1709 = vrot.lane.b32.xlu0 %v1705, 126
    %v1710 = vpop.permute.xlu0 %1709
    %1711 = vrot.lane.b32.xlu0 %v1706, 126
    %v1712 = vpop.permute.xlu0 %1711
    %v1715 = vadd.f32 %v1659, %v1710
    %v1716 = vadd.f32 %v1660, %v1712
    %v1717 = vld [vmem:[%s4 + $0x1] sm:$0xff]
    %v1718 = vld [vmem:[%s4 + $0x9] sm:$0xff]
    %vm1719 = vcmask 293888
    %1720 = vst.msk [vmem:[%s5] sm:$0xff] %vm1719, 0.0
    %1721 = vst.msk [vmem:[%s5 + $0x8] sm:$0xff] %vm1719, 0.0
    %vm1722 = vcmask 287744
    %1723 = vst.msk [vmem:[%s5 + $0x10] sm:$0x3] %vm1722, 0.0
    %1724 = vst.msk [vmem:[%s5 + $0x18] sm:$0xff] %vm1719, 0.0
    %1725 = vst.msk [vmem:[%s5 + $0x20] sm:$0xff] %vm1719, 0.0
    %1726 = vst.msk [vmem:[%s5 + $0x28] sm:$0x3] %vm1722, 0.0
    %1727 = vst.msk [vmem:[%s5 + $0x30] sm:$0xff] %vm1719, 0.0
    %1728 = vst.msk [vmem:[%s5 + $0x38] sm:$0xff] %vm1719, 0.0
    %1729 = vst.msk [vmem:[%s5 + $0x40] sm:$0x3] %vm1722, 0.0
    %1730 = vst.msk [vmem:[%s5 + $0x48] sm:$0xff] %vm1719, 0.0
    %1731 = vst.msk [vmem:[%s5 + $0x50] sm:$0xff] %vm1719, 0.0
    %1732 = vst.msk [vmem:[%s5 + $0x58] sm:$0x3] %vm1722, 0.0
    %1735 = vrot.lane.b32.xlu0 %v1717, 127
    %v1736 = vpop.permute.xlu0 %1735
    %1737 = vrot.lane.b32.xlu0 %v1718, 127
    %v1738 = vpop.permute.xlu0 %1737
    %v1741 = vmul.f32 %v1673, %v1736
    %v1742 = vmul.f32 %v1674, %v1738
    %1745 = vrot.lane.b32.xlu0 %v1741, 1
    %v1746 = vpop.permute.xlu0 %1745
    %1747 = vrot.lane.b32.xlu0 %v1742, 1
    %v1748 = vpop.permute.xlu0 %1747
    %vm1751 = vcmask 285704
    %1752 = vst.msk [vmem:[%s5 + $0x1] sm:$0xff] %vm1751, %v1746
    %1753 = vst.msk [vmem:[%s5 + $0x9] sm:$0xff] %vm1751, %v1748
    %vm1754 = vcmask 277504
    %v1755 = vsel %vm1754, %v1741, 0.0
    %v1756 = vsel %vm1754, %v1742, 0.0
    %v1757 = vadd.f32 %v1755, %v1756
    %1758 = vadd.xlane.f32.xlu0 %v1757
    %v1759 = vpop.xlane.xlu0 %1758
    %v1760 = vrot.slane %v1759, 4
    %v1761 = vadd.f32 %v1759, %v1760
    %v1762 = vrot.slane %v1761, 2
    %v1763 = vadd.f32 %v1761, %v1762
    %v1764 = vrot.slane %v1763, 1
    %v1765 = vadd.f32 %v1763, %v1764
    %s1766 = vtos %v1765
    %v1767 = vmul.f32 %v1741, %v1741
    %v1768 = vmul.f32 %v1742, %v1742
    %v1769 = vsel %vm1754, %v1767, 0.0
    %v1770 = vsel %vm1754, %v1768, 0.0
    %v1771 = vadd.f32 %v1769, %v1770
    %1772 = vadd.xlane.f32.xlu0 %v1771
    %v1773 = vpop.xlane.xlu0 %1772
    %v1774 = vrot.slane %v1773, 4
    %v1775 = vadd.f32 %v1773, %v1774
    %v1776 = vrot.slane %v1775, 2
    %v1777 = vadd.f32 %v1775, %v1776
    %v1778 = vrot.slane %v1777, 1
    %v1779 = vadd.f32 %v1777, %v1778
    %s1780 = vtos %v1779
    %v1781 = vmul.f32 %v1687, %v1736
    %v1782 = vmul.f32 %v1688, %v1738
    %1785 = vrot.lane.b32.xlu0 %v1781, 1
    %v1786 = vpop.permute.xlu0 %1785
    %1787 = vrot.lane.b32.xlu0 %v1782, 1
    %v1788 = vpop.permute.xlu0 %1787
    %s1791 = scalar_lea.vmem %s5, 24
    %1792 = vst.msk [vmem:[%s1791 + $0x1] sm:$0xff] %vm1751, %v1786
    %1793 = vst.msk [vmem:[%s1791 + $0x9] sm:$0xff] %vm1751, %v1788
    %v1794 = vsel %vm1754, %v1781, 0.0
    %v1795 = vsel %vm1754, %v1782, 0.0
    %v1796 = vadd.f32 %v1794, %v1795
    %1797 = vadd.xlane.f32.xlu0 %v1796
    %v1798 = vpop.xlane.xlu0 %1797
    %v1799 = vrot.slane %v1798, 4
    %v1800 = vadd.f32 %v1798, %v1799
    %v1801 = vrot.slane %v1800, 2
    %v1802 = vadd.f32 %v1800, %v1801
    %v1803 = vrot.slane %v1802, 1
    %v1804 = vadd.f32 %v1802, %v1803
    %s1805 = vtos %v1804
    %v1806 = vmul.f32 %v1781, %v1781
    %v1807 = vmul.f32 %v1782, %v1782
    %v1808 = vsel %vm1754, %v1806, 0.0
    %v1809 = vsel %vm1754, %v1807, 0.0
    %v1810 = vadd.f32 %v1808, %v1809
    %1811 = vadd.xlane.f32.xlu0 %v1810
    %v1812 = vpop.xlane.xlu0 %1811
    %v1813 = vrot.slane %v1812, 4
    %v1814 = vadd.f32 %v1812, %v1813
    %v1815 = vrot.slane %v1814, 2
    %v1816 = vadd.f32 %v1814, %v1815
    %v1817 = vrot.slane %v1816, 1
    %v1818 = vadd.f32 %v1816, %v1817
    %s1819 = vtos %v1818
    %v1820 = vmul.f32 %v1701, %v1736
    %v1821 = vmul.f32 %v1702, %v1738
    %1824 = vrot.lane.b32.xlu0 %v1820, 1
    %v1825 = vpop.permute.xlu0 %1824
    %1826 = vrot.lane.b32.xlu0 %v1821, 1
    %v1827 = vpop.permute.xlu0 %1826
    %s1830 = scalar_lea.vmem %s5, 48
    %1831 = vst.msk [vmem:[%s1830 + $0x1] sm:$0xff] %vm1751, %v1825
    %1832 = vst.msk [vmem:[%s1830 + $0x9] sm:$0xff] %vm1751, %v1827
    %v1833 = vsel %vm1754, %v1820, 0.0
    %v1834 = vsel %vm1754, %v1821, 0.0
    %v1835 = vadd.f32 %v1833, %v1834
    %1836 = vadd.xlane.f32.xlu0 %v1835
    %v1837 = vpop.xlane.xlu0 %1836
    %v1838 = vrot.slane %v1837, 4
    %v1839 = vadd.f32 %v1837, %v1838
    %v1840 = vrot.slane %v1839, 2
    %v1841 = vadd.f32 %v1839, %v1840
    %v1842 = vrot.slane %v1841, 1
    %v1843 = vadd.f32 %v1841, %v1842
    %s1844 = vtos %v1843
    %v1845 = vmul.f32 %v1820, %v1820
    %v1846 = vmul.f32 %v1821, %v1821
    %v1847 = vsel %vm1754, %v1845, 0.0
    %v1848 = vsel %vm1754, %v1846, 0.0
    %v1849 = vadd.f32 %v1847, %v1848
    %1850 = vadd.xlane.f32.xlu0 %v1849
    %v1851 = vpop.xlane.xlu0 %1850
    %v1852 = vrot.slane %v1851, 4
    %v1853 = vadd.f32 %v1851, %v1852
    %v1854 = vrot.slane %v1853, 2
    %v1855 = vadd.f32 %v1853, %v1854
    %v1856 = vrot.slane %v1855, 1
    %v1857 = vadd.f32 %v1855, %v1856
    %s1858 = vtos %v1857
    %v1859 = vmul.f32 %v1715, %v1736
    %v1860 = vmul.f32 %v1716, %v1738
    %1863 = vrot.lane.b32.xlu0 %v1859, 1
    %v1864 = vpop.permute.xlu0 %1863
    %1865 = vrot.lane.b32.xlu0 %v1860, 1
    %v1866 = vpop.permute.xlu0 %1865
    %s1869 = scalar_lea.vmem %s5, 72
    %1870 = vst.msk [vmem:[%s1869 + $0x1] sm:$0xff] %vm1751, %v1864
    %1871 = vst.msk [vmem:[%s1869 + $0x9] sm:$0xff] %vm1751, %v1866
    %v1872 = vsel %vm1754, %v1859, 0.0
    %v1873 = vsel %vm1754, %v1860, 0.0
    %v1874 = vadd.f32 %v1872, %v1873
    %1875 = vadd.xlane.f32.xlu0 %v1874
    %v1876 = vpop.xlane.xlu0 %1875
    %v1877 = vrot.slane %v1876, 4
    %v1878 = vadd.f32 %v1876, %v1877
    %v1879 = vrot.slane %v1878, 2
    %v1880 = vadd.f32 %v1878, %v1879
    %v1881 = vrot.slane %v1880, 1
    %v1882 = vadd.f32 %v1880, %v1881
    %s1883 = vtos %v1882
    %v1884 = vmul.f32 %v1859, %v1859
    %v1885 = vmul.f32 %v1860, %v1860
    %v1886 = vsel %vm1754, %v1884, 0.0
    %v1887 = vsel %vm1754, %v1885, 0.0
    %v1888 = vadd.f32 %v1886, %v1887
    %1889 = vadd.xlane.f32.xlu0 %v1888
    %v1890 = vpop.xlane.xlu0 %1889
    %v1891 = vrot.slane %v1890, 4
    %v1892 = vadd.f32 %v1890, %v1891
    %v1893 = vrot.slane %v1892, 2
    %v1894 = vadd.f32 %v1892, %v1893
    %v1895 = vrot.slane %v1894, 1
    %v1896 = vadd.f32 %v1894, %v1895
    %s1897 = vtos %v1896
    %v1898 = vstv %s1766
    %v1899 = vstv %s1805
    %v1900 = vstv %s1844
    %v1901 = vstv %s1883
    %v1902 = vlaneseq
    %vm1903 = vcmp.ge.s32.totalorder %v1902, 0
    %vm1904 = vcmp.lt.s32.totalorder %v1902, 1
    %vm1905 = vmand %vm1903, %vm1904
    %v1906 = vsel %vm1905, %v1898, %v1899
    %vm1907 = vcmp.lt.s32.totalorder %v1902, 2
    %vm1908 = vmand %vm1903, %vm1907
    %v1909 = vsel %vm1908, %v1906, %v1900
    %vm1910 = vcmp.lt.s32.totalorder %v1902, 3
    %vm1911 = vmand %vm1903, %vm1910
    %v1912 = vsel %vm1911, %v1909, %v1901
    %v1913 = vstv %s1780
    %v1914 = vstv %s1819
    %v1915 = vstv %s1858
    %v1916 = vstv %s1897
    %v1917 = vsel %vm1905, %v1913, %v1914
    %v1918 = vsel %vm1908, %v1917, %v1915
    %v1919 = vsel %vm1911, %v1918, %v1916
    %v1921 = vlaneseq
    %v1922 = vshrl.u32 %v1921, 7
    %v1923 = vsub.s32 0, %v1922
    %v1924 = vrot.slane %v1919, %v1923
    %vm1926 = vcmask 1040384
    %v1927 = vsel %vm1926, %v1912, %v1924
    %vm1928 = vcmask 25600
    %1929 = vst.msk [vmem:[%s6] sm:$0x3] %vm1928, %v1927
    // Predicated region
    $region34: #{scnn_block1_forward.3} parent=1 // pred_check
      _
    $region35: #{scnn_block1_forward.3} parent=1 // pred_check_branch
      %1931 = sbr.rel (0) target = $region37
    $region36: #{scnn_block1_forward.3} parent=1 // pred_region
      _
    $region37: #{scnn_block1_forward.3} parent=1 // pred_fallthru
      _
    // Predicated region
    $region38: #{scnn_block1_forward.3} parent=1 // pred_check
      _
    $region39: #{scnn_block1_forward.3} parent=1 // pred_check_branch
      %1933 = sbr.rel (0) target = $region41
    $region40: #{scnn_block1_forward.3} parent=1 // pred_region
      _
    $region41: #{scnn_block1_forward.3} parent=1 // pred_fallthru
      _
    // Predicated region
    $region42: #{scnn_block1_forward.3} parent=1 // pred_check
      _
    $region43: #{scnn_block1_forward.3} parent=1 // pred_check_branch
      %1935 = sbr.rel (0) target = $region45
    $region44: #{scnn_block1_forward.3} parent=1 // pred_region
      _
    $region45: #{scnn_block1_forward.3} parent=1 // pred_fallthru
      _
    // Predicated region
    $region46: #{scnn_block1_forward.3} parent=1 // pred_check
      _
    $region47: #{scnn_block1_forward.3} parent=1 // pred_check_branch
      %1937 = sbr.rel (0) target = $region49
    $region48: #{scnn_block1_forward.3} parent=1 // pred_region
      _
    $region49: #{scnn_block1_forward.3} parent=1 // pred_fallthru
      _
    %1938 = vsyncpa [#allocation3], 1
    %1939 = vsyncpa [#allocation5], 1

// kernel: scnn_block1_forward.4
$region0: #{scnn_block1_forward.4}
  #allocation0 [shape = 'u32[]', space=smem, size = 0x4, offset = 0x4, fixed_abs, tag = 'smem constant byte address 0x4 - core index']
  #allocation1 [shape = 'u32[144,128]{1,0:T(1,128)}', space=vmem, size = 0x12000, scoped, tag = 'internal scratch']
  #allocation2 [shape = 'f32[4,18,36]{2,1,0:T(8,128)}', space=vmem, size = 0xc000, scoped, tag = 'scratch operand']
  %s0 = inlined_call_operand.vmem [shape: f32[1,4,18,36], index: 0, kind: input, shape index: {}]
  %s1 = inlined_call_operand.vmem [shape: f32[4,36], index: 1, kind: input, shape index: {}]
  %s2 = inlined_call_operand.vmem [shape: f32[4], index: 2, kind: input, shape index: {}]
  %s3 = inlined_call_operand.vmem [shape: f32[4], index: 3, kind: input, shape index: {}]
  %s4 = inlined_call_operand.vmem [shape: f32[18,36], index: 4, kind: input, shape index: {}]
  %s5 = inlined_call_operand.vmem [shape: f32[1,4,18,36], index: 5, kind: output, shape index: {0}]
  %s6 = inlined_call_operand.vmem [shape: f32[1,2,4], index: 6, kind: output, shape index: {1}]
  %7 = xla_tuple %s5, %s6
  %s8 = sld [smem:[#allocation0]]
  $region50: #{scnn_block1_forward.4} parent=0
    _
  %s10 = ssub.s32 1, %s8
  %s11 = scalar_select 0, %s10, %s8
  $region1: #{scnn_block1_forward.4} parent=0
    #allocation3 [shape = 'u8[2048]{0}', space=smem, size = 0x800, scoped, tag = 'input window, operand 1, single buffered']
    #allocation4 [shape = 's32[1]{0}', space=sflag, size = 0x4, scoped, tag = 'scoped memory for scnn_block1_forward.4']
    #allocation5 [shape = 'u8[512]{0}', space=smem, size = 0x200, scoped, tag = 'input window, operand 2, single buffered']
    #allocation6 [shape = 's32[1]{0}', space=sflag, size = 0x4, scoped, tag = 'scoped memory for scnn_block1_forward.4']
    #allocation7 [shape = 'u8[512]{0}', space=smem, size = 0x200, scoped, tag = 'input window, operand 3, single buffered']
    %12 = vsyncpa [#allocation4], 0
    %13 = vsyncpa [#allocation6], 0
    // Predicated region
    $region2: #{scnn_block1_forward.4} parent=1 // pred_check
      _
    $region3: #{scnn_block1_forward.4} parent=1 // pred_check_branch
      %15 = sbr.rel (0) target = $region5
    $region4: #{scnn_block1_forward.4} parent=1 // pred_region
      _
    $region5: #{scnn_block1_forward.4} parent=1 // pred_fallthru
      _
    // Predicated region
    $region6: #{scnn_block1_forward.4} parent=1 // pred_check
      _
    $region7: #{scnn_block1_forward.4} parent=1 // pred_check_branch
      %17 = sbr.rel (0) target = $region9
    $region8: #{scnn_block1_forward.4} parent=1 // pred_region
      %s19 = ssub.s32 64, 64
      %20 = vsyncadd [#allocation4], %s19
      %s22 = sshll.u32 %s1, 4
      %s23 = int_to_ptr.vmem [resolvable:$true] %s22
      %25 = dma.vmem_to_smem %s23, 64, [#allocation3], [#allocation4]
    $region9: #{scnn_block1_forward.4} parent=1 // pred_fallthru
      _
    // Predicated region
    $region10: #{scnn_block1_forward.4} parent=1 // pred_check
      _
    $region11: #{scnn_block1_forward.4} parent=1 // pred_check_branch
      %27 = sbr.rel (0) target = $region13
    $region12: #{scnn_block1_forward.4} parent=1 // pred_region
      %s29 = ssub.s32 16, 16
      %30 = vsyncadd [#allocation6], %s29
      %s32 = sshll.u32 %s2, 4
      %s33 = int_to_ptr.vmem [resolvable:$true] %s32
      %35 = dma.vmem_to_smem %s33, 16, [#allocation5], [#allocation6]
    $region13: #{scnn_block1_forward.4} parent=1 // pred_fallthru
      _
    // Predicated region
    $region14: #{scnn_block1_forward.4} parent=1 // pred_check
      _
    $region15: #{scnn_block1_forward.4} parent=1 // pred_check_branch
      %37 = sbr.rel (0) target = $region17
    $region16: #{scnn_block1_forward.4} parent=1 // pred_region
      %s39 = ssub.s32 16, 16
      %40 = vsyncadd [#allocation6], %s39
      %s42 = sshll.u32 %s3, 4
      %s43 = int_to_ptr.vmem [resolvable:$true] %s42
      %45 = dma.vmem_to_smem %s43, 16, [#allocation7], [#allocation6]
    $region17: #{scnn_block1_forward.4} parent=1 // pred_fallthru
      _
    // Predicated region
    $region18: #{scnn_block1_forward.4} parent=1 // pred_check
      _
    $region19: #{scnn_block1_forward.4} parent=1 // pred_check_branch
      %47 = sbr.rel (0) target = $region21
    $region20: #{scnn_block1_forward.4} parent=1 // pred_region
      _
    $region21: #{scnn_block1_forward.4} parent=1 // pred_fallthru
      _
    // Predicated region
    $region22: #{scnn_block1_forward.4} parent=1 // pred_check
      _
    $region23: #{scnn_block1_forward.4} parent=1 // pred_check_branch
      %49 = sbr.rel (0) target = $region25
    $region24: #{scnn_block1_forward.4} parent=1 // pred_region
      %50 = dma.done [#allocation4], 64
    $region25: #{scnn_block1_forward.4} parent=1 // pred_fallthru
      _
    // Predicated region
    $region26: #{scnn_block1_forward.4} parent=1 // pred_check
      _
    $region27: #{scnn_block1_forward.4} parent=1 // pred_check_branch
      %52 = sbr.rel (0) target = $region29
    $region28: #{scnn_block1_forward.4} parent=1 // pred_region
      %53 = dma.done [#allocation6], 16
    $region29: #{scnn_block1_forward.4} parent=1 // pred_fallthru
      _
    // Predicated region
    $region30: #{scnn_block1_forward.4} parent=1 // pred_check
      _
    $region31: #{scnn_block1_forward.4} parent=1 // pred_check_branch
      %55 = sbr.rel (0) target = $region33
    $region32: #{scnn_block1_forward.4} parent=1 // pred_region
      %56 = dma.done [#allocation6], 16
    $region33: #{scnn_block1_forward.4} parent=1 // pred_fallthru
      _
    %57 = sfence
    %v58 = vld [vmem:[%s4] sm:$0xff]
    %v59 = vld [vmem:[%s4 + $0x8] sm:$0xff]
    %v60 = vld [vmem:[%s4 + $0x10] sm:$0x3]
    %v61 = vld [vmem:[%s0] sm:$0xff]
    %v62 = vld [vmem:[%s0 + $0x8] sm:$0xff]
    %v63 = vld [vmem:[%s0 + $0x10] sm:$0x3]
    %s64 = sld [smem:[#allocation5]]
    %v65 = vstv %s64
    %v66 = vmul.f32 %v61, %v65
    %v67 = vmul.f32 %v62, %v65
    %v68 = vmul.f32 %v63, %v65
    %s69 = sld [smem:[#allocation7]]
    %v70 = vstv %s69
    %v71 = vadd.f32 %v66, %v70
    %v72 = vadd.f32 %v67, %v70
    %v73 = vadd.f32 %v68, %v70
    %v74 = vmax.f32 %v71, 0.0
    %v75 = vmax.f32 %v72, 0.0
    %v76 = vmax.f32 %v73, 0.0
    %v77 = vmul.f32 %v58, %v74
    %v78 = vmul.f32 %v59, %v75
    %v79 = vmul.f32 %v60, %v76
    %vm80 = vcmask 293888
    %81 = vst.msk [vmem:[#allocation2] sm:$0xff] %vm80, %v77
    %82 = vst.msk [vmem:[#allocation2 + $0x8] sm:$0xff] %vm80, %v78
    %vm83 = vcmask 287744
    %84 = vst.msk [vmem:[#allocation2 + $0x10] sm:$0x3] %vm83, %v79
    %s85 = scalar_lea.vmem %s0, 24
    %v86 = vld [vmem:[%s85] sm:$0xff]
    %v87 = vld [vmem:[%s85 + $0x8] sm:$0xff]
    %v88 = vld [vmem:[%s85 + $0x10] sm:$0x3]
    %s89 = sld [smem:[#allocation5 + $0x1]]
    %v90 = vstv %s89
    %v91 = vmul.f32 %v86, %v90
    %v92 = vmul.f32 %v87, %v90
    %v93 = vmul.f32 %v88, %v90
    %s94 = sld [smem:[#allocation7 + $0x1]]
    %v95 = vstv %s94
    %v96 = vadd.f32 %v91, %v95
    %v97 = vadd.f32 %v92, %v95
    %v98 = vadd.f32 %v93, %v95
    %v99 = vmax.f32 %v96, 0.0
    %v100 = vmax.f32 %v97, 0.0
    %v101 = vmax.f32 %v98, 0.0
    %v102 = vmul.f32 %v58, %v99
    %v103 = vmul.f32 %v59, %v100
    %v104 = vmul.f32 %v60, %v101
    %s105 = scalar_lea.vmem [#allocation2], 24
    %106 = vst.msk [vmem:[%s105] sm:$0xff] %vm80, %v102
    %107 = vst.msk [vmem:[%s105 + $0x8] sm:$0xff] %vm80, %v103
    %108 = vst.msk [vmem:[%s105 + $0x10] sm:$0x3] %vm83, %v104
    %s109 = scalar_lea.vmem %s0, 48
    %v110 = vld [vmem:[%s109] sm:$0xff]
    %v111 = vld [vmem:[%s109 + $0x8] sm:$0xff]
    %v112 = vld [vmem:[%s109 + $0x10] sm:$0x3]
    %s113 = sld [smem:[#allocation5 + $0x2]]
    %v114 = vstv %s113
    %v115 = vmul.f32 %v110, %v114
    %v116 = vmul.f32 %v111, %v114
    %v117 = vmul.f32 %v112, %v114
    %s118 = sld [smem:[#allocation7 + $0x2]]
    %v119 = vstv %s118
    %v120 = vadd.f32 %v115, %v119
    %v121 = vadd.f32 %v116, %v119
    %v122 = vadd.f32 %v117, %v119
    %v123 = vmax.f32 %v120, 0.0
    %v124 = vmax.f32 %v121, 0.0
    %v125 = vmax.f32 %v122, 0.0
    %v126 = vmul.f32 %v58, %v123
    %v127 = vmul.f32 %v59, %v124
    %v128 = vmul.f32 %v60, %v125
    %s129 = scalar_lea.vmem [#allocation2], 48
    %130 = vst.msk [vmem:[%s129] sm:$0xff] %vm80, %v126
    %131 = vst.msk [vmem:[%s129 + $0x8] sm:$0xff] %vm80, %v127
    %132 = vst.msk [vmem:[%s129 + $0x10] sm:$0x3] %vm83, %v128
    %s133 = scalar_lea.vmem %s0, 72
    %v134 = vld [vmem:[%s133] sm:$0xff]
    %v135 = vld [vmem:[%s133 + $0x8] sm:$0xff]
    %v136 = vld [vmem:[%s133 + $0x10] sm:$0x3]
    %s137 = sld [smem:[#allocation5 + $0x3]]
    %v138 = vstv %s137
    %v139 = vmul.f32 %v134, %v138
    %v140 = vmul.f32 %v135, %v138
    %v141 = vmul.f32 %v136, %v138
    %s142 = sld [smem:[#allocation7 + $0x3]]
    %v143 = vstv %s142
    %v144 = vadd.f32 %v139, %v143
    %v145 = vadd.f32 %v140, %v143
    %v146 = vadd.f32 %v141, %v143
    %v147 = vmax.f32 %v144, 0.0
    %v148 = vmax.f32 %v145, 0.0
    %v149 = vmax.f32 %v146, 0.0
    %v150 = vmul.f32 %v58, %v147
    %v151 = vmul.f32 %v59, %v148
    %v152 = vmul.f32 %v60, %v149
    %s153 = scalar_lea.vmem [#allocation2], 72
    %154 = vst.msk [vmem:[%s153] sm:$0xff] %vm80, %v150
    %155 = vst.msk [vmem:[%s153 + $0x8] sm:$0xff] %vm80, %v151
    %156 = vst.msk [vmem:[%s153 + $0x10] sm:$0x3] %vm83, %v152
    %v157 = vld [vmem:[#allocation2] sm:$0xff]
    %v158 = vld [vmem:[#allocation2 + $0x8] sm:$0xff]
    %s159 = sld [smem:[#allocation3]]
    %v160 = vstv %s159
    %v161 = vmul.f32 %v160, %v157
    %v162 = vmul.f32 %v160, %v158
    %v163 = vadd.f32 %v161, 0.0
    %v164 = vadd.f32 %v162, 0.0
    %s165 = sld [smem:[#allocation3 + $0x80]]
    %v166 = vstv %s165
    %v167 = vmul.f32 %v166, %v157
    %v168 = vmul.f32 %v166, %v158
    %v169 = vadd.f32 %v167, 0.0
    %v170 = vadd.f32 %v168, 0.0
    %s171 = sld [smem:[#allocation3 + $0x100]]
    %v172 = vstv %s171
    %v173 = vmul.f32 %v172, %v157
    %v174 = vmul.f32 %v172, %v158
    %v175 = vadd.f32 %v173, 0.0
    %v176 = vadd.f32 %v174, 0.0
    %s177 = sld [smem:[#allocation3 + $0x180]]
    %v178 = vstv %s177
    %v179 = vmul.f32 %v178, %v157
    %v180 = vmul.f32 %v178, %v158
    %v181 = vadd.f32 %v179, 0.0
    %v182 = vadd.f32 %v180, 0.0
    %s183 = sld [smem:[#allocation3 + $0x1]]
    %v184 = vstv %s183
    %v185 = vmul.f32 %v184, %v157
    %v186 = vmul.f32 %v184, %v158
    %189 = vrot.lane.b32.xlu0 %v185, 127
    %v190 = vpop.permute.xlu0 %189
    %191 = vrot.lane.b32.xlu0 %v186, 127
    %v192 = vpop.permute.xlu0 %191
    %v195 = vadd.f32 %v163, %v190
    %v196 = vadd.f32 %v164, %v192
    %s197 = sld [smem:[#allocation3 + $0x81]]
    %v198 = vstv %s197
    %v199 = vmul.f32 %v198, %v157
    %v200 = vmul.f32 %v198, %v158
    %203 = vrot.lane.b32.xlu0 %v199, 127
    %v204 = vpop.permute.xlu0 %203
    %205 = vrot.lane.b32.xlu0 %v200, 127
    %v206 = vpop.permute.xlu0 %205
    %v209 = vadd.f32 %v169, %v204
    %v210 = vadd.f32 %v170, %v206
    %s211 = sld [smem:[#allocation3 + $0x101]]
    %v212 = vstv %s211
    %v213 = vmul.f32 %v212, %v157
    %v214 = vmul.f32 %v212, %v158
    %217 = vrot.lane.b32.xlu0 %v213, 127
    %v218 = vpop.permute.xlu0 %217
    %219 = vrot.lane.b32.xlu0 %v214, 127
    %v220 = vpop.permute.xlu0 %219
    %v223 = vadd.f32 %v175, %v218
    %v224 = vadd.f32 %v176, %v220
    %s225 = sld [smem:[#allocation3 + $0x181]]
    %v226 = vstv %s225
    %v227 = vmul.f32 %v226, %v157
    %v228 = vmul.f32 %v226, %v158
    %231 = vrot.lane.b32.xlu0 %v227, 127
    %v232 = vpop.permute.xlu0 %231
    %233 = vrot.lane.b32.xlu0 %v228, 127
    %v234 = vpop.permute.xlu0 %233
    %v237 = vadd.f32 %v181, %v232
    %v238 = vadd.f32 %v182, %v234
    %s239 = sld [smem:[#allocation3 + $0x2]]
    %v240 = vstv %s239
    %v241 = vmul.f32 %v240, %v157
    %v242 = vmul.f32 %v240, %v158
    %245 = vrot.lane.b32.xlu0 %v241, 126
    %v246 = vpop.permute.xlu0 %245
    %247 = vrot.lane.b32.xlu0 %v242, 126
    %v248 = vpop.permute.xlu0 %247
    %v251 = vadd.f32 %v195, %v246
    %v252 = vadd.f32 %v196, %v248
    %s253 = sld [smem:[#allocation3 + $0x82]]
    %v254 = vstv %s253
    %v255 = vmul.f32 %v254, %v157
    %v256 = vmul.f32 %v254, %v158
    %259 = vrot.lane.b32.xlu0 %v255, 126
    %v260 = vpop.permute.xlu0 %259
    %261 = vrot.lane.b32.xlu0 %v256, 126
    %v262 = vpop.permute.xlu0 %261
    %v265 = vadd.f32 %v209, %v260
    %v266 = vadd.f32 %v210, %v262
    %s267 = sld [smem:[#allocation3 + $0x102]]
    %v268 = vstv %s267
    %v269 = vmul.f32 %v268, %v157
    %v270 = vmul.f32 %v268, %v158
    %273 = vrot.lane.b32.xlu0 %v269, 126
    %v274 = vpop.permute.xlu0 %273
    %275 = vrot.lane.b32.xlu0 %v270, 126
    %v276 = vpop.permute.xlu0 %275
    %v279 = vadd.f32 %v223, %v274
    %v280 = vadd.f32 %v224, %v276
    %s281 = sld [smem:[#allocation3 + $0x182]]
    %v282 = vstv %s281
    %v283 = vmul.f32 %v282, %v157
    %v284 = vmul.f32 %v282, %v158
    %287 = vrot.lane.b32.xlu0 %v283, 126
    %v288 = vpop.permute.xlu0 %287
    %289 = vrot.lane.b32.xlu0 %v284, 126
    %v290 = vpop.permute.xlu0 %289
    %v293 = vadd.f32 %v237, %v288
    %v294 = vadd.f32 %v238, %v290
    %v295 = vld [vmem:[#allocation2 + $0x1] sm:$0xff]
    %v296 = vld [vmem:[#allocation2 + $0x9] sm:$0xff]
    %s297 = sld [smem:[#allocation3 + $0x3]]
    %v298 = vstv %s297
    %v299 = vmul.f32 %v298, %v295
    %v300 = vmul.f32 %v298, %v296
    %v301 = vadd.f32 %v251, %v299
    %v302 = vadd.f32 %v252, %v300
    %s303 = sld [smem:[#allocation3 + $0x83]]
    %v304 = vstv %s303
    %v305 = vmul.f32 %v304, %v295
    %v306 = vmul.f32 %v304, %v296
    %v307 = vadd.f32 %v265, %v305
    %v308 = vadd.f32 %v266, %v306
    %s309 = sld [smem:[#allocation3 + $0x103]]
    %v310 = vstv %s309
    %v311 = vmul.f32 %v310, %v295
    %v312 = vmul.f32 %v310, %v296
    %v313 = vadd.f32 %v279, %v311
    %v314 = vadd.f32 %v280, %v312
    %s315 = sld [smem:[#allocation3 + $0x183]]
    %v316 = vstv %s315
    %v317 = vmul.f32 %v316, %v295
    %v318 = vmul.f32 %v316, %v296
    %v319 = vadd.f32 %v293, %v317
    %v320 = vadd.f32 %v294, %v318
    %s321 = sld [smem:[#allocation3 + $0x4]]
    %v322 = vstv %s321
    %v323 = vmul.f32 %v322, %v295
    %v324 = vmul.f32 %v322, %v296
    %327 = vrot.lane.b32.xlu0 %v323, 127
    %v328 = vpop.permute.xlu0 %327
    %329 = vrot.lane.b32.xlu0 %v324, 127
    %v330 = vpop.permute.xlu0 %329
    %v333 = vadd.f32 %v301, %v328
    %v334 = vadd.f32 %v302, %v330
    %s335 = sld [smem:[#allocation3 + $0x84]]
    %v336 = vstv %s335
    %v337 = vmul.f32 %v336, %v295
    %v338 = vmul.f32 %v336, %v296
    %341 = vrot.lane.b32.xlu0 %v337, 127
    %v342 = vpop.permute.xlu0 %341
    %343 = vrot.lane.b32.xlu0 %v338, 127
    %v344 = vpop.permute.xlu0 %343
    %v347 = vadd.f32 %v307, %v342
    %v348 = vadd.f32 %v308, %v344
    %s349 = sld [smem:[#allocation3 + $0x104]]
    %v350 = vstv %s349
    %v351 = vmul.f32 %v350, %v295
    %v352 = vmul.f32 %v350, %v296
    %355 = vrot.lane.b32.xlu0 %v351, 127
    %v356 = vpop.permute.xlu0 %355
    %357 = vrot.lane.b32.xlu0 %v352, 127
    %v358 = vpop.permute.xlu0 %357
    %v361 = vadd.f32 %v313, %v356
    %v362 = vadd.f32 %v314, %v358
    %s363 = sld [smem:[#allocation3 + $0x184]]
    %v364 = vstv %s363
    %v365 = vmul.f32 %v364, %v295
    %v366 = vmul.f32 %v364, %v296
    %369 = vrot.lane.b32.xlu0 %v365, 127
    %v370 = vpop.permute.xlu0 %369
    %371 = vrot.lane.b32.xlu0 %v366, 127
    %v372 = vpop.permute.xlu0 %371
    %v375 = vadd.f32 %v319, %v370
    %v376 = vadd.f32 %v320, %v372
    %s377 = sld [smem:[#allocation3 + $0x5]]
    %v378 = vstv %s377
    %v379 = vmul.f32 %v378, %v295
    %v380 = vmul.f32 %v378, %v296
    %383 = vrot.lane.b32.xlu0 %v379, 126
    %v384 = vpop.permute.xlu0 %383
    %385 = vrot.lane.b32.xlu0 %v380, 126
    %v386 = vpop.permute.xlu0 %385
    %v389 = vadd.f32 %v333, %v384
    %v390 = vadd.f32 %v334, %v386
    %s391 = sld [smem:[#allocation3 + $0x85]]
    %v392 = vstv %s391
    %v393 = vmul.f32 %v392, %v295
    %v394 = vmul.f32 %v392, %v296
    %397 = vrot.lane.b32.xlu0 %v393, 126
    %v398 = vpop.permute.xlu0 %397
    %399 = vrot.lane.b32.xlu0 %v394, 126
    %v400 = vpop.permute.xlu0 %399
    %v403 = vadd.f32 %v347, %v398
    %v404 = vadd.f32 %v348, %v400
    %s405 = sld [smem:[#allocation3 + $0x105]]
    %v406 = vstv %s405
    %v407 = vmul.f32 %v406, %v295
    %v408 = vmul.f32 %v406, %v296
    %411 = vrot.lane.b32.xlu0 %v407, 126
    %v412 = vpop.permute.xlu0 %411
    %413 = vrot.lane.b32.xlu0 %v408, 126
    %v414 = vpop.permute.xlu0 %413
    %v417 = vadd.f32 %v361, %v412
    %v418 = vadd.f32 %v362, %v414
    %s419 = sld [smem:[#allocation3 + $0x185]]
    %v420 = vstv %s419
    %v421 = vmul.f32 %v420, %v295
    %v422 = vmul.f32 %v420, %v296
    %425 = vrot.lane.b32.xlu0 %v421, 126
    %v426 = vpop.permute.xlu0 %425
    %427 = vrot.lane.b32.xlu0 %v422, 126
    %v428 = vpop.permute.xlu0 %427
    %v431 = vadd.f32 %v375, %v426
    %v432 = vadd.f32 %v376, %v428
    %v433 = vld [vmem:[#allocation2 + $0x2] sm:$0xff]
    %v434 = vld [vmem:[#allocation2 + $0xa] sm:$0xff]
    %s435 = sld [smem:[#allocation3 + $0x6]]
    %v436 = vstv %s435
    %v437 = vmul.f32 %v436, %v433
    %v438 = vmul.f32 %v436, %v434
    %v439 = vadd.f32 %v389, %v437
    %v440 = vadd.f32 %v390, %v438
    %s441 = sld [smem:[#allocation3 + $0x86]]
    %v442 = vstv %s441
    %v443 = vmul.f32 %v442, %v433
    %v444 = vmul.f32 %v442, %v434
    %v445 = vadd.f32 %v403, %v443
    %v446 = vadd.f32 %v404, %v444
    %s447 = sld [smem:[#allocation3 + $0x106]]
    %v448 = vstv %s447
    %v449 = vmul.f32 %v448, %v433
    %v450 = vmul.f32 %v448, %v434
    %v451 = vadd.f32 %v417, %v449
    %v452 = vadd.f32 %v418, %v450
    %s453 = sld [smem:[#allocation3 + $0x186]]
    %v454 = vstv %s453
    %v455 = vmul.f32 %v454, %v433
    %v456 = vmul.f32 %v454, %v434
    %v457 = vadd.f32 %v431, %v455
    %v458 = vadd.f32 %v432, %v456
    %s459 = sld [smem:[#allocation3 + $0x7]]
    %v460 = vstv %s459
    %v461 = vmul.f32 %v460, %v433
    %v462 = vmul.f32 %v460, %v434
    %465 = vrot.lane.b32.xlu0 %v461, 127
    %v466 = vpop.permute.xlu0 %465
    %467 = vrot.lane.b32.xlu0 %v462, 127
    %v468 = vpop.permute.xlu0 %467
    %v471 = vadd.f32 %v439, %v466
    %v472 = vadd.f32 %v440, %v468
    %s473 = sld [smem:[#allocation3 + $0x87]]
    %v474 = vstv %s473
    %v475 = vmul.f32 %v474, %v433
    %v476 = vmul.f32 %v474, %v434
    %479 = vrot.lane.b32.xlu0 %v475, 127
    %v480 = vpop.permute.xlu0 %479
    %481 = vrot.lane.b32.xlu0 %v476, 127
    %v482 = vpop.permute.xlu0 %481
    %v485 = vadd.f32 %v445, %v480
    %v486 = vadd.f32 %v446, %v482
    %s487 = sld [smem:[#allocation3 + $0x107]]
    %v488 = vstv %s487
    %v489 = vmul.f32 %v488, %v433
    %v490 = vmul.f32 %v488, %v434
    %493 = vrot.lane.b32.xlu0 %v489, 127
    %v494 = vpop.permute.xlu0 %493
    %495 = vrot.lane.b32.xlu0 %v490, 127
    %v496 = vpop.permute.xlu0 %495
    %v499 = vadd.f32 %v451, %v494
    %v500 = vadd.f32 %v452, %v496
    %s501 = sld [smem:[#allocation3 + $0x187]]
    %v502 = vstv %s501
    %v503 = vmul.f32 %v502, %v433
    %v504 = vmul.f32 %v502, %v434
    %507 = vrot.lane.b32.xlu0 %v503, 127
    %v508 = vpop.permute.xlu0 %507
    %509 = vrot.lane.b32.xlu0 %v504, 127
    %v510 = vpop.permute.xlu0 %509
    %v513 = vadd.f32 %v457, %v508
    %v514 = vadd.f32 %v458, %v510
    %s515 = sld [smem:[#allocation3 + $0x8]]
    %v516 = vstv %s515
    %v517 = vmul.f32 %v516, %v433
    %v518 = vmul.f32 %v516, %v434
    %521 = vrot.lane.b32.xlu0 %v517, 126
    %v522 = vpop.permute.xlu0 %521
    %523 = vrot.lane.b32.xlu0 %v518, 126
    %v524 = vpop.permute.xlu0 %523
    %v527 = vadd.f32 %v471, %v522
    %v528 = vadd.f32 %v472, %v524
    %s529 = sld [smem:[#allocation3 + $0x88]]
    %v530 = vstv %s529
    %v531 = vmul.f32 %v530, %v433
    %v532 = vmul.f32 %v530, %v434
    %535 = vrot.lane.b32.xlu0 %v531, 126
    %v536 = vpop.permute.xlu0 %535
    %537 = vrot.lane.b32.xlu0 %v532, 126
    %v538 = vpop.permute.xlu0 %537
    %v541 = vadd.f32 %v485, %v536
    %v542 = vadd.f32 %v486, %v538
    %s543 = sld [smem:[#allocation3 + $0x108]]
    %v544 = vstv %s543
    %v545 = vmul.f32 %v544, %v433
    %v546 = vmul.f32 %v544, %v434
    %549 = vrot.lane.b32.xlu0 %v545, 126
    %v550 = vpop.permute.xlu0 %549
    %551 = vrot.lane.b32.xlu0 %v546, 126
    %v552 = vpop.permute.xlu0 %551
    %v555 = vadd.f32 %v499, %v550
    %v556 = vadd.f32 %v500, %v552
    %s557 = sld [smem:[#allocation3 + $0x188]]
    %v558 = vstv %s557
    %v559 = vmul.f32 %v558, %v433
    %v560 = vmul.f32 %v558, %v434
    %563 = vrot.lane.b32.xlu0 %v559, 126
    %v564 = vpop.permute.xlu0 %563
    %565 = vrot.lane.b32.xlu0 %v560, 126
    %v566 = vpop.permute.xlu0 %565
    %v569 = vadd.f32 %v513, %v564
    %v570 = vadd.f32 %v514, %v566
    %v571 = vld [vmem:[%s105] sm:$0xff]
    %v572 = vld [vmem:[%s105 + $0x8] sm:$0xff]
    %s573 = sld [smem:[#allocation3 + $0x9]]
    %v574 = vstv %s573
    %v575 = vmul.f32 %v574, %v571
    %v576 = vmul.f32 %v574, %v572
    %v577 = vadd.f32 %v527, %v575
    %v578 = vadd.f32 %v528, %v576
    %s579 = sld [smem:[#allocation3 + $0x89]]
    %v580 = vstv %s579
    %v581 = vmul.f32 %v580, %v571
    %v582 = vmul.f32 %v580, %v572
    %v583 = vadd.f32 %v541, %v581
    %v584 = vadd.f32 %v542, %v582
    %s585 = sld [smem:[#allocation3 + $0x109]]
    %v586 = vstv %s585
    %v587 = vmul.f32 %v586, %v571
    %v588 = vmul.f32 %v586, %v572
    %v589 = vadd.f32 %v555, %v587
    %v590 = vadd.f32 %v556, %v588
    %s591 = sld [smem:[#allocation3 + $0x189]]
    %v592 = vstv %s591
    %v593 = vmul.f32 %v592, %v571
    %v594 = vmul.f32 %v592, %v572
    %v595 = vadd.f32 %v569, %v593
    %v596 = vadd.f32 %v570, %v594
    %s597 = sld [smem:[#allocation3 + $0xa]]
    %v598 = vstv %s597
    %v599 = vmul.f32 %v598, %v571
    %v600 = vmul.f32 %v598, %v572
    %603 = vrot.lane.b32.xlu0 %v599, 127
    %v604 = vpop.permute.xlu0 %603
    %605 = vrot.lane.b32.xlu0 %v600, 127
    %v606 = vpop.permute.xlu0 %605
    %v609 = vadd.f32 %v577, %v604
    %v610 = vadd.f32 %v578, %v606
    %s611 = sld [smem:[#allocation3 + $0x8a]]
    %v612 = vstv %s611
    %v613 = vmul.f32 %v612, %v571
    %v614 = vmul.f32 %v612, %v572
    %617 = vrot.lane.b32.xlu0 %v613, 127
    %v618 = vpop.permute.xlu0 %617
    %619 = vrot.lane.b32.xlu0 %v614, 127
    %v620 = vpop.permute.xlu0 %619
    %v623 = vadd.f32 %v583, %v618
    %v624 = vadd.f32 %v584, %v620
    %s625 = sld [smem:[#allocation3 + $0x10a]]
    %v626 = vstv %s625
    %v627 = vmul.f32 %v626, %v571
    %v628 = vmul.f32 %v626, %v572
    %631 = vrot.lane.b32.xlu0 %v627, 127
    %v632 = vpop.permute.xlu0 %631
    %633 = vrot.lane.b32.xlu0 %v628, 127
    %v634 = vpop.permute.xlu0 %633
    %v637 = vadd.f32 %v589, %v632
    %v638 = vadd.f32 %v590, %v634
    %s639 = sld [smem:[#allocation3 + $0x18a]]
    %v640 = vstv %s639
    %v641 = vmul.f32 %v640, %v571
    %v642 = vmul.f32 %v640, %v572
    %645 = vrot.lane.b32.xlu0 %v641, 127
    %v646 = vpop.permute.xlu0 %645
    %647 = vrot.lane.b32.xlu0 %v642, 127
    %v648 = vpop.permute.xlu0 %647
    %v651 = vadd.f32 %v595, %v646
    %v652 = vadd.f32 %v596, %v648
    %s653 = sld [smem:[#allocation3 + $0xb]]
    %v654 = vstv %s653
    %v655 = vmul.f32 %v654, %v571
    %v656 = vmul.f32 %v654, %v572
    %659 = vrot.lane.b32.xlu0 %v655, 126
    %v660 = vpop.permute.xlu0 %659
    %661 = vrot.lane.b32.xlu0 %v656, 126
    %v662 = vpop.permute.xlu0 %661
    %v665 = vadd.f32 %v609, %v660
    %v666 = vadd.f32 %v610, %v662
    %s667 = sld [smem:[#allocation3 + $0x8b]]
    %v668 = vstv %s667
    %v669 = vmul.f32 %v668, %v571
    %v670 = vmul.f32 %v668, %v572
    %673 = vrot.lane.b32.xlu0 %v669, 126
    %v674 = vpop.permute.xlu0 %673
    %675 = vrot.lane.b32.xlu0 %v670, 126
    %v676 = vpop.permute.xlu0 %675
    %v679 = vadd.f32 %v623, %v674
    %v680 = vadd.f32 %v624, %v676
    %s681 = sld [smem:[#allocation3 + $0x10b]]
    %v682 = vstv %s681
    %v683 = vmul.f32 %v682, %v571
    %v684 = vmul.f32 %v682, %v572
    %687 = vrot.lane.b32.xlu0 %v683, 126
    %v688 = vpop.permute.xlu0 %687
    %689 = vrot.lane.b32.xlu0 %v684, 126
    %v690 = vpop.permute.xlu0 %689
    %v693 = vadd.f32 %v637, %v688
    %v694 = vadd.f32 %v638, %v690
    %s695 = sld [smem:[#allocation3 + $0x18b]]
    %v696 = vstv %s695
    %v697 = vmul.f32 %v696, %v571
    %v698 = vmul.f32 %v696, %v572
    %701 = vrot.lane.b32.xlu0 %v697, 126
    %v702 = vpop.permute.xlu0 %701
    %703 = vrot.lane.b32.xlu0 %v698, 126
    %v704 = vpop.permute.xlu0 %703
    %v707 = vadd.f32 %v651, %v702
    %v708 = vadd.f32 %v652, %v704
    %v709 = vld [vmem:[%s105 + $0x1] sm:$0xff]
    %v710 = vld [vmem:[%s105 + $0x9] sm:$0xff]
    %s711 = sld [smem:[#allocation3 + $0xc]]
    %v712 = vstv %s711
    %v713 = vmul.f32 %v712, %v709
    %v714 = vmul.f32 %v712, %v710
    %v715 = vadd.f32 %v665, %v713
    %v716 = vadd.f32 %v666, %v714
    %s717 = sld [smem:[#allocation3 + $0x8c]]
    %v718 = vstv %s717
    %v719 = vmul.f32 %v718, %v709
    %v720 = vmul.f32 %v718, %v710
    %v721 = vadd.f32 %v679, %v719
    %v722 = vadd.f32 %v680, %v720
    %s723 = sld [smem:[#allocation3 + $0x10c]]
    %v724 = vstv %s723
    %v725 = vmul.f32 %v724, %v709
    %v726 = vmul.f32 %v724, %v710
    %v727 = vadd.f32 %v693, %v725
    %v728 = vadd.f32 %v694, %v726
    %s729 = sld [smem:[#allocation3 + $0x18c]]
    %v730 = vstv %s729
    %v731 = vmul.f32 %v730, %v709
    %v732 = vmul.f32 %v730, %v710
    %v733 = vadd.f32 %v707, %v731
    %v734 = vadd.f32 %v708, %v732
    %s735 = sld [smem:[#allocation3 + $0xd]]
    %v736 = vstv %s735
    %v737 = vmul.f32 %v736, %v709
    %v738 = vmul.f32 %v736, %v710
    %741 = vrot.lane.b32.xlu0 %v737, 127
    %v742 = vpop.permute.xlu0 %741
    %743 = vrot.lane.b32.xlu0 %v738, 127
    %v744 = vpop.permute.xlu0 %743
    %v747 = vadd.f32 %v715, %v742
    %v748 = vadd.f32 %v716, %v744
    %s749 = sld [smem:[#allocation3 + $0x8d]]
    %v750 = vstv %s749
    %v751 = vmul.f32 %v750, %v709
    %v752 = vmul.f32 %v750, %v710
    %755 = vrot.lane.b32.xlu0 %v751, 127
    %v756 = vpop.permute.xlu0 %755
    %757 = vrot.lane.b32.xlu0 %v752, 127
    %v758 = vpop.permute.xlu0 %757
    %v761 = vadd.f32 %v721, %v756
    %v762 = vadd.f32 %v722, %v758
    %s763 = sld [smem:[#allocation3 + $0x10d]]
    %v764 = vstv %s763
    %v765 = vmul.f32 %v764, %v709
    %v766 = vmul.f32 %v764, %v710
    %769 = vrot.lane.b32.xlu0 %v765, 127
    %v770 = vpop.permute.xlu0 %769
    %771 = vrot.lane.b32.xlu0 %v766, 127
    %v772 = vpop.permute.xlu0 %771
    %v775 = vadd.f32 %v727, %v770
    %v776 = vadd.f32 %v728, %v772
    %s777 = sld [smem:[#allocation3 + $0x18d]]
    %v778 = vstv %s777
    %v779 = vmul.f32 %v778, %v709
    %v780 = vmul.f32 %v778, %v710
    %783 = vrot.lane.b32.xlu0 %v779, 127
    %v784 = vpop.permute.xlu0 %783
    %785 = vrot.lane.b32.xlu0 %v780, 127
    %v786 = vpop.permute.xlu0 %785
    %v789 = vadd.f32 %v733, %v784
    %v790 = vadd.f32 %v734, %v786
    %s791 = sld [smem:[#allocation3 + $0xe]]
    %v792 = vstv %s791
    %v793 = vmul.f32 %v792, %v709
    %v794 = vmul.f32 %v792, %v710
    %797 = vrot.lane.b32.xlu0 %v793, 126
    %v798 = vpop.permute.xlu0 %797
    %799 = vrot.lane.b32.xlu0 %v794, 126
    %v800 = vpop.permute.xlu0 %799
    %v803 = vadd.f32 %v747, %v798
    %v804 = vadd.f32 %v748, %v800
    %s805 = sld [smem:[#allocation3 + $0x8e]]
    %v806 = vstv %s805
    %v807 = vmul.f32 %v806, %v709
    %v808 = vmul.f32 %v806, %v710
    %811 = vrot.lane.b32.xlu0 %v807, 126
    %v812 = vpop.permute.xlu0 %811
    %813 = vrot.lane.b32.xlu0 %v808, 126
    %v814 = vpop.permute.xlu0 %813
    %v817 = vadd.f32 %v761, %v812
    %v818 = vadd.f32 %v762, %v814
    %s819 = sld [smem:[#allocation3 + $0x10e]]
    %v820 = vstv %s819
    %v821 = vmul.f32 %v820, %v709
    %v822 = vmul.f32 %v820, %v710
    %825 = vrot.lane.b32.xlu0 %v821, 126
    %v826 = vpop.permute.xlu0 %825
    %827 = vrot.lane.b32.xlu0 %v822, 126
    %v828 = vpop.permute.xlu0 %827
    %v831 = vadd.f32 %v775, %v826
    %v832 = vadd.f32 %v776, %v828
    %s833 = sld [smem:[#allocation3 + $0x18e]]
    %v834 = vstv %s833
    %v835 = vmul.f32 %v834, %v709
    %v836 = vmul.f32 %v834, %v710
    %839 = vrot.lane.b32.xlu0 %v835, 126
    %v840 = vpop.permute.xlu0 %839
    %841 = vrot.lane.b32.xlu0 %v836, 126
    %v842 = vpop.permute.xlu0 %841
    %v845 = vadd.f32 %v789, %v840
    %v846 = vadd.f32 %v790, %v842
    %v847 = vld [vmem:[%s105 + $0x2] sm:$0xff]
    %v848 = vld [vmem:[%s105 + $0xa] sm:$0xff]
    %s849 = sld [smem:[#allocation3 + $0xf]]
    %v850 = vstv %s849
    %v851 = vmul.f32 %v850, %v847
    %v852 = vmul.f32 %v850, %v848
    %v853 = vadd.f32 %v803, %v851
    %v854 = vadd.f32 %v804, %v852
    %s855 = sld [smem:[#allocation3 + $0x8f]]
    %v856 = vstv %s855
    %v857 = vmul.f32 %v856, %v847
    %v858 = vmul.f32 %v856, %v848
    %v859 = vadd.f32 %v817, %v857
    %v860 = vadd.f32 %v818, %v858
    %s861 = sld [smem:[#allocation3 + $0x10f]]
    %v862 = vstv %s861
    %v863 = vmul.f32 %v862, %v847
    %v864 = vmul.f32 %v862, %v848
    %v865 = vadd.f32 %v831, %v863
    %v866 = vadd.f32 %v832, %v864
    %s867 = sld [smem:[#allocation3 + $0x18f]]
    %v868 = vstv %s867
    %v869 = vmul.f32 %v868, %v847
    %v870 = vmul.f32 %v868, %v848
    %v871 = vadd.f32 %v845, %v869
    %v872 = vadd.f32 %v846, %v870
    %s873 = sld [smem:[#allocation3 + $0x10]]
    %v874 = vstv %s873
    %v875 = vmul.f32 %v874, %v847
    %v876 = vmul.f32 %v874, %v848
    %879 = vrot.lane.b32.xlu0 %v875, 127
    %v880 = vpop.permute.xlu0 %879
    %881 = vrot.lane.b32.xlu0 %v876, 127
    %v882 = vpop.permute.xlu0 %881
    %v885 = vadd.f32 %v853, %v880
    %v886 = vadd.f32 %v854, %v882
    %s887 = sld [smem:[#allocation3 + $0x90]]
    %v888 = vstv %s887
    %v889 = vmul.f32 %v888, %v847
    %v890 = vmul.f32 %v888, %v848
    %893 = vrot.lane.b32.xlu0 %v889, 127
    %v894 = vpop.permute.xlu0 %893
    %895 = vrot.lane.b32.xlu0 %v890, 127
    %v896 = vpop.permute.xlu0 %895
    %v899 = vadd.f32 %v859, %v894
    %v900 = vadd.f32 %v860, %v896
    %s901 = sld [smem:[#allocation3 + $0x110]]
    %v902 = vstv %s901
    %v903 = vmul.f32 %v902, %v847
    %v904 = vmul.f32 %v902, %v848
    %907 = vrot.lane.b32.xlu0 %v903, 127
    %v908 = vpop.permute.xlu0 %907
    %909 = vrot.lane.b32.xlu0 %v904, 127
    %v910 = vpop.permute.xlu0 %909
    %v913 = vadd.f32 %v865, %v908
    %v914 = vadd.f32 %v866, %v910
    %s915 = sld [smem:[#allocation3 + $0x190]]
    %v916 = vstv %s915
    %v917 = vmul.f32 %v916, %v847
    %v918 = vmul.f32 %v916, %v848
    %921 = vrot.lane.b32.xlu0 %v917, 127
    %v922 = vpop.permute.xlu0 %921
    %923 = vrot.lane.b32.xlu0 %v918, 127
    %v924 = vpop.permute.xlu0 %923
    %v927 = vadd.f32 %v871, %v922
    %v928 = vadd.f32 %v872, %v924
    %s929 = sld [smem:[#allocation3 + $0x11]]
    %v930 = vstv %s929
    %v931 = vmul.f32 %v930, %v847
    %v932 = vmul.f32 %v930, %v848
    %935 = vrot.lane.b32.xlu0 %v931, 126
    %v936 = vpop.permute.xlu0 %935
    %937 = vrot.lane.b32.xlu0 %v932, 126
    %v938 = vpop.permute.xlu0 %937
    %v941 = vadd.f32 %v885, %v936
    %v942 = vadd.f32 %v886, %v938
    %s943 = sld [smem:[#allocation3 + $0x91]]
    %v944 = vstv %s943
    %v945 = vmul.f32 %v944, %v847
    %v946 = vmul.f32 %v944, %v848
    %949 = vrot.lane.b32.xlu0 %v945, 126
    %v950 = vpop.permute.xlu0 %949
    %951 = vrot.lane.b32.xlu0 %v946, 126
    %v952 = vpop.permute.xlu0 %951
    %v955 = vadd.f32 %v899, %v950
    %v956 = vadd.f32 %v900, %v952
    %s957 = sld [smem:[#allocation3 + $0x111]]
    %v958 = vstv %s957
    %v959 = vmul.f32 %v958, %v847
    %v960 = vmul.f32 %v958, %v848
    %963 = vrot.lane.b32.xlu0 %v959, 126
    %v964 = vpop.permute.xlu0 %963
    %965 = vrot.lane.b32.xlu0 %v960, 126
    %v966 = vpop.permute.xlu0 %965
    %v969 = vadd.f32 %v913, %v964
    %v970 = vadd.f32 %v914, %v966
    %s971 = sld [smem:[#allocation3 + $0x191]]
    %v972 = vstv %s971
    %v973 = vmul.f32 %v972, %v847
    %v974 = vmul.f32 %v972, %v848
    %977 = vrot.lane.b32.xlu0 %v973, 126
    %v978 = vpop.permute.xlu0 %977
    %979 = vrot.lane.b32.xlu0 %v974, 126
    %v980 = vpop.permute.xlu0 %979
    %v983 = vadd.f32 %v927, %v978
    %v984 = vadd.f32 %v928, %v980
    %v985 = vld [vmem:[%s129] sm:$0xff]
    %v986 = vld [vmem:[%s129 + $0x8] sm:$0xff]
    %s987 = sld [smem:[#allocation3 + $0x12]]
    %v988 = vstv %s987
    %v989 = vmul.f32 %v988, %v985
    %v990 = vmul.f32 %v988, %v986
    %v991 = vadd.f32 %v941, %v989
    %v992 = vadd.f32 %v942, %v990
    %s993 = sld [smem:[#allocation3 + $0x92]]
    %v994 = vstv %s993
    %v995 = vmul.f32 %v994, %v985
    %v996 = vmul.f32 %v994, %v986
    %v997 = vadd.f32 %v955, %v995
    %v998 = vadd.f32 %v956, %v996
    %s999 = sld [smem:[#allocation3 + $0x112]]
    %v1000 = vstv %s999
    %v1001 = vmul.f32 %v1000, %v985
    %v1002 = vmul.f32 %v1000, %v986
    %v1003 = vadd.f32 %v969, %v1001
    %v1004 = vadd.f32 %v970, %v1002
    %s1005 = sld [smem:[#allocation3 + $0x192]]
    %v1006 = vstv %s1005
    %v1007 = vmul.f32 %v1006, %v985
    %v1008 = vmul.f32 %v1006, %v986
    %v1009 = vadd.f32 %v983, %v1007
    %v1010 = vadd.f32 %v984, %v1008
    %s1011 = sld [smem:[#allocation3 + $0x13]]
    %v1012 = vstv %s1011
    %v1013 = vmul.f32 %v1012, %v985
    %v1014 = vmul.f32 %v1012, %v986
    %1017 = vrot.lane.b32.xlu0 %v1013, 127
    %v1018 = vpop.permute.xlu0 %1017
    %1019 = vrot.lane.b32.xlu0 %v1014, 127
    %v1020 = vpop.permute.xlu0 %1019
    %v1023 = vadd.f32 %v991, %v1018
    %v1024 = vadd.f32 %v992, %v1020
    %s1025 = sld [smem:[#allocation3 + $0x93]]
    %v1026 = vstv %s1025
    %v1027 = vmul.f32 %v1026, %v985
    %v1028 = vmul.f32 %v1026, %v986
    %1031 = vrot.lane.b32.xlu0 %v1027, 127
    %v1032 = vpop.permute.xlu0 %1031
    %1033 = vrot.lane.b32.xlu0 %v1028, 127
    %v1034 = vpop.permute.xlu0 %1033
    %v1037 = vadd.f32 %v997, %v1032
    %v1038 = vadd.f32 %v998, %v1034
    %s1039 = sld [smem:[#allocation3 + $0x113]]
    %v1040 = vstv %s1039
    %v1041 = vmul.f32 %v1040, %v985
    %v1042 = vmul.f32 %v1040, %v986
    %1045 = vrot.lane.b32.xlu0 %v1041, 127
    %v1046 = vpop.permute.xlu0 %1045
    %1047 = vrot.lane.b32.xlu0 %v1042, 127
    %v1048 = vpop.permute.xlu0 %1047
    %v1051 = vadd.f32 %v1003, %v1046
    %v1052 = vadd.f32 %v1004, %v1048
    %s1053 = sld [smem:[#allocation3 + $0x193]]
    %v1054 = vstv %s1053
    %v1055 = vmul.f32 %v1054, %v985
    %v1056 = vmul.f32 %v1054, %v986
    %1059 = vrot.lane.b32.xlu0 %v1055, 127
    %v1060 = vpop.permute.xlu0 %1059
    %1061 = vrot.lane.b32.xlu0 %v1056, 127
    %v1062 = vpop.permute.xlu0 %1061
    %v1065 = vadd.f32 %v1009, %v1060
    %v1066 = vadd.f32 %v1010, %v1062
    %s1067 = sld [smem:[#allocation3 + $0x14]]
    %v1068 = vstv %s1067
    %v1069 = vmul.f32 %v1068, %v985
    %v1070 = vmul.f32 %v1068, %v986
    %1073 = vrot.lane.b32.xlu0 %v1069, 126
    %v1074 = vpop.permute.xlu0 %1073
    %1075 = vrot.lane.b32.xlu0 %v1070, 126
    %v1076 = vpop.permute.xlu0 %1075
    %v1079 = vadd.f32 %v1023, %v1074
    %v1080 = vadd.f32 %v1024, %v1076
    %s1081 = sld [smem:[#allocation3 + $0x94]]
    %v1082 = vstv %s1081
    %v1083 = vmul.f32 %v1082, %v985
    %v1084 = vmul.f32 %v1082, %v986
    %1087 = vrot.lane.b32.xlu0 %v1083, 126
    %v1088 = vpop.permute.xlu0 %1087
    %1089 = vrot.lane.b32.xlu0 %v1084, 126
    %v1090 = vpop.permute.xlu0 %1089
    %v1093 = vadd.f32 %v1037, %v1088
    %v1094 = vadd.f32 %v1038, %v1090
    %s1095 = sld [smem:[#allocation3 + $0x114]]
    %v1096 = vstv %s1095
    %v1097 = vmul.f32 %v1096, %v985
    %v1098 = vmul.f32 %v1096, %v986
    %1101 = vrot.lane.b32.xlu0 %v1097, 126
    %v1102 = vpop.permute.xlu0 %1101
    %1103 = vrot.lane.b32.xlu0 %v1098, 126
    %v1104 = vpop.permute.xlu0 %1103
    %v1107 = vadd.f32 %v1051, %v1102
    %v1108 = vadd.f32 %v1052, %v1104
    %s1109 = sld [smem:[#allocation3 + $0x194]]
    %v1110 = vstv %s1109
    %v1111 = vmul.f32 %v1110, %v985
    %v1112 = vmul.f32 %v1110, %v986
    %1115 = vrot.lane.b32.xlu0 %v1111, 126
    %v1116 = vpop.permute.xlu0 %1115
    %1117 = vrot.lane.b32.xlu0 %v1112, 126
    %v1118 = vpop.permute.xlu0 %1117
    %v1121 = vadd.f32 %v1065, %v1116
    %v1122 = vadd.f32 %v1066, %v1118
    %v1123 = vld [vmem:[%s129 + $0x1] sm:$0xff]
    %v1124 = vld [vmem:[%s129 + $0x9] sm:$0xff]
    %s1125 = sld [smem:[#allocation3 + $0x15]]
    %v1126 = vstv %s1125
    %v1127 = vmul.f32 %v1126, %v1123
    %v1128 = vmul.f32 %v1126, %v1124
    %v1129 = vadd.f32 %v1079, %v1127
    %v1130 = vadd.f32 %v1080, %v1128
    %s1131 = sld [smem:[#allocation3 + $0x95]]
    %v1132 = vstv %s1131
    %v1133 = vmul.f32 %v1132, %v1123
    %v1134 = vmul.f32 %v1132, %v1124
    %v1135 = vadd.f32 %v1093, %v1133
    %v1136 = vadd.f32 %v1094, %v1134
    %s1137 = sld [smem:[#allocation3 + $0x115]]
    %v1138 = vstv %s1137
    %v1139 = vmul.f32 %v1138, %v1123
    %v1140 = vmul.f32 %v1138, %v1124
    %v1141 = vadd.f32 %v1107, %v1139
    %v1142 = vadd.f32 %v1108, %v1140
    %s1143 = sld [smem:[#allocation3 + $0x195]]
    %v1144 = vstv %s1143
    %v1145 = vmul.f32 %v1144, %v1123
    %v1146 = vmul.f32 %v1144, %v1124
    %v1147 = vadd.f32 %v1121, %v1145
    %v1148 = vadd.f32 %v1122, %v1146
    %s1149 = sld [smem:[#allocation3 + $0x16]]
    %v1150 = vstv %s1149
    %v1151 = vmul.f32 %v1150, %v1123
    %v1152 = vmul.f32 %v1150, %v1124
    %1155 = vrot.lane.b32.xlu0 %v1151, 127
    %v1156 = vpop.permute.xlu0 %1155
    %1157 = vrot.lane.b32.xlu0 %v1152, 127
    %v1158 = vpop.permute.xlu0 %1157
    %v1161 = vadd.f32 %v1129, %v1156
    %v1162 = vadd.f32 %v1130, %v1158
    %s1163 = sld [smem:[#allocation3 + $0x96]]
    %v1164 = vstv %s1163
    %v1165 = vmul.f32 %v1164, %v1123
    %v1166 = vmul.f32 %v1164, %v1124
    %1169 = vrot.lane.b32.xlu0 %v1165, 127
    %v1170 = vpop.permute.xlu0 %1169
    %1171 = vrot.lane.b32.xlu0 %v1166, 127
    %v1172 = vpop.permute.xlu0 %1171
    %v1175 = vadd.f32 %v1135, %v1170
    %v1176 = vadd.f32 %v1136, %v1172
    %s1177 = sld [smem:[#allocation3 + $0x116]]
    %v1178 = vstv %s1177
    %v1179 = vmul.f32 %v1178, %v1123
    %v1180 = vmul.f32 %v1178, %v1124
    %1183 = vrot.lane.b32.xlu0 %v1179, 127
    %v1184 = vpop.permute.xlu0 %1183
    %1185 = vrot.lane.b32.xlu0 %v1180, 127
    %v1186 = vpop.permute.xlu0 %1185
    %v1189 = vadd.f32 %v1141, %v1184
    %v1190 = vadd.f32 %v1142, %v1186
    %s1191 = sld [smem:[#allocation3 + $0x196]]
    %v1192 = vstv %s1191
    %v1193 = vmul.f32 %v1192, %v1123
    %v1194 = vmul.f32 %v1192, %v1124
    %1197 = vrot.lane.b32.xlu0 %v1193, 127
    %v1198 = vpop.permute.xlu0 %1197
    %1199 = vrot.lane.b32.xlu0 %v1194, 127
    %v1200 = vpop.permute.xlu0 %1199
    %v1203 = vadd.f32 %v1147, %v1198
    %v1204 = vadd.f32 %v1148, %v1200
    %s1205 = sld [smem:[#allocation3 + $0x17]]
    %v1206 = vstv %s1205
    %v1207 = vmul.f32 %v1206, %v1123
    %v1208 = vmul.f32 %v1206, %v1124
    %1211 = vrot.lane.b32.xlu0 %v1207, 126
    %v1212 = vpop.permute.xlu0 %1211
    %1213 = vrot.lane.b32.xlu0 %v1208, 126
    %v1214 = vpop.permute.xlu0 %1213
    %v1217 = vadd.f32 %v1161, %v1212
    %v1218 = vadd.f32 %v1162, %v1214
    %s1219 = sld [smem:[#allocation3 + $0x97]]
    %v1220 = vstv %s1219
    %v1221 = vmul.f32 %v1220, %v1123
    %v1222 = vmul.f32 %v1220, %v1124
    %1225 = vrot.lane.b32.xlu0 %v1221, 126
    %v1226 = vpop.permute.xlu0 %1225
    %1227 = vrot.lane.b32.xlu0 %v1222, 126
    %v1228 = vpop.permute.xlu0 %1227
    %v1231 = vadd.f32 %v1175, %v1226
    %v1232 = vadd.f32 %v1176, %v1228
    %s1233 = sld [smem:[#allocation3 + $0x117]]
    %v1234 = vstv %s1233
    %v1235 = vmul.f32 %v1234, %v1123
    %v1236 = vmul.f32 %v1234, %v1124
    %1239 = vrot.lane.b32.xlu0 %v1235, 126
    %v1240 = vpop.permute.xlu0 %1239
    %1241 = vrot.lane.b32.xlu0 %v1236, 126
    %v1242 = vpop.permute.xlu0 %1241
    %v1245 = vadd.f32 %v1189, %v1240
    %v1246 = vadd.f32 %v1190, %v1242
    %s1247 = sld [smem:[#allocation3 + $0x197]]
    %v1248 = vstv %s1247
    %v1249 = vmul.f32 %v1248, %v1123
    %v1250 = vmul.f32 %v1248, %v1124
    %1253 = vrot.lane.b32.xlu0 %v1249, 126
    %v1254 = vpop.permute.xlu0 %1253
    %1255 = vrot.lane.b32.xlu0 %v1250, 126
    %v1256 = vpop.permute.xlu0 %1255
    %v1259 = vadd.f32 %v1203, %v1254
    %v1260 = vadd.f32 %v1204, %v1256
    %v1261 = vld [vmem:[%s129 + $0x2] sm:$0xff]
    %v1262 = vld [vmem:[%s129 + $0xa] sm:$0xff]
    %s1263 = sld [smem:[#allocation3 + $0x18]]
    %v1264 = vstv %s1263
    %v1265 = vmul.f32 %v1264, %v1261
    %v1266 = vmul.f32 %v1264, %v1262
    %v1267 = vadd.f32 %v1217, %v1265
    %v1268 = vadd.f32 %v1218, %v1266
    %s1269 = sld [smem:[#allocation3 + $0x98]]
    %v1270 = vstv %s1269
    %v1271 = vmul.f32 %v1270, %v1261
    %v1272 = vmul.f32 %v1270, %v1262
    %v1273 = vadd.f32 %v1231, %v1271
    %v1274 = vadd.f32 %v1232, %v1272
    %s1275 = sld [smem:[#allocation3 + $0x118]]
    %v1276 = vstv %s1275
    %v1277 = vmul.f32 %v1276, %v1261
    %v1278 = vmul.f32 %v1276, %v1262
    %v1279 = vadd.f32 %v1245, %v1277
    %v1280 = vadd.f32 %v1246, %v1278
    %s1281 = sld [smem:[#allocation3 + $0x198]]
    %v1282 = vstv %s1281
    %v1283 = vmul.f32 %v1282, %v1261
    %v1284 = vmul.f32 %v1282, %v1262
    %v1285 = vadd.f32 %v1259, %v1283
    %v1286 = vadd.f32 %v1260, %v1284
    %s1287 = sld [smem:[#allocation3 + $0x19]]
    %v1288 = vstv %s1287
    %v1289 = vmul.f32 %v1288, %v1261
    %v1290 = vmul.f32 %v1288, %v1262
    %1293 = vrot.lane.b32.xlu0 %v1289, 127
    %v1294 = vpop.permute.xlu0 %1293
    %1295 = vrot.lane.b32.xlu0 %v1290, 127
    %v1296 = vpop.permute.xlu0 %1295
    %v1299 = vadd.f32 %v1267, %v1294
    %v1300 = vadd.f32 %v1268, %v1296
    %s1301 = sld [smem:[#allocation3 + $0x99]]
    %v1302 = vstv %s1301
    %v1303 = vmul.f32 %v1302, %v1261
    %v1304 = vmul.f32 %v1302, %v1262
    %1307 = vrot.lane.b32.xlu0 %v1303, 127
    %v1308 = vpop.permute.xlu0 %1307
    %1309 = vrot.lane.b32.xlu0 %v1304, 127
    %v1310 = vpop.permute.xlu0 %1309
    %v1313 = vadd.f32 %v1273, %v1308
    %v1314 = vadd.f32 %v1274, %v1310
    %s1315 = sld [smem:[#allocation3 + $0x119]]
    %v1316 = vstv %s1315
    %v1317 = vmul.f32 %v1316, %v1261
    %v1318 = vmul.f32 %v1316, %v1262
    %1321 = vrot.lane.b32.xlu0 %v1317, 127
    %v1322 = vpop.permute.xlu0 %1321
    %1323 = vrot.lane.b32.xlu0 %v1318, 127
    %v1324 = vpop.permute.xlu0 %1323
    %v1327 = vadd.f32 %v1279, %v1322
    %v1328 = vadd.f32 %v1280, %v1324
    %s1329 = sld [smem:[#allocation3 + $0x199]]
    %v1330 = vstv %s1329
    %v1331 = vmul.f32 %v1330, %v1261
    %v1332 = vmul.f32 %v1330, %v1262
    %1335 = vrot.lane.b32.xlu0 %v1331, 127
    %v1336 = vpop.permute.xlu0 %1335
    %1337 = vrot.lane.b32.xlu0 %v1332, 127
    %v1338 = vpop.permute.xlu0 %1337
    %v1341 = vadd.f32 %v1285, %v1336
    %v1342 = vadd.f32 %v1286, %v1338
    %s1343 = sld [smem:[#allocation3 + $0x1a]]
    %v1344 = vstv %s1343
    %v1345 = vmul.f32 %v1344, %v1261
    %v1346 = vmul.f32 %v1344, %v1262
    %1349 = vrot.lane.b32.xlu0 %v1345, 126
    %v1350 = vpop.permute.xlu0 %1349
    %1351 = vrot.lane.b32.xlu0 %v1346, 126
    %v1352 = vpop.permute.xlu0 %1351
    %v1355 = vadd.f32 %v1299, %v1350
    %v1356 = vadd.f32 %v1300, %v1352
    %s1357 = sld [smem:[#allocation3 + $0x9a]]
    %v1358 = vstv %s1357
    %v1359 = vmul.f32 %v1358, %v1261
    %v1360 = vmul.f32 %v1358, %v1262
    %1363 = vrot.lane.b32.xlu0 %v1359, 126
    %v1364 = vpop.permute.xlu0 %1363
    %1365 = vrot.lane.b32.xlu0 %v1360, 126
    %v1366 = vpop.permute.xlu0 %1365
    %v1369 = vadd.f32 %v1313, %v1364
    %v1370 = vadd.f32 %v1314, %v1366
    %s1371 = sld [smem:[#allocation3 + $0x11a]]
    %v1372 = vstv %s1371
    %v1373 = vmul.f32 %v1372, %v1261
    %v1374 = vmul.f32 %v1372, %v1262
    %1377 = vrot.lane.b32.xlu0 %v1373, 126
    %v1378 = vpop.permute.xlu0 %1377
    %1379 = vrot.lane.b32.xlu0 %v1374, 126
    %v1380 = vpop.permute.xlu0 %1379
    %v1383 = vadd.f32 %v1327, %v1378
    %v1384 = vadd.f32 %v1328, %v1380
    %s1385 = sld [smem:[#allocation3 + $0x19a]]
    %v1386 = vstv %s1385
    %v1387 = vmul.f32 %v1386, %v1261
    %v1388 = vmul.f32 %v1386, %v1262
    %1391 = vrot.lane.b32.xlu0 %v1387, 126
    %v1392 = vpop.permute.xlu0 %1391
    %1393 = vrot.lane.b32.xlu0 %v1388, 126
    %v1394 = vpop.permute.xlu0 %1393
    %v1397 = vadd.f32 %v1341, %v1392
    %v1398 = vadd.f32 %v1342, %v1394
    %v1399 = vld [vmem:[%s153] sm:$0xff]
    %v1400 = vld [vmem:[%s153 + $0x8] sm:$0xff]
    %s1401 = sld [smem:[#allocation3 + $0x1b]]
    %v1402 = vstv %s1401
    %v1403 = vmul.f32 %v1402, %v1399
    %v1404 = vmul.f32 %v1402, %v1400
    %v1405 = vadd.f32 %v1355, %v1403
    %v1406 = vadd.f32 %v1356, %v1404
    %s1407 = sld [smem:[#allocation3 + $0x9b]]
    %v1408 = vstv %s1407
    %v1409 = vmul.f32 %v1408, %v1399
    %v1410 = vmul.f32 %v1408, %v1400
    %v1411 = vadd.f32 %v1369, %v1409
    %v1412 = vadd.f32 %v1370, %v1410
    %s1413 = sld [smem:[#allocation3 + $0x11b]]
    %v1414 = vstv %s1413
    %v1415 = vmul.f32 %v1414, %v1399
    %v1416 = vmul.f32 %v1414, %v1400
    %v1417 = vadd.f32 %v1383, %v1415
    %v1418 = vadd.f32 %v1384, %v1416
    %s1419 = sld [smem:[#allocation3 + $0x19b]]
    %v1420 = vstv %s1419
    %v1421 = vmul.f32 %v1420, %v1399
    %v1422 = vmul.f32 %v1420, %v1400
    %v1423 = vadd.f32 %v1397, %v1421
    %v1424 = vadd.f32 %v1398, %v1422
    %s1425 = sld [smem:[#allocation3 + $0x1c]]
    %v1426 = vstv %s1425
    %v1427 = vmul.f32 %v1426, %v1399
    %v1428 = vmul.f32 %v1426, %v1400
    %1431 = vrot.lane.b32.xlu0 %v1427, 127
    %v1432 = vpop.permute.xlu0 %1431
    %1433 = vrot.lane.b32.xlu0 %v1428, 127
    %v1434 = vpop.permute.xlu0 %1433
    %v1437 = vadd.f32 %v1405, %v1432
    %v1438 = vadd.f32 %v1406, %v1434
    %s1439 = sld [smem:[#allocation3 + $0x9c]]
    %v1440 = vstv %s1439
    %v1441 = vmul.f32 %v1440, %v1399
    %v1442 = vmul.f32 %v1440, %v1400
    %1445 = vrot.lane.b32.xlu0 %v1441, 127
    %v1446 = vpop.permute.xlu0 %1445
    %1447 = vrot.lane.b32.xlu0 %v1442, 127
    %v1448 = vpop.permute.xlu0 %1447
    %v1451 = vadd.f32 %v1411, %v1446
    %v1452 = vadd.f32 %v1412, %v1448
    %s1453 = sld [smem:[#allocation3 + $0x11c]]
    %v1454 = vstv %s1453
    %v1455 = vmul.f32 %v1454, %v1399
    %v1456 = vmul.f32 %v1454, %v1400
    %1459 = vrot.lane.b32.xlu0 %v1455, 127
    %v1460 = vpop.permute.xlu0 %1459
    %1461 = vrot.lane.b32.xlu0 %v1456, 127
    %v1462 = vpop.permute.xlu0 %1461
    %v1465 = vadd.f32 %v1417, %v1460
    %v1466 = vadd.f32 %v1418, %v1462
    %s1467 = sld [smem:[#allocation3 + $0x19c]]
    %v1468 = vstv %s1467
    %v1469 = vmul.f32 %v1468, %v1399
    %v1470 = vmul.f32 %v1468, %v1400
    %1473 = vrot.lane.b32.xlu0 %v1469, 127
    %v1474 = vpop.permute.xlu0 %1473
    %1475 = vrot.lane.b32.xlu0 %v1470, 127
    %v1476 = vpop.permute.xlu0 %1475
    %v1479 = vadd.f32 %v1423, %v1474
    %v1480 = vadd.f32 %v1424, %v1476
    %s1481 = sld [smem:[#allocation3 + $0x1d]]
    %v1482 = vstv %s1481
    %v1483 = vmul.f32 %v1482, %v1399
    %v1484 = vmul.f32 %v1482, %v1400
    %1487 = vrot.lane.b32.xlu0 %v1483, 126
    %v1488 = vpop.permute.xlu0 %1487
    %1489 = vrot.lane.b32.xlu0 %v1484, 126
    %v1490 = vpop.permute.xlu0 %1489
    %v1493 = vadd.f32 %v1437, %v1488
    %v1494 = vadd.f32 %v1438, %v1490
    %s1495 = sld [smem:[#allocation3 + $0x9d]]
    %v1496 = vstv %s1495
    %v1497 = vmul.f32 %v1496, %v1399
    %v1498 = vmul.f32 %v1496, %v1400
    %1501 = vrot.lane.b32.xlu0 %v1497, 126
    %v1502 = vpop.permute.xlu0 %1501
    %1503 = vrot.lane.b32.xlu0 %v1498, 126
    %v1504 = vpop.permute.xlu0 %1503
    %v1507 = vadd.f32 %v1451, %v1502
    %v1508 = vadd.f32 %v1452, %v1504
    %s1509 = sld [smem:[#allocation3 + $0x11d]]
    %v1510 = vstv %s1509
    %v1511 = vmul.f32 %v1510, %v1399
    %v1512 = vmul.f32 %v1510, %v1400
    %1515 = vrot.lane.b32.xlu0 %v1511, 126
    %v1516 = vpop.permute.xlu0 %1515
    %1517 = vrot.lane.b32.xlu0 %v1512, 126
    %v1518 = vpop.permute.xlu0 %1517
    %v1521 = vadd.f32 %v1465, %v1516
    %v1522 = vadd.f32 %v1466, %v1518
    %s1523 = sld [smem:[#allocation3 + $0x19d]]
    %v1524 = vstv %s1523
    %v1525 = vmul.f32 %v1524, %v1399
    %v1526 = vmul.f32 %v1524, %v1400
    %1529 = vrot.lane.b32.xlu0 %v1525, 126
    %v1530 = vpop.permute.xlu0 %1529
    %1531 = vrot.lane.b32.xlu0 %v1526, 126
    %v1532 = vpop.permute.xlu0 %1531
    %v1535 = vadd.f32 %v1479, %v1530
    %v1536 = vadd.f32 %v1480, %v1532
    %v1537 = vld [vmem:[%s153 + $0x1] sm:$0xff]
    %v1538 = vld [vmem:[%s153 + $0x9] sm:$0xff]
    %s1539 = sld [smem:[#allocation3 + $0x1e]]
    %v1540 = vstv %s1539
    %v1541 = vmul.f32 %v1540, %v1537
    %v1542 = vmul.f32 %v1540, %v1538
    %v1543 = vadd.f32 %v1493, %v1541
    %v1544 = vadd.f32 %v1494, %v1542
    %s1545 = sld [smem:[#allocation3 + $0x9e]]
    %v1546 = vstv %s1545
    %v1547 = vmul.f32 %v1546, %v1537
    %v1548 = vmul.f32 %v1546, %v1538
    %v1549 = vadd.f32 %v1507, %v1547
    %v1550 = vadd.f32 %v1508, %v1548
    %s1551 = sld [smem:[#allocation3 + $0x11e]]
    %v1552 = vstv %s1551
    %v1553 = vmul.f32 %v1552, %v1537
    %v1554 = vmul.f32 %v1552, %v1538
    %v1555 = vadd.f32 %v1521, %v1553
    %v1556 = vadd.f32 %v1522, %v1554
    %s1557 = sld [smem:[#allocation3 + $0x19e]]
    %v1558 = vstv %s1557
    %v1559 = vmul.f32 %v1558, %v1537
    %v1560 = vmul.f32 %v1558, %v1538
    %v1561 = vadd.f32 %v1535, %v1559
    %v1562 = vadd.f32 %v1536, %v1560
    %s1563 = sld [smem:[#allocation3 + $0x1f]]
    %v1564 = vstv %s1563
    %v1565 = vmul.f32 %v1564, %v1537
    %v1566 = vmul.f32 %v1564, %v1538
    %1569 = vrot.lane.b32.xlu0 %v1565, 127
    %v1570 = vpop.permute.xlu0 %1569
    %1571 = vrot.lane.b32.xlu0 %v1566, 127
    %v1572 = vpop.permute.xlu0 %1571
    %v1575 = vadd.f32 %v1543, %v1570
    %v1576 = vadd.f32 %v1544, %v1572
    %s1577 = sld [smem:[#allocation3 + $0x9f]]
    %v1578 = vstv %s1577
    %v1579 = vmul.f32 %v1578, %v1537
    %v1580 = vmul.f32 %v1578, %v1538
    %1583 = vrot.lane.b32.xlu0 %v1579, 127
    %v1584 = vpop.permute.xlu0 %1583
    %1585 = vrot.lane.b32.xlu0 %v1580, 127
    %v1586 = vpop.permute.xlu0 %1585
    %v1589 = vadd.f32 %v1549, %v1584
    %v1590 = vadd.f32 %v1550, %v1586
    %s1591 = sld [smem:[#allocation3 + $0x11f]]
    %v1592 = vstv %s1591
    %v1593 = vmul.f32 %v1592, %v1537
    %v1594 = vmul.f32 %v1592, %v1538
    %1597 = vrot.lane.b32.xlu0 %v1593, 127
    %v1598 = vpop.permute.xlu0 %1597
    %1599 = vrot.lane.b32.xlu0 %v1594, 127
    %v1600 = vpop.permute.xlu0 %1599
    %v1603 = vadd.f32 %v1555, %v1598
    %v1604 = vadd.f32 %v1556, %v1600
    %s1605 = sld [smem:[#allocation3 + $0x19f]]
    %v1606 = vstv %s1605
    %v1607 = vmul.f32 %v1606, %v1537
    %v1608 = vmul.f32 %v1606, %v1538
    %1611 = vrot.lane.b32.xlu0 %v1607, 127
    %v1612 = vpop.permute.xlu0 %1611
    %1613 = vrot.lane.b32.xlu0 %v1608, 127
    %v1614 = vpop.permute.xlu0 %1613
    %v1617 = vadd.f32 %v1561, %v1612
    %v1618 = vadd.f32 %v1562, %v1614
    %s1619 = sld [smem:[#allocation3 + $0x20]]
    %v1620 = vstv %s1619
    %v1621 = vmul.f32 %v1620, %v1537
    %v1622 = vmul.f32 %v1620, %v1538
    %1625 = vrot.lane.b32.xlu0 %v1621, 126
    %v1626 = vpop.permute.xlu0 %1625
    %1627 = vrot.lane.b32.xlu0 %v1622, 126
    %v1628 = vpop.permute.xlu0 %1627
    %v1631 = vadd.f32 %v1575, %v1626
    %v1632 = vadd.f32 %v1576, %v1628
    %s1633 = sld [smem:[#allocation3 + $0xa0]]
    %v1634 = vstv %s1633
    %v1635 = vmul.f32 %v1634, %v1537
    %v1636 = vmul.f32 %v1634, %v1538
    %1639 = vrot.lane.b32.xlu0 %v1635, 126
    %v1640 = vpop.permute.xlu0 %1639
    %1641 = vrot.lane.b32.xlu0 %v1636, 126
    %v1642 = vpop.permute.xlu0 %1641
    %v1645 = vadd.f32 %v1589, %v1640
    %v1646 = vadd.f32 %v1590, %v1642
    %s1647 = sld [smem:[#allocation3 + $0x120]]
    %v1648 = vstv %s1647
    %v1649 = vmul.f32 %v1648, %v1537
    %v1650 = vmul.f32 %v1648, %v1538
    %1653 = vrot.lane.b32.xlu0 %v1649, 126
    %v1654 = vpop.permute.xlu0 %1653
    %1655 = vrot.lane.b32.xlu0 %v1650, 126
    %v1656 = vpop.permute.xlu0 %1655
    %v1659 = vadd.f32 %v1603, %v1654
    %v1660 = vadd.f32 %v1604, %v1656
    %s1661 = sld [smem:[#allocation3 + $0x1a0]]
    %v1662 = vstv %s1661
    %v1663 = vmul.f32 %v1662, %v1537
    %v1664 = vmul.f32 %v1662, %v1538
    %1667 = vrot.lane.b32.xlu0 %v1663, 126
    %v1668 = vpop.permute.xlu0 %1667
    %1669 = vrot.lane.b32.xlu0 %v1664, 126
    %v1670 = vpop.permute.xlu0 %1669
    %v1673 = vadd.f32 %v1617, %v1668
    %v1674 = vadd.f32 %v1618, %v1670
    %v1675 = vld [vmem:[%s153 + $0x2] sm:$0xff]
    %v1676 = vld [vmem:[%s153 + $0xa] sm:$0xff]
    %s1677 = sld [smem:[#allocation3 + $0x21]]
    %v1678 = vstv %s1677
    %v1679 = vmul.f32 %v1678, %v1675
    %v1680 = vmul.f32 %v1678, %v1676
    %v1681 = vadd.f32 %v1631, %v1679
    %v1682 = vadd.f32 %v1632, %v1680
    %s1683 = sld [smem:[#allocation3 + $0xa1]]
    %v1684 = vstv %s1683
    %v1685 = vmul.f32 %v1684, %v1675
    %v1686 = vmul.f32 %v1684, %v1676
    %v1687 = vadd.f32 %v1645, %v1685
    %v1688 = vadd.f32 %v1646, %v1686
    %s1689 = sld [smem:[#allocation3 + $0x121]]
    %v1690 = vstv %s1689
    %v1691 = vmul.f32 %v1690, %v1675
    %v1692 = vmul.f32 %v1690, %v1676
    %v1693 = vadd.f32 %v1659, %v1691
    %v1694 = vadd.f32 %v1660, %v1692
    %s1695 = sld [smem:[#allocation3 + $0x1a1]]
    %v1696 = vstv %s1695
    %v1697 = vmul.f32 %v1696, %v1675
    %v1698 = vmul.f32 %v1696, %v1676
    %v1699 = vadd.f32 %v1673, %v1697
    %v1700 = vadd.f32 %v1674, %v1698
    %s1701 = sld [smem:[#allocation3 + $0x22]]
    %v1702 = vstv %s1701
    %v1703 = vmul.f32 %v1702, %v1675
    %v1704 = vmul.f32 %v1702, %v1676
    %1707 = vrot.lane.b32.xlu0 %v1703, 127
    %v1708 = vpop.permute.xlu0 %1707
    %1709 = vrot.lane.b32.xlu0 %v1704, 127
    %v1710 = vpop.permute.xlu0 %1709
    %v1713 = vadd.f32 %v1681, %v1708
    %v1714 = vadd.f32 %v1682, %v1710
    %s1715 = sld [smem:[#allocation3 + $0xa2]]
    %v1716 = vstv %s1715
    %v1717 = vmul.f32 %v1716, %v1675
    %v1718 = vmul.f32 %v1716, %v1676
    %1721 = vrot.lane.b32.xlu0 %v1717, 127
    %v1722 = vpop.permute.xlu0 %1721
    %1723 = vrot.lane.b32.xlu0 %v1718, 127
    %v1724 = vpop.permute.xlu0 %1723
    %v1727 = vadd.f32 %v1687, %v1722
    %v1728 = vadd.f32 %v1688, %v1724
    %s1729 = sld [smem:[#allocation3 + $0x122]]
    %v1730 = vstv %s1729
    %v1731 = vmul.f32 %v1730, %v1675
    %v1732 = vmul.f32 %v1730, %v1676
    %1735 = vrot.lane.b32.xlu0 %v1731, 127
    %v1736 = vpop.permute.xlu0 %1735
    %1737 = vrot.lane.b32.xlu0 %v1732, 127
    %v1738 = vpop.permute.xlu0 %1737
    %v1741 = vadd.f32 %v1693, %v1736
    %v1742 = vadd.f32 %v1694, %v1738
    %s1743 = sld [smem:[#allocation3 + $0x1a2]]
    %v1744 = vstv %s1743
    %v1745 = vmul.f32 %v1744, %v1675
    %v1746 = vmul.f32 %v1744, %v1676
    %1749 = vrot.lane.b32.xlu0 %v1745, 127
    %v1750 = vpop.permute.xlu0 %1749
    %1751 = vrot.lane.b32.xlu0 %v1746, 127
    %v1752 = vpop.permute.xlu0 %1751
    %v1755 = vadd.f32 %v1699, %v1750
    %v1756 = vadd.f32 %v1700, %v1752
    %s1757 = sld [smem:[#allocation3 + $0x23]]
    %v1758 = vstv %s1757
    %v1759 = vmul.f32 %v1758, %v1675
    %v1760 = vmul.f32 %v1758, %v1676
    %1763 = vrot.lane.b32.xlu0 %v1759, 126
    %v1764 = vpop.permute.xlu0 %1763
    %1765 = vrot.lane.b32.xlu0 %v1760, 126
    %v1766 = vpop.permute.xlu0 %1765
    %v1769 = vadd.f32 %v1713, %v1764
    %v1770 = vadd.f32 %v1714, %v1766
    %s1771 = sld [smem:[#allocation3 + $0xa3]]
    %v1772 = vstv %s1771
    %v1773 = vmul.f32 %v1772, %v1675
    %v1774 = vmul.f32 %v1772, %v1676
    %1777 = vrot.lane.b32.xlu0 %v1773, 126
    %v1778 = vpop.permute.xlu0 %1777
    %1779 = vrot.lane.b32.xlu0 %v1774, 126
    %v1780 = vpop.permute.xlu0 %1779
    %v1783 = vadd.f32 %v1727, %v1778
    %v1784 = vadd.f32 %v1728, %v1780
    %s1785 = sld [smem:[#allocation3 + $0x123]]
    %v1786 = vstv %s1785
    %v1787 = vmul.f32 %v1786, %v1675
    %v1788 = vmul.f32 %v1786, %v1676
    %1791 = vrot.lane.b32.xlu0 %v1787, 126
    %v1792 = vpop.permute.xlu0 %1791
    %1793 = vrot.lane.b32.xlu0 %v1788, 126
    %v1794 = vpop.permute.xlu0 %1793
    %v1797 = vadd.f32 %v1741, %v1792
    %v1798 = vadd.f32 %v1742, %v1794
    %s1799 = sld [smem:[#allocation3 + $0x1a3]]
    %v1800 = vstv %s1799
    %v1801 = vmul.f32 %v1800, %v1675
    %v1802 = vmul.f32 %v1800, %v1676
    %1805 = vrot.lane.b32.xlu0 %v1801, 126
    %v1806 = vpop.permute.xlu0 %1805
    %1807 = vrot.lane.b32.xlu0 %v1802, 126
    %v1808 = vpop.permute.xlu0 %1807
    %v1811 = vadd.f32 %v1755, %v1806
    %v1812 = vadd.f32 %v1756, %v1808
    %v1813 = vld [vmem:[%s4 + $0x1] sm:$0xff]
    %v1814 = vld [vmem:[%s4 + $0x9] sm:$0xff]
    %1815 = vst.msk [vmem:[%s5] sm:$0xff] %vm80, 0.0
    %1816 = vst.msk [vmem:[%s5 + $0x8] sm:$0xff] %vm80, 0.0
    %1817 = vst.msk [vmem:[%s5 + $0x10] sm:$0x3] %vm83, 0.0
    %1818 = vst.msk [vmem:[%s5 + $0x18] sm:$0xff] %vm80, 0.0
    %1819 = vst.msk [vmem:[%s5 + $0x20] sm:$0xff] %vm80, 0.0
    %1820 = vst.msk [vmem:[%s5 + $0x28] sm:$0x3] %vm83, 0.0
    %1821 = vst.msk [vmem:[%s5 + $0x30] sm:$0xff] %vm80, 0.0
    %1822 = vst.msk [vmem:[%s5 + $0x38] sm:$0xff] %vm80, 0.0
    %1823 = vst.msk [vmem:[%s5 + $0x40] sm:$0x3] %vm83, 0.0
    %1824 = vst.msk [vmem:[%s5 + $0x48] sm:$0xff] %vm80, 0.0
    %1825 = vst.msk [vmem:[%s5 + $0x50] sm:$0xff] %vm80, 0.0
    %1826 = vst.msk [vmem:[%s5 + $0x58] sm:$0x3] %vm83, 0.0
    %1829 = vrot.lane.b32.xlu0 %v1813, 127
    %v1830 = vpop.permute.xlu0 %1829
    %1831 = vrot.lane.b32.xlu0 %v1814, 127
    %v1832 = vpop.permute.xlu0 %1831
    %v1835 = vmul.f32 %v1769, %v1830
    %v1836 = vmul.f32 %v1770, %v1832
    %1839 = vrot.lane.b32.xlu0 %v1835, 1
    %v1840 = vpop.permute.xlu0 %1839
    %1841 = vrot.lane.b32.xlu0 %v1836, 1
    %v1842 = vpop.permute.xlu0 %1841
    %vm1845 = vcmask 285704
    %1846 = vst.msk [vmem:[%s5 + $0x1] sm:$0xff] %vm1845, %v1840
    %1847 = vst.msk [vmem:[%s5 + $0x9] sm:$0xff] %vm1845, %v1842
    %vm1848 = vcmask 277504
    %v1849 = vsel %vm1848, %v1835, 0.0
    %v1850 = vsel %vm1848, %v1836, 0.0
    %v1851 = vadd.f32 %v1849, %v1850
    %1852 = vadd.xlane.f32.xlu0 %v1851
    %v1853 = vpop.xlane.xlu0 %1852
    %v1854 = vrot.slane %v1853, 4
    %v1855 = vadd.f32 %v1853, %v1854
    %v1856 = vrot.slane %v1855, 2
    %v1857 = vadd.f32 %v1855, %v1856
    %v1858 = vrot.slane %v1857, 1
    %v1859 = vadd.f32 %v1857, %v1858
    %s1860 = vtos %v1859
    %v1861 = vmul.f32 %v1835, %v1835
    %v1862 = vmul.f32 %v1836, %v1836
    %v1863 = vsel %vm1848, %v1861, 0.0
    %v1864 = vsel %vm1848, %v1862, 0.0
    %v1865 = vadd.f32 %v1863, %v1864
    %1866 = vadd.xlane.f32.xlu0 %v1865
    %v1867 = vpop.xlane.xlu0 %1866
    %v1868 = vrot.slane %v1867, 4
    %v1869 = vadd.f32 %v1867, %v1868
    %v1870 = vrot.slane %v1869, 2
    %v1871 = vadd.f32 %v1869, %v1870
    %v1872 = vrot.slane %v1871, 1
    %v1873 = vadd.f32 %v1871, %v1872
    %s1874 = vtos %v1873
    %v1875 = vmul.f32 %v1783, %v1830
    %v1876 = vmul.f32 %v1784, %v1832
    %1879 = vrot.lane.b32.xlu0 %v1875, 1
    %v1880 = vpop.permute.xlu0 %1879
    %1881 = vrot.lane.b32.xlu0 %v1876, 1
    %v1882 = vpop.permute.xlu0 %1881
    %s1885 = scalar_lea.vmem %s5, 24
    %1886 = vst.msk [vmem:[%s1885 + $0x1] sm:$0xff] %vm1845, %v1880
    %1887 = vst.msk [vmem:[%s1885 + $0x9] sm:$0xff] %vm1845, %v1882
    %v1888 = vsel %vm1848, %v1875, 0.0
    %v1889 = vsel %vm1848, %v1876, 0.0
    %v1890 = vadd.f32 %v1888, %v1889
    %1891 = vadd.xlane.f32.xlu0 %v1890
    %v1892 = vpop.xlane.xlu0 %1891
    %v1893 = vrot.slane %v1892, 4
    %v1894 = vadd.f32 %v1892, %v1893
    %v1895 = vrot.slane %v1894, 2
    %v1896 = vadd.f32 %v1894, %v1895
    %v1897 = vrot.slane %v1896, 1
    %v1898 = vadd.f32 %v1896, %v1897
    %s1899 = vtos %v1898
    %v1900 = vmul.f32 %v1875, %v1875
    %v1901 = vmul.f32 %v1876, %v1876
    %v1902 = vsel %vm1848, %v1900, 0.0
    %v1903 = vsel %vm1848, %v1901, 0.0
    %v1904 = vadd.f32 %v1902, %v1903
    %1905 = vadd.xlane.f32.xlu0 %v1904
    %v1906 = vpop.xlane.xlu0 %1905
    %v1907 = vrot.slane %v1906, 4
    %v1908 = vadd.f32 %v1906, %v1907
    %v1909 = vrot.slane %v1908, 2
    %v1910 = vadd.f32 %v1908, %v1909
    %v1911 = vrot.slane %v1910, 1
    %v1912 = vadd.f32 %v1910, %v1911
    %s1913 = vtos %v1912
    %v1914 = vmul.f32 %v1797, %v1830
    %v1915 = vmul.f32 %v1798, %v1832
    %1918 = vrot.lane.b32.xlu0 %v1914, 1
    %v1919 = vpop.permute.xlu0 %1918
    %1920 = vrot.lane.b32.xlu0 %v1915, 1
    %v1921 = vpop.permute.xlu0 %1920
    %s1924 = scalar_lea.vmem %s5, 48
    %1925 = vst.msk [vmem:[%s1924 + $0x1] sm:$0xff] %vm1845, %v1919
    %1926 = vst.msk [vmem:[%s1924 + $0x9] sm:$0xff] %vm1845, %v1921
    %v1927 = vsel %vm1848, %v1914, 0.0
    %v1928 = vsel %vm1848, %v1915, 0.0
    %v1929 = vadd.f32 %v1927, %v1928
    %1930 = vadd.xlane.f32.xlu0 %v1929
    %v1931 = vpop.xlane.xlu0 %1930
    %v1932 = vrot.slane %v1931, 4
    %v1933 = vadd.f32 %v1931, %v1932
    %v1934 = vrot.slane %v1933, 2
    %v1935 = vadd.f32 %v1933, %v1934
    %v1936 = vrot.slane %v1935, 1
    %v1937 = vadd.f32 %v1935, %v1936
    %s1938 = vtos %v1937
    %v1939 = vmul.f32 %v1914, %v1914
    %v1940 = vmul.f32 %v1915, %v1915
    %v1941 = vsel %vm1848, %v1939, 0.0
    %v1942 = vsel %vm1848, %v1940, 0.0
    %v1943 = vadd.f32 %v1941, %v1942
    %1944 = vadd.xlane.f32.xlu0 %v1943
    %v1945 = vpop.xlane.xlu0 %1944
    %v1946 = vrot.slane %v1945, 4
    %v1947 = vadd.f32 %v1945, %v1946
    %v1948 = vrot.slane %v1947, 2
    %v1949 = vadd.f32 %v1947, %v1948
    %v1950 = vrot.slane %v1949, 1
    %v1951 = vadd.f32 %v1949, %v1950
    %s1952 = vtos %v1951
    %v1953 = vmul.f32 %v1811, %v1830
    %v1954 = vmul.f32 %v1812, %v1832
    %1957 = vrot.lane.b32.xlu0 %v1953, 1
    %v1958 = vpop.permute.xlu0 %1957
    %1959 = vrot.lane.b32.xlu0 %v1954, 1
    %v1960 = vpop.permute.xlu0 %1959
    %s1963 = scalar_lea.vmem %s5, 72
    %1964 = vst.msk [vmem:[%s1963 + $0x1] sm:$0xff] %vm1845, %v1958
    %1965 = vst.msk [vmem:[%s1963 + $0x9] sm:$0xff] %vm1845, %v1960
    %v1966 = vsel %vm1848, %v1953, 0.0
    %v1967 = vsel %vm1848, %v1954, 0.0
    %v1968 = vadd.f32 %v1966, %v1967
    %1969 = vadd.xlane.f32.xlu0 %v1968
    %v1970 = vpop.xlane.xlu0 %1969
    %v1971 = vrot.slane %v1970, 4
    %v1972 = vadd.f32 %v1970, %v1971
    %v1973 = vrot.slane %v1972, 2
    %v1974 = vadd.f32 %v1972, %v1973
    %v1975 = vrot.slane %v1974, 1
    %v1976 = vadd.f32 %v1974, %v1975
    %s1977 = vtos %v1976
    %v1978 = vmul.f32 %v1953, %v1953
    %v1979 = vmul.f32 %v1954, %v1954
    %v1980 = vsel %vm1848, %v1978, 0.0
    %v1981 = vsel %vm1848, %v1979, 0.0
    %v1982 = vadd.f32 %v1980, %v1981
    %1983 = vadd.xlane.f32.xlu0 %v1982
    %v1984 = vpop.xlane.xlu0 %1983
    %v1985 = vrot.slane %v1984, 4
    %v1986 = vadd.f32 %v1984, %v1985
    %v1987 = vrot.slane %v1986, 2
    %v1988 = vadd.f32 %v1986, %v1987
    %v1989 = vrot.slane %v1988, 1
    %v1990 = vadd.f32 %v1988, %v1989
    %s1991 = vtos %v1990
    %v1992 = vstv %s1860
    %v1993 = vstv %s1899
    %v1994 = vstv %s1938
    %v1995 = vstv %s1977
    %v1996 = vlaneseq
    %vm1997 = vcmp.ge.s32.totalorder %v1996, 0
    %vm1998 = vcmp.lt.s32.totalorder %v1996, 1
    %vm1999 = vmand %vm1997, %vm1998
    %v2000 = vsel %vm1999, %v1992, %v1993
    %vm2001 = vcmp.lt.s32.totalorder %v1996, 2
    %vm2002 = vmand %vm1997, %vm2001
    %v2003 = vsel %vm2002, %v2000, %v1994
    %vm2004 = vcmp.lt.s32.totalorder %v1996, 3
    %vm2005 = vmand %vm1997, %vm2004
    %v2006 = vsel %vm2005, %v2003, %v1995
    %v2007 = vstv %s1874
    %v2008 = vstv %s1913
    %v2009 = vstv %s1952
    %v2010 = vstv %s1991
    %v2011 = vsel %vm1999, %v2007, %v2008
    %v2012 = vsel %vm2002, %v2011, %v2009
    %v2013 = vsel %vm2005, %v2012, %v2010
    %v2015 = vlaneseq
    %v2016 = vshrl.u32 %v2015, 7
    %v2017 = vsub.s32 0, %v2016
    %v2018 = vrot.slane %v2013, %v2017
    %vm2020 = vcmask 1040384
    %v2021 = vsel %vm2020, %v2006, %v2018
    %vm2022 = vcmask 25600
    %2023 = vst.msk [vmem:[%s6] sm:$0x3] %vm2022, %v2021
    // Predicated region
    $region34: #{scnn_block1_forward.4} parent=1 // pred_check
      _
    $region35: #{scnn_block1_forward.4} parent=1 // pred_check_branch
      %2025 = sbr.rel (0) target = $region37
    $region36: #{scnn_block1_forward.4} parent=1 // pred_region
      _
    $region37: #{scnn_block1_forward.4} parent=1 // pred_fallthru
      _
    // Predicated region
    $region38: #{scnn_block1_forward.4} parent=1 // pred_check
      _
    $region39: #{scnn_block1_forward.4} parent=1 // pred_check_branch
      %2027 = sbr.rel (0) target = $region41
    $region40: #{scnn_block1_forward.4} parent=1 // pred_region
      _
    $region41: #{scnn_block1_forward.4} parent=1 // pred_fallthru
      _
    // Predicated region
    $region42: #{scnn_block1_forward.4} parent=1 // pred_check
      _
    $region43: #{scnn_block1_forward.4} parent=1 // pred_check_branch
      %2029 = sbr.rel (0) target = $region45
    $region44: #{scnn_block1_forward.4} parent=1 // pred_region
      _
    $region45: #{scnn_block1_forward.4} parent=1 // pred_fallthru
      _
    // Predicated region
    $region46: #{scnn_block1_forward.4} parent=1 // pred_check
      _
    $region47: #{scnn_block1_forward.4} parent=1 // pred_check_branch
      %2031 = sbr.rel (0) target = $region49
    $region48: #{scnn_block1_forward.4} parent=1 // pred_region
      _
    $region49: #{scnn_block1_forward.4} parent=1 // pred_fallthru
      _
    %2032 = vsyncpa [#allocation4], 1
    %2033 = vsyncpa [#allocation6], 1

</llo_original>
